<compile_context>
chip_gen: v7x
topology: tpu7x:2x2x1
jax: 0.10.0
libtpu: 0.0.40
codegen_flags: <defaults>
</compile_context>

<pallas_src>
import functools

import jax
import jax.numpy as jnp
from jax import lax
from jax.experimental import pallas as pl
from jax.experimental.pallas import tpu as pltpu

DTYPE = jnp.bfloat16          # matmul operand dtype (accumulation stays f32)
CPAD = 128                    # channel padding -> lane-dense stores
VMEM_LIMIT = 32 * 1024 * 1024


def _round_up(n, m):
    return (n + m - 1) // m * m


# ---------------------------------------------------------------------------
# Pallas kernels
# ---------------------------------------------------------------------------
def _stable_sigmoid_f32(x):
    """sigmoid(x) without exp overflow; the divide lands on the EUP slot."""
    z = jnp.exp(jnp.where(x >= 0, -x, x))                 # exp(-|x|) in (0, 1]
    return jnp.where(x >= 0, 1.0, z) * pl.reciprocal(1.0 + z, approx=True)


def _matmul_bias_act_kernel(x_ref, w_ref, b_ref, o_ref, *, act):
    acc = jnp.dot(x_ref[...], w_ref[...], preferred_element_type=jnp.float32)
    acc = acc + b_ref[...].astype(jnp.float32)
    if act == "swish":
        acc = acc * _stable_sigmoid_f32(acc)
    elif act == "sigmoid":
        acc = jnp.clip(_stable_sigmoid_f32(acc), 0.0, 1.0)
    o_ref[...] = acc.astype(o_ref.dtype)


def matmul_bias_act(x, w, b, act="none", tm=256):
    """act(x @ w + b); x:(M,K), w:(K,N), b:(1,N) -> (M,N). Gridded over M."""
    M, K = x.shape
    _, N = w.shape
    tm = min(tm, _round_up(max(M, 8), 8))
    Mp = _round_up(M, tm)
    if Mp != M:
        x = jnp.pad(x, ((0, Mp - M), (0, 0)))
    out = pl.pallas_call(
        functools.partial(_matmul_bias_act_kernel, act=act),
        out_shape=jax.ShapeDtypeStruct((Mp, N), DTYPE),
        grid_spec=pltpu.PrefetchScalarGridSpec(
            num_scalar_prefetch=0,
            grid=(Mp // tm,),
            in_specs=[pl.BlockSpec((tm, K), lambda i: (i, 0)),
                      pl.BlockSpec((K, N), lambda i: (0, 0)),   # resident weight
                      pl.BlockSpec((1, N), lambda i: (0, 0))],  # resident bias
            out_specs=pl.BlockSpec((tm, N), lambda i: (i, 0)),
        ),
        compiler_params=pltpu.CompilerParams(
            dimension_semantics=("parallel",),
            vmem_limit_bytes=VMEM_LIMIT,
        ),
    )(x, w, b)
    return out if Mp == M else out[:M]


def _dual_linear_kernel(x_ref, w1_ref, b1_ref, w2_ref, b2_ref, o_ref):
    lat = jnp.dot(x_ref[...], w1_ref[...], preferred_element_type=jnp.float32)
    lat = (lat + b1_ref[...].astype(jnp.float32)).astype(x_ref.dtype)
    out = jnp.dot(lat, w2_ref[...], preferred_element_type=jnp.float32)
    out = out + b2_ref[...].astype(jnp.float32)
    o_ref[...] = out.astype(o_ref.dtype)


def dual_linear(x, w1, b1, w2, b2, tm=128):
    """Fused encoder-Linear -> decoder-Linear (latent stays in VMEM)."""
    M, K1 = x.shape
    _, N1 = w1.shape
    _, N2 = w2.shape
    tm = min(tm, _round_up(max(M, 8), 8))
    Mp = _round_up(M, tm)
    if Mp != M:
        x = jnp.pad(x, ((0, Mp - M), (0, 0)))
    out = pl.pallas_call(
        _dual_linear_kernel,
        out_shape=jax.ShapeDtypeStruct((Mp, N2), DTYPE),
        grid_spec=pltpu.PrefetchScalarGridSpec(
            num_scalar_prefetch=0,
            grid=(Mp // tm,),
            in_specs=[pl.BlockSpec((tm, K1), lambda i: (i, 0)),
                      pl.BlockSpec((K1, N1), lambda i: (0, 0)),
                      pl.BlockSpec((1, N1), lambda i: (0, 0)),
                      pl.BlockSpec((N1, N2), lambda i: (0, 0)),
                      pl.BlockSpec((1, N2), lambda i: (0, 0))],
            out_specs=pl.BlockSpec((tm, N2), lambda i: (i, 0)),
        ),
        compiler_params=pltpu.CompilerParams(
            dimension_semantics=("parallel",),
            vmem_limit_bytes=VMEM_LIMIT,
        ),
    )(x, w1, b1, w2, b2)
    return out if Mp == M else out[:M]


# ---------------------------------------------------------------------------
# XLA-side glue: im2col / depth-to-space (pure slicing, small tensors)
# ---------------------------------------------------------------------------
def im2col(xp, k, s):
    """xp: (B,H,W,C) padded NHWC -> (B*Ho*Wo, k*k*C); feature = (di*k+dj)*C+ci."""
    B, H, W, C = xp.shape
    Ho = (H - k) // s + 1
    Wo = (W - k) // s + 1
    cols = [xp[:, di:di + (Ho - 1) * s + 1:s, dj:dj + (Wo - 1) * s + 1:s, :]
            for di in range(k) for dj in range(k)]
    return jnp.concatenate(cols, axis=-1).reshape(B * Ho * Wo, k * k * C), Ho, Wo


def depth_to_space(o, H, W, cout):
    """o: (B, H+1, W+1, 4, cout) sub-pixel conv output -> (B, 2H, 2W, cout)."""
    y = jnp.zeros((o.shape[0], 2 * H, 2 * W, cout), o.dtype)
    for a in range(2):
        for b in range(2):
            y = y.at[:, a::2, b::2, :].set(o[:, a:a + H, b:b + W, 2 * a + b, :])
    return y


# ---------------------------------------------------------------------------
# Weight construction from PyTorch-shaped parameters
# ---------------------------------------------------------------------------
def conv_weight_to_mat(w):
    """Conv2d weight (Cout,Cin,k,k) -> (k*k*Cin, Cout), rows = (kh*k+kw)*Cin+ci."""
    return jnp.transpose(w, (2, 3, 1, 0)).reshape(-1, w.shape[0])


def conv_weight_padded(w, cin_pad, cout_pad):
    cout, cin, k, _ = w.shape
    m = conv_weight_to_mat(w).reshape(k * k, cin, cout)
    out = jnp.zeros((k * k, cin_pad, cout_pad), jnp.float32)
    return out.at[:, :cin, :cout].set(m).reshape(k * k * cin_pad, cout_pad)


# kernel tap used for (output parity a, 2x2 window offset dr):  kh = TAP[a][dr]
_SUBPIX_TAP = ((3, 1), (2, 0))


def convT_subpixel_weight(wt, cin_pad, cout_pad):
    """ConvTranspose2d(k=4,s=2,p=1) weight (Cin,Cout,4,4) -> weight of the
    equivalent stride-1 k=2 conv that emits 4 sub-pixel output groups.
    Rows: (dr*2+dc)*cin_pad + ci ; cols: (2a+b)*cout_pad + co."""
    cin, cout = wt.shape[0], wt.shape[1]
    w = jnp.zeros((2, 2, cin_pad, 2, 2, cout_pad), jnp.float32)
    for a in range(2):
        for b in range(2):
            for dr in range(2):
                for dc in range(2):
                    tap = wt[:, :, _SUBPIX_TAP[a][dr], _SUBPIX_TAP[b][dc]]
                    w = w.at[dr, dc, :cin, a, b, :cout].set(tap)
    return w.reshape(4 * cin_pad, 4 * cout_pad)


def fold_encoder_linear(w_el, b_el, c_real=64, hw=7):
    """Fold PyTorch NCHW .view() flatten order into the encoder Linear weight
    so the kernel consumes the channel-padded NHWC flatten directly."""
    b_dim = w_el.shape[0]
    n_lat = _round_up(b_dim, 128)
    wt = w_el.reshape(b_dim, c_real, hw, hw).transpose(2, 3, 1, 0)   # (h,w,c,d)
    w = jnp.zeros((hw, hw, CPAD, n_lat), jnp.float32)
    w = w.at[:, :, :c_real, :b_dim].set(wt).reshape(hw * hw * CPAD, n_lat)
    b = jnp.zeros((1, n_lat), jnp.float32).at[0, :b_dim].set(b_el)
    return w, b


def fold_decoder_linear(w_dl, b_dl, c_real=64, hw=7):
    """Decoder Linear emits channel-padded NHWC (7,7,128) order directly."""
    b_dim = w_dl.shape[1]
    k_lat = _round_up(b_dim, 128)
    wt = w_dl.reshape(c_real, hw, hw, b_dim).transpose(3, 1, 2, 0)   # (d,h,w,c)
    w = jnp.zeros((k_lat, hw, hw, CPAD), jnp.float32)
    w = w.at[:b_dim, :, :, :c_real].set(wt).reshape(k_lat, hw * hw * CPAD)
    bt = b_dl.reshape(c_real, hw, hw).transpose(1, 2, 0)             # (h,w,c)
    b = jnp.zeros((hw, hw, CPAD), jnp.float32).at[:, :, :c_real].set(bt)
    return w, b.reshape(1, -1)


def init_params(key, b_dim):
    ks = jax.random.split(key, 8)
    sc = 0.05
    tp = {  # PyTorch-shaped parameters (also used by the pure-JAX reference)
        "w_enc1": sc * jax.random.normal(ks[0], (32, 1, 4, 4), jnp.float32),
        "w_enc2": sc * jax.random.normal(ks[1], (64, 32, 4, 4), jnp.float32),
        "w_el":   sc * jax.random.normal(ks[2], (b_dim, 64 * 7 * 7), jnp.float32),
        "b_el":   sc * jax.random.normal(ks[3], (b_dim,), jnp.float32),
        "w_dl":   sc * jax.random.normal(ks[4], (64 * 7 * 7, b_dim), jnp.float32),
        "b_dl":   sc * jax.random.normal(ks[5], (64 * 7 * 7,), jnp.float32),
        "w_dec1": sc * jax.random.normal(ks[6], (64, 32, 4, 4), jnp.float32),
        "w_dec2": sc * jax.random.normal(ks[7], (32, 1, 4, 4), jnp.float32),
    }
    w_el, b_el = fold_encoder_linear(tp["w_el"], tp["b_el"])
    w_dl, b_dl = fold_decoder_linear(tp["w_dl"], tp["b_dl"])
    kp = {
        "w_c1": conv_weight_padded(tp["w_enc1"], 1, CPAD),          # (16, 128)
        "w_c2": conv_weight_padded(tp["w_enc2"], CPAD, CPAD),       # (2048, 128)
        "w_el": w_el, "b_el": b_el,                                 # (6272,128),(1,128)
        "w_dl": w_dl, "b_dl": b_dl,                                 # (128,6272),(1,6272)
        "w_d1": convT_subpixel_weight(tp["w_dec1"], CPAD, 32),      # (512, 128)
        "w_d2": convT_subpixel_weight(tp["w_dec2"], 32, 32),        # (128, 128)
        "b0":   jnp.zeros((1, CPAD), jnp.float32),
    }
    kp = jax.tree_util.tree_map(lambda a: a.astype(DTYPE), kp)
    return tp, kp


# ---------------------------------------------------------------------------
# Forward pass (Image_AE.forward)
# ---------------------------------------------------------------------------
def image_ae_forward(x_nchw, params):
    B = x_nchw.shape[0]
    x = jnp.transpose(x_nchw, (0, 2, 3, 1)).astype(DTYPE)            # (B,28,28,1)

    # encoder conv1: Conv2d(1->32, k4 s2 p1, no bias) + Swish (channels -> 128)
    p, ho, wo = im2col(jnp.pad(x, ((0, 0), (1, 1), (1, 1), (0, 0))), 4, 2)
    h = matmul_bias_act(p, params["w_c1"], params["b0"], act="swish")
    h = h.reshape(B, ho, wo, CPAD)                                   # (B,14,14,128)

    # encoder conv2: Conv2d(32->64, k4 s2 p1) + Swish
    p, ho, wo = im2col(jnp.pad(h, ((0, 0), (1, 1), (1, 1), (0, 0))), 4, 2)
    h = matmul_bias_act(p, params["w_c2"], params["b0"], act="swish")
    h = h.reshape(B, ho, wo, CPAD)                                   # (B,7,7,128)

    # encoder Linear -> decoder Linear, fused; NCHW .view() folded into weights
    h = dual_linear(h.reshape(B, ho * wo * CPAD),
                    params["w_el"], params["b_el"],
                    params["w_dl"], params["b_dl"])                  # (B, 6272)
    h = h.reshape(B, 7, 7, CPAD)

    # decoder ConvTranspose2d(64->32, k4 s2 p1) + Swish  (sub-pixel form)
    p, ho, wo = im2col(jnp.pad(h, ((0, 0), (1, 1), (1, 1), (0, 0))), 2, 1)
    o = matmul_bias_act(p, params["w_d1"], params["b0"], act="swish")  # (B*64,128)
    o = o.reshape(B, ho, wo, 4, 32)
    h = depth_to_space(o, 7, 7, 32)                                  # (B,14,14,32)

    # decoder ConvTranspose2d(32->1, k4 s2 p1) + Sigmoid (sub-pixel form)
    p, ho, wo = im2col(jnp.pad(h, ((0, 0), (1, 1), (1, 1), (0, 0))), 2, 1)
    o = matmul_bias_act(p, params["w_d2"], params["b0"], act="sigmoid")  # (B*225,128)
    o = o.reshape(B, ho, wo, 4, 32)[..., :1]
    y = depth_to_space(o, 14, 14, 1)                                 # (B,28,28,1)

    return jnp.transpose(y, (0, 3, 1, 2)).astype(jnp.float32)        # NCHW


# ---------------------------------------------------------------------------
# Pure-JAX reference (mirrors the PyTorch module) for a correctness check
# ---------------------------------------------------------------------------
def reference_forward(x, tp):
    swish = lambda v: v * jax.nn.sigmoid(v)
    dn = ("NCHW", "OIHW", "NCHW")
    h = swish(lax.conv_general_dilated(x, tp["w_enc1"], (2, 2),
                                       [(1, 1), (1, 1)], dimension_numbers=dn))
    h = swish(lax.conv_general_dilated(h, tp["w_enc2"], (2, 2),
                                       [(1, 1), (1, 1)], dimension_numbers=dn))
    b = h.reshape(h.shape[0], -1) @ tp["w_el"].T + tp["b_el"]
    h = (b @ tp["w_dl"].T + tp["b_dl"]).reshape(-1, 64, 7, 7)

    def convT(v, w):  # ConvTranspose2d(k=4, s=2, p=1, bias=False)
        wf = jnp.transpose(jnp.flip(w, (2, 3)), (1, 0, 2, 3))
        return lax.conv_general_dilated(v, wf, (1, 1), [(2, 2), (2, 2)],
                                        lhs_dilation=(2, 2), dimension_numbers=dn)

    h = swish(convT(h, tp["w_dec1"]))
    return jax.nn.sigmoid(convT(h, tp["w_dec2"]))


if __name__ == "__main__":
    B, b_dim = 2, 64
    key = jax.random.PRNGKey(0)
    k_x, k_p = jax.random.split(key)

    # Module geometry fixes spatial size at 28x28 (64*7*7 Linear).
    x = jax.random.uniform(k_x, (B, 1, 28, 28), jnp.float32)
    torch_params, kernel_params = init_params(k_p, b_dim)

    fwd = jax.jit(image_ae_forward)
    y = fwd(x, kernel_params)
    jax.block_until_ready(y)

    assert y.shape == (B, 1, 28, 28), y.shape
    assert bool(jnp.all(jnp.isfinite(y)))
    assert bool(jnp.all((y >= 0.0) & (y <= 1.0)))          # final Sigmoid range

    y_ref = reference_forward(x, torch_params)
    err = float(jnp.max(jnp.abs(y - y_ref)))
    assert err < 5e-2, f"max abs error vs reference: {err}"

    print("KERNEL_OK")
</pallas_src>

<mosaic_0001>
module attributes {stable_mosaic.version = 11 : i64} {
  func.func @_matmul_bias_act_kernel(%arg0: i32, %arg1: memref<256x16xbf16, #tpu.memory_space<vmem>>, %arg2: memref<16x128xbf16, #tpu.memory_space<vmem>>, %arg3: memref<1x128xbf16, #tpu.memory_space<vmem>>, %arg4: memref<256x128xbf16, #tpu.memory_space<vmem>>) attributes {dimension_semantics = [#tpu.dimension_semantics<parallel>], iteration_bounds = array<i64: 2>, scalar_prefetch = 0 : i64, scratch_operands = 0 : i64, tpu.core_type = #tpu.core_type<tc>, window_params = [{transform_indices = @transform_0, window_bounds = array<i64: 256, 16>}, {pipeline_mode = #tpu.pipeline_mode<synchronous>, transform_indices = @transform_1, window_bounds = array<i64: 16, 128>}, {pipeline_mode = #tpu.pipeline_mode<synchronous>, transform_indices = @transform_2, window_bounds = array<i64: 1, 128>}, {transform_indices = @transform_3, window_bounds = array<i64: 256, 128>}]} {
    %c0 = arith.constant 0 : index
    %c0_0 = arith.constant 0 : index
    %0 = vector.load %arg1[%c0, %c0_0] : memref<256x16xbf16, #tpu.memory_space<vmem>>, vector<256x16xbf16>
    %c0_1 = arith.constant 0 : index
    %c0_2 = arith.constant 0 : index
    %1 = vector.load %arg2[%c0_1, %c0_2] : memref<16x128xbf16, #tpu.memory_space<vmem>>, vector<16x128xbf16>
    %cst = arith.constant dense<0.000000e+00> : vector<256x128xf32>
    %2 = tpu.matmul %0, %1, %cst {dimension_numbers = #tpu.dot_dimension_numbers<[1], [0], [0], [1], [0, 0, 1, 1], [], []>} : vector<256x16xbf16>, vector<16x128xbf16>, vector<256x128xf32> -> vector<256x128xf32>
    %c0_3 = arith.constant 0 : index
    %c0_4 = arith.constant 0 : index
    %3 = vector.load %arg3[%c0_3, %c0_4] : memref<1x128xbf16, #tpu.memory_space<vmem>>, vector<1x128xbf16>
    %4 = arith.extf %3 : vector<1x128xbf16> to vector<1x128xf32>
    %5 = vector.broadcast %4 : vector<1x128xf32> to vector<256x128xf32>
    %6 = arith.addf %2, %5 : vector<256x128xf32>
    %cst_5 = arith.constant 0.000000e+00 : f32
    %7 = vector.broadcast %cst_5 : f32 to vector<256x128xf32>
    %8 = arith.cmpf oge, %6, %7 : vector<256x128xf32>
    %cst_6 = arith.constant 0.000000e+00 : f32
    %9 = vector.broadcast %cst_6 : f32 to vector<256x128xf32>
    %10 = arith.subf %9, %6 : vector<256x128xf32>
    %11 = arith.select %8, %10, %6 : vector<256x128xi1>, vector<256x128xf32>
    %12 = math.exp %11 : vector<256x128xf32>
    %cst_7 = arith.constant 0.000000e+00 : f32
    %13 = vector.broadcast %cst_7 : f32 to vector<256x128xf32>
    %14 = arith.cmpf oge, %6, %13 : vector<256x128xf32>
    %cst_8 = arith.constant 1.000000e+00 : f32
    %15 = vector.broadcast %cst_8 : f32 to vector<256x128xf32>
    %16 = arith.select %14, %15, %12 : vector<256x128xi1>, vector<256x128xf32>
    %cst_9 = arith.constant 1.000000e+00 : f32
    %17 = vector.broadcast %cst_9 : f32 to vector<256x128xf32>
    %18 = arith.addf %17, %12 : vector<256x128xf32>
    %19 = tpu.reciprocal %18 {approx = true} : vector<256x128xf32> -> vector<256x128xf32>
    %20 = arith.mulf %16, %19 : vector<256x128xf32>
    %21 = arith.mulf %6, %20 : vector<256x128xf32>
    %22 = arith.truncf %21 : vector<256x128xf32> to vector<256x128xbf16>
    %c0_10 = arith.constant 0 : index
    %c0_11 = arith.constant 0 : index
    %23 = vector.load %arg4[%c0_10, %c0_11] : memref<256x128xbf16, #tpu.memory_space<vmem>>, vector<256x128xbf16>
    tpu.vector_store %arg4[%c0_10, %c0_11], %22 {strides = array<i32>} : memref<256x128xbf16, #tpu.memory_space<vmem>>, vector<256x128xbf16>,
    return
  }
  func.func @transform_0(%arg0: i32) -> (i32, i32) {
    %c0_i32 = arith.constant 0 : i32
    %c0_i32_0 = arith.constant 0 : i32
    return %arg0, %c0_i32 : i32, i32
  }
  func.func @transform_1(%arg0: i32) -> (i32, i32) {
    %c0_i32 = arith.constant 0 : i32
    %c0_i32_0 = arith.constant 0 : i32
    %c0_i32_1 = arith.constant 0 : i32
    return %c0_i32, %c0_i32_0 : i32, i32
  }
  func.func @transform_2(%arg0: i32) -> (i32, i32) {
    %c0_i32 = arith.constant 0 : i32
    %c0_i32_0 = arith.constant 0 : i32
    %c0_i32_1 = arith.constant 0 : i32
    return %c0_i32, %c0_i32_0 : i32, i32
  }
  func.func @transform_3(%arg0: i32) -> (i32, i32) {
    %c0_i32 = arith.constant 0 : i32
    %c0_i32_0 = arith.constant 0 : i32
    return %arg0, %c0_i32 : i32, i32
  }
}

module attributes {stable_mosaic.version = 11 : i64} {
  func.func @_matmul_bias_act_kernel(%arg0: i32, %arg1: memref<104x2048xbf16, #tpu.memory_space<vmem>>, %arg2: memref<2048x128xbf16, #tpu.memory_space<vmem>>, %arg3: memref<1x128xbf16, #tpu.memory_space<vmem>>, %arg4: memref<104x128xbf16, #tpu.memory_space<vmem>>) attributes {dimension_semantics = [#tpu.dimension_semantics<parallel>], iteration_bounds = array<i64: 1>, scalar_prefetch = 0 : i64, scratch_operands = 0 : i64, tpu.core_type = #tpu.core_type<tc>, window_params = [{transform_indices = @transform_0, window_bounds = array<i64: 104, 2048>}, {pipeline_mode = #tpu.pipeline_mode<synchronous>, transform_indices = @transform_1, window_bounds = array<i64: 2048, 128>}, {pipeline_mode = #tpu.pipeline_mode<synchronous>, transform_indices = @transform_2, window_bounds = array<i64: 1, 128>}, {transform_indices = @transform_3, window_bounds = array<i64: 104, 128>}]} {
    %c0 = arith.constant 0 : index
    %c0_0 = arith.constant 0 : index
    %0 = vector.load %arg1[%c0, %c0_0] : memref<104x2048xbf16, #tpu.memory_space<vmem>>, vector<104x2048xbf16>
    %c0_1 = arith.constant 0 : index
    %c0_2 = arith.constant 0 : index
    %1 = vector.load %arg2[%c0_1, %c0_2] : memref<2048x128xbf16, #tpu.memory_space<vmem>>, vector<2048x128xbf16>
    %cst = arith.constant dense<0.000000e+00> : vector<104x128xf32>
    %2 = tpu.matmul %0, %1, %cst {dimension_numbers = #tpu.dot_dimension_numbers<[1], [0], [0], [1], [0, 0, 1, 1], [], []>} : vector<104x2048xbf16>, vector<2048x128xbf16>, vector<104x128xf32> -> vector<104x128xf32>
    %c0_3 = arith.constant 0 : index
    %c0_4 = arith.constant 0 : index
    %3 = vector.load %arg3[%c0_3, %c0_4] : memref<1x128xbf16, #tpu.memory_space<vmem>>, vector<1x128xbf16>
    %4 = arith.extf %3 : vector<1x128xbf16> to vector<1x128xf32>
    %5 = vector.broadcast %4 : vector<1x128xf32> to vector<104x128xf32>
    %6 = arith.addf %2, %5 : vector<104x128xf32>
    %cst_5 = arith.constant 0.000000e+00 : f32
    %7 = vector.broadcast %cst_5 : f32 to vector<104x128xf32>
    %8 = arith.cmpf oge, %6, %7 : vector<104x128xf32>
    %cst_6 = arith.constant 0.000000e+00 : f32
    %9 = vector.broadcast %cst_6 : f32 to vector<104x128xf32>
    %10 = arith.subf %9, %6 : vector<104x128xf32>
    %11 = arith.select %8, %10, %6 : vector<104x128xi1>, vector<104x128xf32>
    %12 = math.exp %11 : vector<104x128xf32>
    %cst_7 = arith.constant 0.000000e+00 : f32
    %13 = vector.broadcast %cst_7 : f32 to vector<104x128xf32>
    %14 = arith.cmpf oge, %6, %13 : vector<104x128xf32>
    %cst_8 = arith.constant 1.000000e+00 : f32
    %15 = vector.broadcast %cst_8 : f32 to vector<104x128xf32>
    %16 = arith.select %14, %15, %12 : vector<104x128xi1>, vector<104x128xf32>
    %cst_9 = arith.constant 1.000000e+00 : f32
    %17 = vector.broadcast %cst_9 : f32 to vector<104x128xf32>
    %18 = arith.addf %17, %12 : vector<104x128xf32>
    %19 = tpu.reciprocal %18 {approx = true} : vector<104x128xf32> -> vector<104x128xf32>
    %20 = arith.mulf %16, %19 : vector<104x128xf32>
    %21 = arith.mulf %6, %20 : vector<104x128xf32>
    %22 = arith.truncf %21 : vector<104x128xf32> to vector<104x128xbf16>
    %c0_10 = arith.constant 0 : index
    %c0_11 = arith.constant 0 : index
    %23 = vector.load %arg4[%c0_10, %c0_11] : memref<104x128xbf16, #tpu.memory_space<vmem>>, vector<104x128xbf16>
    tpu.vector_store %arg4[%c0_10, %c0_11], %22 {strides = array<i32>} : memref<104x128xbf16, #tpu.memory_space<vmem>>, vector<104x128xbf16>,
    return
  }
  func.func @transform_0(%arg0: i32) -> (i32, i32) {
    %c0_i32 = arith.constant 0 : i32
    %c0_i32_0 = arith.constant 0 : i32
    return %arg0, %c0_i32 : i32, i32
  }
  func.func @transform_1(%arg0: i32) -> (i32, i32) {
    %c0_i32 = arith.constant 0 : i32
    %c0_i32_0 = arith.constant 0 : i32
    %c0_i32_1 = arith.constant 0 : i32
    return %c0_i32, %c0_i32_0 : i32, i32
  }
  func.func @transform_2(%arg0: i32) -> (i32, i32) {
    %c0_i32 = arith.constant 0 : i32
    %c0_i32_0 = arith.constant 0 : i32
    %c0_i32_1 = arith.constant 0 : i32
    return %c0_i32, %c0_i32_0 : i32, i32
  }
  func.func @transform_3(%arg0: i32) -> (i32, i32) {
    %c0_i32 = arith.constant 0 : i32
    %c0_i32_0 = arith.constant 0 : i32
    return %arg0, %c0_i32 : i32, i32
  }
}

module attributes {stable_mosaic.version = 11 : i64} {
  func.func @_dual_linear_kernel(%arg0: i32, %arg1: memref<8x6272xbf16, #tpu.memory_space<vmem>>, %arg2: memref<6272x128xbf16, #tpu.memory_space<vmem>>, %arg3: memref<1x128xbf16, #tpu.memory_space<vmem>>, %arg4: memref<128x6272xbf16, #tpu.memory_space<vmem>>, %arg5: memref<1x6272xbf16, #tpu.memory_space<vmem>>, %arg6: memref<8x6272xbf16, #tpu.memory_space<vmem>>) attributes {dimension_semantics = [#tpu.dimension_semantics<parallel>], iteration_bounds = array<i64: 1>, scalar_prefetch = 0 : i64, scratch_operands = 0 : i64, tpu.core_type = #tpu.core_type<tc>, window_params = [{transform_indices = @transform_0, window_bounds = array<i64: 8, 6272>}, {pipeline_mode = #tpu.pipeline_mode<synchronous>, transform_indices = @transform_1, window_bounds = array<i64: 6272, 128>}, {pipeline_mode = #tpu.pipeline_mode<synchronous>, transform_indices = @transform_2, window_bounds = array<i64: 1, 128>}, {pipeline_mode = #tpu.pipeline_mode<synchronous>, transform_indices = @transform_3, window_bounds = array<i64: 128, 6272>}, {pipeline_mode = #tpu.pipeline_mode<synchronous>, transform_indices = @transform_4, window_bounds = array<i64: 1, 6272>}, {transform_indices = @transform_5, window_bounds = array<i64: 8, 6272>}]} {
    %c0 = arith.constant 0 : index
    %c0_0 = arith.constant 0 : index
    %0 = vector.load %arg1[%c0, %c0_0] : memref<8x6272xbf16, #tpu.memory_space<vmem>>, vector<8x6272xbf16>
    %c0_1 = arith.constant 0 : index
    %c0_2 = arith.constant 0 : index
    %1 = vector.load %arg2[%c0_1, %c0_2] : memref<6272x128xbf16, #tpu.memory_space<vmem>>, vector<6272x128xbf16>
    %cst = arith.constant dense<0.000000e+00> : vector<8x128xf32>
    %2 = tpu.matmul %0, %1, %cst {dimension_numbers = #tpu.dot_dimension_numbers<[1], [0], [0], [1], [0, 0, 1, 1], [], []>} : vector<8x6272xbf16>, vector<6272x128xbf16>, vector<8x128xf32> -> vector<8x128xf32>
    %c0_3 = arith.constant 0 : index
    %c0_4 = arith.constant 0 : index
    %3 = vector.load %arg3[%c0_3, %c0_4] : memref<1x128xbf16, #tpu.memory_space<vmem>>, vector<1x128xbf16>
    %4 = arith.extf %3 : vector<1x128xbf16> to vector<1x128xf32>
    %5 = vector.broadcast %4 : vector<1x128xf32> to vector<8x128xf32>
    %6 = arith.addf %2, %5 : vector<8x128xf32>
    %7 = arith.truncf %6 : vector<8x128xf32> to vector<8x128xbf16>
    %c0_5 = arith.constant 0 : index
    %c0_6 = arith.constant 0 : index
    %8 = vector.load %arg4[%c0_5, %c0_6] : memref<128x6272xbf16, #tpu.memory_space<vmem>>, vector<128x6272xbf16>
    %cst_7 = arith.constant dense<0.000000e+00> : vector<8x6272xf32>
    %9 = tpu.matmul %7, %8, %cst_7 {dimension_numbers = #tpu.dot_dimension_numbers<[1], [0], [0], [1], [0, 0, 1, 1], [], []>} : vector<8x128xbf16>, vector<128x6272xbf16>, vector<8x6272xf32> -> vector<8x6272xf32>
    %c0_8 = arith.constant 0 : index
    %c0_9 = arith.constant 0 : index
    %10 = vector.load %arg5[%c0_8, %c0_9] : memref<1x6272xbf16, #tpu.memory_space<vmem>>, vector<1x6272xbf16>
    %11 = arith.extf %10 : vector<1x6272xbf16> to vector<1x6272xf32>
    %12 = vector.broadcast %11 : vector<1x6272xf32> to vector<8x6272xf32>
    %13 = arith.addf %9, %12 : vector<8x6272xf32>
    %14 = arith.truncf %13 : vector<8x6272xf32> to vector<8x6272xbf16>
    %c0_10 = arith.constant 0 : index
    %c0_11 = arith.constant 0 : index
    %15 = vector.load %arg6[%c0_10, %c0_11] : memref<8x6272xbf16, #tpu.memory_space<vmem>>, vector<8x6272xbf16>
    tpu.vector_store %arg6[%c0_10, %c0_11], %14 {strides = array<i32>} : memref<8x6272xbf16, #tpu.memory_space<vmem>>, vector<8x6272xbf16>,
    return
  }
  func.func @transform_0(%arg0: i32) -> (i32, i32) {
    %c0_i32 = arith.constant 0 : i32
    %c0_i32_0 = arith.constant 0 : i32
    return %arg0, %c0_i32 : i32, i32
  }
  func.func @transform_1(%arg0: i32) -> (i32, i32) {
    %c0_i32 = arith.constant 0 : i32
    %c0_i32_0 = arith.constant 0 : i32
    %c0_i32_1 = arith.constant 0 : i32
    return %c0_i32, %c0_i32_0 : i32, i32
  }
  func.func @transform_2(%arg0: i32) -> (i32, i32) {
    %c0_i32 = arith.constant 0 : i32
    %c0_i32_0 = arith.constant 0 : i32
    %c0_i32_1 = arith.constant 0 : i32
    return %c0_i32, %c0_i32_0 : i32, i32
  }
  func.func @transform_3(%arg0: i32) -> (i32, i32) {
    %c0_i32 = arith.constant 0 : i32
    %c0_i32_0 = arith.constant 0 : i32
    %c0_i32_1 = arith.constant 0 : i32
    return %c0_i32, %c0_i32_0 : i32, i32
  }
  func.func @transform_4(%arg0: i32) -> (i32, i32) {
    %c0_i32 = arith.constant 0 : i32
    %c0_i32_0 = arith.constant 0 : i32
    %c0_i32_1 = arith.constant 0 : i32
    return %c0_i32, %c0_i32_0 : i32, i32
  }
  func.func @transform_5(%arg0: i32) -> (i32, i32) {
    %c0_i32 = arith.constant 0 : i32
    %c0_i32_0 = arith.constant 0 : i32
    return %arg0, %c0_i32 : i32, i32
  }
}

module attributes {stable_mosaic.version = 11 : i64} {
  func.func @_matmul_bias_act_kernel(%arg0: i32, %arg1: memref<128x512xbf16, #tpu.memory_space<vmem>>, %arg2: memref<512x128xbf16, #tpu.memory_space<vmem>>, %arg3: memref<1x128xbf16, #tpu.memory_space<vmem>>, %arg4: memref<128x128xbf16, #tpu.memory_space<vmem>>) attributes {dimension_semantics = [#tpu.dimension_semantics<parallel>], iteration_bounds = array<i64: 1>, scalar_prefetch = 0 : i64, scratch_operands = 0 : i64, tpu.core_type = #tpu.core_type<tc>, window_params = [{transform_indices = @transform_0, window_bounds = array<i64: 128, 512>}, {pipeline_mode = #tpu.pipeline_mode<synchronous>, transform_indices = @transform_1, window_bounds = array<i64: 512, 128>}, {pipeline_mode = #tpu.pipeline_mode<synchronous>, transform_indices = @transform_2, window_bounds = array<i64: 1, 128>}, {transform_indices = @transform_3, window_bounds = array<i64: 128, 128>}]} {
    %c0 = arith.constant 0 : index
    %c0_0 = arith.constant 0 : index
    %0 = vector.load %arg1[%c0, %c0_0] : memref<128x512xbf16, #tpu.memory_space<vmem>>, vector<128x512xbf16>
    %c0_1 = arith.constant 0 : index
    %c0_2 = arith.constant 0 : index
    %1 = vector.load %arg2[%c0_1, %c0_2] : memref<512x128xbf16, #tpu.memory_space<vmem>>, vector<512x128xbf16>
    %cst = arith.constant dense<0.000000e+00> : vector<128x128xf32>
    %2 = tpu.matmul %0, %1, %cst {dimension_numbers = #tpu.dot_dimension_numbers<[1], [0], [0], [1], [0, 0, 1, 1], [], []>} : vector<128x512xbf16>, vector<512x128xbf16>, vector<128x128xf32> -> vector<128x128xf32>
    %c0_3 = arith.constant 0 : index
    %c0_4 = arith.constant 0 : index
    %3 = vector.load %arg3[%c0_3, %c0_4] : memref<1x128xbf16, #tpu.memory_space<vmem>>, vector<1x128xbf16>
    %4 = arith.extf %3 : vector<1x128xbf16> to vector<1x128xf32>
    %5 = vector.broadcast %4 : vector<1x128xf32> to vector<128x128xf32>
    %6 = arith.addf %2, %5 : vector<128x128xf32>
    %cst_5 = arith.constant 0.000000e+00 : f32
    %7 = vector.broadcast %cst_5 : f32 to vector<128x128xf32>
    %8 = arith.cmpf oge, %6, %7 : vector<128x128xf32>
    %cst_6 = arith.constant 0.000000e+00 : f32
    %9 = vector.broadcast %cst_6 : f32 to vector<128x128xf32>
    %10 = arith.subf %9, %6 : vector<128x128xf32>
    %11 = arith.select %8, %10, %6 : vector<128x128xi1>, vector<128x128xf32>
    %12 = math.exp %11 : vector<128x128xf32>
    %cst_7 = arith.constant 0.000000e+00 : f32
    %13 = vector.broadcast %cst_7 : f32 to vector<128x128xf32>
    %14 = arith.cmpf oge, %6, %13 : vector<128x128xf32>
    %cst_8 = arith.constant 1.000000e+00 : f32
    %15 = vector.broadcast %cst_8 : f32 to vector<128x128xf32>
    %16 = arith.select %14, %15, %12 : vector<128x128xi1>, vector<128x128xf32>
    %cst_9 = arith.constant 1.000000e+00 : f32
    %17 = vector.broadcast %cst_9 : f32 to vector<128x128xf32>
    %18 = arith.addf %17, %12 : vector<128x128xf32>
    %19 = tpu.reciprocal %18 {approx = true} : vector<128x128xf32> -> vector<128x128xf32>
    %20 = arith.mulf %16, %19 : vector<128x128xf32>
    %21 = arith.mulf %6, %20 : vector<128x128xf32>
    %22 = arith.truncf %21 : vector<128x128xf32> to vector<128x128xbf16>
    %c0_10 = arith.constant 0 : index
    %c0_11 = arith.constant 0 : index
    %23 = vector.load %arg4[%c0_10, %c0_11] : memref<128x128xbf16, #tpu.memory_space<vmem>>, vector<128x128xbf16>
    tpu.vector_store %arg4[%c0_10, %c0_11], %22 {strides = array<i32>} : memref<128x128xbf16, #tpu.memory_space<vmem>>, vector<128x128xbf16>,
    return
  }
  func.func @transform_0(%arg0: i32) -> (i32, i32) {
    %c0_i32 = arith.constant 0 : i32
    %c0_i32_0 = arith.constant 0 : i32
    return %arg0, %c0_i32 : i32, i32
  }
  func.func @transform_1(%arg0: i32) -> (i32, i32) {
    %c0_i32 = arith.constant 0 : i32
    %c0_i32_0 = arith.constant 0 : i32
    %c0_i32_1 = arith.constant 0 : i32
    return %c0_i32, %c0_i32_0 : i32, i32
  }
  func.func @transform_2(%arg0: i32) -> (i32, i32) {
    %c0_i32 = arith.constant 0 : i32
    %c0_i32_0 = arith.constant 0 : i32
    %c0_i32_1 = arith.constant 0 : i32
    return %c0_i32, %c0_i32_0 : i32, i32
  }
  func.func @transform_3(%arg0: i32) -> (i32, i32) {
    %c0_i32 = arith.constant 0 : i32
    %c0_i32_0 = arith.constant 0 : i32
    return %arg0, %c0_i32 : i32, i32
  }
}

module attributes {stable_mosaic.version = 11 : i64} {
  func.func @_matmul_bias_act_kernel(%arg0: i32, %arg1: memref<256x128xbf16, #tpu.memory_space<vmem>>, %arg2: memref<128x128xbf16, #tpu.memory_space<vmem>>, %arg3: memref<1x128xbf16, #tpu.memory_space<vmem>>, %arg4: memref<256x128xbf16, #tpu.memory_space<vmem>>) attributes {dimension_semantics = [#tpu.dimension_semantics<parallel>], iteration_bounds = array<i64: 2>, scalar_prefetch = 0 : i64, scratch_operands = 0 : i64, tpu.core_type = #tpu.core_type<tc>, window_params = [{transform_indices = @transform_0, window_bounds = array<i64: 256, 128>}, {pipeline_mode = #tpu.pipeline_mode<synchronous>, transform_indices = @transform_1, window_bounds = array<i64: 128, 128>}, {pipeline_mode = #tpu.pipeline_mode<synchronous>, transform_indices = @transform_2, window_bounds = array<i64: 1, 128>}, {transform_indices = @transform_3, window_bounds = array<i64: 256, 128>}]} {
    %c0 = arith.constant 0 : index
    %c0_0 = arith.constant 0 : index
    %0 = vector.load %arg1[%c0, %c0_0] : memref<256x128xbf16, #tpu.memory_space<vmem>>, vector<256x128xbf16>
    %c0_1 = arith.constant 0 : index
    %c0_2 = arith.constant 0 : index
    %1 = vector.load %arg2[%c0_1, %c0_2] : memref<128x128xbf16, #tpu.memory_space<vmem>>, vector<128x128xbf16>
    %cst = arith.constant dense<0.000000e+00> : vector<256x128xf32>
    %2 = tpu.matmul %0, %1, %cst {dimension_numbers = #tpu.dot_dimension_numbers<[1], [0], [0], [1], [0, 0, 1, 1], [], []>} : vector<256x128xbf16>, vector<128x128xbf16>, vector<256x128xf32> -> vector<256x128xf32>
    %c0_3 = arith.constant 0 : index
    %c0_4 = arith.constant 0 : index
    %3 = vector.load %arg3[%c0_3, %c0_4] : memref<1x128xbf16, #tpu.memory_space<vmem>>, vector<1x128xbf16>
    %4 = arith.extf %3 : vector<1x128xbf16> to vector<1x128xf32>
    %5 = vector.broadcast %4 : vector<1x128xf32> to vector<256x128xf32>
    %6 = arith.addf %2, %5 : vector<256x128xf32>
    %cst_5 = arith.constant 0.000000e+00 : f32
    %7 = vector.broadcast %cst_5 : f32 to vector<256x128xf32>
    %8 = arith.cmpf oge, %6, %7 : vector<256x128xf32>
    %cst_6 = arith.constant 0.000000e+00 : f32
    %9 = vector.broadcast %cst_6 : f32 to vector<256x128xf32>
    %10 = arith.subf %9, %6 : vector<256x128xf32>
    %11 = arith.select %8, %10, %6 : vector<256x128xi1>, vector<256x128xf32>
    %12 = math.exp %11 : vector<256x128xf32>
    %cst_7 = arith.constant 0.000000e+00 : f32
    %13 = vector.broadcast %cst_7 : f32 to vector<256x128xf32>
    %14 = arith.cmpf oge, %6, %13 : vector<256x128xf32>
    %cst_8 = arith.constant 1.000000e+00 : f32
    %15 = vector.broadcast %cst_8 : f32 to vector<256x128xf32>
    %16 = arith.select %14, %15, %12 : vector<256x128xi1>, vector<256x128xf32>
    %cst_9 = arith.constant 1.000000e+00 : f32
    %17 = vector.broadcast %cst_9 : f32 to vector<256x128xf32>
    %18 = arith.addf %17, %12 : vector<256x128xf32>
    %19 = tpu.reciprocal %18 {approx = true} : vector<256x128xf32> -> vector<256x128xf32>
    %20 = arith.mulf %16, %19 : vector<256x128xf32>
    %cst_10 = arith.constant 0.000000e+00 : f32
    %cst_11 = arith.constant 1.000000e+00 : f32
    %21 = vector.broadcast %cst_10 : f32 to vector<256x128xf32>
    %22 = arith.maximumf %21, %20 : vector<256x128xf32>
    %23 = vector.broadcast %cst_11 : f32 to vector<256x128xf32>
    %24 = arith.minimumf %23, %22 : vector<256x128xf32>
    %25 = arith.truncf %24 : vector<256x128xf32> to vector<256x128xbf16>
    %c0_12 = arith.constant 0 : index
    %c0_13 = arith.constant 0 : index
    %26 = vector.load %arg4[%c0_12, %c0_13] : memref<256x128xbf16, #tpu.memory_space<vmem>>, vector<256x128xbf16>
    tpu.vector_store %arg4[%c0_12, %c0_13], %25 {strides = array<i32>} : memref<256x128xbf16, #tpu.memory_space<vmem>>, vector<256x128xbf16>,
    return
  }
  func.func @transform_0(%arg0: i32) -> (i32, i32) {
    %c0_i32 = arith.constant 0 : i32
    %c0_i32_0 = arith.constant 0 : i32
    return %arg0, %c0_i32 : i32, i32
  }
  func.func @transform_1(%arg0: i32) -> (i32, i32) {
    %c0_i32 = arith.constant 0 : i32
    %c0_i32_0 = arith.constant 0 : i32
    %c0_i32_1 = arith.constant 0 : i32
    return %c0_i32, %c0_i32_0 : i32, i32
  }
  func.func @transform_2(%arg0: i32) -> (i32, i32) {
    %c0_i32 = arith.constant 0 : i32
    %c0_i32_0 = arith.constant 0 : i32
    %c0_i32_1 = arith.constant 0 : i32
    return %c0_i32, %c0_i32_0 : i32, i32
  }
  func.func @transform_3(%arg0: i32) -> (i32, i32) {
    %c0_i32 = arith.constant 0 : i32
    %c0_i32_0 = arith.constant 0 : i32
    return %arg0, %c0_i32 : i32, i32
  }
}

</mosaic_0001>

<llo_original>
// kernel: image_ae_forward.5
$region0: #{image_ae_forward.5}
  #allocation0 [shape = 'u32[]', space=smem, size = 0x4, offset = 0x4, fixed_abs, tag = 'smem constant byte address 0x4 - core index']
  #allocation1 [shape = 'u32[144,128]{1,0:T(1,128)}', space=vmem, size = 0x12000, scoped, tag = 'internal scratch']
  %s0 = inlined_call_operand.vmem [shape: bf16[512,16], index: 0, kind: input, shape index: {}]
  %s1 = inlined_call_operand.hbm [shape: bf16[16,128], index: 1, kind: input, shape index: {}]
  %s2 = inlined_call_operand.hbm [shape: bf16[1,128], index: 2, kind: input, shape index: {}]
  %s3 = inlined_call_operand.vmem [shape: bf16[512,128], index: 3, kind: output, shape index: {}]
  %s4 = sld [smem:[#allocation0]]
  $region53: #{image_ae_forward.5} parent=0
    _
  %s6 = ssub.s32 1, %s4
  %s7 = scalar_select 0, %s6, %s4
  $region1: #{image_ae_forward.5} parent=0
    #allocation2 [shape = 'u8[4096]{0}', space=vmem, size = 0x1000, scoped, tag = 'input window, operand 1, single buffered']
    #allocation3 [shape = 's32[2]{0}', space=sflag, size = 0x8, scoped, tag = 'scoped memory for image_ae_forward.5']
    #allocation4 [shape = 'u8[512]{0}', space=vmem, size = 0x400, scoped, tag = 'input window, operand 2, single buffered']
    #allocation5 [shape = 's32[1]{0}', space=sflag, size = 0x4, scoped, tag = 'scoped memory for image_ae_forward.5']
    %8 = vsyncpa [#allocation3], 0
    %9 = vsyncpa [#allocation5], 0
    loop: start=0, step=1, limit=4
    $region2: #{image_ae_forward.5} parent=1 // loop_pre_header
      _
    $region3: #{image_ae_forward.5} parent=1 // loop_header
      %s11 = sphi 0, %s15
      %p12 = scmp.ge.s32.totalorder %s11, 4
      %s21 = sphi 0, %s23
      %s24 = sphi 0, %s21
      %s25 = sphi 0, %s24
      %s41 = sphi 0, %s25
      %s45 = sphi 0, %s45
      %s47 = sphi 0, %s45
      %s48 = sphi 0, %s47
      %s62 = sphi 0, %s48
      %s66 = sphi 0, %s66
      %s68 = sphi 0, %s66
      %s69 = sphi 0, %s68
      %s83 = sphi 0, %s69
      %s89 = sphi 0, %s91
      %s92 = sphi 0, %s89
      %s93 = sphi 0, %s92
      %s109 = sphi 0, %s93
    $region4: #{image_ae_forward.5} parent=1 // loop_header_branch
      %14 = sbr.rel (%p12) target = $region8
    $region5: #{image_ae_forward.5} parent=1 // loop_body
      %s16 = ssub.s32 %s11, 1
      %s17 = ssub.s32 %s11, 2
      %s18 = sadd.s32 %s11, 1
      %s19 = ssub.s32 %s11, %s18
      %p20 = scmp.eq.s32.totalorder %s19, 0
      %s22 = sadd.s32 %s21, 1
      %s23 = scalar_select %p20, %s21, %s22
      %p26 = pneg %p20
      %p27 = scmp.eq.s32.totalorder %s11, 1
      %p28 = por %p26, %p27
      %p29 = scmp.ne.s32.totalorder %s21, %s24
      %p30 = scmp.eq.s32.totalorder %s11, 0
      %p31 = por %p29, %p30
      %p32 = scmp.ne.s32.totalorder %s21, %s24
      %p33 = scmp.eq.s32.totalorder %s16, 1
      %p34 = por %p32, %p33
      %p35 = scmp.ne.s32.totalorder %s24, %s25
      %p36 = scmp.eq.s32.totalorder %s16, 0
      %p37 = por %p35, %p36
      %p38 = scmp.ne.s32.totalorder %s24, %s25
      %p39 = scmp.eq.s32.totalorder %s17, 1
      %p40 = por %p38, %p39
      %p42 = scmp.ne.s32.totalorder %s25, %s41
      %p43 = scmp.eq.s32.totalorder %s17, 0
      %p44 = por %p42, %p43
      %s46 = sadd.s32 %s45, 1
      %p49 = scmp.eq.s32.totalorder %s11, 1
      %p50 = scmp.ne.s32.totalorder %s45, %s47
      %p51 = scmp.eq.s32.totalorder %s11, 0
      %p52 = por %p50, %p51
      %p53 = scmp.ne.s32.totalorder %s45, %s47
      %p54 = scmp.eq.s32.totalorder %s16, 1
      %p55 = por %p53, %p54
      %p56 = scmp.ne.s32.totalorder %s47, %s48
      %p57 = scmp.eq.s32.totalorder %s16, 0
      %p58 = por %p56, %p57
      %p59 = scmp.ne.s32.totalorder %s47, %s48
      %p60 = scmp.eq.s32.totalorder %s17, 1
      %p61 = por %p59, %p60
      %p63 = scmp.ne.s32.totalorder %s48, %s62
      %p64 = scmp.eq.s32.totalorder %s17, 0
      %p65 = por %p63, %p64
      %s67 = sadd.s32 %s66, 1
      %p70 = scmp.eq.s32.totalorder %s11, 1
      %p71 = scmp.ne.s32.totalorder %s66, %s68
      %p72 = scmp.eq.s32.totalorder %s11, 0
      %p73 = por %p71, %p72
      %p74 = scmp.ne.s32.totalorder %s66, %s68
      %p75 = scmp.eq.s32.totalorder %s16, 1
      %p76 = por %p74, %p75
      %p77 = scmp.ne.s32.totalorder %s68, %s69
      %p78 = scmp.eq.s32.totalorder %s16, 0
      %p79 = por %p77, %p78
      %p80 = scmp.ne.s32.totalorder %s68, %s69
      %p81 = scmp.eq.s32.totalorder %s17, 1
      %p82 = por %p80, %p81
      %p84 = scmp.ne.s32.totalorder %s69, %s83
      %p85 = scmp.eq.s32.totalorder %s17, 0
      %p86 = por %p84, %p85
      %s87 = ssub.s32 %s11, %s18
      %p88 = scmp.eq.s32.totalorder %s87, 0
      %s90 = sadd.s32 %s89, 1
      %s91 = scalar_select %p88, %s89, %s90
      %p94 = pneg %p88
      %p95 = scmp.eq.s32.totalorder %s11, 1
      %p96 = por %p94, %p95
      %p97 = scmp.ne.s32.totalorder %s89, %s92
      %p98 = scmp.eq.s32.totalorder %s11, 0
      %p99 = por %p97, %p98
      %p100 = scmp.ne.s32.totalorder %s89, %s92
      %p101 = scmp.eq.s32.totalorder %s16, 1
      %p102 = por %p100, %p101
      %p103 = scmp.ne.s32.totalorder %s92, %s93
      %p104 = scmp.eq.s32.totalorder %s16, 0
      %p105 = por %p103, %p104
      %p106 = scmp.ne.s32.totalorder %s92, %s93
      %p107 = scmp.eq.s32.totalorder %s17, 1
      %p108 = por %p106, %p107
      %p110 = scmp.ne.s32.totalorder %s93, %s109
      %p111 = scmp.eq.s32.totalorder %s17, 0
      %p112 = por %p110, %p111
      %p113 = scmp.le.s32.totalorder 1, %s11
      %p114 = scmp.lt.s32.totalorder %s11, 3
      %p115 = pnand %p113, %p114
      %p116 = pneg %p115
      // Predicated region
      $region9: #{image_ae_forward.5} parent=5 // pred_check
        _
      $region10: #{image_ae_forward.5} parent=5 // pred_check_branch
        %118 = sbr.rel (%p115) target = $region12
      $region11: #{image_ae_forward.5} parent=5 // pred_region
        %s119 = ssub.s32 %s11, 1
        // Predicated region
        $region13: #{image_ae_forward.5} parent=11 // pred_check
          %p120 = pneg %p58
        $region14: #{image_ae_forward.5} parent=11 // pred_check_branch
          %122 = sbr.rel (%p120) target = $region16
        $region15: #{image_ae_forward.5} parent=11 // pred_region
          %s124 = ssub.s32 128, 128
          %125 = vsyncadd [#allocation3], %s124
          %s126 = sshll.u32 [#allocation2], 4
          %s127 = int_to_ptr.vmem [resolvable:$true] %s126
          %132 = dma.hbm_to_vmem [thread:$0]  %s1, 128, %s127, [#allocation3], 64, 64, 4
        $region16: #{image_ae_forward.5} parent=11 // pred_fallthru
          _
        // Predicated region
        $region17: #{image_ae_forward.5} parent=11 // pred_check
          %p133 = pneg %p79
        $region18: #{image_ae_forward.5} parent=11 // pred_check_branch
          %135 = sbr.rel (%p133) target = $region20
        $region19: #{image_ae_forward.5} parent=11 // pred_region
          %s137 = ssub.s32 16, 16
          %138 = vsyncadd [#allocation5], %s137
          %s140 = sshll.u32 [#allocation4], 4
          %s141 = int_to_ptr.vmem [resolvable:$true] %s140
          %143 = dma.hbm_to_vmem [thread:$0]  %s2, 16, %s141, [#allocation5]
        $region20: #{image_ae_forward.5} parent=11 // pred_fallthru
          _
      $region12: #{image_ae_forward.5} parent=5 // pred_fallthru
        _
      %p144 = scmp.lt.s32.totalorder %s11, 2
      // Predicated region
      $region21: #{image_ae_forward.5} parent=5 // pred_check
        %p145 = pneg %p144
      $region22: #{image_ae_forward.5} parent=5 // pred_check_branch
        %147 = sbr.rel (%p145) target = $region24
      $region23: #{image_ae_forward.5} parent=5 // pred_region
        // Predicated region
        $region25: #{image_ae_forward.5} parent=23 // pred_check
          %p148 = pneg %p31
        $region26: #{image_ae_forward.5} parent=23 // pred_check_branch
          %150 = sbr.rel (%p148) target = $region28
        $region27: #{image_ae_forward.5} parent=23 // pred_region
          %s151 = smul.u32 32, %s11
          %p152 = scmp.lt.s32.totalorder %s151, 63
          %s153 = scalar_select %p152, %s151, 63
          %s154 = smul.addr %s153, 4
          %s155 = scalar_lea.vmem %s0, %s154
          %s156 = smul.u32 32, %s11
        $region28: #{image_ae_forward.5} parent=23 // pred_fallthru
          _
      $region24: #{image_ae_forward.5} parent=5 // pred_fallthru
        _
      %p157 = scmp.le.s32.totalorder 1, %s11
      %p158 = scmp.lt.s32.totalorder %s11, 3
      %p159 = pnand %p157, %p158
      %p160 = pneg %p159
      // Predicated region
      $region29: #{image_ae_forward.5} parent=5 // pred_check
        _
      $region30: #{image_ae_forward.5} parent=5 // pred_check_branch
        %162 = sbr.rel (%p159) target = $region32
      $region31: #{image_ae_forward.5} parent=5 // pred_region
        %s163 = ssub.s32 %s11, 1
        // Predicated region
        $region33: #{image_ae_forward.5} parent=31 // pred_check
          %p164 = pneg %p58
        $region34: #{image_ae_forward.5} parent=31 // pred_check_branch
          %166 = sbr.rel (%p164) target = $region36
        $region35: #{image_ae_forward.5} parent=31 // pred_region
          %167 = dma.done [#allocation3], 128
        $region36: #{image_ae_forward.5} parent=31 // pred_fallthru
          _
        // Predicated region
        $region37: #{image_ae_forward.5} parent=31 // pred_check
          %p168 = pneg %p79
        $region38: #{image_ae_forward.5} parent=31 // pred_check_branch
          %170 = sbr.rel (%p168) target = $region40
        $region39: #{image_ae_forward.5} parent=31 // pred_region
          %171 = dma.done [#allocation5], 16
        $region40: #{image_ae_forward.5} parent=31 // pred_fallthru
          _
        %s172 = smul.u32 32, %s16
        %p173 = scmp.lt.s32.totalorder %s172, 63
        %s174 = scalar_select %p173, %s172, 63
        %s175 = smul.addr %s174, 4
        %s176 = scalar_lea.vmem %s0, %s175
        %p177 = pneg %p37
        %p178 = pneg %p34
        %p179 = pneg %p58
        %p180 = pneg %p55
        %p181 = pneg %p79
        %p182 = pneg %p76
        %p183 = pneg %p105
        %p184 = pneg %p102
        %s185 = smul.u32 32, %s16
        %p186 = scmp.lt.s32.totalorder %s185, 63
        %s187 = scalar_select %p186, %s185, 63
        %s188 = smul.addr %s187, 4
        %s189 = scalar_lea.vmem %s3, %s188
        %s190 = smul.u32 32, %s16
        %p191 = scmp.lt.s32.totalorder %s190, 63
        %s192 = scalar_select %p191, %s190, 63
        %s193 = smul.addr %s192, 4
        %s194 = scalar_lea.vmem %s0, %s193
        %s195 = smul.u32 32, %s16
        %s196 = smul.u32 32, %s16
        %p197 = scmp.lt.s32.totalorder %s196, 63
        %s198 = scalar_select %p197, %s196, 63
        %s199 = smul.addr %s198, 4
        %s200 = scalar_lea.vmem %s3, %s199
        %s201 = smul.u32 32, %s16
        %v203 = vld [vmem:[%s194] sm:$0xf]
        %v204 = vld [vmem:[%s194 + $0x4] sm:$0xf]
        %v205 = vld [vmem:[%s194 + $0x8] sm:$0xf]
        %v206 = vld [vmem:[%s194 + $0xc] sm:$0xf]
        %v207 = vld [vmem:[%s194 + $0x10] sm:$0xf]
        %v208 = vld [vmem:[%s194 + $0x14] sm:$0xf]
        %v209 = vld [vmem:[%s194 + $0x18] sm:$0xf]
        %v210 = vld [vmem:[%s194 + $0x1c] sm:$0xf]
        %v211 = vld [vmem:[%s194 + $0x20] sm:$0xf]
        %v212 = vld [vmem:[%s194 + $0x24] sm:$0xf]
        %v213 = vld [vmem:[%s194 + $0x28] sm:$0xf]
        %v214 = vld [vmem:[%s194 + $0x2c] sm:$0xf]
        %v215 = vld [vmem:[%s194 + $0x30] sm:$0xf]
        %v216 = vld [vmem:[%s194 + $0x34] sm:$0xf]
        %v217 = vld [vmem:[%s194 + $0x38] sm:$0xf]
        %v218 = vld [vmem:[%s194 + $0x3c] sm:$0xf]
        %v219 = vld [vmem:[%s194 + $0x40] sm:$0xf]
        %v220 = vld [vmem:[%s194 + $0x44] sm:$0xf]
        %v221 = vld [vmem:[%s194 + $0x48] sm:$0xf]
        %v222 = vld [vmem:[%s194 + $0x4c] sm:$0xf]
        %v223 = vld [vmem:[%s194 + $0x50] sm:$0xf]
        %v224 = vld [vmem:[%s194 + $0x54] sm:$0xf]
        %v225 = vld [vmem:[%s194 + $0x58] sm:$0xf]
        %v226 = vld [vmem:[%s194 + $0x5c] sm:$0xf]
        %v227 = vld [vmem:[%s194 + $0x60] sm:$0xf]
        %v228 = vld [vmem:[%s194 + $0x64] sm:$0xf]
        %v229 = vld [vmem:[%s194 + $0x68] sm:$0xf]
        %v230 = vld [vmem:[%s194 + $0x6c] sm:$0xf]
        %v231 = vld [vmem:[%s194 + $0x70] sm:$0xf]
        %v232 = vld [vmem:[%s194 + $0x74] sm:$0xf]
        %v233 = vld [vmem:[%s194 + $0x78] sm:$0xf]
        %v234 = vld [vmem:[%s194 + $0x7c] sm:$0xf]
        %v235 = vld [vmem:[#allocation2] sm:$0xf]
        %v236 = vld [vmem:[#allocation2 + $0x4] sm:$0xf]
        %v237 = vld [vmem:[#allocation4] sm:$0x1]
        %v238 = vunpack.c.l.bf16 %v237
        %v239 = vlaneseq
        %v240 = vshrl.u32 %v239, 7
        %v241 = vsub.s32 0, %v240
        %v242 = vrot.slane %v238, %v241
        %v275 = vunpack.c.l.b16 %v203
        %v276 = vunpack.c.l.b16 %v204
        %v277 = vunpack.c.l.b16 %v205
        %v278 = vunpack.c.l.b16 %v206
        %v279 = vunpack.c.l.b16 %v207
        %v280 = vunpack.c.l.b16 %v208
        %v281 = vunpack.c.l.b16 %v209
        %v282 = vunpack.c.l.b16 %v210
        %v283 = vunpack.c.l.b16 %v211
        %v284 = vunpack.c.l.b16 %v212
        %v285 = vunpack.c.l.b16 %v213
        %v286 = vunpack.c.l.b16 %v214
        %v287 = vunpack.c.l.b16 %v215
        %v288 = vunpack.c.l.b16 %v216
        %v289 = vunpack.c.l.b16 %v217
        %v290 = vunpack.c.l.b16 %v218
        %v291 = vunpack.c.l.b16 %v219
        %v292 = vunpack.c.l.b16 %v220
        %v293 = vunpack.c.l.b16 %v221
        %v294 = vunpack.c.l.b16 %v222
        %v295 = vunpack.c.l.b16 %v223
        %v296 = vunpack.c.l.b16 %v224
        %v297 = vunpack.c.l.b16 %v225
        %v298 = vunpack.c.l.b16 %v226
        %v299 = vunpack.c.l.b16 %v227
        %v300 = vunpack.c.l.b16 %v228
        %v301 = vunpack.c.l.b16 %v229
        %v302 = vunpack.c.l.b16 %v230
        %v303 = vunpack.c.l.b16 %v231
        %v304 = vunpack.c.l.b16 %v232
        %v305 = vunpack.c.l.b16 %v233
        %v306 = vunpack.c.l.b16 %v234
        %v307 = vpack.c.b16 %v276, %v275
        %v308 = vpack.c.b16 %v278, %v277
        %v309 = vpack.c.b16 %v280, %v279
        %v310 = vpack.c.b16 %v282, %v281
        %v311 = vpack.c.b16 %v284, %v283
        %v312 = vpack.c.b16 %v286, %v285
        %v313 = vpack.c.b16 %v288, %v287
        %v314 = vpack.c.b16 %v290, %v289
        %v315 = vpack.c.b16 %v292, %v291
        %v316 = vpack.c.b16 %v294, %v293
        %v317 = vpack.c.b16 %v296, %v295
        %v318 = vpack.c.b16 %v298, %v297
        %v319 = vpack.c.b16 %v300, %v299
        %v320 = vpack.c.b16 %v302, %v301
        %v321 = vpack.c.b16 %v304, %v303
        %v322 = vpack.c.b16 %v306, %v305
        %v325 = vunpack.c.l.b16 %v235
        %v326 = vunpack.c.l.b16 %v236
        %v327 = vpack.c.b16 %v326, %v325
        %vm329 = vcmask 130048
        %v331 = vsel %vm329, %v307, 0
        %v334 = vsel %vm329, %v308, 0
        %v337 = vsel %vm329, %v309, 0
        %v340 = vsel %vm329, %v310, 0
        %v343 = vsel %vm329, %v311, 0
        %v346 = vsel %vm329, %v312, 0
        %v349 = vsel %vm329, %v313, 0
        %v352 = vsel %vm329, %v314, 0
        %v355 = vsel %vm329, %v315, 0
        %v358 = vsel %vm329, %v316, 0
        %v361 = vsel %vm329, %v317, 0
        %v364 = vsel %vm329, %v318, 0
        %v367 = vsel %vm329, %v319, 0
        %v370 = vsel %vm329, %v320, 0
        %v373 = vsel %vm329, %v321, 0
        %v376 = vsel %vm329, %v322, 0
        %378 = vmatprep.subr.bf16.mxu0 0
        %379 = vmatpush1.bf16.msra.mxu0 %v327
        %380 = vmatprep.subr.bf16.mxu0 0
        %381 = vmatpush1.bf16.msra.mxu0 0
        %382 = vmatprep.subr.bf16.mxu0 0
        %383 = vmatpush1.bf16.msra.mxu0 0
        %384 = vmatprep.subr.bf16.mxu0 0
        %385 = vmatpush1.bf16.msra.mxu0 0
        %386 = vmatprep.subr.bf16.mxu0 0
        %387 = vmatpush1.bf16.msra.mxu0 0
        %388 = vmatprep.subr.bf16.mxu0 0
        %389 = vmatpush1.bf16.msra.mxu0 0
        %390 = vmatprep.subr.bf16.mxu0 0
        %391 = vmatpush1.bf16.msra.mxu0 0
        %392 = vmatprep.subr.bf16.mxu0 0
        %393 = vmatpush1.bf16.msra.mxu0 0
        %394 = vmatprep.subr.bf16.mxu0 0
        %395 = vmatpush1.bf16.msra.mxu0 0
        %396 = vmatprep.subr.bf16.mxu0 0
        %397 = vmatpush1.bf16.msra.mxu0 0
        %398 = vmatprep.subr.bf16.mxu0 0
        %399 = vmatpush1.bf16.msra.mxu0 0
        %400 = vmatprep.subr.bf16.mxu0 0
        %401 = vmatpush1.bf16.msra.mxu0 0
        %402 = vmatprep.subr.bf16.mxu0 0
        %403 = vmatpush1.bf16.msra.mxu0 0
        %404 = vmatprep.subr.bf16.mxu0 0
        %405 = vmatpush1.bf16.msra.mxu0 0
        %406 = vmatprep.subr.bf16.mxu0 0
        %407 = vmatpush1.bf16.msra.mxu0 0
        %408 = vmatprep.subr.bf16.mxu0 0
        %409 = vmatpush1.bf16.msra.mxu0 0
        %410 = vmatprep.mubr.bf16.mxu0 0
        %411 = vmatmul.mubr.bf16.gmra.mrb[0].mxu0 %v331
        %v412 = vpop.f32.mrb[0].mxu0
        %v413 = vadd.f32 %v242, %v412
        %v414 = vpop.f32.mrb[0].mxu0
        %v415 = vpop.f32.mrb[0].mxu0
        %v416 = vadd.f32 %v242, %v415
        %v417 = vpop.f32.mrb[0].mxu0
        %418 = vmatprep.mubr.bf16.mxu0 0
        %419 = vmatmul.mubr.bf16.gmra.mrb[0].mxu0 %v334
        %v420 = vpop.f32.mrb[0].mxu0
        %v421 = vadd.f32 %v242, %v420
        %v422 = vpop.f32.mrb[0].mxu0
        %v423 = vpop.f32.mrb[0].mxu0
        %v424 = vadd.f32 %v242, %v423
        %v425 = vpop.f32.mrb[0].mxu0
        %426 = vmatprep.mubr.bf16.mxu0 0
        %427 = vmatmul.mubr.bf16.gmra.mrb[0].mxu0 %v337
        %v428 = vpop.f32.mrb[0].mxu0
        %v429 = vadd.f32 %v242, %v428
        %v430 = vpop.f32.mrb[0].mxu0
        %v431 = vpop.f32.mrb[0].mxu0
        %v432 = vadd.f32 %v242, %v431
        %v433 = vpop.f32.mrb[0].mxu0
        %434 = vmatprep.mubr.bf16.mxu0 0
        %435 = vmatmul.mubr.bf16.gmra.mrb[0].mxu0 %v340
        %v436 = vpop.f32.mrb[0].mxu0
        %v437 = vadd.f32 %v242, %v436
        %v438 = vpop.f32.mrb[0].mxu0
        %v439 = vpop.f32.mrb[0].mxu0
        %v440 = vadd.f32 %v242, %v439
        %v441 = vpop.f32.mrb[0].mxu0
        %442 = vmatprep.mubr.bf16.mxu0 0
        %443 = vmatmul.mubr.bf16.gmra.mrb[0].mxu0 %v343
        %v444 = vpop.f32.mrb[0].mxu0
        %v445 = vadd.f32 %v242, %v444
        %v446 = vpop.f32.mrb[0].mxu0
        %v447 = vpop.f32.mrb[0].mxu0
        %v448 = vadd.f32 %v242, %v447
        %v449 = vpop.f32.mrb[0].mxu0
        %450 = vmatprep.mubr.bf16.mxu0 0
        %451 = vmatmul.mubr.bf16.gmra.mrb[0].mxu0 %v346
        %v452 = vpop.f32.mrb[0].mxu0
        %v453 = vadd.f32 %v242, %v452
        %v454 = vpop.f32.mrb[0].mxu0
        %v455 = vpop.f32.mrb[0].mxu0
        %v456 = vadd.f32 %v242, %v455
        %v457 = vpop.f32.mrb[0].mxu0
        %458 = vmatprep.mubr.bf16.mxu0 0
        %459 = vmatmul.mubr.bf16.gmra.mrb[0].mxu0 %v349
        %v460 = vpop.f32.mrb[0].mxu0
        %v461 = vadd.f32 %v242, %v460
        %v462 = vpop.f32.mrb[0].mxu0
        %v463 = vpop.f32.mrb[0].mxu0
        %v464 = vadd.f32 %v242, %v463
        %v465 = vpop.f32.mrb[0].mxu0
        %466 = vmatprep.mubr.bf16.mxu0 0
        %467 = vmatmul.mubr.bf16.gmra.mrb[0].mxu0 %v352
        %v468 = vpop.f32.mrb[0].mxu0
        %v469 = vadd.f32 %v242, %v468
        %v470 = vpop.f32.mrb[0].mxu0
        %v471 = vpop.f32.mrb[0].mxu0
        %v472 = vadd.f32 %v242, %v471
        %v473 = vpop.f32.mrb[0].mxu0
        %474 = vmatprep.mubr.bf16.mxu0 0
        %475 = vmatmul.mubr.bf16.gmra.mrb[0].mxu0 %v355
        %v476 = vpop.f32.mrb[0].mxu0
        %v477 = vadd.f32 %v242, %v476
        %v478 = vpop.f32.mrb[0].mxu0
        %v479 = vpop.f32.mrb[0].mxu0
        %v480 = vadd.f32 %v242, %v479
        %v481 = vpop.f32.mrb[0].mxu0
        %482 = vmatprep.mubr.bf16.mxu0 0
        %483 = vmatmul.mubr.bf16.gmra.mrb[0].mxu0 %v358
        %v484 = vpop.f32.mrb[0].mxu0
        %v485 = vadd.f32 %v242, %v484
        %v486 = vpop.f32.mrb[0].mxu0
        %v487 = vpop.f32.mrb[0].mxu0
        %v488 = vadd.f32 %v242, %v487
        %v489 = vpop.f32.mrb[0].mxu0
        %490 = vmatprep.mubr.bf16.mxu0 0
        %491 = vmatmul.mubr.bf16.gmra.mrb[0].mxu0 %v361
        %v492 = vpop.f32.mrb[0].mxu0
        %v493 = vadd.f32 %v242, %v492
        %v494 = vpop.f32.mrb[0].mxu0
        %v495 = vpop.f32.mrb[0].mxu0
        %v496 = vadd.f32 %v242, %v495
        %v497 = vpop.f32.mrb[0].mxu0
        %498 = vmatprep.mubr.bf16.mxu0 0
        %499 = vmatmul.mubr.bf16.gmra.mrb[0].mxu0 %v364
        %v500 = vpop.f32.mrb[0].mxu0
        %v501 = vadd.f32 %v242, %v500
        %v502 = vpop.f32.mrb[0].mxu0
        %v503 = vpop.f32.mrb[0].mxu0
        %v504 = vadd.f32 %v242, %v503
        %v505 = vpop.f32.mrb[0].mxu0
        %506 = vmatprep.mubr.bf16.mxu0 0
        %507 = vmatmul.mubr.bf16.gmra.mrb[0].mxu0 %v367
        %v508 = vpop.f32.mrb[0].mxu0
        %v509 = vadd.f32 %v242, %v508
        %v510 = vpop.f32.mrb[0].mxu0
        %v511 = vpop.f32.mrb[0].mxu0
        %v512 = vadd.f32 %v242, %v511
        %v513 = vpop.f32.mrb[0].mxu0
        %514 = vmatprep.mubr.bf16.mxu0 0
        %515 = vmatmul.mubr.bf16.gmra.mrb[0].mxu0 %v370
        %v516 = vpop.f32.mrb[0].mxu0
        %v517 = vadd.f32 %v242, %v516
        %v518 = vpop.f32.mrb[0].mxu0
        %v519 = vpop.f32.mrb[0].mxu0
        %v520 = vadd.f32 %v242, %v519
        %v521 = vpop.f32.mrb[0].mxu0
        %522 = vmatprep.mubr.bf16.mxu0 0
        %523 = vmatmul.mubr.bf16.gmra.mrb[0].mxu0 %v373
        %v524 = vpop.f32.mrb[0].mxu0
        %v525 = vadd.f32 %v242, %v524
        %v526 = vpop.f32.mrb[0].mxu0
        %v527 = vpop.f32.mrb[0].mxu0
        %v528 = vadd.f32 %v242, %v527
        %v529 = vpop.f32.mrb[0].mxu0
        %530 = vmatprep.mubr.bf16.mxu0 0
        %531 = vmatmul.mubr.bf16.gmra.mrb[0].mxu0 %v376
        %v532 = vpop.f32.mrb[0].mxu0
        %v533 = vadd.f32 %v242, %v532
        %v534 = vpop.f32.mrb[0].mxu0
        %v535 = vpop.f32.mrb[0].mxu0
        %v536 = vadd.f32 %v242, %v535
        %v537 = vpop.f32.mrb[0].mxu0
        %538 = vdwg.mxu0
        %vm539 = vcmp.ge.f32.partialorder %v413, 0.0
        %vm540 = vcmp.ge.f32.partialorder %v416, 0.0
        %vm541 = vcmp.ge.f32.partialorder %v421, 0.0
        %vm542 = vcmp.ge.f32.partialorder %v424, 0.0
        %vm543 = vcmp.ge.f32.partialorder %v429, 0.0
        %vm544 = vcmp.ge.f32.partialorder %v432, 0.0
        %vm545 = vcmp.ge.f32.partialorder %v437, 0.0
        %vm546 = vcmp.ge.f32.partialorder %v440, 0.0
        %vm547 = vcmp.ge.f32.partialorder %v445, 0.0
        %vm548 = vcmp.ge.f32.partialorder %v448, 0.0
        %vm549 = vcmp.ge.f32.partialorder %v453, 0.0
        %vm550 = vcmp.ge.f32.partialorder %v456, 0.0
        %vm551 = vcmp.ge.f32.partialorder %v461, 0.0
        %vm552 = vcmp.ge.f32.partialorder %v464, 0.0
        %vm553 = vcmp.ge.f32.partialorder %v469, 0.0
        %vm554 = vcmp.ge.f32.partialorder %v472, 0.0
        %vm555 = vcmp.ge.f32.partialorder %v477, 0.0
        %vm556 = vcmp.ge.f32.partialorder %v480, 0.0
        %vm557 = vcmp.ge.f32.partialorder %v485, 0.0
        %vm558 = vcmp.ge.f32.partialorder %v488, 0.0
        %vm559 = vcmp.ge.f32.partialorder %v493, 0.0
        %vm560 = vcmp.ge.f32.partialorder %v496, 0.0
        %vm561 = vcmp.ge.f32.partialorder %v501, 0.0
        %vm562 = vcmp.ge.f32.partialorder %v504, 0.0
        %vm563 = vcmp.ge.f32.partialorder %v509, 0.0
        %vm564 = vcmp.ge.f32.partialorder %v512, 0.0
        %vm565 = vcmp.ge.f32.partialorder %v517, 0.0
        %vm566 = vcmp.ge.f32.partialorder %v520, 0.0
        %vm567 = vcmp.ge.f32.partialorder %v525, 0.0
        %vm568 = vcmp.ge.f32.partialorder %v528, 0.0
        %vm569 = vcmp.ge.f32.partialorder %v533, 0.0
        %vm570 = vcmp.ge.f32.partialorder %v536, 0.0
        %v571 = vsub.f32 0.0, %v413
        %v572 = vsub.f32 0.0, %v416
        %v573 = vsub.f32 0.0, %v421
        %v574 = vsub.f32 0.0, %v424
        %v575 = vsub.f32 0.0, %v429
        %v576 = vsub.f32 0.0, %v432
        %v577 = vsub.f32 0.0, %v437
        %v578 = vsub.f32 0.0, %v440
        %v579 = vsub.f32 0.0, %v445
        %v580 = vsub.f32 0.0, %v448
        %v581 = vsub.f32 0.0, %v453
        %v582 = vsub.f32 0.0, %v456
        %v583 = vsub.f32 0.0, %v461
        %v584 = vsub.f32 0.0, %v464
        %v585 = vsub.f32 0.0, %v469
        %v586 = vsub.f32 0.0, %v472
        %v587 = vsub.f32 0.0, %v477
        %v588 = vsub.f32 0.0, %v480
        %v589 = vsub.f32 0.0, %v485
        %v590 = vsub.f32 0.0, %v488
        %v591 = vsub.f32 0.0, %v493
        %v592 = vsub.f32 0.0, %v496
        %v593 = vsub.f32 0.0, %v501
        %v594 = vsub.f32 0.0, %v504
        %v595 = vsub.f32 0.0, %v509
        %v596 = vsub.f32 0.0, %v512
        %v597 = vsub.f32 0.0, %v517
        %v598 = vsub.f32 0.0, %v520
        %v599 = vsub.f32 0.0, %v525
        %v600 = vsub.f32 0.0, %v528
        %v601 = vsub.f32 0.0, %v533
        %v602 = vsub.f32 0.0, %v536
        %v603 = vsel %vm539, %v571, %v413
        %v604 = vsel %vm540, %v572, %v416
        %v605 = vsel %vm541, %v573, %v421
        %v606 = vsel %vm542, %v574, %v424
        %v607 = vsel %vm543, %v575, %v429
        %v608 = vsel %vm544, %v576, %v432
        %v609 = vsel %vm545, %v577, %v437
        %v610 = vsel %vm546, %v578, %v440
        %v611 = vsel %vm547, %v579, %v445
        %v612 = vsel %vm548, %v580, %v448
        %v613 = vsel %vm549, %v581, %v453
        %v614 = vsel %vm550, %v582, %v456
        %v615 = vsel %vm551, %v583, %v461
        %v616 = vsel %vm552, %v584, %v464
        %v617 = vsel %vm553, %v585, %v469
        %v618 = vsel %vm554, %v586, %v472
        %v619 = vsel %vm555, %v587, %v477
        %v620 = vsel %vm556, %v588, %v480
        %v621 = vsel %vm557, %v589, %v485
        %v622 = vsel %vm558, %v590, %v488
        %v623 = vsel %vm559, %v591, %v493
        %v624 = vsel %vm560, %v592, %v496
        %v625 = vsel %vm561, %v593, %v501
        %v626 = vsel %vm562, %v594, %v504
        %v627 = vsel %vm563, %v595, %v509
        %v628 = vsel %vm564, %v596, %v512
        %v629 = vsel %vm565, %v597, %v517
        %v630 = vsel %vm566, %v598, %v520
        %v631 = vsel %vm567, %v599, %v525
        %v632 = vsel %vm568, %v600, %v528
        %v633 = vsel %vm569, %v601, %v533
        %v634 = vsel %vm570, %v602, %v536
        %v635 = vmul.f32 %v603, 1.442695
        %v636 = vpow.pop %v635
        %v637 = vmul.f32 %v604, 1.442695
        %v638 = vpow.pop %v637
        %v639 = vmul.f32 %v605, 1.442695
        %v640 = vpow.pop %v639
        %v641 = vmul.f32 %v606, 1.442695
        %v642 = vpow.pop %v641
        %v643 = vmul.f32 %v607, 1.442695
        %v644 = vpow.pop %v643
        %v645 = vmul.f32 %v608, 1.442695
        %v646 = vpow.pop %v645
        %v647 = vmul.f32 %v609, 1.442695
        %v648 = vpow.pop %v647
        %v649 = vmul.f32 %v610, 1.442695
        %v650 = vpow.pop %v649
        %v651 = vmul.f32 %v611, 1.442695
        %v652 = vpow.pop %v651
        %v653 = vmul.f32 %v612, 1.442695
        %v654 = vpow.pop %v653
        %v655 = vmul.f32 %v613, 1.442695
        %v656 = vpow.pop %v655
        %v657 = vmul.f32 %v614, 1.442695
        %v658 = vpow.pop %v657
        %v659 = vmul.f32 %v615, 1.442695
        %v660 = vpow.pop %v659
        %v661 = vmul.f32 %v616, 1.442695
        %v662 = vpow.pop %v661
        %v663 = vmul.f32 %v617, 1.442695
        %v664 = vpow.pop %v663
        %v665 = vmul.f32 %v618, 1.442695
        %v666 = vpow.pop %v665
        %v667 = vmul.f32 %v619, 1.442695
        %v668 = vpow.pop %v667
        %v669 = vmul.f32 %v620, 1.442695
        %v670 = vpow.pop %v669
        %v671 = vmul.f32 %v621, 1.442695
        %v672 = vpow.pop %v671
        %v673 = vmul.f32 %v622, 1.442695
        %v674 = vpow.pop %v673
        %v675 = vmul.f32 %v623, 1.442695
        %v676 = vpow.pop %v675
        %v677 = vmul.f32 %v624, 1.442695
        %v678 = vpow.pop %v677
        %v679 = vmul.f32 %v625, 1.442695
        %v680 = vpow.pop %v679
        %v681 = vmul.f32 %v626, 1.442695
        %v682 = vpow.pop %v681
        %v683 = vmul.f32 %v627, 1.442695
        %v684 = vpow.pop %v683
        %v685 = vmul.f32 %v628, 1.442695
        %v686 = vpow.pop %v685
        %v687 = vmul.f32 %v629, 1.442695
        %v688 = vpow.pop %v687
        %v689 = vmul.f32 %v630, 1.442695
        %v690 = vpow.pop %v689
        %v691 = vmul.f32 %v631, 1.442695
        %v692 = vpow.pop %v691
        %v693 = vmul.f32 %v632, 1.442695
        %v694 = vpow.pop %v693
        %v695 = vmul.f32 %v633, 1.442695
        %v696 = vpow.pop %v695
        %v697 = vmul.f32 %v634, 1.442695
        %v698 = vpow.pop %v697
        %v699 = vsel %vm539, 1.0, %v636
        %v700 = vsel %vm540, 1.0, %v638
        %v701 = vsel %vm541, 1.0, %v640
        %v702 = vsel %vm542, 1.0, %v642
        %v703 = vsel %vm543, 1.0, %v644
        %v704 = vsel %vm544, 1.0, %v646
        %v705 = vsel %vm545, 1.0, %v648
        %v706 = vsel %vm546, 1.0, %v650
        %v707 = vsel %vm547, 1.0, %v652
        %v708 = vsel %vm548, 1.0, %v654
        %v709 = vsel %vm549, 1.0, %v656
        %v710 = vsel %vm550, 1.0, %v658
        %v711 = vsel %vm551, 1.0, %v660
        %v712 = vsel %vm552, 1.0, %v662
        %v713 = vsel %vm553, 1.0, %v664
        %v714 = vsel %vm554, 1.0, %v666
        %v715 = vsel %vm555, 1.0, %v668
        %v716 = vsel %vm556, 1.0, %v670
        %v717 = vsel %vm557, 1.0, %v672
        %v718 = vsel %vm558, 1.0, %v674
        %v719 = vsel %vm559, 1.0, %v676
        %v720 = vsel %vm560, 1.0, %v678
        %v721 = vsel %vm561, 1.0, %v680
        %v722 = vsel %vm562, 1.0, %v682
        %v723 = vsel %vm563, 1.0, %v684
        %v724 = vsel %vm564, 1.0, %v686
        %v725 = vsel %vm565, 1.0, %v688
        %v726 = vsel %vm566, 1.0, %v690
        %v727 = vsel %vm567, 1.0, %v692
        %v728 = vsel %vm568, 1.0, %v694
        %v729 = vsel %vm569, 1.0, %v696
        %v730 = vsel %vm570, 1.0, %v698
        %v731 = vadd.f32 %v636, 1.0
        %v732 = vadd.f32 %v638, 1.0
        %v733 = vadd.f32 %v640, 1.0
        %v734 = vadd.f32 %v642, 1.0
        %v735 = vadd.f32 %v644, 1.0
        %v736 = vadd.f32 %v646, 1.0
        %v737 = vadd.f32 %v648, 1.0
        %v738 = vadd.f32 %v650, 1.0
        %v739 = vadd.f32 %v652, 1.0
        %v740 = vadd.f32 %v654, 1.0
        %v741 = vadd.f32 %v656, 1.0
        %v742 = vadd.f32 %v658, 1.0
        %v743 = vadd.f32 %v660, 1.0
        %v744 = vadd.f32 %v662, 1.0
        %v745 = vadd.f32 %v664, 1.0
        %v746 = vadd.f32 %v666, 1.0
        %v747 = vadd.f32 %v668, 1.0
        %v748 = vadd.f32 %v670, 1.0
        %v749 = vadd.f32 %v672, 1.0
        %v750 = vadd.f32 %v674, 1.0
        %v751 = vadd.f32 %v676, 1.0
        %v752 = vadd.f32 %v678, 1.0
        %v753 = vadd.f32 %v680, 1.0
        %v754 = vadd.f32 %v682, 1.0
        %v755 = vadd.f32 %v684, 1.0
        %v756 = vadd.f32 %v686, 1.0
        %v757 = vadd.f32 %v688, 1.0
        %v758 = vadd.f32 %v690, 1.0
        %v759 = vadd.f32 %v692, 1.0
        %v760 = vadd.f32 %v694, 1.0
        %v761 = vadd.f32 %v696, 1.0
        %v762 = vadd.f32 %v698, 1.0
        %v763 = vrcp.pop %v731
        %v764 = vrcp.pop %v732
        %v765 = vrcp.pop %v733
        %v766 = vrcp.pop %v734
        %v767 = vrcp.pop %v735
        %v768 = vrcp.pop %v736
        %v769 = vrcp.pop %v737
        %v770 = vrcp.pop %v738
        %v771 = vrcp.pop %v739
        %v772 = vrcp.pop %v740
        %v773 = vrcp.pop %v741
        %v774 = vrcp.pop %v742
        %v775 = vrcp.pop %v743
        %v776 = vrcp.pop %v744
        %v777 = vrcp.pop %v745
        %v778 = vrcp.pop %v746
        %v779 = vrcp.pop %v747
        %v780 = vrcp.pop %v748
        %v781 = vrcp.pop %v749
        %v782 = vrcp.pop %v750
        %v783 = vrcp.pop %v751
        %v784 = vrcp.pop %v752
        %v785 = vrcp.pop %v753
        %v786 = vrcp.pop %v754
        %v787 = vrcp.pop %v755
        %v788 = vrcp.pop %v756
        %v789 = vrcp.pop %v757
        %v790 = vrcp.pop %v758
        %v791 = vrcp.pop %v759
        %v792 = vrcp.pop %v760
        %v793 = vrcp.pop %v761
        %v794 = vrcp.pop %v762
        %v795 = vmul.f32 %v699, %v763
        %v796 = vmul.f32 %v700, %v764
        %v797 = vmul.f32 %v701, %v765
        %v798 = vmul.f32 %v702, %v766
        %v799 = vmul.f32 %v703, %v767
        %v800 = vmul.f32 %v704, %v768
        %v801 = vmul.f32 %v705, %v769
        %v802 = vmul.f32 %v706, %v770
        %v803 = vmul.f32 %v707, %v771
        %v804 = vmul.f32 %v708, %v772
        %v805 = vmul.f32 %v709, %v773
        %v806 = vmul.f32 %v710, %v774
        %v807 = vmul.f32 %v711, %v775
        %v808 = vmul.f32 %v712, %v776
        %v809 = vmul.f32 %v713, %v777
        %v810 = vmul.f32 %v714, %v778
        %v811 = vmul.f32 %v715, %v779
        %v812 = vmul.f32 %v716, %v780
        %v813 = vmul.f32 %v717, %v781
        %v814 = vmul.f32 %v718, %v782
        %v815 = vmul.f32 %v719, %v783
        %v816 = vmul.f32 %v720, %v784
        %v817 = vmul.f32 %v721, %v785
        %v818 = vmul.f32 %v722, %v786
        %v819 = vmul.f32 %v723, %v787
        %v820 = vmul.f32 %v724, %v788
        %v821 = vmul.f32 %v725, %v789
        %v822 = vmul.f32 %v726, %v790
        %v823 = vmul.f32 %v727, %v791
        %v824 = vmul.f32 %v728, %v792
        %v825 = vmul.f32 %v729, %v793
        %v826 = vmul.f32 %v730, %v794
        %v827 = vmul.f32 %v413, %v795
        %v828 = vmul.f32 %v416, %v796
        %v829 = vmul.f32 %v421, %v797
        %v830 = vmul.f32 %v424, %v798
        %v831 = vmul.f32 %v429, %v799
        %v832 = vmul.f32 %v432, %v800
        %v833 = vmul.f32 %v437, %v801
        %v834 = vmul.f32 %v440, %v802
        %v835 = vmul.f32 %v445, %v803
        %v836 = vmul.f32 %v448, %v804
        %v837 = vmul.f32 %v453, %v805
        %v838 = vmul.f32 %v456, %v806
        %v839 = vmul.f32 %v461, %v807
        %v840 = vmul.f32 %v464, %v808
        %v841 = vmul.f32 %v469, %v809
        %v842 = vmul.f32 %v472, %v810
        %v843 = vmul.f32 %v477, %v811
        %v844 = vmul.f32 %v480, %v812
        %v845 = vmul.f32 %v485, %v813
        %v846 = vmul.f32 %v488, %v814
        %v847 = vmul.f32 %v493, %v815
        %v848 = vmul.f32 %v496, %v816
        %v849 = vmul.f32 %v501, %v817
        %v850 = vmul.f32 %v504, %v818
        %v851 = vmul.f32 %v509, %v819
        %v852 = vmul.f32 %v512, %v820
        %v853 = vmul.f32 %v517, %v821
        %v854 = vmul.f32 %v520, %v822
        %v855 = vmul.f32 %v525, %v823
        %v856 = vmul.f32 %v528, %v824
        %v857 = vmul.f32 %v533, %v825
        %v858 = vmul.f32 %v536, %v826
        %v859 = vpack.c.bf16 %v828, %v827
        %v860 = vpack.c.bf16 %v830, %v829
        %v861 = vpack.c.bf16 %v832, %v831
        %v862 = vpack.c.bf16 %v834, %v833
        %v863 = vpack.c.bf16 %v836, %v835
        %v864 = vpack.c.bf16 %v838, %v837
        %v865 = vpack.c.bf16 %v840, %v839
        %v866 = vpack.c.bf16 %v842, %v841
        %v867 = vpack.c.bf16 %v844, %v843
        %v868 = vpack.c.bf16 %v846, %v845
        %v869 = vpack.c.bf16 %v848, %v847
        %v870 = vpack.c.bf16 %v850, %v849
        %v871 = vpack.c.bf16 %v852, %v851
        %v872 = vpack.c.bf16 %v854, %v853
        %v873 = vpack.c.bf16 %v856, %v855
        %v874 = vpack.c.bf16 %v858, %v857
        %v891 = vunpack.c.l.b16 %v859
        %v892 = vunpack.c.h.b16 %v859
        %v893 = vunpack.c.l.b16 %v860
        %v894 = vunpack.c.h.b16 %v860
        %v895 = vunpack.c.l.b16 %v861
        %v896 = vunpack.c.h.b16 %v861
        %v897 = vunpack.c.l.b16 %v862
        %v898 = vunpack.c.h.b16 %v862
        %v899 = vunpack.c.l.b16 %v863
        %v900 = vunpack.c.h.b16 %v863
        %v901 = vunpack.c.l.b16 %v864
        %v902 = vunpack.c.h.b16 %v864
        %v903 = vunpack.c.l.b16 %v865
        %v904 = vunpack.c.h.b16 %v865
        %v905 = vunpack.c.l.b16 %v866
        %v906 = vunpack.c.h.b16 %v866
        %v907 = vunpack.c.l.b16 %v867
        %v908 = vunpack.c.h.b16 %v867
        %v909 = vunpack.c.l.b16 %v868
        %v910 = vunpack.c.h.b16 %v868
        %v911 = vunpack.c.l.b16 %v869
        %v912 = vunpack.c.h.b16 %v869
        %v913 = vunpack.c.l.b16 %v870
        %v914 = vunpack.c.h.b16 %v870
        %v915 = vunpack.c.l.b16 %v871
        %v916 = vunpack.c.h.b16 %v871
        %v917 = vunpack.c.l.b16 %v872
        %v918 = vunpack.c.h.b16 %v872
        %v919 = vunpack.c.l.b16 %v873
        %v920 = vunpack.c.h.b16 %v873
        %v921 = vunpack.c.l.b16 %v874
        %v922 = vunpack.c.h.b16 %v874
        %v923 = vpack.c.b16 %v891, %v891
        %v924 = vpack.c.b16 %v892, %v892
        %v925 = vpack.c.b16 %v893, %v893
        %v926 = vpack.c.b16 %v894, %v894
        %v927 = vpack.c.b16 %v895, %v895
        %v928 = vpack.c.b16 %v896, %v896
        %v929 = vpack.c.b16 %v897, %v897
        %v930 = vpack.c.b16 %v898, %v898
        %v931 = vpack.c.b16 %v899, %v899
        %v932 = vpack.c.b16 %v900, %v900
        %v933 = vpack.c.b16 %v901, %v901
        %v934 = vpack.c.b16 %v902, %v902
        %v935 = vpack.c.b16 %v903, %v903
        %v936 = vpack.c.b16 %v904, %v904
        %v937 = vpack.c.b16 %v905, %v905
        %v938 = vpack.c.b16 %v906, %v906
        %v939 = vpack.c.b16 %v907, %v907
        %v940 = vpack.c.b16 %v908, %v908
        %v941 = vpack.c.b16 %v909, %v909
        %v942 = vpack.c.b16 %v910, %v910
        %v943 = vpack.c.b16 %v911, %v911
        %v944 = vpack.c.b16 %v912, %v912
        %v945 = vpack.c.b16 %v913, %v913
        %v946 = vpack.c.b16 %v914, %v914
        %v947 = vpack.c.b16 %v915, %v915
        %v948 = vpack.c.b16 %v916, %v916
        %v949 = vpack.c.b16 %v917, %v917
        %v950 = vpack.c.b16 %v918, %v918
        %v951 = vpack.c.b16 %v919, %v919
        %v952 = vpack.c.b16 %v920, %v920
        %v953 = vpack.c.b16 %v921, %v921
        %v954 = vpack.c.b16 %v922, %v922
        %987 = vst [vmem:[%s200] sm:$0xf] %v923
        %988 = vst [vmem:[%s200 + $0x4] sm:$0xf] %v924
        %989 = vst [vmem:[%s200 + $0x8] sm:$0xf] %v925
        %990 = vst [vmem:[%s200 + $0xc] sm:$0xf] %v926
        %991 = vst [vmem:[%s200 + $0x10] sm:$0xf] %v927
        %992 = vst [vmem:[%s200 + $0x14] sm:$0xf] %v928
        %993 = vst [vmem:[%s200 + $0x18] sm:$0xf] %v929
        %994 = vst [vmem:[%s200 + $0x1c] sm:$0xf] %v930
        %995 = vst [vmem:[%s200 + $0x20] sm:$0xf] %v931
        %996 = vst [vmem:[%s200 + $0x24] sm:$0xf] %v932
        %997 = vst [vmem:[%s200 + $0x28] sm:$0xf] %v933
        %998 = vst [vmem:[%s200 + $0x2c] sm:$0xf] %v934
        %999 = vst [vmem:[%s200 + $0x30] sm:$0xf] %v935
        %1000 = vst [vmem:[%s200 + $0x34] sm:$0xf] %v936
        %1001 = vst [vmem:[%s200 + $0x38] sm:$0xf] %v937
        %1002 = vst [vmem:[%s200 + $0x3c] sm:$0xf] %v938
        %1003 = vst [vmem:[%s200 + $0x40] sm:$0xf] %v939
        %1004 = vst [vmem:[%s200 + $0x44] sm:$0xf] %v940
        %1005 = vst [vmem:[%s200 + $0x48] sm:$0xf] %v941
        %1006 = vst [vmem:[%s200 + $0x4c] sm:$0xf] %v942
        %1007 = vst [vmem:[%s200 + $0x50] sm:$0xf] %v943
        %1008 = vst [vmem:[%s200 + $0x54] sm:$0xf] %v944
        %1009 = vst [vmem:[%s200 + $0x58] sm:$0xf] %v945
        %1010 = vst [vmem:[%s200 + $0x5c] sm:$0xf] %v946
        %1011 = vst [vmem:[%s200 + $0x60] sm:$0xf] %v947
        %1012 = vst [vmem:[%s200 + $0x64] sm:$0xf] %v948
        %1013 = vst [vmem:[%s200 + $0x68] sm:$0xf] %v949
        %1014 = vst [vmem:[%s200 + $0x6c] sm:$0xf] %v950
        %1015 = vst [vmem:[%s200 + $0x70] sm:$0xf] %v951
        %1016 = vst [vmem:[%s200 + $0x74] sm:$0xf] %v952
        %1017 = vst [vmem:[%s200 + $0x78] sm:$0xf] %v953
        %1018 = vst [vmem:[%s200 + $0x7c] sm:$0xf] %v954
        %s1019 = smul.u32 32, %s16
        %p1020 = scmp.lt.s32.totalorder %s1019, 63
        %s1021 = scalar_select %p1020, %s1019, 63
        %s1022 = smul.addr %s1021, 4
        %s1023 = scalar_lea.vmem %s3, %s1022
        // Predicated region
        $region41: #{image_ae_forward.5} parent=31 // pred_check
          %p1024 = pneg %p102
        $region42: #{image_ae_forward.5} parent=31 // pred_check_branch
          %1026 = sbr.rel (%p1024) target = $region44
        $region43: #{image_ae_forward.5} parent=31 // pred_region
          %s1027 = smul.u32 32, %s16
        $region44: #{image_ae_forward.5} parent=31 // pred_fallthru
          _
      $region32: #{image_ae_forward.5} parent=5 // pred_fallthru
        _
      %p1028 = scmp.le.s32.totalorder 2, %s11
      // Predicated region
      $region45: #{image_ae_forward.5} parent=5 // pred_check
        %p1029 = pneg %p1028
      $region46: #{image_ae_forward.5} parent=5 // pred_check_branch
        %1031 = sbr.rel (%p1029) target = $region48
      $region47: #{image_ae_forward.5} parent=5 // pred_region
        %s1032 = ssub.s32 %s11, 2
        // Predicated region
        $region49: #{image_ae_forward.5} parent=47 // pred_check
          %p1033 = pneg %p108
        $region50: #{image_ae_forward.5} parent=47 // pred_check_branch
          %1035 = sbr.rel (%p1033) target = $region52
        $region51: #{image_ae_forward.5} parent=47 // pred_region
          %s1036 = smul.u32 32, %s17
          %p1037 = scmp.lt.s32.totalorder %s1036, 63
          %s1038 = scalar_select %p1037, %s1036, 63
          %s1039 = smul.addr %s1038, 4
          %s1040 = scalar_lea.vmem %s3, %s1039
        $region52: #{image_ae_forward.5} parent=47 // pred_fallthru
          _
      $region48: #{image_ae_forward.5} parent=5 // pred_fallthru
        _
    $region6: #{image_ae_forward.5} parent=1 // loop_footer
      %s15 = sadd.s32 1, %s11
    $region7: #{image_ae_forward.5} parent=1 // loop_footer_branch
      %10 = sbr.rel target = $region3
    $region8: #{image_ae_forward.5} parent=1 // loop_exit
      _
    %1041 = vsyncpa [#allocation3], 1
    %s1042 = scalar_lea.sflag [#allocation3], 1
    %1043 = vsyncpa %s1042, 1
    %1044 = vsyncpa [#allocation5], 1

// kernel: image_ae_forward.8
$region0: #{image_ae_forward.8}
  #allocation0 [shape = 'u32[]', space=smem, size = 0x4, offset = 0x4, fixed_abs, tag = 'smem constant byte address 0x4 - core index']
  #allocation1 [shape = 'u32[144,128]{1,0:T(1,128)}', space=vmem, size = 0x12000, scoped, tag = 'internal scratch']
  %s0 = inlined_call_operand.vmem [shape: bf16[128,512], index: 0, kind: input, shape index: {}]
  %s1 = inlined_call_operand.vmem [shape: bf16[512,128], index: 1, kind: input, shape index: {}]
  %s2 = inlined_call_operand.vmem [shape: bf16[1,128], index: 2, kind: input, shape index: {}]
  %s3 = inlined_call_operand.vmem [shape: bf16[128,128], index: 3, kind: output, shape index: {}]
  %s4 = sld [smem:[#allocation0]]
  $region22: #{image_ae_forward.8} parent=0
    _
  %s6 = ssub.s32 1, %s4
  %s7 = scalar_select 0, %s6, %s4
  // Predicated region
  $region2: #{image_ae_forward.8} parent=0 // pred_check
    _
  $region3: #{image_ae_forward.8} parent=0 // pred_check_branch
    %9 = sbr.rel (0) target = $region5
  $region4: #{image_ae_forward.8} parent=0 // pred_region
    _
  $region5: #{image_ae_forward.8} parent=0 // pred_fallthru
    _
  // Predicated region
  $region6: #{image_ae_forward.8} parent=0 // pred_check
    _
  $region7: #{image_ae_forward.8} parent=0 // pred_check_branch
    %11 = sbr.rel (0) target = $region9
  $region8: #{image_ae_forward.8} parent=0 // pred_region
    _
  $region9: #{image_ae_forward.8} parent=0 // pred_fallthru
    _
  // Predicated region
  $region10: #{image_ae_forward.8} parent=0 // pred_check
    _
  $region11: #{image_ae_forward.8} parent=0 // pred_check_branch
    %13 = sbr.rel (0) target = $region13
  $region12: #{image_ae_forward.8} parent=0 // pred_region
    _
  $region13: #{image_ae_forward.8} parent=0 // pred_fallthru
    _
  %v15 = vld [vmem:[%s0] sm:$0xff]
  %v16 = vld [vmem:[%s0 + $0x8] sm:$0xff]
  %v17 = vld [vmem:[%s0 + $0x10] sm:$0xff]
  %v18 = vld [vmem:[%s0 + $0x18] sm:$0xff]
  %v19 = vld [vmem:[%s0 + $0x20] sm:$0xff]
  %v20 = vld [vmem:[%s0 + $0x28] sm:$0xff]
  %v21 = vld [vmem:[%s0 + $0x30] sm:$0xff]
  %v22 = vld [vmem:[%s0 + $0x38] sm:$0xff]
  %v23 = vld [vmem:[%s0 + $0x40] sm:$0xff]
  %v24 = vld [vmem:[%s0 + $0x48] sm:$0xff]
  %v25 = vld [vmem:[%s0 + $0x50] sm:$0xff]
  %v26 = vld [vmem:[%s0 + $0x58] sm:$0xff]
  %v27 = vld [vmem:[%s0 + $0x60] sm:$0xff]
  %v28 = vld [vmem:[%s0 + $0x68] sm:$0xff]
  %v29 = vld [vmem:[%s0 + $0x70] sm:$0xff]
  %v30 = vld [vmem:[%s0 + $0x78] sm:$0xff]
  %v31 = vld [vmem:[%s0 + $0x80] sm:$0xff]
  %v32 = vld [vmem:[%s0 + $0x88] sm:$0xff]
  %v33 = vld [vmem:[%s0 + $0x90] sm:$0xff]
  %v34 = vld [vmem:[%s0 + $0x98] sm:$0xff]
  %v35 = vld [vmem:[%s0 + $0xa0] sm:$0xff]
  %v36 = vld [vmem:[%s0 + $0xa8] sm:$0xff]
  %v37 = vld [vmem:[%s0 + $0xb0] sm:$0xff]
  %v38 = vld [vmem:[%s0 + $0xb8] sm:$0xff]
  %v39 = vld [vmem:[%s0 + $0xc0] sm:$0xff]
  %v40 = vld [vmem:[%s0 + $0xc8] sm:$0xff]
  %v41 = vld [vmem:[%s0 + $0xd0] sm:$0xff]
  %v42 = vld [vmem:[%s0 + $0xd8] sm:$0xff]
  %v43 = vld [vmem:[%s0 + $0xe0] sm:$0xff]
  %v44 = vld [vmem:[%s0 + $0xe8] sm:$0xff]
  %v45 = vld [vmem:[%s0 + $0xf0] sm:$0xff]
  %v46 = vld [vmem:[%s0 + $0xf8] sm:$0xff]
  %v47 = vld [vmem:[%s1] sm:$0xf]
  %v48 = vld [vmem:[%s1 + $0x4] sm:$0xf]
  %v49 = vld [vmem:[%s1 + $0x8] sm:$0xf]
  %v50 = vld [vmem:[%s1 + $0xc] sm:$0xf]
  %v51 = vld [vmem:[%s1 + $0x10] sm:$0xf]
  %v52 = vld [vmem:[%s1 + $0x14] sm:$0xf]
  %v53 = vld [vmem:[%s1 + $0x18] sm:$0xf]
  %v54 = vld [vmem:[%s1 + $0x1c] sm:$0xf]
  %v55 = vld [vmem:[%s1 + $0x20] sm:$0xf]
  %v56 = vld [vmem:[%s1 + $0x24] sm:$0xf]
  %v57 = vld [vmem:[%s1 + $0x28] sm:$0xf]
  %v58 = vld [vmem:[%s1 + $0x2c] sm:$0xf]
  %v59 = vld [vmem:[%s1 + $0x30] sm:$0xf]
  %v60 = vld [vmem:[%s1 + $0x34] sm:$0xf]
  %v61 = vld [vmem:[%s1 + $0x38] sm:$0xf]
  %v62 = vld [vmem:[%s1 + $0x3c] sm:$0xf]
  %v63 = vld [vmem:[%s1 + $0x40] sm:$0xf]
  %v64 = vld [vmem:[%s1 + $0x44] sm:$0xf]
  %v65 = vld [vmem:[%s1 + $0x48] sm:$0xf]
  %v66 = vld [vmem:[%s1 + $0x4c] sm:$0xf]
  %v67 = vld [vmem:[%s1 + $0x50] sm:$0xf]
  %v68 = vld [vmem:[%s1 + $0x54] sm:$0xf]
  %v69 = vld [vmem:[%s1 + $0x58] sm:$0xf]
  %v70 = vld [vmem:[%s1 + $0x5c] sm:$0xf]
  %v71 = vld [vmem:[%s1 + $0x60] sm:$0xf]
  %v72 = vld [vmem:[%s1 + $0x64] sm:$0xf]
  %v73 = vld [vmem:[%s1 + $0x68] sm:$0xf]
  %v74 = vld [vmem:[%s1 + $0x6c] sm:$0xf]
  %v75 = vld [vmem:[%s1 + $0x70] sm:$0xf]
  %v76 = vld [vmem:[%s1 + $0x74] sm:$0xf]
  %v77 = vld [vmem:[%s1 + $0x78] sm:$0xf]
  %v78 = vld [vmem:[%s1 + $0x7c] sm:$0xf]
  %v79 = vld [vmem:[%s1 + $0x80] sm:$0xf]
  %v80 = vld [vmem:[%s1 + $0x84] sm:$0xf]
  %v81 = vld [vmem:[%s1 + $0x88] sm:$0xf]
  %v82 = vld [vmem:[%s1 + $0x8c] sm:$0xf]
  %v83 = vld [vmem:[%s1 + $0x90] sm:$0xf]
  %v84 = vld [vmem:[%s1 + $0x94] sm:$0xf]
  %v85 = vld [vmem:[%s1 + $0x98] sm:$0xf]
  %v86 = vld [vmem:[%s1 + $0x9c] sm:$0xf]
  %v87 = vld [vmem:[%s1 + $0xa0] sm:$0xf]
  %v88 = vld [vmem:[%s1 + $0xa4] sm:$0xf]
  %v89 = vld [vmem:[%s1 + $0xa8] sm:$0xf]
  %v90 = vld [vmem:[%s1 + $0xac] sm:$0xf]
  %v91 = vld [vmem:[%s1 + $0xb0] sm:$0xf]
  %v92 = vld [vmem:[%s1 + $0xb4] sm:$0xf]
  %v93 = vld [vmem:[%s1 + $0xb8] sm:$0xf]
  %v94 = vld [vmem:[%s1 + $0xbc] sm:$0xf]
  %v95 = vld [vmem:[%s1 + $0xc0] sm:$0xf]
  %v96 = vld [vmem:[%s1 + $0xc4] sm:$0xf]
  %v97 = vld [vmem:[%s1 + $0xc8] sm:$0xf]
  %v98 = vld [vmem:[%s1 + $0xcc] sm:$0xf]
  %v99 = vld [vmem:[%s1 + $0xd0] sm:$0xf]
  %v100 = vld [vmem:[%s1 + $0xd4] sm:$0xf]
  %v101 = vld [vmem:[%s1 + $0xd8] sm:$0xf]
  %v102 = vld [vmem:[%s1 + $0xdc] sm:$0xf]
  %v103 = vld [vmem:[%s1 + $0xe0] sm:$0xf]
  %v104 = vld [vmem:[%s1 + $0xe4] sm:$0xf]
  %v105 = vld [vmem:[%s1 + $0xe8] sm:$0xf]
  %v106 = vld [vmem:[%s1 + $0xec] sm:$0xf]
  %v107 = vld [vmem:[%s1 + $0xf0] sm:$0xf]
  %v108 = vld [vmem:[%s1 + $0xf4] sm:$0xf]
  %v109 = vld [vmem:[%s1 + $0xf8] sm:$0xf]
  %v110 = vld [vmem:[%s1 + $0xfc] sm:$0xf]
  %v111 = vld [vmem:[%s2] sm:$0x1]
  %v112 = vunpack.c.l.bf16 %v111
  %v113 = vlaneseq
  %v114 = vshrl.u32 %v113, 7
  %v115 = vsub.s32 0, %v114
  %v116 = vrot.slane %v112, %v115
  %v149 = vunpack.c.l.b16 %v15
  %v150 = vunpack.c.h.b16 %v15
  %v151 = vunpack.c.l.b16 %v16
  %v152 = vunpack.c.h.b16 %v16
  %v153 = vunpack.c.l.b16 %v17
  %v154 = vunpack.c.h.b16 %v17
  %v155 = vunpack.c.l.b16 %v18
  %v156 = vunpack.c.h.b16 %v18
  %v157 = vunpack.c.l.b16 %v19
  %v158 = vunpack.c.h.b16 %v19
  %v159 = vunpack.c.l.b16 %v20
  %v160 = vunpack.c.h.b16 %v20
  %v161 = vunpack.c.l.b16 %v21
  %v162 = vunpack.c.h.b16 %v21
  %v163 = vunpack.c.l.b16 %v22
  %v164 = vunpack.c.h.b16 %v22
  %v165 = vunpack.c.l.b16 %v23
  %v166 = vunpack.c.h.b16 %v23
  %v167 = vunpack.c.l.b16 %v24
  %v168 = vunpack.c.h.b16 %v24
  %v169 = vunpack.c.l.b16 %v25
  %v170 = vunpack.c.h.b16 %v25
  %v171 = vunpack.c.l.b16 %v26
  %v172 = vunpack.c.h.b16 %v26
  %v173 = vunpack.c.l.b16 %v27
  %v174 = vunpack.c.h.b16 %v27
  %v175 = vunpack.c.l.b16 %v28
  %v176 = vunpack.c.h.b16 %v28
  %v177 = vunpack.c.l.b16 %v29
  %v178 = vunpack.c.h.b16 %v29
  %v179 = vunpack.c.l.b16 %v30
  %v180 = vunpack.c.h.b16 %v30
  %v181 = vunpack.c.l.b16 %v31
  %v182 = vunpack.c.h.b16 %v31
  %v183 = vunpack.c.l.b16 %v32
  %v184 = vunpack.c.h.b16 %v32
  %v185 = vunpack.c.l.b16 %v33
  %v186 = vunpack.c.h.b16 %v33
  %v187 = vunpack.c.l.b16 %v34
  %v188 = vunpack.c.h.b16 %v34
  %v189 = vunpack.c.l.b16 %v35
  %v190 = vunpack.c.h.b16 %v35
  %v191 = vunpack.c.l.b16 %v36
  %v192 = vunpack.c.h.b16 %v36
  %v193 = vunpack.c.l.b16 %v37
  %v194 = vunpack.c.h.b16 %v37
  %v195 = vunpack.c.l.b16 %v38
  %v196 = vunpack.c.h.b16 %v38
  %v197 = vunpack.c.l.b16 %v39
  %v198 = vunpack.c.h.b16 %v39
  %v199 = vunpack.c.l.b16 %v40
  %v200 = vunpack.c.h.b16 %v40
  %v201 = vunpack.c.l.b16 %v41
  %v202 = vunpack.c.h.b16 %v41
  %v203 = vunpack.c.l.b16 %v42
  %v204 = vunpack.c.h.b16 %v42
  %v205 = vunpack.c.l.b16 %v43
  %v206 = vunpack.c.h.b16 %v43
  %v207 = vunpack.c.l.b16 %v44
  %v208 = vunpack.c.h.b16 %v44
  %v209 = vunpack.c.l.b16 %v45
  %v210 = vunpack.c.h.b16 %v45
  %v211 = vunpack.c.l.b16 %v46
  %v212 = vunpack.c.h.b16 %v46
  %v213 = vpack.c.b16 %v153, %v149
  %v214 = vpack.c.b16 %v154, %v150
  %v215 = vpack.c.b16 %v155, %v151
  %v216 = vpack.c.b16 %v156, %v152
  %v217 = vpack.c.b16 %v161, %v157
  %v218 = vpack.c.b16 %v162, %v158
  %v219 = vpack.c.b16 %v163, %v159
  %v220 = vpack.c.b16 %v164, %v160
  %v221 = vpack.c.b16 %v169, %v165
  %v222 = vpack.c.b16 %v170, %v166
  %v223 = vpack.c.b16 %v171, %v167
  %v224 = vpack.c.b16 %v172, %v168
  %v225 = vpack.c.b16 %v177, %v173
  %v226 = vpack.c.b16 %v178, %v174
  %v227 = vpack.c.b16 %v179, %v175
  %v228 = vpack.c.b16 %v180, %v176
  %v229 = vpack.c.b16 %v185, %v181
  %v230 = vpack.c.b16 %v186, %v182
  %v231 = vpack.c.b16 %v187, %v183
  %v232 = vpack.c.b16 %v188, %v184
  %v233 = vpack.c.b16 %v193, %v189
  %v234 = vpack.c.b16 %v194, %v190
  %v235 = vpack.c.b16 %v195, %v191
  %v236 = vpack.c.b16 %v196, %v192
  %v237 = vpack.c.b16 %v201, %v197
  %v238 = vpack.c.b16 %v202, %v198
  %v239 = vpack.c.b16 %v203, %v199
  %v240 = vpack.c.b16 %v204, %v200
  %v241 = vpack.c.b16 %v209, %v205
  %v242 = vpack.c.b16 %v210, %v206
  %v243 = vpack.c.b16 %v211, %v207
  %v244 = vpack.c.b16 %v212, %v208
  %v341 = vunpack.c.l.b16 %v47
  %v342 = vunpack.c.l.b16 %v48
  %v343 = vunpack.c.l.b16 %v49
  %v344 = vunpack.c.l.b16 %v50
  %v345 = vunpack.c.l.b16 %v51
  %v346 = vunpack.c.l.b16 %v52
  %v347 = vunpack.c.l.b16 %v53
  %v348 = vunpack.c.l.b16 %v54
  %v349 = vunpack.c.l.b16 %v55
  %v350 = vunpack.c.l.b16 %v56
  %v351 = vunpack.c.l.b16 %v57
  %v352 = vunpack.c.l.b16 %v58
  %v353 = vunpack.c.l.b16 %v59
  %v354 = vunpack.c.l.b16 %v60
  %v355 = vunpack.c.l.b16 %v61
  %v356 = vunpack.c.l.b16 %v62
  %v357 = vunpack.c.l.b16 %v63
  %v358 = vunpack.c.l.b16 %v64
  %v359 = vunpack.c.l.b16 %v65
  %v360 = vunpack.c.l.b16 %v66
  %v361 = vunpack.c.l.b16 %v67
  %v362 = vunpack.c.l.b16 %v68
  %v363 = vunpack.c.l.b16 %v69
  %v364 = vunpack.c.l.b16 %v70
  %v365 = vunpack.c.l.b16 %v71
  %v366 = vunpack.c.l.b16 %v72
  %v367 = vunpack.c.l.b16 %v73
  %v368 = vunpack.c.l.b16 %v74
  %v369 = vunpack.c.l.b16 %v75
  %v370 = vunpack.c.l.b16 %v76
  %v371 = vunpack.c.l.b16 %v77
  %v372 = vunpack.c.l.b16 %v78
  %v373 = vunpack.c.l.b16 %v79
  %v374 = vunpack.c.l.b16 %v80
  %v375 = vunpack.c.l.b16 %v81
  %v376 = vunpack.c.l.b16 %v82
  %v377 = vunpack.c.l.b16 %v83
  %v378 = vunpack.c.l.b16 %v84
  %v379 = vunpack.c.l.b16 %v85
  %v380 = vunpack.c.l.b16 %v86
  %v381 = vunpack.c.l.b16 %v87
  %v382 = vunpack.c.l.b16 %v88
  %v383 = vunpack.c.l.b16 %v89
  %v384 = vunpack.c.l.b16 %v90
  %v385 = vunpack.c.l.b16 %v91
  %v386 = vunpack.c.l.b16 %v92
  %v387 = vunpack.c.l.b16 %v93
  %v388 = vunpack.c.l.b16 %v94
  %v389 = vunpack.c.l.b16 %v95
  %v390 = vunpack.c.l.b16 %v96
  %v391 = vunpack.c.l.b16 %v97
  %v392 = vunpack.c.l.b16 %v98
  %v393 = vunpack.c.l.b16 %v99
  %v394 = vunpack.c.l.b16 %v100
  %v395 = vunpack.c.l.b16 %v101
  %v396 = vunpack.c.l.b16 %v102
  %v397 = vunpack.c.l.b16 %v103
  %v398 = vunpack.c.l.b16 %v104
  %v399 = vunpack.c.l.b16 %v105
  %v400 = vunpack.c.l.b16 %v106
  %v401 = vunpack.c.l.b16 %v107
  %v402 = vunpack.c.l.b16 %v108
  %v403 = vunpack.c.l.b16 %v109
  %v404 = vunpack.c.l.b16 %v110
  %v405 = vpack.c.b16 %v342, %v341
  %v406 = vpack.c.b16 %v344, %v343
  %v407 = vpack.c.b16 %v346, %v345
  %v408 = vpack.c.b16 %v348, %v347
  %v409 = vpack.c.b16 %v350, %v349
  %v410 = vpack.c.b16 %v352, %v351
  %v411 = vpack.c.b16 %v354, %v353
  %v412 = vpack.c.b16 %v356, %v355
  %v413 = vpack.c.b16 %v358, %v357
  %v414 = vpack.c.b16 %v360, %v359
  %v415 = vpack.c.b16 %v362, %v361
  %v416 = vpack.c.b16 %v364, %v363
  %v417 = vpack.c.b16 %v366, %v365
  %v418 = vpack.c.b16 %v368, %v367
  %v419 = vpack.c.b16 %v370, %v369
  %v420 = vpack.c.b16 %v372, %v371
  %v421 = vpack.c.b16 %v374, %v373
  %v422 = vpack.c.b16 %v376, %v375
  %v423 = vpack.c.b16 %v378, %v377
  %v424 = vpack.c.b16 %v380, %v379
  %v425 = vpack.c.b16 %v382, %v381
  %v426 = vpack.c.b16 %v384, %v383
  %v427 = vpack.c.b16 %v386, %v385
  %v428 = vpack.c.b16 %v388, %v387
  %v429 = vpack.c.b16 %v390, %v389
  %v430 = vpack.c.b16 %v392, %v391
  %v431 = vpack.c.b16 %v394, %v393
  %v432 = vpack.c.b16 %v396, %v395
  %v433 = vpack.c.b16 %v398, %v397
  %v434 = vpack.c.b16 %v400, %v399
  %v435 = vpack.c.b16 %v402, %v401
  %v436 = vpack.c.b16 %v404, %v403
  %469 = vmatprep.subr.bf16.mxu0 0
  %470 = vmatpush1.bf16.msra.mxu0 %v405
  %471 = vmatprep.subr.bf16.mxu0 0
  %472 = vmatpush1.bf16.msra.mxu0 %v406
  %473 = vmatprep.subr.bf16.mxu0 0
  %474 = vmatpush1.bf16.msra.mxu0 %v407
  %475 = vmatprep.subr.bf16.mxu0 0
  %476 = vmatpush1.bf16.msra.mxu0 %v408
  %477 = vmatprep.subr.bf16.mxu0 0
  %478 = vmatpush1.bf16.msra.mxu0 %v409
  %479 = vmatprep.subr.bf16.mxu0 0
  %480 = vmatpush1.bf16.msra.mxu0 %v410
  %481 = vmatprep.subr.bf16.mxu0 0
  %482 = vmatpush1.bf16.msra.mxu0 %v411
  %483 = vmatprep.subr.bf16.mxu0 0
  %484 = vmatpush1.bf16.msra.mxu0 %v412
  %485 = vmatprep.subr.bf16.mxu0 0
  %486 = vmatpush1.bf16.msra.mxu0 %v413
  %487 = vmatprep.subr.bf16.mxu0 0
  %488 = vmatpush1.bf16.msra.mxu0 %v414
  %489 = vmatprep.subr.bf16.mxu0 0
  %490 = vmatpush1.bf16.msra.mxu0 %v415
  %491 = vmatprep.subr.bf16.mxu0 0
  %492 = vmatpush1.bf16.msra.mxu0 %v416
  %493 = vmatprep.subr.bf16.mxu0 0
  %494 = vmatpush1.bf16.msra.mxu0 %v417
  %495 = vmatprep.subr.bf16.mxu0 0
  %496 = vmatpush1.bf16.msra.mxu0 %v418
  %497 = vmatprep.subr.bf16.mxu0 0
  %498 = vmatpush1.bf16.msra.mxu0 %v419
  %499 = vmatprep.subr.bf16.mxu0 0
  %500 = vmatpush1.bf16.msra.mxu0 %v420
  %501 = vmatprep.mubr.bf16.mxu0 %v214
  %502 = vmatmul.mubr.bf16.gmra.mrb[0].mxu0 %v213
  %v503 = vpop.f32.mrb[0].mxu0
  %v504 = vadd.f32 %v116, %v503
  %v505 = vpop.f32.mrb[0].mxu0
  %v506 = vpop.f32.mrb[0].mxu0
  %v507 = vadd.f32 %v116, %v506
  %v508 = vpop.f32.mrb[0].mxu0
  %509 = vmatprep.mubr.bf16.mxu0 %v218
  %510 = vmatmul.mubr.bf16.gmra.mrb[0].mxu0 %v217
  %v511 = vpop.f32.mrb[0].mxu0
  %v512 = vadd.f32 %v116, %v511
  %v513 = vpop.f32.mrb[0].mxu0
  %v514 = vpop.f32.mrb[0].mxu0
  %v515 = vadd.f32 %v116, %v514
  %v516 = vpop.f32.mrb[0].mxu0
  %517 = vmatprep.mubr.bf16.mxu0 %v222
  %518 = vmatmul.mubr.bf16.gmra.mrb[0].mxu0 %v221
  %v519 = vpop.f32.mrb[0].mxu0
  %v520 = vadd.f32 %v116, %v519
  %v521 = vpop.f32.mrb[0].mxu0
  %v522 = vpop.f32.mrb[0].mxu0
  %v523 = vadd.f32 %v116, %v522
  %v524 = vpop.f32.mrb[0].mxu0
  %525 = vmatprep.mubr.bf16.mxu0 %v226
  %526 = vmatmul.mubr.bf16.gmra.mrb[0].mxu0 %v225
  %v527 = vpop.f32.mrb[0].mxu0
  %v528 = vadd.f32 %v116, %v527
  %v529 = vpop.f32.mrb[0].mxu0
  %v530 = vpop.f32.mrb[0].mxu0
  %v531 = vadd.f32 %v116, %v530
  %v532 = vpop.f32.mrb[0].mxu0
  %533 = vmatprep.mubr.bf16.mxu0 %v230
  %534 = vmatmul.mubr.bf16.gmra.mrb[0].mxu0 %v229
  %v535 = vpop.f32.mrb[0].mxu0
  %v536 = vadd.f32 %v116, %v535
  %v537 = vpop.f32.mrb[0].mxu0
  %v538 = vpop.f32.mrb[0].mxu0
  %v539 = vadd.f32 %v116, %v538
  %v540 = vpop.f32.mrb[0].mxu0
  %541 = vmatprep.mubr.bf16.mxu0 %v234
  %542 = vmatmul.mubr.bf16.gmra.mrb[0].mxu0 %v233
  %v543 = vpop.f32.mrb[0].mxu0
  %v544 = vadd.f32 %v116, %v543
  %v545 = vpop.f32.mrb[0].mxu0
  %v546 = vpop.f32.mrb[0].mxu0
  %v547 = vadd.f32 %v116, %v546
  %v548 = vpop.f32.mrb[0].mxu0
  %549 = vmatprep.mubr.bf16.mxu0 %v238
  %550 = vmatmul.mubr.bf16.gmra.mrb[0].mxu0 %v237
  %v551 = vpop.f32.mrb[0].mxu0
  %v552 = vadd.f32 %v116, %v551
  %v553 = vpop.f32.mrb[0].mxu0
  %v554 = vpop.f32.mrb[0].mxu0
  %v555 = vadd.f32 %v116, %v554
  %v556 = vpop.f32.mrb[0].mxu0
  %557 = vmatprep.mubr.bf16.mxu0 %v242
  %558 = vmatmul.mubr.bf16.gmra.mrb[0].mxu0 %v241
  %v559 = vpop.f32.mrb[0].mxu0
  %v560 = vadd.f32 %v116, %v559
  %v561 = vpop.f32.mrb[0].mxu0
  %v562 = vpop.f32.mrb[0].mxu0
  %v563 = vadd.f32 %v116, %v562
  %v564 = vpop.f32.mrb[0].mxu0
  %565 = vdwg.mxu0
  %566 = vmatprep.subr.bf16.mxu0 0
  %567 = vmatpush1.bf16.msra.mxu0 %v421
  %568 = vmatprep.subr.bf16.mxu0 0
  %569 = vmatpush1.bf16.msra.mxu0 %v422
  %570 = vmatprep.subr.bf16.mxu0 0
  %571 = vmatpush1.bf16.msra.mxu0 %v423
  %572 = vmatprep.subr.bf16.mxu0 0
  %573 = vmatpush1.bf16.msra.mxu0 %v424
  %574 = vmatprep.subr.bf16.mxu0 0
  %575 = vmatpush1.bf16.msra.mxu0 %v425
  %576 = vmatprep.subr.bf16.mxu0 0
  %577 = vmatpush1.bf16.msra.mxu0 %v426
  %578 = vmatprep.subr.bf16.mxu0 0
  %579 = vmatpush1.bf16.msra.mxu0 %v427
  %580 = vmatprep.subr.bf16.mxu0 0
  %581 = vmatpush1.bf16.msra.mxu0 %v428
  %582 = vmatprep.subr.bf16.mxu0 0
  %583 = vmatpush1.bf16.msra.mxu0 %v429
  %584 = vmatprep.subr.bf16.mxu0 0
  %585 = vmatpush1.bf16.msra.mxu0 %v430
  %586 = vmatprep.subr.bf16.mxu0 0
  %587 = vmatpush1.bf16.msra.mxu0 %v431
  %588 = vmatprep.subr.bf16.mxu0 0
  %589 = vmatpush1.bf16.msra.mxu0 %v432
  %590 = vmatprep.subr.bf16.mxu0 0
  %591 = vmatpush1.bf16.msra.mxu0 %v433
  %592 = vmatprep.subr.bf16.mxu0 0
  %593 = vmatpush1.bf16.msra.mxu0 %v434
  %594 = vmatprep.subr.bf16.mxu0 0
  %595 = vmatpush1.bf16.msra.mxu0 %v435
  %596 = vmatprep.subr.bf16.mxu0 0
  %597 = vmatpush1.bf16.msra.mxu0 %v436
  %598 = vmatprep.mubr.bf16.mxu0 %v216
  %599 = vmatmul.mubr.bf16.gmra.mrb[0].mxu0 %v215
  %v600 = vpop.f32.mrb[0].mxu0
  %v601 = vadd.f32 %v504, %v600
  %v602 = vpop.f32.mrb[0].mxu0
  %v603 = vpop.f32.mrb[0].mxu0
  %v604 = vadd.f32 %v507, %v603
  %v605 = vpop.f32.mrb[0].mxu0
  %606 = vmatprep.mubr.bf16.mxu0 %v220
  %607 = vmatmul.mubr.bf16.gmra.mrb[0].mxu0 %v219
  %v608 = vpop.f32.mrb[0].mxu0
  %v609 = vadd.f32 %v512, %v608
  %v610 = vpop.f32.mrb[0].mxu0
  %v611 = vpop.f32.mrb[0].mxu0
  %v612 = vadd.f32 %v515, %v611
  %v613 = vpop.f32.mrb[0].mxu0
  %614 = vmatprep.mubr.bf16.mxu0 %v224
  %615 = vmatmul.mubr.bf16.gmra.mrb[0].mxu0 %v223
  %v616 = vpop.f32.mrb[0].mxu0
  %v617 = vadd.f32 %v520, %v616
  %v618 = vpop.f32.mrb[0].mxu0
  %v619 = vpop.f32.mrb[0].mxu0
  %v620 = vadd.f32 %v523, %v619
  %v621 = vpop.f32.mrb[0].mxu0
  %622 = vmatprep.mubr.bf16.mxu0 %v228
  %623 = vmatmul.mubr.bf16.gmra.mrb[0].mxu0 %v227
  %v624 = vpop.f32.mrb[0].mxu0
  %v625 = vadd.f32 %v528, %v624
  %v626 = vpop.f32.mrb[0].mxu0
  %v627 = vpop.f32.mrb[0].mxu0
  %v628 = vadd.f32 %v531, %v627
  %v629 = vpop.f32.mrb[0].mxu0
  %630 = vmatprep.mubr.bf16.mxu0 %v232
  %631 = vmatmul.mubr.bf16.gmra.mrb[0].mxu0 %v231
  %v632 = vpop.f32.mrb[0].mxu0
  %v633 = vadd.f32 %v536, %v632
  %v634 = vpop.f32.mrb[0].mxu0
  %v635 = vpop.f32.mrb[0].mxu0
  %v636 = vadd.f32 %v539, %v635
  %v637 = vpop.f32.mrb[0].mxu0
  %638 = vmatprep.mubr.bf16.mxu0 %v236
  %639 = vmatmul.mubr.bf16.gmra.mrb[0].mxu0 %v235
  %v640 = vpop.f32.mrb[0].mxu0
  %v641 = vadd.f32 %v544, %v640
  %v642 = vpop.f32.mrb[0].mxu0
  %v643 = vpop.f32.mrb[0].mxu0
  %v644 = vadd.f32 %v547, %v643
  %v645 = vpop.f32.mrb[0].mxu0
  %646 = vmatprep.mubr.bf16.mxu0 %v240
  %647 = vmatmul.mubr.bf16.gmra.mrb[0].mxu0 %v239
  %v648 = vpop.f32.mrb[0].mxu0
  %v649 = vadd.f32 %v552, %v648
  %v650 = vpop.f32.mrb[0].mxu0
  %v651 = vpop.f32.mrb[0].mxu0
  %v652 = vadd.f32 %v555, %v651
  %v653 = vpop.f32.mrb[0].mxu0
  %654 = vmatprep.mubr.bf16.mxu0 %v244
  %655 = vmatmul.mubr.bf16.gmra.mrb[0].mxu0 %v243
  %v656 = vpop.f32.mrb[0].mxu0
  %v657 = vadd.f32 %v560, %v656
  %v658 = vpop.f32.mrb[0].mxu0
  %v659 = vpop.f32.mrb[0].mxu0
  %v660 = vadd.f32 %v563, %v659
  %v661 = vpop.f32.mrb[0].mxu0
  %662 = vdwg.mxu0
  %vm663 = vcmp.ge.f32.partialorder %v601, 0.0
  %vm664 = vcmp.ge.f32.partialorder %v604, 0.0
  %vm665 = vcmp.ge.f32.partialorder %v609, 0.0
  %vm666 = vcmp.ge.f32.partialorder %v612, 0.0
  %vm667 = vcmp.ge.f32.partialorder %v617, 0.0
  %vm668 = vcmp.ge.f32.partialorder %v620, 0.0
  %vm669 = vcmp.ge.f32.partialorder %v625, 0.0
  %vm670 = vcmp.ge.f32.partialorder %v628, 0.0
  %vm671 = vcmp.ge.f32.partialorder %v633, 0.0
  %vm672 = vcmp.ge.f32.partialorder %v636, 0.0
  %vm673 = vcmp.ge.f32.partialorder %v641, 0.0
  %vm674 = vcmp.ge.f32.partialorder %v644, 0.0
  %vm675 = vcmp.ge.f32.partialorder %v649, 0.0
  %vm676 = vcmp.ge.f32.partialorder %v652, 0.0
  %vm677 = vcmp.ge.f32.partialorder %v657, 0.0
  %vm678 = vcmp.ge.f32.partialorder %v660, 0.0
  %v679 = vsub.f32 0.0, %v601
  %v680 = vsub.f32 0.0, %v604
  %v681 = vsub.f32 0.0, %v609
  %v682 = vsub.f32 0.0, %v612
  %v683 = vsub.f32 0.0, %v617
  %v684 = vsub.f32 0.0, %v620
  %v685 = vsub.f32 0.0, %v625
  %v686 = vsub.f32 0.0, %v628
  %v687 = vsub.f32 0.0, %v633
  %v688 = vsub.f32 0.0, %v636
  %v689 = vsub.f32 0.0, %v641
  %v690 = vsub.f32 0.0, %v644
  %v691 = vsub.f32 0.0, %v649
  %v692 = vsub.f32 0.0, %v652
  %v693 = vsub.f32 0.0, %v657
  %v694 = vsub.f32 0.0, %v660
  %v695 = vsel %vm663, %v679, %v601
  %v696 = vsel %vm664, %v680, %v604
  %v697 = vsel %vm665, %v681, %v609
  %v698 = vsel %vm666, %v682, %v612
  %v699 = vsel %vm667, %v683, %v617
  %v700 = vsel %vm668, %v684, %v620
  %v701 = vsel %vm669, %v685, %v625
  %v702 = vsel %vm670, %v686, %v628
  %v703 = vsel %vm671, %v687, %v633
  %v704 = vsel %vm672, %v688, %v636
  %v705 = vsel %vm673, %v689, %v641
  %v706 = vsel %vm674, %v690, %v644
  %v707 = vsel %vm675, %v691, %v649
  %v708 = vsel %vm676, %v692, %v652
  %v709 = vsel %vm677, %v693, %v657
  %v710 = vsel %vm678, %v694, %v660
  %v711 = vmul.f32 %v695, 1.442695
  %v712 = vpow.pop %v711
  %v713 = vmul.f32 %v696, 1.442695
  %v714 = vpow.pop %v713
  %v715 = vmul.f32 %v697, 1.442695
  %v716 = vpow.pop %v715
  %v717 = vmul.f32 %v698, 1.442695
  %v718 = vpow.pop %v717
  %v719 = vmul.f32 %v699, 1.442695
  %v720 = vpow.pop %v719
  %v721 = vmul.f32 %v700, 1.442695
  %v722 = vpow.pop %v721
  %v723 = vmul.f32 %v701, 1.442695
  %v724 = vpow.pop %v723
  %v725 = vmul.f32 %v702, 1.442695
  %v726 = vpow.pop %v725
  %v727 = vmul.f32 %v703, 1.442695
  %v728 = vpow.pop %v727
  %v729 = vmul.f32 %v704, 1.442695
  %v730 = vpow.pop %v729
  %v731 = vmul.f32 %v705, 1.442695
  %v732 = vpow.pop %v731
  %v733 = vmul.f32 %v706, 1.442695
  %v734 = vpow.pop %v733
  %v735 = vmul.f32 %v707, 1.442695
  %v736 = vpow.pop %v735
  %v737 = vmul.f32 %v708, 1.442695
  %v738 = vpow.pop %v737
  %v739 = vmul.f32 %v709, 1.442695
  %v740 = vpow.pop %v739
  %v741 = vmul.f32 %v710, 1.442695
  %v742 = vpow.pop %v741
  %v743 = vsel %vm663, 1.0, %v712
  %v744 = vsel %vm664, 1.0, %v714
  %v745 = vsel %vm665, 1.0, %v716
  %v746 = vsel %vm666, 1.0, %v718
  %v747 = vsel %vm667, 1.0, %v720
  %v748 = vsel %vm668, 1.0, %v722
  %v749 = vsel %vm669, 1.0, %v724
  %v750 = vsel %vm670, 1.0, %v726
  %v751 = vsel %vm671, 1.0, %v728
  %v752 = vsel %vm672, 1.0, %v730
  %v753 = vsel %vm673, 1.0, %v732
  %v754 = vsel %vm674, 1.0, %v734
  %v755 = vsel %vm675, 1.0, %v736
  %v756 = vsel %vm676, 1.0, %v738
  %v757 = vsel %vm677, 1.0, %v740
  %v758 = vsel %vm678, 1.0, %v742
  %v759 = vadd.f32 %v712, 1.0
  %v760 = vadd.f32 %v714, 1.0
  %v761 = vadd.f32 %v716, 1.0
  %v762 = vadd.f32 %v718, 1.0
  %v763 = vadd.f32 %v720, 1.0
  %v764 = vadd.f32 %v722, 1.0
  %v765 = vadd.f32 %v724, 1.0
  %v766 = vadd.f32 %v726, 1.0
  %v767 = vadd.f32 %v728, 1.0
  %v768 = vadd.f32 %v730, 1.0
  %v769 = vadd.f32 %v732, 1.0
  %v770 = vadd.f32 %v734, 1.0
  %v771 = vadd.f32 %v736, 1.0
  %v772 = vadd.f32 %v738, 1.0
  %v773 = vadd.f32 %v740, 1.0
  %v774 = vadd.f32 %v742, 1.0
  %v775 = vrcp.pop %v759
  %v776 = vrcp.pop %v760
  %v777 = vrcp.pop %v761
  %v778 = vrcp.pop %v762
  %v779 = vrcp.pop %v763
  %v780 = vrcp.pop %v764
  %v781 = vrcp.pop %v765
  %v782 = vrcp.pop %v766
  %v783 = vrcp.pop %v767
  %v784 = vrcp.pop %v768
  %v785 = vrcp.pop %v769
  %v786 = vrcp.pop %v770
  %v787 = vrcp.pop %v771
  %v788 = vrcp.pop %v772
  %v789 = vrcp.pop %v773
  %v790 = vrcp.pop %v774
  %v791 = vmul.f32 %v743, %v775
  %v792 = vmul.f32 %v744, %v776
  %v793 = vmul.f32 %v745, %v777
  %v794 = vmul.f32 %v746, %v778
  %v795 = vmul.f32 %v747, %v779
  %v796 = vmul.f32 %v748, %v780
  %v797 = vmul.f32 %v749, %v781
  %v798 = vmul.f32 %v750, %v782
  %v799 = vmul.f32 %v751, %v783
  %v800 = vmul.f32 %v752, %v784
  %v801 = vmul.f32 %v753, %v785
  %v802 = vmul.f32 %v754, %v786
  %v803 = vmul.f32 %v755, %v787
  %v804 = vmul.f32 %v756, %v788
  %v805 = vmul.f32 %v757, %v789
  %v806 = vmul.f32 %v758, %v790
  %v807 = vmul.f32 %v601, %v791
  %v808 = vmul.f32 %v604, %v792
  %v809 = vmul.f32 %v609, %v793
  %v810 = vmul.f32 %v612, %v794
  %v811 = vmul.f32 %v617, %v795
  %v812 = vmul.f32 %v620, %v796
  %v813 = vmul.f32 %v625, %v797
  %v814 = vmul.f32 %v628, %v798
  %v815 = vmul.f32 %v633, %v799
  %v816 = vmul.f32 %v636, %v800
  %v817 = vmul.f32 %v641, %v801
  %v818 = vmul.f32 %v644, %v802
  %v819 = vmul.f32 %v649, %v803
  %v820 = vmul.f32 %v652, %v804
  %v821 = vmul.f32 %v657, %v805
  %v822 = vmul.f32 %v660, %v806
  %v823 = vpack.c.bf16 %v808, %v807
  %v824 = vpack.c.bf16 %v810, %v809
  %v825 = vpack.c.bf16 %v812, %v811
  %v826 = vpack.c.bf16 %v814, %v813
  %v827 = vpack.c.bf16 %v816, %v815
  %v828 = vpack.c.bf16 %v818, %v817
  %v829 = vpack.c.bf16 %v820, %v819
  %v830 = vpack.c.bf16 %v822, %v821
  %v839 = vunpack.c.l.b16 %v823
  %v840 = vunpack.c.h.b16 %v823
  %v841 = vunpack.c.l.b16 %v824
  %v842 = vunpack.c.h.b16 %v824
  %v843 = vunpack.c.l.b16 %v825
  %v844 = vunpack.c.h.b16 %v825
  %v845 = vunpack.c.l.b16 %v826
  %v846 = vunpack.c.h.b16 %v826
  %v847 = vunpack.c.l.b16 %v827
  %v848 = vunpack.c.h.b16 %v827
  %v849 = vunpack.c.l.b16 %v828
  %v850 = vunpack.c.h.b16 %v828
  %v851 = vunpack.c.l.b16 %v829
  %v852 = vunpack.c.h.b16 %v829
  %v853 = vunpack.c.l.b16 %v830
  %v854 = vunpack.c.h.b16 %v830
  %v855 = vpack.c.b16 %v839, %v839
  %v856 = vpack.c.b16 %v840, %v840
  %v857 = vpack.c.b16 %v841, %v841
  %v858 = vpack.c.b16 %v842, %v842
  %v859 = vpack.c.b16 %v843, %v843
  %v860 = vpack.c.b16 %v844, %v844
  %v861 = vpack.c.b16 %v845, %v845
  %v862 = vpack.c.b16 %v846, %v846
  %v863 = vpack.c.b16 %v847, %v847
  %v864 = vpack.c.b16 %v848, %v848
  %v865 = vpack.c.b16 %v849, %v849
  %v866 = vpack.c.b16 %v850, %v850
  %v867 = vpack.c.b16 %v851, %v851
  %v868 = vpack.c.b16 %v852, %v852
  %v869 = vpack.c.b16 %v853, %v853
  %v870 = vpack.c.b16 %v854, %v854
  %887 = vst [vmem:[%s3] sm:$0xf] %v855
  %888 = vst [vmem:[%s3 + $0x4] sm:$0xf] %v856
  %889 = vst [vmem:[%s3 + $0x8] sm:$0xf] %v857
  %890 = vst [vmem:[%s3 + $0xc] sm:$0xf] %v858
  %891 = vst [vmem:[%s3 + $0x10] sm:$0xf] %v859
  %892 = vst [vmem:[%s3 + $0x14] sm:$0xf] %v860
  %893 = vst [vmem:[%s3 + $0x18] sm:$0xf] %v861
  %894 = vst [vmem:[%s3 + $0x1c] sm:$0xf] %v862
  %895 = vst [vmem:[%s3 + $0x20] sm:$0xf] %v863
  %896 = vst [vmem:[%s3 + $0x24] sm:$0xf] %v864
  %897 = vst [vmem:[%s3 + $0x28] sm:$0xf] %v865
  %898 = vst [vmem:[%s3 + $0x2c] sm:$0xf] %v866
  %899 = vst [vmem:[%s3 + $0x30] sm:$0xf] %v867
  %900 = vst [vmem:[%s3 + $0x34] sm:$0xf] %v868
  %901 = vst [vmem:[%s3 + $0x38] sm:$0xf] %v869
  %902 = vst [vmem:[%s3 + $0x3c] sm:$0xf] %v870
  // Predicated region
  $region14: #{image_ae_forward.8} parent=0 // pred_check
    _
  $region15: #{image_ae_forward.8} parent=0 // pred_check_branch
    %904 = sbr.rel (0) target = $region17
  $region16: #{image_ae_forward.8} parent=0 // pred_region
    _
  $region17: #{image_ae_forward.8} parent=0 // pred_fallthru
    _
  // Predicated region
  $region18: #{image_ae_forward.8} parent=0 // pred_check
    _
  $region19: #{image_ae_forward.8} parent=0 // pred_check_branch
    %906 = sbr.rel (0) target = $region21
  $region20: #{image_ae_forward.8} parent=0 // pred_region
    _
  $region21: #{image_ae_forward.8} parent=0 // pred_fallthru
    _

// kernel: image_ae_forward.6
$region0: #{image_ae_forward.6}
  #allocation0 [shape = 'u32[]', space=smem, size = 0x4, offset = 0x4, fixed_abs, tag = 'smem constant byte address 0x4 - core index']
  #allocation1 [shape = 'u32[144,128]{1,0:T(1,128)}', space=vmem, size = 0x12000, scoped, tag = 'internal scratch']
  %s0 = inlined_call_operand.vmem [shape: bf16[104,2048], index: 0, kind: input, shape index: {}]
  %s1 = inlined_call_operand.vmem [shape: bf16[2048,128], index: 1, kind: input, shape index: {}]
  %s2 = inlined_call_operand.vmem [shape: bf16[1,128], index: 2, kind: input, shape index: {}]
  %s3 = inlined_call_operand.vmem [shape: bf16[104,128], index: 3, kind: output, shape index: {}]
  %s4 = sld [smem:[#allocation0]]
  $region22: #{image_ae_forward.6} parent=0
    _
  %s6 = ssub.s32 1, %s4
  %s7 = scalar_select 0, %s6, %s4
  // Predicated region
  $region2: #{image_ae_forward.6} parent=0 // pred_check
    _
  $region3: #{image_ae_forward.6} parent=0 // pred_check_branch
    %9 = sbr.rel (0) target = $region5
  $region4: #{image_ae_forward.6} parent=0 // pred_region
    _
  $region5: #{image_ae_forward.6} parent=0 // pred_fallthru
    _
  // Predicated region
  $region6: #{image_ae_forward.6} parent=0 // pred_check
    _
  $region7: #{image_ae_forward.6} parent=0 // pred_check_branch
    %11 = sbr.rel (0) target = $region9
  $region8: #{image_ae_forward.6} parent=0 // pred_region
    _
  $region9: #{image_ae_forward.6} parent=0 // pred_fallthru
    _
  // Predicated region
  $region10: #{image_ae_forward.6} parent=0 // pred_check
    _
  $region11: #{image_ae_forward.6} parent=0 // pred_check_branch
    %13 = sbr.rel (0) target = $region13
  $region12: #{image_ae_forward.6} parent=0 // pred_region
    _
  $region13: #{image_ae_forward.6} parent=0 // pred_fallthru
    _
  %v15 = vld [vmem:[%s0] sm:$0xff]
  %v16 = vld [vmem:[%s0 + $0x8] sm:$0xff]
  %v17 = vld [vmem:[%s0 + $0x10] sm:$0xff]
  %v18 = vld [vmem:[%s0 + $0x18] sm:$0xff]
  %v19 = vld [vmem:[%s0 + $0x20] sm:$0xff]
  %v20 = vld [vmem:[%s0 + $0x28] sm:$0xff]
  %v21 = vld [vmem:[%s0 + $0x30] sm:$0xff]
  %v22 = vld [vmem:[%s0 + $0x38] sm:$0xff]
  %v23 = vld [vmem:[%s0 + $0x40] sm:$0xff]
  %v24 = vld [vmem:[%s0 + $0x48] sm:$0xff]
  %v25 = vld [vmem:[%s0 + $0x50] sm:$0xff]
  %v26 = vld [vmem:[%s0 + $0x58] sm:$0xff]
  %v27 = vld [vmem:[%s0 + $0x60] sm:$0xff]
  %v28 = vld [vmem:[%s0 + $0x68] sm:$0xff]
  %v29 = vld [vmem:[%s0 + $0x70] sm:$0xff]
  %v30 = vld [vmem:[%s0 + $0x78] sm:$0xff]
  %v31 = vld [vmem:[%s0 + $0x80] sm:$0xff]
  %v32 = vld [vmem:[%s0 + $0x88] sm:$0xff]
  %v33 = vld [vmem:[%s0 + $0x90] sm:$0xff]
  %v34 = vld [vmem:[%s0 + $0x98] sm:$0xff]
  %v35 = vld [vmem:[%s0 + $0xa0] sm:$0xff]
  %v36 = vld [vmem:[%s0 + $0xa8] sm:$0xff]
  %v37 = vld [vmem:[%s0 + $0xb0] sm:$0xff]
  %v38 = vld [vmem:[%s0 + $0xb8] sm:$0xff]
  %v39 = vld [vmem:[%s0 + $0xc0] sm:$0xff]
  %v40 = vld [vmem:[%s0 + $0xc8] sm:$0xff]
  %v41 = vld [vmem:[%s0 + $0xd0] sm:$0xff]
  %v42 = vld [vmem:[%s0 + $0xd8] sm:$0xff]
  %v43 = vld [vmem:[%s0 + $0xe0] sm:$0xff]
  %v44 = vld [vmem:[%s0 + $0xe8] sm:$0xff]
  %v45 = vld [vmem:[%s0 + $0xf0] sm:$0xff]
  %v46 = vld [vmem:[%s0 + $0xf8] sm:$0xff]
  %v47 = vld [vmem:[%s0 + $0x100] sm:$0xff]
  %v48 = vld [vmem:[%s0 + $0x108] sm:$0xff]
  %v49 = vld [vmem:[%s0 + $0x110] sm:$0xff]
  %v50 = vld [vmem:[%s0 + $0x118] sm:$0xff]
  %v51 = vld [vmem:[%s0 + $0x120] sm:$0xff]
  %v52 = vld [vmem:[%s0 + $0x128] sm:$0xff]
  %v53 = vld [vmem:[%s0 + $0x130] sm:$0xff]
  %v54 = vld [vmem:[%s0 + $0x138] sm:$0xff]
  %v55 = vld [vmem:[%s0 + $0x140] sm:$0xff]
  %v56 = vld [vmem:[%s0 + $0x148] sm:$0xff]
  %v57 = vld [vmem:[%s0 + $0x150] sm:$0xff]
  %v58 = vld [vmem:[%s0 + $0x158] sm:$0xff]
  %v59 = vld [vmem:[%s0 + $0x160] sm:$0xff]
  %v60 = vld [vmem:[%s0 + $0x168] sm:$0xff]
  %v61 = vld [vmem:[%s0 + $0x170] sm:$0xff]
  %v62 = vld [vmem:[%s0 + $0x178] sm:$0xff]
  %v63 = vld [vmem:[%s0 + $0x180] sm:$0xff]
  %v64 = vld [vmem:[%s0 + $0x188] sm:$0xff]
  %v65 = vld [vmem:[%s0 + $0x190] sm:$0xff]
  %v66 = vld [vmem:[%s0 + $0x198] sm:$0xff]
  %v67 = vld [vmem:[%s0 + $0x1a0] sm:$0xff]
  %v68 = vld [vmem:[%s0 + $0x1a8] sm:$0xff]
  %v69 = vld [vmem:[%s0 + $0x1b0] sm:$0xff]
  %v70 = vld [vmem:[%s0 + $0x1b8] sm:$0xff]
  %v71 = vld [vmem:[%s0 + $0x1c0] sm:$0xff]
  %v72 = vld [vmem:[%s0 + $0x1c8] sm:$0xff]
  %v73 = vld [vmem:[%s0 + $0x1d0] sm:$0xff]
  %v74 = vld [vmem:[%s0 + $0x1d8] sm:$0xff]
  %v75 = vld [vmem:[%s0 + $0x1e0] sm:$0xff]
  %v76 = vld [vmem:[%s0 + $0x1e8] sm:$0xff]
  %v77 = vld [vmem:[%s0 + $0x1f0] sm:$0xff]
  %v78 = vld [vmem:[%s0 + $0x1f8] sm:$0xff]
  %v79 = vld [vmem:[%s0 + $0x200] sm:$0xff]
  %v80 = vld [vmem:[%s0 + $0x208] sm:$0xff]
  %v81 = vld [vmem:[%s0 + $0x210] sm:$0xff]
  %v82 = vld [vmem:[%s0 + $0x218] sm:$0xff]
  %v83 = vld [vmem:[%s0 + $0x220] sm:$0xff]
  %v84 = vld [vmem:[%s0 + $0x228] sm:$0xff]
  %v85 = vld [vmem:[%s0 + $0x230] sm:$0xff]
  %v86 = vld [vmem:[%s0 + $0x238] sm:$0xff]
  %v87 = vld [vmem:[%s0 + $0x240] sm:$0xff]
  %v88 = vld [vmem:[%s0 + $0x248] sm:$0xff]
  %v89 = vld [vmem:[%s0 + $0x250] sm:$0xff]
  %v90 = vld [vmem:[%s0 + $0x258] sm:$0xff]
  %v91 = vld [vmem:[%s0 + $0x260] sm:$0xff]
  %v92 = vld [vmem:[%s0 + $0x268] sm:$0xff]
  %v93 = vld [vmem:[%s0 + $0x270] sm:$0xff]
  %v94 = vld [vmem:[%s0 + $0x278] sm:$0xff]
  %v95 = vld [vmem:[%s0 + $0x280] sm:$0xff]
  %v96 = vld [vmem:[%s0 + $0x288] sm:$0xff]
  %v97 = vld [vmem:[%s0 + $0x290] sm:$0xff]
  %v98 = vld [vmem:[%s0 + $0x298] sm:$0xff]
  %v99 = vld [vmem:[%s0 + $0x2a0] sm:$0xff]
  %v100 = vld [vmem:[%s0 + $0x2a8] sm:$0xff]
  %v101 = vld [vmem:[%s0 + $0x2b0] sm:$0xff]
  %v102 = vld [vmem:[%s0 + $0x2b8] sm:$0xff]
  %v103 = vld [vmem:[%s0 + $0x2c0] sm:$0xff]
  %v104 = vld [vmem:[%s0 + $0x2c8] sm:$0xff]
  %v105 = vld [vmem:[%s0 + $0x2d0] sm:$0xff]
  %v106 = vld [vmem:[%s0 + $0x2d8] sm:$0xff]
  %v107 = vld [vmem:[%s0 + $0x2e0] sm:$0xff]
  %v108 = vld [vmem:[%s0 + $0x2e8] sm:$0xff]
  %v109 = vld [vmem:[%s0 + $0x2f0] sm:$0xff]
  %v110 = vld [vmem:[%s0 + $0x2f8] sm:$0xff]
  %v111 = vld [vmem:[%s0 + $0x300] sm:$0xff]
  %v112 = vld [vmem:[%s0 + $0x308] sm:$0xff]
  %v113 = vld [vmem:[%s0 + $0x310] sm:$0xff]
  %v114 = vld [vmem:[%s0 + $0x318] sm:$0xff]
  %v115 = vld [vmem:[%s0 + $0x320] sm:$0xff]
  %v116 = vld [vmem:[%s0 + $0x328] sm:$0xff]
  %v117 = vld [vmem:[%s0 + $0x330] sm:$0xff]
  %v118 = vld [vmem:[%s0 + $0x338] sm:$0xff]
  %v119 = vld [vmem:[%s1] sm:$0xf]
  %v120 = vld [vmem:[%s1 + $0x4] sm:$0xf]
  %v121 = vld [vmem:[%s1 + $0x8] sm:$0xf]
  %v122 = vld [vmem:[%s1 + $0xc] sm:$0xf]
  %v123 = vld [vmem:[%s1 + $0x10] sm:$0xf]
  %v124 = vld [vmem:[%s1 + $0x14] sm:$0xf]
  %v125 = vld [vmem:[%s1 + $0x18] sm:$0xf]
  %v126 = vld [vmem:[%s1 + $0x1c] sm:$0xf]
  %v127 = vld [vmem:[%s1 + $0x20] sm:$0xf]
  %v128 = vld [vmem:[%s1 + $0x24] sm:$0xf]
  %v129 = vld [vmem:[%s1 + $0x28] sm:$0xf]
  %v130 = vld [vmem:[%s1 + $0x2c] sm:$0xf]
  %v131 = vld [vmem:[%s1 + $0x30] sm:$0xf]
  %v132 = vld [vmem:[%s1 + $0x34] sm:$0xf]
  %v133 = vld [vmem:[%s1 + $0x38] sm:$0xf]
  %v134 = vld [vmem:[%s1 + $0x3c] sm:$0xf]
  %v135 = vld [vmem:[%s1 + $0x40] sm:$0xf]
  %v136 = vld [vmem:[%s1 + $0x44] sm:$0xf]
  %v137 = vld [vmem:[%s1 + $0x48] sm:$0xf]
  %v138 = vld [vmem:[%s1 + $0x4c] sm:$0xf]
  %v139 = vld [vmem:[%s1 + $0x50] sm:$0xf]
  %v140 = vld [vmem:[%s1 + $0x54] sm:$0xf]
  %v141 = vld [vmem:[%s1 + $0x58] sm:$0xf]
  %v142 = vld [vmem:[%s1 + $0x5c] sm:$0xf]
  %v143 = vld [vmem:[%s1 + $0x60] sm:$0xf]
  %v144 = vld [vmem:[%s1 + $0x64] sm:$0xf]
  %v145 = vld [vmem:[%s1 + $0x68] sm:$0xf]
  %v146 = vld [vmem:[%s1 + $0x6c] sm:$0xf]
  %v147 = vld [vmem:[%s1 + $0x70] sm:$0xf]
  %v148 = vld [vmem:[%s1 + $0x74] sm:$0xf]
  %v149 = vld [vmem:[%s1 + $0x78] sm:$0xf]
  %v150 = vld [vmem:[%s1 + $0x7c] sm:$0xf]
  %v151 = vld [vmem:[%s1 + $0x80] sm:$0xf]
  %v152 = vld [vmem:[%s1 + $0x84] sm:$0xf]
  %v153 = vld [vmem:[%s1 + $0x88] sm:$0xf]
  %v154 = vld [vmem:[%s1 + $0x8c] sm:$0xf]
  %v155 = vld [vmem:[%s1 + $0x90] sm:$0xf]
  %v156 = vld [vmem:[%s1 + $0x94] sm:$0xf]
  %v157 = vld [vmem:[%s1 + $0x98] sm:$0xf]
  %v158 = vld [vmem:[%s1 + $0x9c] sm:$0xf]
  %v159 = vld [vmem:[%s1 + $0xa0] sm:$0xf]
  %v160 = vld [vmem:[%s1 + $0xa4] sm:$0xf]
  %v161 = vld [vmem:[%s1 + $0xa8] sm:$0xf]
  %v162 = vld [vmem:[%s1 + $0xac] sm:$0xf]
  %v163 = vld [vmem:[%s1 + $0xb0] sm:$0xf]
  %v164 = vld [vmem:[%s1 + $0xb4] sm:$0xf]
  %v165 = vld [vmem:[%s1 + $0xb8] sm:$0xf]
  %v166 = vld [vmem:[%s1 + $0xbc] sm:$0xf]
  %v167 = vld [vmem:[%s1 + $0xc0] sm:$0xf]
  %v168 = vld [vmem:[%s1 + $0xc4] sm:$0xf]
  %v169 = vld [vmem:[%s1 + $0xc8] sm:$0xf]
  %v170 = vld [vmem:[%s1 + $0xcc] sm:$0xf]
  %v171 = vld [vmem:[%s1 + $0xd0] sm:$0xf]
  %v172 = vld [vmem:[%s1 + $0xd4] sm:$0xf]
  %v173 = vld [vmem:[%s1 + $0xd8] sm:$0xf]
  %v174 = vld [vmem:[%s1 + $0xdc] sm:$0xf]
  %v175 = vld [vmem:[%s1 + $0xe0] sm:$0xf]
  %v176 = vld [vmem:[%s1 + $0xe4] sm:$0xf]
  %v177 = vld [vmem:[%s1 + $0xe8] sm:$0xf]
  %v178 = vld [vmem:[%s1 + $0xec] sm:$0xf]
  %v179 = vld [vmem:[%s1 + $0xf0] sm:$0xf]
  %v180 = vld [vmem:[%s1 + $0xf4] sm:$0xf]
  %v181 = vld [vmem:[%s1 + $0xf8] sm:$0xf]
  %v182 = vld [vmem:[%s1 + $0xfc] sm:$0xf]
  %v183 = vld [vmem:[%s1 + $0x100] sm:$0xf]
  %v184 = vld [vmem:[%s1 + $0x104] sm:$0xf]
  %v185 = vld [vmem:[%s1 + $0x108] sm:$0xf]
  %v186 = vld [vmem:[%s1 + $0x10c] sm:$0xf]
  %v187 = vld [vmem:[%s1 + $0x110] sm:$0xf]
  %v188 = vld [vmem:[%s1 + $0x114] sm:$0xf]
  %v189 = vld [vmem:[%s1 + $0x118] sm:$0xf]
  %v190 = vld [vmem:[%s1 + $0x11c] sm:$0xf]
  %v191 = vld [vmem:[%s1 + $0x120] sm:$0xf]
  %v192 = vld [vmem:[%s1 + $0x124] sm:$0xf]
  %v193 = vld [vmem:[%s1 + $0x128] sm:$0xf]
  %v194 = vld [vmem:[%s1 + $0x12c] sm:$0xf]
  %v195 = vld [vmem:[%s1 + $0x130] sm:$0xf]
  %v196 = vld [vmem:[%s1 + $0x134] sm:$0xf]
  %v197 = vld [vmem:[%s1 + $0x138] sm:$0xf]
  %v198 = vld [vmem:[%s1 + $0x13c] sm:$0xf]
  %v199 = vld [vmem:[%s1 + $0x140] sm:$0xf]
  %v200 = vld [vmem:[%s1 + $0x144] sm:$0xf]
  %v201 = vld [vmem:[%s1 + $0x148] sm:$0xf]
  %v202 = vld [vmem:[%s1 + $0x14c] sm:$0xf]
  %v203 = vld [vmem:[%s1 + $0x150] sm:$0xf]
  %v204 = vld [vmem:[%s1 + $0x154] sm:$0xf]
  %v205 = vld [vmem:[%s1 + $0x158] sm:$0xf]
  %v206 = vld [vmem:[%s1 + $0x15c] sm:$0xf]
  %v207 = vld [vmem:[%s1 + $0x160] sm:$0xf]
  %v208 = vld [vmem:[%s1 + $0x164] sm:$0xf]
  %v209 = vld [vmem:[%s1 + $0x168] sm:$0xf]
  %v210 = vld [vmem:[%s1 + $0x16c] sm:$0xf]
  %v211 = vld [vmem:[%s1 + $0x170] sm:$0xf]
  %v212 = vld [vmem:[%s1 + $0x174] sm:$0xf]
  %v213 = vld [vmem:[%s1 + $0x178] sm:$0xf]
  %v214 = vld [vmem:[%s1 + $0x17c] sm:$0xf]
  %v215 = vld [vmem:[%s1 + $0x180] sm:$0xf]
  %v216 = vld [vmem:[%s1 + $0x184] sm:$0xf]
  %v217 = vld [vmem:[%s1 + $0x188] sm:$0xf]
  %v218 = vld [vmem:[%s1 + $0x18c] sm:$0xf]
  %v219 = vld [vmem:[%s1 + $0x190] sm:$0xf]
  %v220 = vld [vmem:[%s1 + $0x194] sm:$0xf]
  %v221 = vld [vmem:[%s1 + $0x198] sm:$0xf]
  %v222 = vld [vmem:[%s1 + $0x19c] sm:$0xf]
  %v223 = vld [vmem:[%s1 + $0x1a0] sm:$0xf]
  %v224 = vld [vmem:[%s1 + $0x1a4] sm:$0xf]
  %v225 = vld [vmem:[%s1 + $0x1a8] sm:$0xf]
  %v226 = vld [vmem:[%s1 + $0x1ac] sm:$0xf]
  %v227 = vld [vmem:[%s1 + $0x1b0] sm:$0xf]
  %v228 = vld [vmem:[%s1 + $0x1b4] sm:$0xf]
  %v229 = vld [vmem:[%s1 + $0x1b8] sm:$0xf]
  %v230 = vld [vmem:[%s1 + $0x1bc] sm:$0xf]
  %v231 = vld [vmem:[%s1 + $0x1c0] sm:$0xf]
  %v232 = vld [vmem:[%s1 + $0x1c4] sm:$0xf]
  %v233 = vld [vmem:[%s1 + $0x1c8] sm:$0xf]
  %v234 = vld [vmem:[%s1 + $0x1cc] sm:$0xf]
  %v235 = vld [vmem:[%s1 + $0x1d0] sm:$0xf]
  %v236 = vld [vmem:[%s1 + $0x1d4] sm:$0xf]
  %v237 = vld [vmem:[%s1 + $0x1d8] sm:$0xf]
  %v238 = vld [vmem:[%s1 + $0x1dc] sm:$0xf]
  %v239 = vld [vmem:[%s1 + $0x1e0] sm:$0xf]
  %v240 = vld [vmem:[%s1 + $0x1e4] sm:$0xf]
  %v241 = vld [vmem:[%s1 + $0x1e8] sm:$0xf]
  %v242 = vld [vmem:[%s1 + $0x1ec] sm:$0xf]
  %v243 = vld [vmem:[%s1 + $0x1f0] sm:$0xf]
  %v244 = vld [vmem:[%s1 + $0x1f4] sm:$0xf]
  %v245 = vld [vmem:[%s1 + $0x1f8] sm:$0xf]
  %v246 = vld [vmem:[%s1 + $0x1fc] sm:$0xf]
  %v247 = vld [vmem:[%s1 + $0x200] sm:$0xf]
  %v248 = vld [vmem:[%s1 + $0x204] sm:$0xf]
  %v249 = vld [vmem:[%s1 + $0x208] sm:$0xf]
  %v250 = vld [vmem:[%s1 + $0x20c] sm:$0xf]
  %v251 = vld [vmem:[%s1 + $0x210] sm:$0xf]
  %v252 = vld [vmem:[%s1 + $0x214] sm:$0xf]
  %v253 = vld [vmem:[%s1 + $0x218] sm:$0xf]
  %v254 = vld [vmem:[%s1 + $0x21c] sm:$0xf]
  %v255 = vld [vmem:[%s1 + $0x220] sm:$0xf]
  %v256 = vld [vmem:[%s1 + $0x224] sm:$0xf]
  %v257 = vld [vmem:[%s1 + $0x228] sm:$0xf]
  %v258 = vld [vmem:[%s1 + $0x22c] sm:$0xf]
  %v259 = vld [vmem:[%s1 + $0x230] sm:$0xf]
  %v260 = vld [vmem:[%s1 + $0x234] sm:$0xf]
  %v261 = vld [vmem:[%s1 + $0x238] sm:$0xf]
  %v262 = vld [vmem:[%s1 + $0x23c] sm:$0xf]
  %v263 = vld [vmem:[%s1 + $0x240] sm:$0xf]
  %v264 = vld [vmem:[%s1 + $0x244] sm:$0xf]
  %v265 = vld [vmem:[%s1 + $0x248] sm:$0xf]
  %v266 = vld [vmem:[%s1 + $0x24c] sm:$0xf]
  %v267 = vld [vmem:[%s1 + $0x250] sm:$0xf]
  %v268 = vld [vmem:[%s1 + $0x254] sm:$0xf]
  %v269 = vld [vmem:[%s1 + $0x258] sm:$0xf]
  %v270 = vld [vmem:[%s1 + $0x25c] sm:$0xf]
  %v271 = vld [vmem:[%s1 + $0x260] sm:$0xf]
  %v272 = vld [vmem:[%s1 + $0x264] sm:$0xf]
  %v273 = vld [vmem:[%s1 + $0x268] sm:$0xf]
  %v274 = vld [vmem:[%s1 + $0x26c] sm:$0xf]
  %v275 = vld [vmem:[%s1 + $0x270] sm:$0xf]
  %v276 = vld [vmem:[%s1 + $0x274] sm:$0xf]
  %v277 = vld [vmem:[%s1 + $0x278] sm:$0xf]
  %v278 = vld [vmem:[%s1 + $0x27c] sm:$0xf]
  %v279 = vld [vmem:[%s1 + $0x280] sm:$0xf]
  %v280 = vld [vmem:[%s1 + $0x284] sm:$0xf]
  %v281 = vld [vmem:[%s1 + $0x288] sm:$0xf]
  %v282 = vld [vmem:[%s1 + $0x28c] sm:$0xf]
  %v283 = vld [vmem:[%s1 + $0x290] sm:$0xf]
  %v284 = vld [vmem:[%s1 + $0x294] sm:$0xf]
  %v285 = vld [vmem:[%s1 + $0x298] sm:$0xf]
  %v286 = vld [vmem:[%s1 + $0x29c] sm:$0xf]
  %v287 = vld [vmem:[%s1 + $0x2a0] sm:$0xf]
  %v288 = vld [vmem:[%s1 + $0x2a4] sm:$0xf]
  %v289 = vld [vmem:[%s1 + $0x2a8] sm:$0xf]
  %v290 = vld [vmem:[%s1 + $0x2ac] sm:$0xf]
  %v291 = vld [vmem:[%s1 + $0x2b0] sm:$0xf]
  %v292 = vld [vmem:[%s1 + $0x2b4] sm:$0xf]
  %v293 = vld [vmem:[%s1 + $0x2b8] sm:$0xf]
  %v294 = vld [vmem:[%s1 + $0x2bc] sm:$0xf]
  %v295 = vld [vmem:[%s1 + $0x2c0] sm:$0xf]
  %v296 = vld [vmem:[%s1 + $0x2c4] sm:$0xf]
  %v297 = vld [vmem:[%s1 + $0x2c8] sm:$0xf]
  %v298 = vld [vmem:[%s1 + $0x2cc] sm:$0xf]
  %v299 = vld [vmem:[%s1 + $0x2d0] sm:$0xf]
  %v300 = vld [vmem:[%s1 + $0x2d4] sm:$0xf]
  %v301 = vld [vmem:[%s1 + $0x2d8] sm:$0xf]
  %v302 = vld [vmem:[%s1 + $0x2dc] sm:$0xf]
  %v303 = vld [vmem:[%s1 + $0x2e0] sm:$0xf]
  %v304 = vld [vmem:[%s1 + $0x2e4] sm:$0xf]
  %v305 = vld [vmem:[%s1 + $0x2e8] sm:$0xf]
  %v306 = vld [vmem:[%s1 + $0x2ec] sm:$0xf]
  %v307 = vld [vmem:[%s1 + $0x2f0] sm:$0xf]
  %v308 = vld [vmem:[%s1 + $0x2f4] sm:$0xf]
  %v309 = vld [vmem:[%s1 + $0x2f8] sm:$0xf]
  %v310 = vld [vmem:[%s1 + $0x2fc] sm:$0xf]
  %v311 = vld [vmem:[%s1 + $0x300] sm:$0xf]
  %v312 = vld [vmem:[%s1 + $0x304] sm:$0xf]
  %v313 = vld [vmem:[%s1 + $0x308] sm:$0xf]
  %v314 = vld [vmem:[%s1 + $0x30c] sm:$0xf]
  %v315 = vld [vmem:[%s1 + $0x310] sm:$0xf]
  %v316 = vld [vmem:[%s1 + $0x314] sm:$0xf]
  %v317 = vld [vmem:[%s1 + $0x318] sm:$0xf]
  %v318 = vld [vmem:[%s1 + $0x31c] sm:$0xf]
  %v319 = vld [vmem:[%s1 + $0x320] sm:$0xf]
  %v320 = vld [vmem:[%s1 + $0x324] sm:$0xf]
  %v321 = vld [vmem:[%s1 + $0x328] sm:$0xf]
  %v322 = vld [vmem:[%s1 + $0x32c] sm:$0xf]
  %v323 = vld [vmem:[%s1 + $0x330] sm:$0xf]
  %v324 = vld [vmem:[%s1 + $0x334] sm:$0xf]
  %v325 = vld [vmem:[%s1 + $0x338] sm:$0xf]
  %v326 = vld [vmem:[%s1 + $0x33c] sm:$0xf]
  %v327 = vld [vmem:[%s1 + $0x340] sm:$0xf]
  %v328 = vld [vmem:[%s1 + $0x344] sm:$0xf]
  %v329 = vld [vmem:[%s1 + $0x348] sm:$0xf]
  %v330 = vld [vmem:[%s1 + $0x34c] sm:$0xf]
  %v331 = vld [vmem:[%s1 + $0x350] sm:$0xf]
  %v332 = vld [vmem:[%s1 + $0x354] sm:$0xf]
  %v333 = vld [vmem:[%s1 + $0x358] sm:$0xf]
  %v334 = vld [vmem:[%s1 + $0x35c] sm:$0xf]
  %v335 = vld [vmem:[%s1 + $0x360] sm:$0xf]
  %v336 = vld [vmem:[%s1 + $0x364] sm:$0xf]
  %v337 = vld [vmem:[%s1 + $0x368] sm:$0xf]
  %v338 = vld [vmem:[%s1 + $0x36c] sm:$0xf]
  %v339 = vld [vmem:[%s1 + $0x370] sm:$0xf]
  %v340 = vld [vmem:[%s1 + $0x374] sm:$0xf]
  %v341 = vld [vmem:[%s1 + $0x378] sm:$0xf]
  %v342 = vld [vmem:[%s1 + $0x37c] sm:$0xf]
  %v343 = vld [vmem:[%s1 + $0x380] sm:$0xf]
  %v344 = vld [vmem:[%s1 + $0x384] sm:$0xf]
  %v345 = vld [vmem:[%s1 + $0x388] sm:$0xf]
  %v346 = vld [vmem:[%s1 + $0x38c] sm:$0xf]
  %v347 = vld [vmem:[%s1 + $0x390] sm:$0xf]
  %v348 = vld [vmem:[%s1 + $0x394] sm:$0xf]
  %v349 = vld [vmem:[%s1 + $0x398] sm:$0xf]
  %v350 = vld [vmem:[%s1 + $0x39c] sm:$0xf]
  %v351 = vld [vmem:[%s1 + $0x3a0] sm:$0xf]
  %v352 = vld [vmem:[%s1 + $0x3a4] sm:$0xf]
  %v353 = vld [vmem:[%s1 + $0x3a8] sm:$0xf]
  %v354 = vld [vmem:[%s1 + $0x3ac] sm:$0xf]
  %v355 = vld [vmem:[%s1 + $0x3b0] sm:$0xf]
  %v356 = vld [vmem:[%s1 + $0x3b4] sm:$0xf]
  %v357 = vld [vmem:[%s1 + $0x3b8] sm:$0xf]
  %v358 = vld [vmem:[%s1 + $0x3bc] sm:$0xf]
  %v359 = vld [vmem:[%s1 + $0x3c0] sm:$0xf]
  %v360 = vld [vmem:[%s1 + $0x3c4] sm:$0xf]
  %v361 = vld [vmem:[%s1 + $0x3c8] sm:$0xf]
  %v362 = vld [vmem:[%s1 + $0x3cc] sm:$0xf]
  %v363 = vld [vmem:[%s1 + $0x3d0] sm:$0xf]
  %v364 = vld [vmem:[%s1 + $0x3d4] sm:$0xf]
  %v365 = vld [vmem:[%s1 + $0x3d8] sm:$0xf]
  %v366 = vld [vmem:[%s1 + $0x3dc] sm:$0xf]
  %v367 = vld [vmem:[%s1 + $0x3e0] sm:$0xf]
  %v368 = vld [vmem:[%s1 + $0x3e4] sm:$0xf]
  %v369 = vld [vmem:[%s1 + $0x3e8] sm:$0xf]
  %v370 = vld [vmem:[%s1 + $0x3ec] sm:$0xf]
  %v371 = vld [vmem:[%s1 + $0x3f0] sm:$0xf]
  %v372 = vld [vmem:[%s1 + $0x3f4] sm:$0xf]
  %v373 = vld [vmem:[%s1 + $0x3f8] sm:$0xf]
  %v374 = vld [vmem:[%s1 + $0x3fc] sm:$0xf]
  %v375 = vld [vmem:[%s2] sm:$0x1]
  %v376 = vunpack.c.l.bf16 %v375
  %v377 = vlaneseq
  %v378 = vshrl.u32 %v377, 7
  %v379 = vsub.s32 0, %v378
  %v380 = vrot.slane %v376, %v379
  %v485 = vunpack.c.l.b16 %v15
  %v486 = vunpack.c.h.b16 %v15
  %v487 = vunpack.c.l.b16 %v16
  %v488 = vunpack.c.h.b16 %v16
  %v489 = vunpack.c.l.b16 %v17
  %v490 = vunpack.c.h.b16 %v17
  %v491 = vunpack.c.l.b16 %v18
  %v492 = vunpack.c.h.b16 %v18
  %v493 = vunpack.c.l.b16 %v19
  %v494 = vunpack.c.h.b16 %v19
  %v495 = vunpack.c.l.b16 %v20
  %v496 = vunpack.c.h.b16 %v20
  %v497 = vunpack.c.l.b16 %v21
  %v498 = vunpack.c.h.b16 %v21
  %v499 = vunpack.c.l.b16 %v22
  %v500 = vunpack.c.h.b16 %v22
  %v501 = vunpack.c.l.b16 %v23
  %v502 = vunpack.c.h.b16 %v23
  %v503 = vunpack.c.l.b16 %v24
  %v504 = vunpack.c.h.b16 %v24
  %v505 = vunpack.c.l.b16 %v25
  %v506 = vunpack.c.h.b16 %v25
  %v507 = vunpack.c.l.b16 %v26
  %v508 = vunpack.c.h.b16 %v26
  %v509 = vunpack.c.l.b16 %v27
  %v510 = vunpack.c.h.b16 %v27
  %v511 = vunpack.c.l.b16 %v28
  %v512 = vunpack.c.h.b16 %v28
  %v513 = vunpack.c.l.b16 %v29
  %v514 = vunpack.c.h.b16 %v29
  %v515 = vunpack.c.l.b16 %v30
  %v516 = vunpack.c.h.b16 %v30
  %v517 = vunpack.c.l.b16 %v31
  %v518 = vunpack.c.h.b16 %v31
  %v519 = vunpack.c.l.b16 %v32
  %v520 = vunpack.c.h.b16 %v32
  %v521 = vunpack.c.l.b16 %v33
  %v522 = vunpack.c.h.b16 %v33
  %v523 = vunpack.c.l.b16 %v34
  %v524 = vunpack.c.h.b16 %v34
  %v525 = vunpack.c.l.b16 %v35
  %v526 = vunpack.c.h.b16 %v35
  %v527 = vunpack.c.l.b16 %v36
  %v528 = vunpack.c.h.b16 %v36
  %v529 = vunpack.c.l.b16 %v37
  %v530 = vunpack.c.h.b16 %v37
  %v531 = vunpack.c.l.b16 %v38
  %v532 = vunpack.c.h.b16 %v38
  %v533 = vunpack.c.l.b16 %v39
  %v534 = vunpack.c.h.b16 %v39
  %v535 = vunpack.c.l.b16 %v40
  %v536 = vunpack.c.h.b16 %v40
  %v537 = vunpack.c.l.b16 %v41
  %v538 = vunpack.c.h.b16 %v41
  %v539 = vunpack.c.l.b16 %v42
  %v540 = vunpack.c.h.b16 %v42
  %v541 = vunpack.c.l.b16 %v43
  %v542 = vunpack.c.h.b16 %v43
  %v543 = vunpack.c.l.b16 %v44
  %v544 = vunpack.c.h.b16 %v44
  %v545 = vunpack.c.l.b16 %v45
  %v546 = vunpack.c.h.b16 %v45
  %v547 = vunpack.c.l.b16 %v46
  %v548 = vunpack.c.h.b16 %v46
  %v549 = vunpack.c.l.b16 %v47
  %v550 = vunpack.c.h.b16 %v47
  %v551 = vunpack.c.l.b16 %v48
  %v552 = vunpack.c.h.b16 %v48
  %v553 = vunpack.c.l.b16 %v49
  %v554 = vunpack.c.h.b16 %v49
  %v555 = vunpack.c.l.b16 %v50
  %v556 = vunpack.c.h.b16 %v50
  %v557 = vunpack.c.l.b16 %v51
  %v558 = vunpack.c.h.b16 %v51
  %v559 = vunpack.c.l.b16 %v52
  %v560 = vunpack.c.h.b16 %v52
  %v561 = vunpack.c.l.b16 %v53
  %v562 = vunpack.c.h.b16 %v53
  %v563 = vunpack.c.l.b16 %v54
  %v564 = vunpack.c.h.b16 %v54
  %v565 = vunpack.c.l.b16 %v55
  %v566 = vunpack.c.h.b16 %v55
  %v567 = vunpack.c.l.b16 %v56
  %v568 = vunpack.c.h.b16 %v56
  %v569 = vunpack.c.l.b16 %v57
  %v570 = vunpack.c.h.b16 %v57
  %v571 = vunpack.c.l.b16 %v58
  %v572 = vunpack.c.h.b16 %v58
  %v573 = vunpack.c.l.b16 %v59
  %v574 = vunpack.c.h.b16 %v59
  %v575 = vunpack.c.l.b16 %v60
  %v576 = vunpack.c.h.b16 %v60
  %v577 = vunpack.c.l.b16 %v61
  %v578 = vunpack.c.h.b16 %v61
  %v579 = vunpack.c.l.b16 %v62
  %v580 = vunpack.c.h.b16 %v62
  %v581 = vunpack.c.l.b16 %v63
  %v582 = vunpack.c.h.b16 %v63
  %v583 = vunpack.c.l.b16 %v64
  %v584 = vunpack.c.h.b16 %v64
  %v585 = vunpack.c.l.b16 %v65
  %v586 = vunpack.c.h.b16 %v65
  %v587 = vunpack.c.l.b16 %v66
  %v588 = vunpack.c.h.b16 %v66
  %v589 = vunpack.c.l.b16 %v67
  %v590 = vunpack.c.h.b16 %v67
  %v591 = vunpack.c.l.b16 %v68
  %v592 = vunpack.c.h.b16 %v68
  %v593 = vunpack.c.l.b16 %v69
  %v594 = vunpack.c.h.b16 %v69
  %v595 = vunpack.c.l.b16 %v70
  %v596 = vunpack.c.h.b16 %v70
  %v597 = vunpack.c.l.b16 %v71
  %v598 = vunpack.c.h.b16 %v71
  %v599 = vunpack.c.l.b16 %v72
  %v600 = vunpack.c.h.b16 %v72
  %v601 = vunpack.c.l.b16 %v73
  %v602 = vunpack.c.h.b16 %v73
  %v603 = vunpack.c.l.b16 %v74
  %v604 = vunpack.c.h.b16 %v74
  %v605 = vunpack.c.l.b16 %v75
  %v606 = vunpack.c.h.b16 %v75
  %v607 = vunpack.c.l.b16 %v76
  %v608 = vunpack.c.h.b16 %v76
  %v609 = vunpack.c.l.b16 %v77
  %v610 = vunpack.c.h.b16 %v77
  %v611 = vunpack.c.l.b16 %v78
  %v612 = vunpack.c.h.b16 %v78
  %v613 = vunpack.c.l.b16 %v79
  %v614 = vunpack.c.h.b16 %v79
  %v615 = vunpack.c.l.b16 %v80
  %v616 = vunpack.c.h.b16 %v80
  %v617 = vunpack.c.l.b16 %v81
  %v618 = vunpack.c.h.b16 %v81
  %v619 = vunpack.c.l.b16 %v82
  %v620 = vunpack.c.h.b16 %v82
  %v621 = vunpack.c.l.b16 %v83
  %v622 = vunpack.c.h.b16 %v83
  %v623 = vunpack.c.l.b16 %v84
  %v624 = vunpack.c.h.b16 %v84
  %v625 = vunpack.c.l.b16 %v85
  %v626 = vunpack.c.h.b16 %v85
  %v627 = vunpack.c.l.b16 %v86
  %v628 = vunpack.c.h.b16 %v86
  %v629 = vunpack.c.l.b16 %v87
  %v630 = vunpack.c.h.b16 %v87
  %v631 = vunpack.c.l.b16 %v88
  %v632 = vunpack.c.h.b16 %v88
  %v633 = vunpack.c.l.b16 %v89
  %v634 = vunpack.c.h.b16 %v89
  %v635 = vunpack.c.l.b16 %v90
  %v636 = vunpack.c.h.b16 %v90
  %v637 = vunpack.c.l.b16 %v91
  %v638 = vunpack.c.h.b16 %v91
  %v639 = vunpack.c.l.b16 %v92
  %v640 = vunpack.c.h.b16 %v92
  %v641 = vunpack.c.l.b16 %v93
  %v642 = vunpack.c.h.b16 %v93
  %v643 = vunpack.c.l.b16 %v94
  %v644 = vunpack.c.h.b16 %v94
  %v645 = vunpack.c.l.b16 %v95
  %v646 = vunpack.c.h.b16 %v95
  %v647 = vunpack.c.l.b16 %v96
  %v648 = vunpack.c.h.b16 %v96
  %v649 = vunpack.c.l.b16 %v97
  %v650 = vunpack.c.h.b16 %v97
  %v651 = vunpack.c.l.b16 %v98
  %v652 = vunpack.c.h.b16 %v98
  %v653 = vunpack.c.l.b16 %v99
  %v654 = vunpack.c.h.b16 %v99
  %v655 = vunpack.c.l.b16 %v100
  %v656 = vunpack.c.h.b16 %v100
  %v657 = vunpack.c.l.b16 %v101
  %v658 = vunpack.c.h.b16 %v101
  %v659 = vunpack.c.l.b16 %v102
  %v660 = vunpack.c.h.b16 %v102
  %v661 = vunpack.c.l.b16 %v103
  %v662 = vunpack.c.h.b16 %v103
  %v663 = vunpack.c.l.b16 %v104
  %v664 = vunpack.c.h.b16 %v104
  %v665 = vunpack.c.l.b16 %v105
  %v666 = vunpack.c.h.b16 %v105
  %v667 = vunpack.c.l.b16 %v106
  %v668 = vunpack.c.h.b16 %v106
  %v669 = vunpack.c.l.b16 %v107
  %v670 = vunpack.c.h.b16 %v107
  %v671 = vunpack.c.l.b16 %v108
  %v672 = vunpack.c.h.b16 %v108
  %v673 = vunpack.c.l.b16 %v109
  %v674 = vunpack.c.h.b16 %v109
  %v675 = vunpack.c.l.b16 %v110
  %v676 = vunpack.c.h.b16 %v110
  %v677 = vunpack.c.l.b16 %v111
  %v678 = vunpack.c.h.b16 %v111
  %v679 = vunpack.c.l.b16 %v112
  %v680 = vunpack.c.h.b16 %v112
  %v681 = vunpack.c.l.b16 %v113
  %v682 = vunpack.c.h.b16 %v113
  %v683 = vunpack.c.l.b16 %v114
  %v684 = vunpack.c.h.b16 %v114
  %v685 = vunpack.c.l.b16 %v115
  %v686 = vunpack.c.h.b16 %v115
  %v687 = vunpack.c.l.b16 %v116
  %v688 = vunpack.c.h.b16 %v116
  %v689 = vunpack.c.l.b16 %v117
  %v690 = vunpack.c.h.b16 %v117
  %v691 = vunpack.c.l.b16 %v118
  %v692 = vunpack.c.h.b16 %v118
  %v693 = vpack.c.b16 %v501, %v485
  %v694 = vpack.c.b16 %v502, %v486
  %v695 = vpack.c.b16 %v503, %v487
  %v696 = vpack.c.b16 %v504, %v488
  %v697 = vpack.c.b16 %v505, %v489
  %v698 = vpack.c.b16 %v506, %v490
  %v699 = vpack.c.b16 %v507, %v491
  %v700 = vpack.c.b16 %v508, %v492
  %v701 = vpack.c.b16 %v509, %v493
  %v702 = vpack.c.b16 %v510, %v494
  %v703 = vpack.c.b16 %v511, %v495
  %v704 = vpack.c.b16 %v512, %v496
  %v705 = vpack.c.b16 %v513, %v497
  %v706 = vpack.c.b16 %v514, %v498
  %v707 = vpack.c.b16 %v515, %v499
  %v708 = vpack.c.b16 %v516, %v500
  %v709 = vpack.c.b16 %v533, %v517
  %v710 = vpack.c.b16 %v534, %v518
  %v711 = vpack.c.b16 %v535, %v519
  %v712 = vpack.c.b16 %v536, %v520
  %v713 = vpack.c.b16 %v537, %v521
  %v714 = vpack.c.b16 %v538, %v522
  %v715 = vpack.c.b16 %v539, %v523
  %v716 = vpack.c.b16 %v540, %v524
  %v717 = vpack.c.b16 %v541, %v525
  %v718 = vpack.c.b16 %v542, %v526
  %v719 = vpack.c.b16 %v543, %v527
  %v720 = vpack.c.b16 %v544, %v528
  %v721 = vpack.c.b16 %v545, %v529
  %v722 = vpack.c.b16 %v546, %v530
  %v723 = vpack.c.b16 %v547, %v531
  %v724 = vpack.c.b16 %v548, %v532
  %v725 = vpack.c.b16 %v565, %v549
  %v726 = vpack.c.b16 %v566, %v550
  %v727 = vpack.c.b16 %v567, %v551
  %v728 = vpack.c.b16 %v568, %v552
  %v729 = vpack.c.b16 %v569, %v553
  %v730 = vpack.c.b16 %v570, %v554
  %v731 = vpack.c.b16 %v571, %v555
  %v732 = vpack.c.b16 %v572, %v556
  %v733 = vpack.c.b16 %v573, %v557
  %v734 = vpack.c.b16 %v574, %v558
  %v735 = vpack.c.b16 %v575, %v559
  %v736 = vpack.c.b16 %v576, %v560
  %v737 = vpack.c.b16 %v577, %v561
  %v738 = vpack.c.b16 %v578, %v562
  %v739 = vpack.c.b16 %v579, %v563
  %v740 = vpack.c.b16 %v580, %v564
  %v741 = vpack.c.b16 %v597, %v581
  %v742 = vpack.c.b16 %v598, %v582
  %v743 = vpack.c.b16 %v599, %v583
  %v744 = vpack.c.b16 %v600, %v584
  %v745 = vpack.c.b16 %v601, %v585
  %v746 = vpack.c.b16 %v602, %v586
  %v747 = vpack.c.b16 %v603, %v587
  %v748 = vpack.c.b16 %v604, %v588
  %v749 = vpack.c.b16 %v605, %v589
  %v750 = vpack.c.b16 %v606, %v590
  %v751 = vpack.c.b16 %v607, %v591
  %v752 = vpack.c.b16 %v608, %v592
  %v753 = vpack.c.b16 %v609, %v593
  %v754 = vpack.c.b16 %v610, %v594
  %v755 = vpack.c.b16 %v611, %v595
  %v756 = vpack.c.b16 %v612, %v596
  %v757 = vpack.c.b16 %v629, %v613
  %v758 = vpack.c.b16 %v630, %v614
  %v759 = vpack.c.b16 %v631, %v615
  %v760 = vpack.c.b16 %v632, %v616
  %v761 = vpack.c.b16 %v633, %v617
  %v762 = vpack.c.b16 %v634, %v618
  %v763 = vpack.c.b16 %v635, %v619
  %v764 = vpack.c.b16 %v636, %v620
  %v765 = vpack.c.b16 %v637, %v621
  %v766 = vpack.c.b16 %v638, %v622
  %v767 = vpack.c.b16 %v639, %v623
  %v768 = vpack.c.b16 %v640, %v624
  %v769 = vpack.c.b16 %v641, %v625
  %v770 = vpack.c.b16 %v642, %v626
  %v771 = vpack.c.b16 %v643, %v627
  %v772 = vpack.c.b16 %v644, %v628
  %v773 = vpack.c.b16 %v661, %v645
  %v774 = vpack.c.b16 %v662, %v646
  %v775 = vpack.c.b16 %v663, %v647
  %v776 = vpack.c.b16 %v664, %v648
  %v777 = vpack.c.b16 %v665, %v649
  %v778 = vpack.c.b16 %v666, %v650
  %v779 = vpack.c.b16 %v667, %v651
  %v780 = vpack.c.b16 %v668, %v652
  %v781 = vpack.c.b16 %v669, %v653
  %v782 = vpack.c.b16 %v670, %v654
  %v783 = vpack.c.b16 %v671, %v655
  %v784 = vpack.c.b16 %v672, %v656
  %v785 = vpack.c.b16 %v673, %v657
  %v786 = vpack.c.b16 %v674, %v658
  %v787 = vpack.c.b16 %v675, %v659
  %v788 = vpack.c.b16 %v676, %v660
  %v789 = vpack.c.b16 %v677, %v677
  %v790 = vpack.c.b16 %v678, %v678
  %v791 = vpack.c.b16 %v679, %v679
  %v792 = vpack.c.b16 %v680, %v680
  %v793 = vpack.c.b16 %v681, %v681
  %v794 = vpack.c.b16 %v682, %v682
  %v795 = vpack.c.b16 %v683, %v683
  %v796 = vpack.c.b16 %v684, %v684
  %v797 = vpack.c.b16 %v685, %v685
  %v798 = vpack.c.b16 %v686, %v686
  %v799 = vpack.c.b16 %v687, %v687
  %v800 = vpack.c.b16 %v688, %v688
  %v801 = vpack.c.b16 %v689, %v689
  %v802 = vpack.c.b16 %v690, %v690
  %v803 = vpack.c.b16 %v691, %v691
  %v804 = vpack.c.b16 %v692, %v692
  %v1173 = vunpack.c.l.b16 %v119
  %v1174 = vunpack.c.l.b16 %v120
  %v1175 = vunpack.c.l.b16 %v121
  %v1176 = vunpack.c.l.b16 %v122
  %v1177 = vunpack.c.l.b16 %v123
  %v1178 = vunpack.c.l.b16 %v124
  %v1179 = vunpack.c.l.b16 %v125
  %v1180 = vunpack.c.l.b16 %v126
  %v1181 = vunpack.c.l.b16 %v127
  %v1182 = vunpack.c.l.b16 %v128
  %v1183 = vunpack.c.l.b16 %v129
  %v1184 = vunpack.c.l.b16 %v130
  %v1185 = vunpack.c.l.b16 %v131
  %v1186 = vunpack.c.l.b16 %v132
  %v1187 = vunpack.c.l.b16 %v133
  %v1188 = vunpack.c.l.b16 %v134
  %v1189 = vunpack.c.l.b16 %v135
  %v1190 = vunpack.c.l.b16 %v136
  %v1191 = vunpack.c.l.b16 %v137
  %v1192 = vunpack.c.l.b16 %v138
  %v1193 = vunpack.c.l.b16 %v139
  %v1194 = vunpack.c.l.b16 %v140
  %v1195 = vunpack.c.l.b16 %v141
  %v1196 = vunpack.c.l.b16 %v142
  %v1197 = vunpack.c.l.b16 %v143
  %v1198 = vunpack.c.l.b16 %v144
  %v1199 = vunpack.c.l.b16 %v145
  %v1200 = vunpack.c.l.b16 %v146
  %v1201 = vunpack.c.l.b16 %v147
  %v1202 = vunpack.c.l.b16 %v148
  %v1203 = vunpack.c.l.b16 %v149
  %v1204 = vunpack.c.l.b16 %v150
  %v1205 = vunpack.c.l.b16 %v151
  %v1206 = vunpack.c.l.b16 %v152
  %v1207 = vunpack.c.l.b16 %v153
  %v1208 = vunpack.c.l.b16 %v154
  %v1209 = vunpack.c.l.b16 %v155
  %v1210 = vunpack.c.l.b16 %v156
  %v1211 = vunpack.c.l.b16 %v157
  %v1212 = vunpack.c.l.b16 %v158
  %v1213 = vunpack.c.l.b16 %v159
  %v1214 = vunpack.c.l.b16 %v160
  %v1215 = vunpack.c.l.b16 %v161
  %v1216 = vunpack.c.l.b16 %v162
  %v1217 = vunpack.c.l.b16 %v163
  %v1218 = vunpack.c.l.b16 %v164
  %v1219 = vunpack.c.l.b16 %v165
  %v1220 = vunpack.c.l.b16 %v166
  %v1221 = vunpack.c.l.b16 %v167
  %v1222 = vunpack.c.l.b16 %v168
  %v1223 = vunpack.c.l.b16 %v169
  %v1224 = vunpack.c.l.b16 %v170
  %v1225 = vunpack.c.l.b16 %v171
  %v1226 = vunpack.c.l.b16 %v172
  %v1227 = vunpack.c.l.b16 %v173
  %v1228 = vunpack.c.l.b16 %v174
  %v1229 = vunpack.c.l.b16 %v175
  %v1230 = vunpack.c.l.b16 %v176
  %v1231 = vunpack.c.l.b16 %v177
  %v1232 = vunpack.c.l.b16 %v178
  %v1233 = vunpack.c.l.b16 %v179
  %v1234 = vunpack.c.l.b16 %v180
  %v1235 = vunpack.c.l.b16 %v181
  %v1236 = vunpack.c.l.b16 %v182
  %v1237 = vunpack.c.l.b16 %v183
  %v1238 = vunpack.c.l.b16 %v184
  %v1239 = vunpack.c.l.b16 %v185
  %v1240 = vunpack.c.l.b16 %v186
  %v1241 = vunpack.c.l.b16 %v187
  %v1242 = vunpack.c.l.b16 %v188
  %v1243 = vunpack.c.l.b16 %v189
  %v1244 = vunpack.c.l.b16 %v190
  %v1245 = vunpack.c.l.b16 %v191
  %v1246 = vunpack.c.l.b16 %v192
  %v1247 = vunpack.c.l.b16 %v193
  %v1248 = vunpack.c.l.b16 %v194
  %v1249 = vunpack.c.l.b16 %v195
  %v1250 = vunpack.c.l.b16 %v196
  %v1251 = vunpack.c.l.b16 %v197
  %v1252 = vunpack.c.l.b16 %v198
  %v1253 = vunpack.c.l.b16 %v199
  %v1254 = vunpack.c.l.b16 %v200
  %v1255 = vunpack.c.l.b16 %v201
  %v1256 = vunpack.c.l.b16 %v202
  %v1257 = vunpack.c.l.b16 %v203
  %v1258 = vunpack.c.l.b16 %v204
  %v1259 = vunpack.c.l.b16 %v205
  %v1260 = vunpack.c.l.b16 %v206
  %v1261 = vunpack.c.l.b16 %v207
  %v1262 = vunpack.c.l.b16 %v208
  %v1263 = vunpack.c.l.b16 %v209
  %v1264 = vunpack.c.l.b16 %v210
  %v1265 = vunpack.c.l.b16 %v211
  %v1266 = vunpack.c.l.b16 %v212
  %v1267 = vunpack.c.l.b16 %v213
  %v1268 = vunpack.c.l.b16 %v214
  %v1269 = vunpack.c.l.b16 %v215
  %v1270 = vunpack.c.l.b16 %v216
  %v1271 = vunpack.c.l.b16 %v217
  %v1272 = vunpack.c.l.b16 %v218
  %v1273 = vunpack.c.l.b16 %v219
  %v1274 = vunpack.c.l.b16 %v220
  %v1275 = vunpack.c.l.b16 %v221
  %v1276 = vunpack.c.l.b16 %v222
  %v1277 = vunpack.c.l.b16 %v223
  %v1278 = vunpack.c.l.b16 %v224
  %v1279 = vunpack.c.l.b16 %v225
  %v1280 = vunpack.c.l.b16 %v226
  %v1281 = vunpack.c.l.b16 %v227
  %v1282 = vunpack.c.l.b16 %v228
  %v1283 = vunpack.c.l.b16 %v229
  %v1284 = vunpack.c.l.b16 %v230
  %v1285 = vunpack.c.l.b16 %v231
  %v1286 = vunpack.c.l.b16 %v232
  %v1287 = vunpack.c.l.b16 %v233
  %v1288 = vunpack.c.l.b16 %v234
  %v1289 = vunpack.c.l.b16 %v235
  %v1290 = vunpack.c.l.b16 %v236
  %v1291 = vunpack.c.l.b16 %v237
  %v1292 = vunpack.c.l.b16 %v238
  %v1293 = vunpack.c.l.b16 %v239
  %v1294 = vunpack.c.l.b16 %v240
  %v1295 = vunpack.c.l.b16 %v241
  %v1296 = vunpack.c.l.b16 %v242
  %v1297 = vunpack.c.l.b16 %v243
  %v1298 = vunpack.c.l.b16 %v244
  %v1299 = vunpack.c.l.b16 %v245
  %v1300 = vunpack.c.l.b16 %v246
  %v1301 = vunpack.c.l.b16 %v247
  %v1302 = vunpack.c.l.b16 %v248
  %v1303 = vunpack.c.l.b16 %v249
  %v1304 = vunpack.c.l.b16 %v250
  %v1305 = vunpack.c.l.b16 %v251
  %v1306 = vunpack.c.l.b16 %v252
  %v1307 = vunpack.c.l.b16 %v253
  %v1308 = vunpack.c.l.b16 %v254
  %v1309 = vunpack.c.l.b16 %v255
  %v1310 = vunpack.c.l.b16 %v256
  %v1311 = vunpack.c.l.b16 %v257
  %v1312 = vunpack.c.l.b16 %v258
  %v1313 = vunpack.c.l.b16 %v259
  %v1314 = vunpack.c.l.b16 %v260
  %v1315 = vunpack.c.l.b16 %v261
  %v1316 = vunpack.c.l.b16 %v262
  %v1317 = vunpack.c.l.b16 %v263
  %v1318 = vunpack.c.l.b16 %v264
  %v1319 = vunpack.c.l.b16 %v265
  %v1320 = vunpack.c.l.b16 %v266
  %v1321 = vunpack.c.l.b16 %v267
  %v1322 = vunpack.c.l.b16 %v268
  %v1323 = vunpack.c.l.b16 %v269
  %v1324 = vunpack.c.l.b16 %v270
  %v1325 = vunpack.c.l.b16 %v271
  %v1326 = vunpack.c.l.b16 %v272
  %v1327 = vunpack.c.l.b16 %v273
  %v1328 = vunpack.c.l.b16 %v274
  %v1329 = vunpack.c.l.b16 %v275
  %v1330 = vunpack.c.l.b16 %v276
  %v1331 = vunpack.c.l.b16 %v277
  %v1332 = vunpack.c.l.b16 %v278
  %v1333 = vunpack.c.l.b16 %v279
  %v1334 = vunpack.c.l.b16 %v280
  %v1335 = vunpack.c.l.b16 %v281
  %v1336 = vunpack.c.l.b16 %v282
  %v1337 = vunpack.c.l.b16 %v283
  %v1338 = vunpack.c.l.b16 %v284
  %v1339 = vunpack.c.l.b16 %v285
  %v1340 = vunpack.c.l.b16 %v286
  %v1341 = vunpack.c.l.b16 %v287
  %v1342 = vunpack.c.l.b16 %v288
  %v1343 = vunpack.c.l.b16 %v289
  %v1344 = vunpack.c.l.b16 %v290
  %v1345 = vunpack.c.l.b16 %v291
  %v1346 = vunpack.c.l.b16 %v292
  %v1347 = vunpack.c.l.b16 %v293
  %v1348 = vunpack.c.l.b16 %v294
  %v1349 = vunpack.c.l.b16 %v295
  %v1350 = vunpack.c.l.b16 %v296
  %v1351 = vunpack.c.l.b16 %v297
  %v1352 = vunpack.c.l.b16 %v298
  %v1353 = vunpack.c.l.b16 %v299
  %v1354 = vunpack.c.l.b16 %v300
  %v1355 = vunpack.c.l.b16 %v301
  %v1356 = vunpack.c.l.b16 %v302
  %v1357 = vunpack.c.l.b16 %v303
  %v1358 = vunpack.c.l.b16 %v304
  %v1359 = vunpack.c.l.b16 %v305
  %v1360 = vunpack.c.l.b16 %v306
  %v1361 = vunpack.c.l.b16 %v307
  %v1362 = vunpack.c.l.b16 %v308
  %v1363 = vunpack.c.l.b16 %v309
  %v1364 = vunpack.c.l.b16 %v310
  %v1365 = vunpack.c.l.b16 %v311
  %v1366 = vunpack.c.l.b16 %v312
  %v1367 = vunpack.c.l.b16 %v313
  %v1368 = vunpack.c.l.b16 %v314
  %v1369 = vunpack.c.l.b16 %v315
  %v1370 = vunpack.c.l.b16 %v316
  %v1371 = vunpack.c.l.b16 %v317
  %v1372 = vunpack.c.l.b16 %v318
  %v1373 = vunpack.c.l.b16 %v319
  %v1374 = vunpack.c.l.b16 %v320
  %v1375 = vunpack.c.l.b16 %v321
  %v1376 = vunpack.c.l.b16 %v322
  %v1377 = vunpack.c.l.b16 %v323
  %v1378 = vunpack.c.l.b16 %v324
  %v1379 = vunpack.c.l.b16 %v325
  %v1380 = vunpack.c.l.b16 %v326
  %v1381 = vunpack.c.l.b16 %v327
  %v1382 = vunpack.c.l.b16 %v328
  %v1383 = vunpack.c.l.b16 %v329
  %v1384 = vunpack.c.l.b16 %v330
  %v1385 = vunpack.c.l.b16 %v331
  %v1386 = vunpack.c.l.b16 %v332
  %v1387 = vunpack.c.l.b16 %v333
  %v1388 = vunpack.c.l.b16 %v334
  %v1389 = vunpack.c.l.b16 %v335
  %v1390 = vunpack.c.l.b16 %v336
  %v1391 = vunpack.c.l.b16 %v337
  %v1392 = vunpack.c.l.b16 %v338
  %v1393 = vunpack.c.l.b16 %v339
  %v1394 = vunpack.c.l.b16 %v340
  %v1395 = vunpack.c.l.b16 %v341
  %v1396 = vunpack.c.l.b16 %v342
  %v1397 = vunpack.c.l.b16 %v343
  %v1398 = vunpack.c.l.b16 %v344
  %v1399 = vunpack.c.l.b16 %v345
  %v1400 = vunpack.c.l.b16 %v346
  %v1401 = vunpack.c.l.b16 %v347
  %v1402 = vunpack.c.l.b16 %v348
  %v1403 = vunpack.c.l.b16 %v349
  %v1404 = vunpack.c.l.b16 %v350
  %v1405 = vunpack.c.l.b16 %v351
  %v1406 = vunpack.c.l.b16 %v352
  %v1407 = vunpack.c.l.b16 %v353
  %v1408 = vunpack.c.l.b16 %v354
  %v1409 = vunpack.c.l.b16 %v355
  %v1410 = vunpack.c.l.b16 %v356
  %v1411 = vunpack.c.l.b16 %v357
  %v1412 = vunpack.c.l.b16 %v358
  %v1413 = vunpack.c.l.b16 %v359
  %v1414 = vunpack.c.l.b16 %v360
  %v1415 = vunpack.c.l.b16 %v361
  %v1416 = vunpack.c.l.b16 %v362
  %v1417 = vunpack.c.l.b16 %v363
  %v1418 = vunpack.c.l.b16 %v364
  %v1419 = vunpack.c.l.b16 %v365
  %v1420 = vunpack.c.l.b16 %v366
  %v1421 = vunpack.c.l.b16 %v367
  %v1422 = vunpack.c.l.b16 %v368
  %v1423 = vunpack.c.l.b16 %v369
  %v1424 = vunpack.c.l.b16 %v370
  %v1425 = vunpack.c.l.b16 %v371
  %v1426 = vunpack.c.l.b16 %v372
  %v1427 = vunpack.c.l.b16 %v373
  %v1428 = vunpack.c.l.b16 %v374
  %v1429 = vpack.c.b16 %v1174, %v1173
  %v1430 = vpack.c.b16 %v1176, %v1175
  %v1431 = vpack.c.b16 %v1178, %v1177
  %v1432 = vpack.c.b16 %v1180, %v1179
  %v1433 = vpack.c.b16 %v1182, %v1181
  %v1434 = vpack.c.b16 %v1184, %v1183
  %v1435 = vpack.c.b16 %v1186, %v1185
  %v1436 = vpack.c.b16 %v1188, %v1187
  %v1437 = vpack.c.b16 %v1190, %v1189
  %v1438 = vpack.c.b16 %v1192, %v1191
  %v1439 = vpack.c.b16 %v1194, %v1193
  %v1440 = vpack.c.b16 %v1196, %v1195
  %v1441 = vpack.c.b16 %v1198, %v1197
  %v1442 = vpack.c.b16 %v1200, %v1199
  %v1443 = vpack.c.b16 %v1202, %v1201
  %v1444 = vpack.c.b16 %v1204, %v1203
  %v1445 = vpack.c.b16 %v1206, %v1205
  %v1446 = vpack.c.b16 %v1208, %v1207
  %v1447 = vpack.c.b16 %v1210, %v1209
  %v1448 = vpack.c.b16 %v1212, %v1211
  %v1449 = vpack.c.b16 %v1214, %v1213
  %v1450 = vpack.c.b16 %v1216, %v1215
  %v1451 = vpack.c.b16 %v1218, %v1217
  %v1452 = vpack.c.b16 %v1220, %v1219
  %v1453 = vpack.c.b16 %v1222, %v1221
  %v1454 = vpack.c.b16 %v1224, %v1223
  %v1455 = vpack.c.b16 %v1226, %v1225
  %v1456 = vpack.c.b16 %v1228, %v1227
  %v1457 = vpack.c.b16 %v1230, %v1229
  %v1458 = vpack.c.b16 %v1232, %v1231
  %v1459 = vpack.c.b16 %v1234, %v1233
  %v1460 = vpack.c.b16 %v1236, %v1235
  %v1461 = vpack.c.b16 %v1238, %v1237
  %v1462 = vpack.c.b16 %v1240, %v1239
  %v1463 = vpack.c.b16 %v1242, %v1241
  %v1464 = vpack.c.b16 %v1244, %v1243
  %v1465 = vpack.c.b16 %v1246, %v1245
  %v1466 = vpack.c.b16 %v1248, %v1247
  %v1467 = vpack.c.b16 %v1250, %v1249
  %v1468 = vpack.c.b16 %v1252, %v1251
  %v1469 = vpack.c.b16 %v1254, %v1253
  %v1470 = vpack.c.b16 %v1256, %v1255
  %v1471 = vpack.c.b16 %v1258, %v1257
  %v1472 = vpack.c.b16 %v1260, %v1259
  %v1473 = vpack.c.b16 %v1262, %v1261
  %v1474 = vpack.c.b16 %v1264, %v1263
  %v1475 = vpack.c.b16 %v1266, %v1265
  %v1476 = vpack.c.b16 %v1268, %v1267
  %v1477 = vpack.c.b16 %v1270, %v1269
  %v1478 = vpack.c.b16 %v1272, %v1271
  %v1479 = vpack.c.b16 %v1274, %v1273
  %v1480 = vpack.c.b16 %v1276, %v1275
  %v1481 = vpack.c.b16 %v1278, %v1277
  %v1482 = vpack.c.b16 %v1280, %v1279
  %v1483 = vpack.c.b16 %v1282, %v1281
  %v1484 = vpack.c.b16 %v1284, %v1283
  %v1485 = vpack.c.b16 %v1286, %v1285
  %v1486 = vpack.c.b16 %v1288, %v1287
  %v1487 = vpack.c.b16 %v1290, %v1289
  %v1488 = vpack.c.b16 %v1292, %v1291
  %v1489 = vpack.c.b16 %v1294, %v1293
  %v1490 = vpack.c.b16 %v1296, %v1295
  %v1491 = vpack.c.b16 %v1298, %v1297
  %v1492 = vpack.c.b16 %v1300, %v1299
  %v1493 = vpack.c.b16 %v1302, %v1301
  %v1494 = vpack.c.b16 %v1304, %v1303
  %v1495 = vpack.c.b16 %v1306, %v1305
  %v1496 = vpack.c.b16 %v1308, %v1307
  %v1497 = vpack.c.b16 %v1310, %v1309
  %v1498 = vpack.c.b16 %v1312, %v1311
  %v1499 = vpack.c.b16 %v1314, %v1313
  %v1500 = vpack.c.b16 %v1316, %v1315
  %v1501 = vpack.c.b16 %v1318, %v1317
  %v1502 = vpack.c.b16 %v1320, %v1319
  %v1503 = vpack.c.b16 %v1322, %v1321
  %v1504 = vpack.c.b16 %v1324, %v1323
  %v1505 = vpack.c.b16 %v1326, %v1325
  %v1506 = vpack.c.b16 %v1328, %v1327
  %v1507 = vpack.c.b16 %v1330, %v1329
  %v1508 = vpack.c.b16 %v1332, %v1331
  %v1509 = vpack.c.b16 %v1334, %v1333
  %v1510 = vpack.c.b16 %v1336, %v1335
  %v1511 = vpack.c.b16 %v1338, %v1337
  %v1512 = vpack.c.b16 %v1340, %v1339
  %v1513 = vpack.c.b16 %v1342, %v1341
  %v1514 = vpack.c.b16 %v1344, %v1343
  %v1515 = vpack.c.b16 %v1346, %v1345
  %v1516 = vpack.c.b16 %v1348, %v1347
  %v1517 = vpack.c.b16 %v1350, %v1349
  %v1518 = vpack.c.b16 %v1352, %v1351
  %v1519 = vpack.c.b16 %v1354, %v1353
  %v1520 = vpack.c.b16 %v1356, %v1355
  %v1521 = vpack.c.b16 %v1358, %v1357
  %v1522 = vpack.c.b16 %v1360, %v1359
  %v1523 = vpack.c.b16 %v1362, %v1361
  %v1524 = vpack.c.b16 %v1364, %v1363
  %v1525 = vpack.c.b16 %v1366, %v1365
  %v1526 = vpack.c.b16 %v1368, %v1367
  %v1527 = vpack.c.b16 %v1370, %v1369
  %v1528 = vpack.c.b16 %v1372, %v1371
  %v1529 = vpack.c.b16 %v1374, %v1373
  %v1530 = vpack.c.b16 %v1376, %v1375
  %v1531 = vpack.c.b16 %v1378, %v1377
  %v1532 = vpack.c.b16 %v1380, %v1379
  %v1533 = vpack.c.b16 %v1382, %v1381
  %v1534 = vpack.c.b16 %v1384, %v1383
  %v1535 = vpack.c.b16 %v1386, %v1385
  %v1536 = vpack.c.b16 %v1388, %v1387
  %v1537 = vpack.c.b16 %v1390, %v1389
  %v1538 = vpack.c.b16 %v1392, %v1391
  %v1539 = vpack.c.b16 %v1394, %v1393
  %v1540 = vpack.c.b16 %v1396, %v1395
  %v1541 = vpack.c.b16 %v1398, %v1397
  %v1542 = vpack.c.b16 %v1400, %v1399
  %v1543 = vpack.c.b16 %v1402, %v1401
  %v1544 = vpack.c.b16 %v1404, %v1403
  %v1545 = vpack.c.b16 %v1406, %v1405
  %v1546 = vpack.c.b16 %v1408, %v1407
  %v1547 = vpack.c.b16 %v1410, %v1409
  %v1548 = vpack.c.b16 %v1412, %v1411
  %v1549 = vpack.c.b16 %v1414, %v1413
  %v1550 = vpack.c.b16 %v1416, %v1415
  %v1551 = vpack.c.b16 %v1418, %v1417
  %v1552 = vpack.c.b16 %v1420, %v1419
  %v1553 = vpack.c.b16 %v1422, %v1421
  %v1554 = vpack.c.b16 %v1424, %v1423
  %v1555 = vpack.c.b16 %v1426, %v1425
  %v1556 = vpack.c.b16 %v1428, %v1427
  %1685 = vmatprep.subr.bf16.mxu0 0
  %1686 = vmatpush1.bf16.msra.mxu0 %v1429
  %1687 = vmatprep.subr.bf16.mxu0 0
  %1688 = vmatpush1.bf16.msra.mxu0 %v1430
  %1689 = vmatprep.subr.bf16.mxu0 0
  %1690 = vmatpush1.bf16.msra.mxu0 %v1431
  %1691 = vmatprep.subr.bf16.mxu0 0
  %1692 = vmatpush1.bf16.msra.mxu0 %v1432
  %1693 = vmatprep.subr.bf16.mxu0 0
  %1694 = vmatpush1.bf16.msra.mxu0 %v1433
  %1695 = vmatprep.subr.bf16.mxu0 0
  %1696 = vmatpush1.bf16.msra.mxu0 %v1434
  %1697 = vmatprep.subr.bf16.mxu0 0
  %1698 = vmatpush1.bf16.msra.mxu0 %v1435
  %1699 = vmatprep.subr.bf16.mxu0 0
  %1700 = vmatpush1.bf16.msra.mxu0 %v1436
  %1701 = vmatprep.subr.bf16.mxu0 0
  %1702 = vmatpush1.bf16.msra.mxu0 %v1437
  %1703 = vmatprep.subr.bf16.mxu0 0
  %1704 = vmatpush1.bf16.msra.mxu0 %v1438
  %1705 = vmatprep.subr.bf16.mxu0 0
  %1706 = vmatpush1.bf16.msra.mxu0 %v1439
  %1707 = vmatprep.subr.bf16.mxu0 0
  %1708 = vmatpush1.bf16.msra.mxu0 %v1440
  %1709 = vmatprep.subr.bf16.mxu0 0
  %1710 = vmatpush1.bf16.msra.mxu0 %v1441
  %1711 = vmatprep.subr.bf16.mxu0 0
  %1712 = vmatpush1.bf16.msra.mxu0 %v1442
  %1713 = vmatprep.subr.bf16.mxu0 0
  %1714 = vmatpush1.bf16.msra.mxu0 %v1443
  %1715 = vmatprep.subr.bf16.mxu0 0
  %1716 = vmatpush1.bf16.msra.mxu0 %v1444
  %1717 = vmatprep.mubr.bf16.mxu0 %v694
  %1718 = vmatmul.mubr.bf16.gmra.mrb[0].mxu0 %v693
  %v1719 = vpop.f32.mrb[0].mxu0
  %v1720 = vadd.f32 %v380, %v1719
  %v1721 = vpop.f32.mrb[0].mxu0
  %v1722 = vpop.f32.mrb[0].mxu0
  %v1723 = vadd.f32 %v380, %v1722
  %v1724 = vpop.f32.mrb[0].mxu0
  %1725 = vmatprep.mubr.bf16.mxu0 %v710
  %1726 = vmatmul.mubr.bf16.gmra.mrb[0].mxu0 %v709
  %v1727 = vpop.f32.mrb[0].mxu0
  %v1728 = vadd.f32 %v380, %v1727
  %v1729 = vpop.f32.mrb[0].mxu0
  %v1730 = vpop.f32.mrb[0].mxu0
  %v1731 = vadd.f32 %v380, %v1730
  %v1732 = vpop.f32.mrb[0].mxu0
  %1733 = vmatprep.mubr.bf16.mxu0 %v726
  %1734 = vmatmul.mubr.bf16.gmra.mrb[0].mxu0 %v725
  %v1735 = vpop.f32.mrb[0].mxu0
  %v1736 = vadd.f32 %v380, %v1735
  %v1737 = vpop.f32.mrb[0].mxu0
  %v1738 = vpop.f32.mrb[0].mxu0
  %v1739 = vadd.f32 %v380, %v1738
  %v1740 = vpop.f32.mrb[0].mxu0
  %1741 = vmatprep.mubr.bf16.mxu0 %v742
  %1742 = vmatmul.mubr.bf16.gmra.mrb[0].mxu0 %v741
  %v1743 = vpop.f32.mrb[0].mxu0
  %v1744 = vadd.f32 %v380, %v1743
  %v1745 = vpop.f32.mrb[0].mxu0
  %v1746 = vpop.f32.mrb[0].mxu0
  %v1747 = vadd.f32 %v380, %v1746
  %v1748 = vpop.f32.mrb[0].mxu0
  %1749 = vmatprep.mubr.bf16.mxu0 %v758
  %1750 = vmatmul.mubr.bf16.gmra.mrb[0].mxu0 %v757
  %v1751 = vpop.f32.mrb[0].mxu0
  %v1752 = vadd.f32 %v380, %v1751
  %v1753 = vpop.f32.mrb[0].mxu0
  %v1754 = vpop.f32.mrb[0].mxu0
  %v1755 = vadd.f32 %v380, %v1754
  %v1756 = vpop.f32.mrb[0].mxu0
  %1757 = vmatprep.mubr.bf16.mxu0 %v774
  %1758 = vmatmul.mubr.bf16.gmra.mrb[0].mxu0 %v773
  %v1759 = vpop.f32.mrb[0].mxu0
  %v1760 = vadd.f32 %v380, %v1759
  %v1761 = vpop.f32.mrb[0].mxu0
  %v1762 = vpop.f32.mrb[0].mxu0
  %v1763 = vadd.f32 %v380, %v1762
  %v1764 = vpop.f32.mrb[0].mxu0
  %1765 = vmatprep.mubr.bf16.mxu0 %v790
  %1766 = vmatmul.mubr.bf16.gmra.mrb[0].mxu0 %v789
  %v1767 = vpop.f32.mrb[0].mxu0
  %v1768 = vadd.f32 %v380, %v1767
  %v1769 = vpop.f32.mrb[0].mxu0
  %v1770 = vpop.f32.mrb[0].mxu0
  %v1771 = vpop.f32.mrb[0].mxu0
  %1772 = vdwg.mxu0
  %1773 = vmatprep.subr.bf16.mxu0 0
  %1774 = vmatpush1.bf16.msra.mxu0 %v1445
  %1775 = vmatprep.subr.bf16.mxu0 0
  %1776 = vmatpush1.bf16.msra.mxu0 %v1446
  %1777 = vmatprep.subr.bf16.mxu0 0
  %1778 = vmatpush1.bf16.msra.mxu0 %v1447
  %1779 = vmatprep.subr.bf16.mxu0 0
  %1780 = vmatpush1.bf16.msra.mxu0 %v1448
  %1781 = vmatprep.subr.bf16.mxu0 0
  %1782 = vmatpush1.bf16.msra.mxu0 %v1449
  %1783 = vmatprep.subr.bf16.mxu0 0
  %1784 = vmatpush1.bf16.msra.mxu0 %v1450
  %1785 = vmatprep.subr.bf16.mxu0 0
  %1786 = vmatpush1.bf16.msra.mxu0 %v1451
  %1787 = vmatprep.subr.bf16.mxu0 0
  %1788 = vmatpush1.bf16.msra.mxu0 %v1452
  %1789 = vmatprep.subr.bf16.mxu0 0
  %1790 = vmatpush1.bf16.msra.mxu0 %v1453
  %1791 = vmatprep.subr.bf16.mxu0 0
  %1792 = vmatpush1.bf16.msra.mxu0 %v1454
  %1793 = vmatprep.subr.bf16.mxu0 0
  %1794 = vmatpush1.bf16.msra.mxu0 %v1455
  %1795 = vmatprep.subr.bf16.mxu0 0
  %1796 = vmatpush1.bf16.msra.mxu0 %v1456
  %1797 = vmatprep.subr.bf16.mxu0 0
  %1798 = vmatpush1.bf16.msra.mxu0 %v1457
  %1799 = vmatprep.subr.bf16.mxu0 0
  %1800 = vmatpush1.bf16.msra.mxu0 %v1458
  %1801 = vmatprep.subr.bf16.mxu0 0
  %1802 = vmatpush1.bf16.msra.mxu0 %v1459
  %1803 = vmatprep.subr.bf16.mxu0 0
  %1804 = vmatpush1.bf16.msra.mxu0 %v1460
  %1805 = vmatprep.mubr.bf16.mxu0 %v696
  %1806 = vmatmul.mubr.bf16.gmra.mrb[0].mxu0 %v695
  %v1807 = vpop.f32.mrb[0].mxu0
  %v1808 = vadd.f32 %v1720, %v1807
  %v1809 = vpop.f32.mrb[0].mxu0
  %v1810 = vpop.f32.mrb[0].mxu0
  %v1811 = vadd.f32 %v1723, %v1810
  %v1812 = vpop.f32.mrb[0].mxu0
  %1813 = vmatprep.mubr.bf16.mxu0 %v712
  %1814 = vmatmul.mubr.bf16.gmra.mrb[0].mxu0 %v711
  %v1815 = vpop.f32.mrb[0].mxu0
  %v1816 = vadd.f32 %v1728, %v1815
  %v1817 = vpop.f32.mrb[0].mxu0
  %v1818 = vpop.f32.mrb[0].mxu0
  %v1819 = vadd.f32 %v1731, %v1818
  %v1820 = vpop.f32.mrb[0].mxu0
  %1821 = vmatprep.mubr.bf16.mxu0 %v728
  %1822 = vmatmul.mubr.bf16.gmra.mrb[0].mxu0 %v727
  %v1823 = vpop.f32.mrb[0].mxu0
  %v1824 = vadd.f32 %v1736, %v1823
  %v1825 = vpop.f32.mrb[0].mxu0
  %v1826 = vpop.f32.mrb[0].mxu0
  %v1827 = vadd.f32 %v1739, %v1826
  %v1828 = vpop.f32.mrb[0].mxu0
  %1829 = vmatprep.mubr.bf16.mxu0 %v744
  %1830 = vmatmul.mubr.bf16.gmra.mrb[0].mxu0 %v743
  %v1831 = vpop.f32.mrb[0].mxu0
  %v1832 = vadd.f32 %v1744, %v1831
  %v1833 = vpop.f32.mrb[0].mxu0
  %v1834 = vpop.f32.mrb[0].mxu0
  %v1835 = vadd.f32 %v1747, %v1834
  %v1836 = vpop.f32.mrb[0].mxu0
  %1837 = vmatprep.mubr.bf16.mxu0 %v760
  %1838 = vmatmul.mubr.bf16.gmra.mrb[0].mxu0 %v759
  %v1839 = vpop.f32.mrb[0].mxu0
  %v1840 = vadd.f32 %v1752, %v1839
  %v1841 = vpop.f32.mrb[0].mxu0
  %v1842 = vpop.f32.mrb[0].mxu0
  %v1843 = vadd.f32 %v1755, %v1842
  %v1844 = vpop.f32.mrb[0].mxu0
  %1845 = vmatprep.mubr.bf16.mxu0 %v776
  %1846 = vmatmul.mubr.bf16.gmra.mrb[0].mxu0 %v775
  %v1847 = vpop.f32.mrb[0].mxu0
  %v1848 = vadd.f32 %v1760, %v1847
  %v1849 = vpop.f32.mrb[0].mxu0
  %v1850 = vpop.f32.mrb[0].mxu0
  %v1851 = vadd.f32 %v1763, %v1850
  %v1852 = vpop.f32.mrb[0].mxu0
  %1853 = vmatprep.mubr.bf16.mxu0 %v792
  %1854 = vmatmul.mubr.bf16.gmra.mrb[0].mxu0 %v791
  %v1855 = vpop.f32.mrb[0].mxu0
  %v1856 = vadd.f32 %v1768, %v1855
  %v1857 = vpop.f32.mrb[0].mxu0
  %v1858 = vpop.f32.mrb[0].mxu0
  %v1859 = vpop.f32.mrb[0].mxu0
  %1860 = vdwg.mxu0
  %1861 = vmatprep.subr.bf16.mxu0 0
  %1862 = vmatpush1.bf16.msra.mxu0 %v1461
  %1863 = vmatprep.subr.bf16.mxu0 0
  %1864 = vmatpush1.bf16.msra.mxu0 %v1462
  %1865 = vmatprep.subr.bf16.mxu0 0
  %1866 = vmatpush1.bf16.msra.mxu0 %v1463
  %1867 = vmatprep.subr.bf16.mxu0 0
  %1868 = vmatpush1.bf16.msra.mxu0 %v1464
  %1869 = vmatprep.subr.bf16.mxu0 0
  %1870 = vmatpush1.bf16.msra.mxu0 %v1465
  %1871 = vmatprep.subr.bf16.mxu0 0
  %1872 = vmatpush1.bf16.msra.mxu0 %v1466
  %1873 = vmatprep.subr.bf16.mxu0 0
  %1874 = vmatpush1.bf16.msra.mxu0 %v1467
  %1875 = vmatprep.subr.bf16.mxu0 0
  %1876 = vmatpush1.bf16.msra.mxu0 %v1468
  %1877 = vmatprep.subr.bf16.mxu0 0
  %1878 = vmatpush1.bf16.msra.mxu0 %v1469
  %1879 = vmatprep.subr.bf16.mxu0 0
  %1880 = vmatpush1.bf16.msra.mxu0 %v1470
  %1881 = vmatprep.subr.bf16.mxu0 0
  %1882 = vmatpush1.bf16.msra.mxu0 %v1471
  %1883 = vmatprep.subr.bf16.mxu0 0
  %1884 = vmatpush1.bf16.msra.mxu0 %v1472
  %1885 = vmatprep.subr.bf16.mxu0 0
  %1886 = vmatpush1.bf16.msra.mxu0 %v1473
  %1887 = vmatprep.subr.bf16.mxu0 0
  %1888 = vmatpush1.bf16.msra.mxu0 %v1474
  %1889 = vmatprep.subr.bf16.mxu0 0
  %1890 = vmatpush1.bf16.msra.mxu0 %v1475
  %1891 = vmatprep.subr.bf16.mxu0 0
  %1892 = vmatpush1.bf16.msra.mxu0 %v1476
  %1893 = vmatprep.mubr.bf16.mxu0 %v698
  %1894 = vmatmul.mubr.bf16.gmra.mrb[0].mxu0 %v697
  %v1895 = vpop.f32.mrb[0].mxu0
  %v1896 = vadd.f32 %v1808, %v1895
  %v1897 = vpop.f32.mrb[0].mxu0
  %v1898 = vpop.f32.mrb[0].mxu0
  %v1899 = vadd.f32 %v1811, %v1898
  %v1900 = vpop.f32.mrb[0].mxu0
  %1901 = vmatprep.mubr.bf16.mxu0 %v714
  %1902 = vmatmul.mubr.bf16.gmra.mrb[0].mxu0 %v713
  %v1903 = vpop.f32.mrb[0].mxu0
  %v1904 = vadd.f32 %v1816, %v1903
  %v1905 = vpop.f32.mrb[0].mxu0
  %v1906 = vpop.f32.mrb[0].mxu0
  %v1907 = vadd.f32 %v1819, %v1906
  %v1908 = vpop.f32.mrb[0].mxu0
  %1909 = vmatprep.mubr.bf16.mxu0 %v730
  %1910 = vmatmul.mubr.bf16.gmra.mrb[0].mxu0 %v729
  %v1911 = vpop.f32.mrb[0].mxu0
  %v1912 = vadd.f32 %v1824, %v1911
  %v1913 = vpop.f32.mrb[0].mxu0
  %v1914 = vpop.f32.mrb[0].mxu0
  %v1915 = vadd.f32 %v1827, %v1914
  %v1916 = vpop.f32.mrb[0].mxu0
  %1917 = vmatprep.mubr.bf16.mxu0 %v746
  %1918 = vmatmul.mubr.bf16.gmra.mrb[0].mxu0 %v745
  %v1919 = vpop.f32.mrb[0].mxu0
  %v1920 = vadd.f32 %v1832, %v1919
  %v1921 = vpop.f32.mrb[0].mxu0
  %v1922 = vpop.f32.mrb[0].mxu0
  %v1923 = vadd.f32 %v1835, %v1922
  %v1924 = vpop.f32.mrb[0].mxu0
  %1925 = vmatprep.mubr.bf16.mxu0 %v762
  %1926 = vmatmul.mubr.bf16.gmra.mrb[0].mxu0 %v761
  %v1927 = vpop.f32.mrb[0].mxu0
  %v1928 = vadd.f32 %v1840, %v1927
  %v1929 = vpop.f32.mrb[0].mxu0
  %v1930 = vpop.f32.mrb[0].mxu0
  %v1931 = vadd.f32 %v1843, %v1930
  %v1932 = vpop.f32.mrb[0].mxu0
  %1933 = vmatprep.mubr.bf16.mxu0 %v778
  %1934 = vmatmul.mubr.bf16.gmra.mrb[0].mxu0 %v777
  %v1935 = vpop.f32.mrb[0].mxu0
  %v1936 = vadd.f32 %v1848, %v1935
  %v1937 = vpop.f32.mrb[0].mxu0
  %v1938 = vpop.f32.mrb[0].mxu0
  %v1939 = vadd.f32 %v1851, %v1938
  %v1940 = vpop.f32.mrb[0].mxu0
  %1941 = vmatprep.mubr.bf16.mxu0 %v794
  %1942 = vmatmul.mubr.bf16.gmra.mrb[0].mxu0 %v793
  %v1943 = vpop.f32.mrb[0].mxu0
  %v1944 = vadd.f32 %v1856, %v1943
  %v1945 = vpop.f32.mrb[0].mxu0
  %v1946 = vpop.f32.mrb[0].mxu0
  %v1947 = vpop.f32.mrb[0].mxu0
  %1948 = vdwg.mxu0
  %1949 = vmatprep.subr.bf16.mxu0 0
  %1950 = vmatpush1.bf16.msra.mxu0 %v1477
  %1951 = vmatprep.subr.bf16.mxu0 0
  %1952 = vmatpush1.bf16.msra.mxu0 %v1478
  %1953 = vmatprep.subr.bf16.mxu0 0
  %1954 = vmatpush1.bf16.msra.mxu0 %v1479
  %1955 = vmatprep.subr.bf16.mxu0 0
  %1956 = vmatpush1.bf16.msra.mxu0 %v1480
  %1957 = vmatprep.subr.bf16.mxu0 0
  %1958 = vmatpush1.bf16.msra.mxu0 %v1481
  %1959 = vmatprep.subr.bf16.mxu0 0
  %1960 = vmatpush1.bf16.msra.mxu0 %v1482
  %1961 = vmatprep.subr.bf16.mxu0 0
  %1962 = vmatpush1.bf16.msra.mxu0 %v1483
  %1963 = vmatprep.subr.bf16.mxu0 0
  %1964 = vmatpush1.bf16.msra.mxu0 %v1484
  %1965 = vmatprep.subr.bf16.mxu0 0
  %1966 = vmatpush1.bf16.msra.mxu0 %v1485
  %1967 = vmatprep.subr.bf16.mxu0 0
  %1968 = vmatpush1.bf16.msra.mxu0 %v1486
  %1969 = vmatprep.subr.bf16.mxu0 0
  %1970 = vmatpush1.bf16.msra.mxu0 %v1487
  %1971 = vmatprep.subr.bf16.mxu0 0
  %1972 = vmatpush1.bf16.msra.mxu0 %v1488
  %1973 = vmatprep.subr.bf16.mxu0 0
  %1974 = vmatpush1.bf16.msra.mxu0 %v1489
  %1975 = vmatprep.subr.bf16.mxu0 0
  %1976 = vmatpush1.bf16.msra.mxu0 %v1490
  %1977 = vmatprep.subr.bf16.mxu0 0
  %1978 = vmatpush1.bf16.msra.mxu0 %v1491
  %1979 = vmatprep.subr.bf16.mxu0 0
  %1980 = vmatpush1.bf16.msra.mxu0 %v1492
  %1981 = vmatprep.mubr.bf16.mxu0 %v700
  %1982 = vmatmul.mubr.bf16.gmra.mrb[0].mxu0 %v699
  %v1983 = vpop.f32.mrb[0].mxu0
  %v1984 = vadd.f32 %v1896, %v1983
  %v1985 = vpop.f32.mrb[0].mxu0
  %v1986 = vpop.f32.mrb[0].mxu0
  %v1987 = vadd.f32 %v1899, %v1986
  %v1988 = vpop.f32.mrb[0].mxu0
  %1989 = vmatprep.mubr.bf16.mxu0 %v716
  %1990 = vmatmul.mubr.bf16.gmra.mrb[0].mxu0 %v715
  %v1991 = vpop.f32.mrb[0].mxu0
  %v1992 = vadd.f32 %v1904, %v1991
  %v1993 = vpop.f32.mrb[0].mxu0
  %v1994 = vpop.f32.mrb[0].mxu0
  %v1995 = vadd.f32 %v1907, %v1994
  %v1996 = vpop.f32.mrb[0].mxu0
  %1997 = vmatprep.mubr.bf16.mxu0 %v732
  %1998 = vmatmul.mubr.bf16.gmra.mrb[0].mxu0 %v731
  %v1999 = vpop.f32.mrb[0].mxu0
  %v2000 = vadd.f32 %v1912, %v1999
  %v2001 = vpop.f32.mrb[0].mxu0
  %v2002 = vpop.f32.mrb[0].mxu0
  %v2003 = vadd.f32 %v1915, %v2002
  %v2004 = vpop.f32.mrb[0].mxu0
  %2005 = vmatprep.mubr.bf16.mxu0 %v748
  %2006 = vmatmul.mubr.bf16.gmra.mrb[0].mxu0 %v747
  %v2007 = vpop.f32.mrb[0].mxu0
  %v2008 = vadd.f32 %v1920, %v2007
  %v2009 = vpop.f32.mrb[0].mxu0
  %v2010 = vpop.f32.mrb[0].mxu0
  %v2011 = vadd.f32 %v1923, %v2010
  %v2012 = vpop.f32.mrb[0].mxu0
  %2013 = vmatprep.mubr.bf16.mxu0 %v764
  %2014 = vmatmul.mubr.bf16.gmra.mrb[0].mxu0 %v763
  %v2015 = vpop.f32.mrb[0].mxu0
  %v2016 = vadd.f32 %v1928, %v2015
  %v2017 = vpop.f32.mrb[0].mxu0
  %v2018 = vpop.f32.mrb[0].mxu0
  %v2019 = vadd.f32 %v1931, %v2018
  %v2020 = vpop.f32.mrb[0].mxu0
  %2021 = vmatprep.mubr.bf16.mxu0 %v780
  %2022 = vmatmul.mubr.bf16.gmra.mrb[0].mxu0 %v779
  %v2023 = vpop.f32.mrb[0].mxu0
  %v2024 = vadd.f32 %v1936, %v2023
  %v2025 = vpop.f32.mrb[0].mxu0
  %v2026 = vpop.f32.mrb[0].mxu0
  %v2027 = vadd.f32 %v1939, %v2026
  %v2028 = vpop.f32.mrb[0].mxu0
  %2029 = vmatprep.mubr.bf16.mxu0 %v796
  %2030 = vmatmul.mubr.bf16.gmra.mrb[0].mxu0 %v795
  %v2031 = vpop.f32.mrb[0].mxu0
  %v2032 = vadd.f32 %v1944, %v2031
  %v2033 = vpop.f32.mrb[0].mxu0
  %v2034 = vpop.f32.mrb[0].mxu0
  %v2035 = vpop.f32.mrb[0].mxu0
  %2036 = vdwg.mxu0
  %2037 = vmatprep.subr.bf16.mxu0 0
  %2038 = vmatpush1.bf16.msra.mxu0 %v1493
  %2039 = vmatprep.subr.bf16.mxu0 0
  %2040 = vmatpush1.bf16.msra.mxu0 %v1494
  %2041 = vmatprep.subr.bf16.mxu0 0
  %2042 = vmatpush1.bf16.msra.mxu0 %v1495
  %2043 = vmatprep.subr.bf16.mxu0 0
  %2044 = vmatpush1.bf16.msra.mxu0 %v1496
  %2045 = vmatprep.subr.bf16.mxu0 0
  %2046 = vmatpush1.bf16.msra.mxu0 %v1497
  %2047 = vmatprep.subr.bf16.mxu0 0
  %2048 = vmatpush1.bf16.msra.mxu0 %v1498
  %2049 = vmatprep.subr.bf16.mxu0 0
  %2050 = vmatpush1.bf16.msra.mxu0 %v1499
  %2051 = vmatprep.subr.bf16.mxu0 0
  %2052 = vmatpush1.bf16.msra.mxu0 %v1500
  %2053 = vmatprep.subr.bf16.mxu0 0
  %2054 = vmatpush1.bf16.msra.mxu0 %v1501
  %2055 = vmatprep.subr.bf16.mxu0 0
  %2056 = vmatpush1.bf16.msra.mxu0 %v1502
  %2057 = vmatprep.subr.bf16.mxu0 0
  %2058 = vmatpush1.bf16.msra.mxu0 %v1503
  %2059 = vmatprep.subr.bf16.mxu0 0
  %2060 = vmatpush1.bf16.msra.mxu0 %v1504
  %2061 = vmatprep.subr.bf16.mxu0 0
  %2062 = vmatpush1.bf16.msra.mxu0 %v1505
  %2063 = vmatprep.subr.bf16.mxu0 0
  %2064 = vmatpush1.bf16.msra.mxu0 %v1506
  %2065 = vmatprep.subr.bf16.mxu0 0
  %2066 = vmatpush1.bf16.msra.mxu0 %v1507
  %2067 = vmatprep.subr.bf16.mxu0 0
  %2068 = vmatpush1.bf16.msra.mxu0 %v1508
  %2069 = vmatprep.mubr.bf16.mxu0 %v702
  %2070 = vmatmul.mubr.bf16.gmra.mrb[0].mxu0 %v701
  %v2071 = vpop.f32.mrb[0].mxu0
  %v2072 = vadd.f32 %v1984, %v2071
  %v2073 = vpop.f32.mrb[0].mxu0
  %v2074 = vpop.f32.mrb[0].mxu0
  %v2075 = vadd.f32 %v1987, %v2074
  %v2076 = vpop.f32.mrb[0].mxu0
  %2077 = vmatprep.mubr.bf16.mxu0 %v718
  %2078 = vmatmul.mubr.bf16.gmra.mrb[0].mxu0 %v717
  %v2079 = vpop.f32.mrb[0].mxu0
  %v2080 = vadd.f32 %v1992, %v2079
  %v2081 = vpop.f32.mrb[0].mxu0
  %v2082 = vpop.f32.mrb[0].mxu0
  %v2083 = vadd.f32 %v1995, %v2082
  %v2084 = vpop.f32.mrb[0].mxu0
  %2085 = vmatprep.mubr.bf16.mxu0 %v734
  %2086 = vmatmul.mubr.bf16.gmra.mrb[0].mxu0 %v733
  %v2087 = vpop.f32.mrb[0].mxu0
  %v2088 = vadd.f32 %v2000, %v2087
  %v2089 = vpop.f32.mrb[0].mxu0
  %v2090 = vpop.f32.mrb[0].mxu0
  %v2091 = vadd.f32 %v2003, %v2090
  %v2092 = vpop.f32.mrb[0].mxu0
  %2093 = vmatprep.mubr.bf16.mxu0 %v750
  %2094 = vmatmul.mubr.bf16.gmra.mrb[0].mxu0 %v749
  %v2095 = vpop.f32.mrb[0].mxu0
  %v2096 = vadd.f32 %v2008, %v2095
  %v2097 = vpop.f32.mrb[0].mxu0
  %v2098 = vpop.f32.mrb[0].mxu0
  %v2099 = vadd.f32 %v2011, %v2098
  %v2100 = vpop.f32.mrb[0].mxu0
  %2101 = vmatprep.mubr.bf16.mxu0 %v766
  %2102 = vmatmul.mubr.bf16.gmra.mrb[0].mxu0 %v765
  %v2103 = vpop.f32.mrb[0].mxu0
  %v2104 = vadd.f32 %v2016, %v2103
  %v2105 = vpop.f32.mrb[0].mxu0
  %v2106 = vpop.f32.mrb[0].mxu0
  %v2107 = vadd.f32 %v2019, %v2106
  %v2108 = vpop.f32.mrb[0].mxu0
  %2109 = vmatprep.mubr.bf16.mxu0 %v782
  %2110 = vmatmul.mubr.bf16.gmra.mrb[0].mxu0 %v781
  %v2111 = vpop.f32.mrb[0].mxu0
  %v2112 = vadd.f32 %v2024, %v2111
  %v2113 = vpop.f32.mrb[0].mxu0
  %v2114 = vpop.f32.mrb[0].mxu0
  %v2115 = vadd.f32 %v2027, %v2114
  %v2116 = vpop.f32.mrb[0].mxu0
  %2117 = vmatprep.mubr.bf16.mxu0 %v798
  %2118 = vmatmul.mubr.bf16.gmra.mrb[0].mxu0 %v797
  %v2119 = vpop.f32.mrb[0].mxu0
  %v2120 = vadd.f32 %v2032, %v2119
  %v2121 = vpop.f32.mrb[0].mxu0
  %v2122 = vpop.f32.mrb[0].mxu0
  %v2123 = vpop.f32.mrb[0].mxu0
  %2124 = vdwg.mxu0
  %2125 = vmatprep.subr.bf16.mxu0 0
  %2126 = vmatpush1.bf16.msra.mxu0 %v1509
  %2127 = vmatprep.subr.bf16.mxu0 0
  %2128 = vmatpush1.bf16.msra.mxu0 %v1510
  %2129 = vmatprep.subr.bf16.mxu0 0
  %2130 = vmatpush1.bf16.msra.mxu0 %v1511
  %2131 = vmatprep.subr.bf16.mxu0 0
  %2132 = vmatpush1.bf16.msra.mxu0 %v1512
  %2133 = vmatprep.subr.bf16.mxu0 0
  %2134 = vmatpush1.bf16.msra.mxu0 %v1513
  %2135 = vmatprep.subr.bf16.mxu0 0
  %2136 = vmatpush1.bf16.msra.mxu0 %v1514
  %2137 = vmatprep.subr.bf16.mxu0 0
  %2138 = vmatpush1.bf16.msra.mxu0 %v1515
  %2139 = vmatprep.subr.bf16.mxu0 0
  %2140 = vmatpush1.bf16.msra.mxu0 %v1516
  %2141 = vmatprep.subr.bf16.mxu0 0
  %2142 = vmatpush1.bf16.msra.mxu0 %v1517
  %2143 = vmatprep.subr.bf16.mxu0 0
  %2144 = vmatpush1.bf16.msra.mxu0 %v1518
  %2145 = vmatprep.subr.bf16.mxu0 0
  %2146 = vmatpush1.bf16.msra.mxu0 %v1519
  %2147 = vmatprep.subr.bf16.mxu0 0
  %2148 = vmatpush1.bf16.msra.mxu0 %v1520
  %2149 = vmatprep.subr.bf16.mxu0 0
  %2150 = vmatpush1.bf16.msra.mxu0 %v1521
  %2151 = vmatprep.subr.bf16.mxu0 0
  %2152 = vmatpush1.bf16.msra.mxu0 %v1522
  %2153 = vmatprep.subr.bf16.mxu0 0
  %2154 = vmatpush1.bf16.msra.mxu0 %v1523
  %2155 = vmatprep.subr.bf16.mxu0 0
  %2156 = vmatpush1.bf16.msra.mxu0 %v1524
  %2157 = vmatprep.mubr.bf16.mxu0 %v704
  %2158 = vmatmul.mubr.bf16.gmra.mrb[0].mxu0 %v703
  %v2159 = vpop.f32.mrb[0].mxu0
  %v2160 = vadd.f32 %v2072, %v2159
  %v2161 = vpop.f32.mrb[0].mxu0
  %v2162 = vpop.f32.mrb[0].mxu0
  %v2163 = vadd.f32 %v2075, %v2162
  %v2164 = vpop.f32.mrb[0].mxu0
  %2165 = vmatprep.mubr.bf16.mxu0 %v720
  %2166 = vmatmul.mubr.bf16.gmra.mrb[0].mxu0 %v719
  %v2167 = vpop.f32.mrb[0].mxu0
  %v2168 = vadd.f32 %v2080, %v2167
  %v2169 = vpop.f32.mrb[0].mxu0
  %v2170 = vpop.f32.mrb[0].mxu0
  %v2171 = vadd.f32 %v2083, %v2170
  %v2172 = vpop.f32.mrb[0].mxu0
  %2173 = vmatprep.mubr.bf16.mxu0 %v736
  %2174 = vmatmul.mubr.bf16.gmra.mrb[0].mxu0 %v735
  %v2175 = vpop.f32.mrb[0].mxu0
  %v2176 = vadd.f32 %v2088, %v2175
  %v2177 = vpop.f32.mrb[0].mxu0
  %v2178 = vpop.f32.mrb[0].mxu0
  %v2179 = vadd.f32 %v2091, %v2178
  %v2180 = vpop.f32.mrb[0].mxu0
  %2181 = vmatprep.mubr.bf16.mxu0 %v752
  %2182 = vmatmul.mubr.bf16.gmra.mrb[0].mxu0 %v751
  %v2183 = vpop.f32.mrb[0].mxu0
  %v2184 = vadd.f32 %v2096, %v2183
  %v2185 = vpop.f32.mrb[0].mxu0
  %v2186 = vpop.f32.mrb[0].mxu0
  %v2187 = vadd.f32 %v2099, %v2186
  %v2188 = vpop.f32.mrb[0].mxu0
  %2189 = vmatprep.mubr.bf16.mxu0 %v768
  %2190 = vmatmul.mubr.bf16.gmra.mrb[0].mxu0 %v767
  %v2191 = vpop.f32.mrb[0].mxu0
  %v2192 = vadd.f32 %v2104, %v2191
  %v2193 = vpop.f32.mrb[0].mxu0
  %v2194 = vpop.f32.mrb[0].mxu0
  %v2195 = vadd.f32 %v2107, %v2194
  %v2196 = vpop.f32.mrb[0].mxu0
  %2197 = vmatprep.mubr.bf16.mxu0 %v784
  %2198 = vmatmul.mubr.bf16.gmra.mrb[0].mxu0 %v783
  %v2199 = vpop.f32.mrb[0].mxu0
  %v2200 = vadd.f32 %v2112, %v2199
  %v2201 = vpop.f32.mrb[0].mxu0
  %v2202 = vpop.f32.mrb[0].mxu0
  %v2203 = vadd.f32 %v2115, %v2202
  %v2204 = vpop.f32.mrb[0].mxu0
  %2205 = vmatprep.mubr.bf16.mxu0 %v800
  %2206 = vmatmul.mubr.bf16.gmra.mrb[0].mxu0 %v799
  %v2207 = vpop.f32.mrb[0].mxu0
  %v2208 = vadd.f32 %v2120, %v2207
  %v2209 = vpop.f32.mrb[0].mxu0
  %v2210 = vpop.f32.mrb[0].mxu0
  %v2211 = vpop.f32.mrb[0].mxu0
  %2212 = vdwg.mxu0
  %2213 = vmatprep.subr.bf16.mxu0 0
  %2214 = vmatpush1.bf16.msra.mxu0 %v1525
  %2215 = vmatprep.subr.bf16.mxu0 0
  %2216 = vmatpush1.bf16.msra.mxu0 %v1526
  %2217 = vmatprep.subr.bf16.mxu0 0
  %2218 = vmatpush1.bf16.msra.mxu0 %v1527
  %2219 = vmatprep.subr.bf16.mxu0 0
  %2220 = vmatpush1.bf16.msra.mxu0 %v1528
  %2221 = vmatprep.subr.bf16.mxu0 0
  %2222 = vmatpush1.bf16.msra.mxu0 %v1529
  %2223 = vmatprep.subr.bf16.mxu0 0
  %2224 = vmatpush1.bf16.msra.mxu0 %v1530
  %2225 = vmatprep.subr.bf16.mxu0 0
  %2226 = vmatpush1.bf16.msra.mxu0 %v1531
  %2227 = vmatprep.subr.bf16.mxu0 0
  %2228 = vmatpush1.bf16.msra.mxu0 %v1532
  %2229 = vmatprep.subr.bf16.mxu0 0
  %2230 = vmatpush1.bf16.msra.mxu0 %v1533
  %2231 = vmatprep.subr.bf16.mxu0 0
  %2232 = vmatpush1.bf16.msra.mxu0 %v1534
  %2233 = vmatprep.subr.bf16.mxu0 0
  %2234 = vmatpush1.bf16.msra.mxu0 %v1535
  %2235 = vmatprep.subr.bf16.mxu0 0
  %2236 = vmatpush1.bf16.msra.mxu0 %v1536
  %2237 = vmatprep.subr.bf16.mxu0 0
  %2238 = vmatpush1.bf16.msra.mxu0 %v1537
  %2239 = vmatprep.subr.bf16.mxu0 0
  %2240 = vmatpush1.bf16.msra.mxu0 %v1538
  %2241 = vmatprep.subr.bf16.mxu0 0
  %2242 = vmatpush1.bf16.msra.mxu0 %v1539
  %2243 = vmatprep.subr.bf16.mxu0 0
  %2244 = vmatpush1.bf16.msra.mxu0 %v1540
  %2245 = vmatprep.mubr.bf16.mxu0 %v706
  %2246 = vmatmul.mubr.bf16.gmra.mrb[0].mxu0 %v705
  %v2247 = vpop.f32.mrb[0].mxu0
  %v2248 = vadd.f32 %v2160, %v2247
  %v2249 = vpop.f32.mrb[0].mxu0
  %v2250 = vpop.f32.mrb[0].mxu0
  %v2251 = vadd.f32 %v2163, %v2250
  %v2252 = vpop.f32.mrb[0].mxu0
  %2253 = vmatprep.mubr.bf16.mxu0 %v722
  %2254 = vmatmul.mubr.bf16.gmra.mrb[0].mxu0 %v721
  %v2255 = vpop.f32.mrb[0].mxu0
  %v2256 = vadd.f32 %v2168, %v2255
  %v2257 = vpop.f32.mrb[0].mxu0
  %v2258 = vpop.f32.mrb[0].mxu0
  %v2259 = vadd.f32 %v2171, %v2258
  %v2260 = vpop.f32.mrb[0].mxu0
  %2261 = vmatprep.mubr.bf16.mxu0 %v738
  %2262 = vmatmul.mubr.bf16.gmra.mrb[0].mxu0 %v737
  %v2263 = vpop.f32.mrb[0].mxu0
  %v2264 = vadd.f32 %v2176, %v2263
  %v2265 = vpop.f32.mrb[0].mxu0
  %v2266 = vpop.f32.mrb[0].mxu0
  %v2267 = vadd.f32 %v2179, %v2266
  %v2268 = vpop.f32.mrb[0].mxu0
  %2269 = vmatprep.mubr.bf16.mxu0 %v754
  %2270 = vmatmul.mubr.bf16.gmra.mrb[0].mxu0 %v753
  %v2271 = vpop.f32.mrb[0].mxu0
  %v2272 = vadd.f32 %v2184, %v2271
  %v2273 = vpop.f32.mrb[0].mxu0
  %v2274 = vpop.f32.mrb[0].mxu0
  %v2275 = vadd.f32 %v2187, %v2274
  %v2276 = vpop.f32.mrb[0].mxu0
  %2277 = vmatprep.mubr.bf16.mxu0 %v770
  %2278 = vmatmul.mubr.bf16.gmra.mrb[0].mxu0 %v769
  %v2279 = vpop.f32.mrb[0].mxu0
  %v2280 = vadd.f32 %v2192, %v2279
  %v2281 = vpop.f32.mrb[0].mxu0
  %v2282 = vpop.f32.mrb[0].mxu0
  %v2283 = vadd.f32 %v2195, %v2282
  %v2284 = vpop.f32.mrb[0].mxu0
  %2285 = vmatprep.mubr.bf16.mxu0 %v786
  %2286 = vmatmul.mubr.bf16.gmra.mrb[0].mxu0 %v785
  %v2287 = vpop.f32.mrb[0].mxu0
  %v2288 = vadd.f32 %v2200, %v2287
  %v2289 = vpop.f32.mrb[0].mxu0
  %v2290 = vpop.f32.mrb[0].mxu0
  %v2291 = vadd.f32 %v2203, %v2290
  %v2292 = vpop.f32.mrb[0].mxu0
  %2293 = vmatprep.mubr.bf16.mxu0 %v802
  %2294 = vmatmul.mubr.bf16.gmra.mrb[0].mxu0 %v801
  %v2295 = vpop.f32.mrb[0].mxu0
  %v2296 = vadd.f32 %v2208, %v2295
  %v2297 = vpop.f32.mrb[0].mxu0
  %v2298 = vpop.f32.mrb[0].mxu0
  %v2299 = vpop.f32.mrb[0].mxu0
  %2300 = vdwg.mxu0
  %2301 = vmatprep.subr.bf16.mxu0 0
  %2302 = vmatpush1.bf16.msra.mxu0 %v1541
  %2303 = vmatprep.subr.bf16.mxu0 0
  %2304 = vmatpush1.bf16.msra.mxu0 %v1542
  %2305 = vmatprep.subr.bf16.mxu0 0
  %2306 = vmatpush1.bf16.msra.mxu0 %v1543
  %2307 = vmatprep.subr.bf16.mxu0 0
  %2308 = vmatpush1.bf16.msra.mxu0 %v1544
  %2309 = vmatprep.subr.bf16.mxu0 0
  %2310 = vmatpush1.bf16.msra.mxu0 %v1545
  %2311 = vmatprep.subr.bf16.mxu0 0
  %2312 = vmatpush1.bf16.msra.mxu0 %v1546
  %2313 = vmatprep.subr.bf16.mxu0 0
  %2314 = vmatpush1.bf16.msra.mxu0 %v1547
  %2315 = vmatprep.subr.bf16.mxu0 0
  %2316 = vmatpush1.bf16.msra.mxu0 %v1548
  %2317 = vmatprep.subr.bf16.mxu0 0
  %2318 = vmatpush1.bf16.msra.mxu0 %v1549
  %2319 = vmatprep.subr.bf16.mxu0 0
  %2320 = vmatpush1.bf16.msra.mxu0 %v1550
  %2321 = vmatprep.subr.bf16.mxu0 0
  %2322 = vmatpush1.bf16.msra.mxu0 %v1551
  %2323 = vmatprep.subr.bf16.mxu0 0
  %2324 = vmatpush1.bf16.msra.mxu0 %v1552
  %2325 = vmatprep.subr.bf16.mxu0 0
  %2326 = vmatpush1.bf16.msra.mxu0 %v1553
  %2327 = vmatprep.subr.bf16.mxu0 0
  %2328 = vmatpush1.bf16.msra.mxu0 %v1554
  %2329 = vmatprep.subr.bf16.mxu0 0
  %2330 = vmatpush1.bf16.msra.mxu0 %v1555
  %2331 = vmatprep.subr.bf16.mxu0 0
  %2332 = vmatpush1.bf16.msra.mxu0 %v1556
  %2333 = vmatprep.mubr.bf16.mxu0 %v708
  %2334 = vmatmul.mubr.bf16.gmra.mrb[0].mxu0 %v707
  %v2335 = vpop.f32.mrb[0].mxu0
  %v2336 = vadd.f32 %v2248, %v2335
  %v2337 = vpop.f32.mrb[0].mxu0
  %v2338 = vpop.f32.mrb[0].mxu0
  %v2339 = vadd.f32 %v2251, %v2338
  %v2340 = vpop.f32.mrb[0].mxu0
  %2341 = vmatprep.mubr.bf16.mxu0 %v724
  %2342 = vmatmul.mubr.bf16.gmra.mrb[0].mxu0 %v723
  %v2343 = vpop.f32.mrb[0].mxu0
  %v2344 = vadd.f32 %v2256, %v2343
  %v2345 = vpop.f32.mrb[0].mxu0
  %v2346 = vpop.f32.mrb[0].mxu0
  %v2347 = vadd.f32 %v2259, %v2346
  %v2348 = vpop.f32.mrb[0].mxu0
  %2349 = vmatprep.mubr.bf16.mxu0 %v740
  %2350 = vmatmul.mubr.bf16.gmra.mrb[0].mxu0 %v739
  %v2351 = vpop.f32.mrb[0].mxu0
  %v2352 = vadd.f32 %v2264, %v2351
  %v2353 = vpop.f32.mrb[0].mxu0
  %v2354 = vpop.f32.mrb[0].mxu0
  %v2355 = vadd.f32 %v2267, %v2354
  %v2356 = vpop.f32.mrb[0].mxu0
  %2357 = vmatprep.mubr.bf16.mxu0 %v756
  %2358 = vmatmul.mubr.bf16.gmra.mrb[0].mxu0 %v755
  %v2359 = vpop.f32.mrb[0].mxu0
  %v2360 = vadd.f32 %v2272, %v2359
  %v2361 = vpop.f32.mrb[0].mxu0
  %v2362 = vpop.f32.mrb[0].mxu0
  %v2363 = vadd.f32 %v2275, %v2362
  %v2364 = vpop.f32.mrb[0].mxu0
  %2365 = vmatprep.mubr.bf16.mxu0 %v772
  %2366 = vmatmul.mubr.bf16.gmra.mrb[0].mxu0 %v771
  %v2367 = vpop.f32.mrb[0].mxu0
  %v2368 = vadd.f32 %v2280, %v2367
  %v2369 = vpop.f32.mrb[0].mxu0
  %v2370 = vpop.f32.mrb[0].mxu0
  %v2371 = vadd.f32 %v2283, %v2370
  %v2372 = vpop.f32.mrb[0].mxu0
  %2373 = vmatprep.mubr.bf16.mxu0 %v788
  %2374 = vmatmul.mubr.bf16.gmra.mrb[0].mxu0 %v787
  %v2375 = vpop.f32.mrb[0].mxu0
  %v2376 = vadd.f32 %v2288, %v2375
  %v2377 = vpop.f32.mrb[0].mxu0
  %v2378 = vpop.f32.mrb[0].mxu0
  %v2379 = vadd.f32 %v2291, %v2378
  %v2380 = vpop.f32.mrb[0].mxu0
  %2381 = vmatprep.mubr.bf16.mxu0 %v804
  %2382 = vmatmul.mubr.bf16.gmra.mrb[0].mxu0 %v803
  %v2383 = vpop.f32.mrb[0].mxu0
  %v2384 = vadd.f32 %v2296, %v2383
  %v2385 = vpop.f32.mrb[0].mxu0
  %v2386 = vpop.f32.mrb[0].mxu0
  %v2387 = vpop.f32.mrb[0].mxu0
  %2388 = vdwg.mxu0
  %vm2389 = vcmp.ge.f32.partialorder %v2336, 0.0
  %vm2390 = vcmp.ge.f32.partialorder %v2339, 0.0
  %vm2391 = vcmp.ge.f32.partialorder %v2344, 0.0
  %vm2392 = vcmp.ge.f32.partialorder %v2347, 0.0
  %vm2393 = vcmp.ge.f32.partialorder %v2352, 0.0
  %vm2394 = vcmp.ge.f32.partialorder %v2355, 0.0
  %vm2395 = vcmp.ge.f32.partialorder %v2360, 0.0
  %vm2396 = vcmp.ge.f32.partialorder %v2363, 0.0
  %vm2397 = vcmp.ge.f32.partialorder %v2368, 0.0
  %vm2398 = vcmp.ge.f32.partialorder %v2371, 0.0
  %vm2399 = vcmp.ge.f32.partialorder %v2376, 0.0
  %vm2400 = vcmp.ge.f32.partialorder %v2379, 0.0
  %vm2401 = vcmp.ge.f32.partialorder %v2384, 0.0
  %v2402 = vsub.f32 0.0, %v2336
  %v2403 = vsub.f32 0.0, %v2339
  %v2404 = vsub.f32 0.0, %v2344
  %v2405 = vsub.f32 0.0, %v2347
  %v2406 = vsub.f32 0.0, %v2352
  %v2407 = vsub.f32 0.0, %v2355
  %v2408 = vsub.f32 0.0, %v2360
  %v2409 = vsub.f32 0.0, %v2363
  %v2410 = vsub.f32 0.0, %v2368
  %v2411 = vsub.f32 0.0, %v2371
  %v2412 = vsub.f32 0.0, %v2376
  %v2413 = vsub.f32 0.0, %v2379
  %v2414 = vsub.f32 0.0, %v2384
  %v2415 = vsel %vm2389, %v2402, %v2336
  %v2416 = vsel %vm2390, %v2403, %v2339
  %v2417 = vsel %vm2391, %v2404, %v2344
  %v2418 = vsel %vm2392, %v2405, %v2347
  %v2419 = vsel %vm2393, %v2406, %v2352
  %v2420 = vsel %vm2394, %v2407, %v2355
  %v2421 = vsel %vm2395, %v2408, %v2360
  %v2422 = vsel %vm2396, %v2409, %v2363
  %v2423 = vsel %vm2397, %v2410, %v2368
  %v2424 = vsel %vm2398, %v2411, %v2371
  %v2425 = vsel %vm2399, %v2412, %v2376
  %v2426 = vsel %vm2400, %v2413, %v2379
  %v2427 = vsel %vm2401, %v2414, %v2384
  %v2428 = vmul.f32 %v2415, 1.442695
  %v2429 = vpow.pop %v2428
  %v2430 = vmul.f32 %v2416, 1.442695
  %v2431 = vpow.pop %v2430
  %v2432 = vmul.f32 %v2417, 1.442695
  %v2433 = vpow.pop %v2432
  %v2434 = vmul.f32 %v2418, 1.442695
  %v2435 = vpow.pop %v2434
  %v2436 = vmul.f32 %v2419, 1.442695
  %v2437 = vpow.pop %v2436
  %v2438 = vmul.f32 %v2420, 1.442695
  %v2439 = vpow.pop %v2438
  %v2440 = vmul.f32 %v2421, 1.442695
  %v2441 = vpow.pop %v2440
  %v2442 = vmul.f32 %v2422, 1.442695
  %v2443 = vpow.pop %v2442
  %v2444 = vmul.f32 %v2423, 1.442695
  %v2445 = vpow.pop %v2444
  %v2446 = vmul.f32 %v2424, 1.442695
  %v2447 = vpow.pop %v2446
  %v2448 = vmul.f32 %v2425, 1.442695
  %v2449 = vpow.pop %v2448
  %v2450 = vmul.f32 %v2426, 1.442695
  %v2451 = vpow.pop %v2450
  %v2452 = vmul.f32 %v2427, 1.442695
  %v2453 = vpow.pop %v2452
  %v2454 = vsel %vm2389, 1.0, %v2429
  %v2455 = vsel %vm2390, 1.0, %v2431
  %v2456 = vsel %vm2391, 1.0, %v2433
  %v2457 = vsel %vm2392, 1.0, %v2435
  %v2458 = vsel %vm2393, 1.0, %v2437
  %v2459 = vsel %vm2394, 1.0, %v2439
  %v2460 = vsel %vm2395, 1.0, %v2441
  %v2461 = vsel %vm2396, 1.0, %v2443
  %v2462 = vsel %vm2397, 1.0, %v2445
  %v2463 = vsel %vm2398, 1.0, %v2447
  %v2464 = vsel %vm2399, 1.0, %v2449
  %v2465 = vsel %vm2400, 1.0, %v2451
  %v2466 = vsel %vm2401, 1.0, %v2453
  %v2467 = vadd.f32 %v2429, 1.0
  %v2468 = vadd.f32 %v2431, 1.0
  %v2469 = vadd.f32 %v2433, 1.0
  %v2470 = vadd.f32 %v2435, 1.0
  %v2471 = vadd.f32 %v2437, 1.0
  %v2472 = vadd.f32 %v2439, 1.0
  %v2473 = vadd.f32 %v2441, 1.0
  %v2474 = vadd.f32 %v2443, 1.0
  %v2475 = vadd.f32 %v2445, 1.0
  %v2476 = vadd.f32 %v2447, 1.0
  %v2477 = vadd.f32 %v2449, 1.0
  %v2478 = vadd.f32 %v2451, 1.0
  %v2479 = vadd.f32 %v2453, 1.0
  %v2480 = vrcp.pop %v2467
  %v2481 = vrcp.pop %v2468
  %v2482 = vrcp.pop %v2469
  %v2483 = vrcp.pop %v2470
  %v2484 = vrcp.pop %v2471
  %v2485 = vrcp.pop %v2472
  %v2486 = vrcp.pop %v2473
  %v2487 = vrcp.pop %v2474
  %v2488 = vrcp.pop %v2475
  %v2489 = vrcp.pop %v2476
  %v2490 = vrcp.pop %v2477
  %v2491 = vrcp.pop %v2478
  %v2492 = vrcp.pop %v2479
  %v2493 = vmul.f32 %v2454, %v2480
  %v2494 = vmul.f32 %v2455, %v2481
  %v2495 = vmul.f32 %v2456, %v2482
  %v2496 = vmul.f32 %v2457, %v2483
  %v2497 = vmul.f32 %v2458, %v2484
  %v2498 = vmul.f32 %v2459, %v2485
  %v2499 = vmul.f32 %v2460, %v2486
  %v2500 = vmul.f32 %v2461, %v2487
  %v2501 = vmul.f32 %v2462, %v2488
  %v2502 = vmul.f32 %v2463, %v2489
  %v2503 = vmul.f32 %v2464, %v2490
  %v2504 = vmul.f32 %v2465, %v2491
  %v2505 = vmul.f32 %v2466, %v2492
  %v2506 = vmul.f32 %v2336, %v2493
  %v2507 = vmul.f32 %v2339, %v2494
  %v2508 = vmul.f32 %v2344, %v2495
  %v2509 = vmul.f32 %v2347, %v2496
  %v2510 = vmul.f32 %v2352, %v2497
  %v2511 = vmul.f32 %v2355, %v2498
  %v2512 = vmul.f32 %v2360, %v2499
  %v2513 = vmul.f32 %v2363, %v2500
  %v2514 = vmul.f32 %v2368, %v2501
  %v2515 = vmul.f32 %v2371, %v2502
  %v2516 = vmul.f32 %v2376, %v2503
  %v2517 = vmul.f32 %v2379, %v2504
  %v2518 = vmul.f32 %v2384, %v2505
  %v2519 = vpack.c.bf16 %v2507, %v2506
  %v2520 = vpack.c.bf16 %v2509, %v2508
  %v2521 = vpack.c.bf16 %v2511, %v2510
  %v2522 = vpack.c.bf16 %v2513, %v2512
  %v2523 = vpack.c.bf16 %v2515, %v2514
  %v2524 = vpack.c.bf16 %v2517, %v2516
  %v2525 = vpack.c.bf16 %v2518, %v2518
  %v2533 = vunpack.c.l.b16 %v2519
  %v2534 = vunpack.c.h.b16 %v2519
  %v2535 = vunpack.c.l.b16 %v2520
  %v2536 = vunpack.c.h.b16 %v2520
  %v2537 = vunpack.c.l.b16 %v2521
  %v2538 = vunpack.c.h.b16 %v2521
  %v2539 = vunpack.c.l.b16 %v2522
  %v2540 = vunpack.c.h.b16 %v2522
  %v2541 = vunpack.c.l.b16 %v2523
  %v2542 = vunpack.c.h.b16 %v2523
  %v2543 = vunpack.c.l.b16 %v2524
  %v2544 = vunpack.c.h.b16 %v2524
  %v2545 = vunpack.c.l.b16 %v2525
  %v2546 = vpack.c.b16 %v2533, %v2533
  %v2547 = vpack.c.b16 %v2534, %v2534
  %v2548 = vpack.c.b16 %v2535, %v2535
  %v2549 = vpack.c.b16 %v2536, %v2536
  %v2550 = vpack.c.b16 %v2537, %v2537
  %v2551 = vpack.c.b16 %v2538, %v2538
  %v2552 = vpack.c.b16 %v2539, %v2539
  %v2553 = vpack.c.b16 %v2540, %v2540
  %v2554 = vpack.c.b16 %v2541, %v2541
  %v2555 = vpack.c.b16 %v2542, %v2542
  %v2556 = vpack.c.b16 %v2543, %v2543
  %v2557 = vpack.c.b16 %v2544, %v2544
  %v2558 = vpack.c.b16 %v2545, %v2545
  %2572 = vst [vmem:[%s3] sm:$0xf] %v2546
  %2573 = vst [vmem:[%s3 + $0x4] sm:$0xf] %v2547
  %2574 = vst [vmem:[%s3 + $0x8] sm:$0xf] %v2548
  %2575 = vst [vmem:[%s3 + $0xc] sm:$0xf] %v2549
  %2576 = vst [vmem:[%s3 + $0x10] sm:$0xf] %v2550
  %2577 = vst [vmem:[%s3 + $0x14] sm:$0xf] %v2551
  %2578 = vst [vmem:[%s3 + $0x18] sm:$0xf] %v2552
  %2579 = vst [vmem:[%s3 + $0x1c] sm:$0xf] %v2553
  %2580 = vst [vmem:[%s3 + $0x20] sm:$0xf] %v2554
  %2581 = vst [vmem:[%s3 + $0x24] sm:$0xf] %v2555
  %2582 = vst [vmem:[%s3 + $0x28] sm:$0xf] %v2556
  %2583 = vst [vmem:[%s3 + $0x2c] sm:$0xf] %v2557
  %2584 = vst [vmem:[%s3 + $0x30] sm:$0xf] %v2558
  // Predicated region
  $region14: #{image_ae_forward.6} parent=0 // pred_check
    _
  $region15: #{image_ae_forward.6} parent=0 // pred_check_branch
    %2586 = sbr.rel (0) target = $region17
  $region16: #{image_ae_forward.6} parent=0 // pred_region
    _
  $region17: #{image_ae_forward.6} parent=0 // pred_fallthru
    _
  // Predicated region
  $region18: #{image_ae_forward.6} parent=0 // pred_check
    _
  $region19: #{image_ae_forward.6} parent=0 // pred_check_branch
    %2588 = sbr.rel (0) target = $region21
  $region20: #{image_ae_forward.6} parent=0 // pred_region
    _
  $region21: #{image_ae_forward.6} parent=0 // pred_fallthru
    _

// kernel: image_ae_forward.7
$region0: #{image_ae_forward.7}
  #allocation0 [shape = 'u32[]', space=smem, size = 0x4, offset = 0x4, fixed_abs, tag = 'smem constant byte address 0x4 - core index']
  #allocation1 [shape = 'u32[144,128]{1,0:T(1,128)}', space=vmem, size = 0x12000, scoped, tag = 'internal scratch']
  %s0 = inlined_call_operand.vmem [shape: bf16[8,6272], index: 0, kind: input, shape index: {}]
  %s1 = inlined_call_operand.vmem [shape: bf16[6272,128], index: 1, kind: input, shape index: {}]
  %s2 = inlined_call_operand.vmem [shape: bf16[1,128], index: 2, kind: input, shape index: {}]
  %s3 = inlined_call_operand.vmem [shape: bf16[128,6272], index: 3, kind: input, shape index: {}]
  %s4 = inlined_call_operand.vmem [shape: bf16[1,6272], index: 4, kind: input, shape index: {}]
  %s5 = inlined_call_operand.vmem [shape: bf16[8,6272], index: 5, kind: output, shape index: {}]
  %s6 = sld [smem:[#allocation0]]
  $region30: #{image_ae_forward.7} parent=0
    _
  %s8 = ssub.s32 1, %s6
  %s9 = scalar_select 0, %s8, %s6
  // Predicated region
  $region2: #{image_ae_forward.7} parent=0 // pred_check
    _
  $region3: #{image_ae_forward.7} parent=0 // pred_check_branch
    %11 = sbr.rel (0) target = $region5
  $region4: #{image_ae_forward.7} parent=0 // pred_region
    _
  $region5: #{image_ae_forward.7} parent=0 // pred_fallthru
    _
  // Predicated region
  $region6: #{image_ae_forward.7} parent=0 // pred_check
    _
  $region7: #{image_ae_forward.7} parent=0 // pred_check_branch
    %13 = sbr.rel (0) target = $region9
  $region8: #{image_ae_forward.7} parent=0 // pred_region
    _
  $region9: #{image_ae_forward.7} parent=0 // pred_fallthru
    _
  // Predicated region
  $region10: #{image_ae_forward.7} parent=0 // pred_check
    _
  $region11: #{image_ae_forward.7} parent=0 // pred_check_branch
    %15 = sbr.rel (0) target = $region13
  $region12: #{image_ae_forward.7} parent=0 // pred_region
    _
  $region13: #{image_ae_forward.7} parent=0 // pred_fallthru
    _
  // Predicated region
  $region14: #{image_ae_forward.7} parent=0 // pred_check
    _
  $region15: #{image_ae_forward.7} parent=0 // pred_check_branch
    %17 = sbr.rel (0) target = $region17
  $region16: #{image_ae_forward.7} parent=0 // pred_region
    _
  $region17: #{image_ae_forward.7} parent=0 // pred_fallthru
    _
  // Predicated region
  $region18: #{image_ae_forward.7} parent=0 // pred_check
    _
  $region19: #{image_ae_forward.7} parent=0 // pred_check_branch
    %19 = sbr.rel (0) target = $region21
  $region20: #{image_ae_forward.7} parent=0 // pred_region
    _
  $region21: #{image_ae_forward.7} parent=0 // pred_fallthru
    _
  %v21 = vld [vmem:[%s0] sm:$0xff]
  %v22 = vld [vmem:[%s0 + $0x8] sm:$0xff]
  %v23 = vld [vmem:[%s0 + $0x10] sm:$0xff]
  %v24 = vld [vmem:[%s0 + $0x18] sm:$0xff]
  %v25 = vld [vmem:[%s0 + $0x20] sm:$0xff]
  %v26 = vld [vmem:[%s0 + $0x28] sm:$0xff]
  %v27 = vld [vmem:[%s0 + $0x30] sm:$0xff]
  %v28 = vld [vmem:[%s0 + $0x38] sm:$0xff]
  %v29 = vld [vmem:[%s0 + $0x40] sm:$0xff]
  %v30 = vld [vmem:[%s0 + $0x48] sm:$0xff]
  %v31 = vld [vmem:[%s0 + $0x50] sm:$0xff]
  %v32 = vld [vmem:[%s0 + $0x58] sm:$0xff]
  %v33 = vld [vmem:[%s0 + $0x60] sm:$0xff]
  %v34 = vld [vmem:[%s0 + $0x68] sm:$0xff]
  %v35 = vld [vmem:[%s0 + $0x70] sm:$0xff]
  %v36 = vld [vmem:[%s0 + $0x78] sm:$0xff]
  %v37 = vld [vmem:[%s0 + $0x80] sm:$0xff]
  %v38 = vld [vmem:[%s0 + $0x88] sm:$0xff]
  %v39 = vld [vmem:[%s0 + $0x90] sm:$0xff]
  %v40 = vld [vmem:[%s0 + $0x98] sm:$0xff]
  %v41 = vld [vmem:[%s0 + $0xa0] sm:$0xff]
  %v42 = vld [vmem:[%s0 + $0xa8] sm:$0xff]
  %v43 = vld [vmem:[%s0 + $0xb0] sm:$0xff]
  %v44 = vld [vmem:[%s0 + $0xb8] sm:$0xff]
  %v45 = vld [vmem:[%s0 + $0xc0] sm:$0xf]
  %v46 = vld [vmem:[%s1] sm:$0xf]
  %v47 = vld [vmem:[%s1 + $0x4] sm:$0xf]
  %v48 = vld [vmem:[%s1 + $0x8] sm:$0xf]
  %v49 = vld [vmem:[%s1 + $0xc] sm:$0xf]
  %v50 = vld [vmem:[%s1 + $0x10] sm:$0xf]
  %v51 = vld [vmem:[%s1 + $0x14] sm:$0xf]
  %v52 = vld [vmem:[%s1 + $0x18] sm:$0xf]
  %v53 = vld [vmem:[%s1 + $0x1c] sm:$0xf]
  %v54 = vld [vmem:[%s1 + $0x20] sm:$0xf]
  %v55 = vld [vmem:[%s1 + $0x24] sm:$0xf]
  %v56 = vld [vmem:[%s1 + $0x28] sm:$0xf]
  %v57 = vld [vmem:[%s1 + $0x2c] sm:$0xf]
  %v58 = vld [vmem:[%s1 + $0x30] sm:$0xf]
  %v59 = vld [vmem:[%s1 + $0x34] sm:$0xf]
  %v60 = vld [vmem:[%s1 + $0x38] sm:$0xf]
  %v61 = vld [vmem:[%s1 + $0x3c] sm:$0xf]
  %v62 = vld [vmem:[%s1 + $0x40] sm:$0xf]
  %v63 = vld [vmem:[%s1 + $0x44] sm:$0xf]
  %v64 = vld [vmem:[%s1 + $0x48] sm:$0xf]
  %v65 = vld [vmem:[%s1 + $0x4c] sm:$0xf]
  %v66 = vld [vmem:[%s1 + $0x50] sm:$0xf]
  %v67 = vld [vmem:[%s1 + $0x54] sm:$0xf]
  %v68 = vld [vmem:[%s1 + $0x58] sm:$0xf]
  %v69 = vld [vmem:[%s1 + $0x5c] sm:$0xf]
  %v70 = vld [vmem:[%s1 + $0x60] sm:$0xf]
  %v71 = vld [vmem:[%s1 + $0x64] sm:$0xf]
  %v72 = vld [vmem:[%s1 + $0x68] sm:$0xf]
  %v73 = vld [vmem:[%s1 + $0x6c] sm:$0xf]
  %v74 = vld [vmem:[%s1 + $0x70] sm:$0xf]
  %v75 = vld [vmem:[%s1 + $0x74] sm:$0xf]
  %v76 = vld [vmem:[%s1 + $0x78] sm:$0xf]
  %v77 = vld [vmem:[%s1 + $0x7c] sm:$0xf]
  %v78 = vld [vmem:[%s1 + $0x80] sm:$0xf]
  %v79 = vld [vmem:[%s1 + $0x84] sm:$0xf]
  %v80 = vld [vmem:[%s1 + $0x88] sm:$0xf]
  %v81 = vld [vmem:[%s1 + $0x8c] sm:$0xf]
  %v82 = vld [vmem:[%s1 + $0x90] sm:$0xf]
  %v83 = vld [vmem:[%s1 + $0x94] sm:$0xf]
  %v84 = vld [vmem:[%s1 + $0x98] sm:$0xf]
  %v85 = vld [vmem:[%s1 + $0x9c] sm:$0xf]
  %v86 = vld [vmem:[%s1 + $0xa0] sm:$0xf]
  %v87 = vld [vmem:[%s1 + $0xa4] sm:$0xf]
  %v88 = vld [vmem:[%s1 + $0xa8] sm:$0xf]
  %v89 = vld [vmem:[%s1 + $0xac] sm:$0xf]
  %v90 = vld [vmem:[%s1 + $0xb0] sm:$0xf]
  %v91 = vld [vmem:[%s1 + $0xb4] sm:$0xf]
  %v92 = vld [vmem:[%s1 + $0xb8] sm:$0xf]
  %v93 = vld [vmem:[%s1 + $0xbc] sm:$0xf]
  %v94 = vld [vmem:[%s1 + $0xc0] sm:$0xf]
  %v95 = vld [vmem:[%s1 + $0xc4] sm:$0xf]
  %v96 = vld [vmem:[%s1 + $0xc8] sm:$0xf]
  %v97 = vld [vmem:[%s1 + $0xcc] sm:$0xf]
  %v98 = vld [vmem:[%s1 + $0xd0] sm:$0xf]
  %v99 = vld [vmem:[%s1 + $0xd4] sm:$0xf]
  %v100 = vld [vmem:[%s1 + $0xd8] sm:$0xf]
  %v101 = vld [vmem:[%s1 + $0xdc] sm:$0xf]
  %v102 = vld [vmem:[%s1 + $0xe0] sm:$0xf]
  %v103 = vld [vmem:[%s1 + $0xe4] sm:$0xf]
  %v104 = vld [vmem:[%s1 + $0xe8] sm:$0xf]
  %v105 = vld [vmem:[%s1 + $0xec] sm:$0xf]
  %v106 = vld [vmem:[%s1 + $0xf0] sm:$0xf]
  %v107 = vld [vmem:[%s1 + $0xf4] sm:$0xf]
  %v108 = vld [vmem:[%s1 + $0xf8] sm:$0xf]
  %v109 = vld [vmem:[%s1 + $0xfc] sm:$0xf]
  %v110 = vld [vmem:[%s1 + $0x100] sm:$0xf]
  %v111 = vld [vmem:[%s1 + $0x104] sm:$0xf]
  %v112 = vld [vmem:[%s1 + $0x108] sm:$0xf]
  %v113 = vld [vmem:[%s1 + $0x10c] sm:$0xf]
  %v114 = vld [vmem:[%s1 + $0x110] sm:$0xf]
  %v115 = vld [vmem:[%s1 + $0x114] sm:$0xf]
  %v116 = vld [vmem:[%s1 + $0x118] sm:$0xf]
  %v117 = vld [vmem:[%s1 + $0x11c] sm:$0xf]
  %v118 = vld [vmem:[%s1 + $0x120] sm:$0xf]
  %v119 = vld [vmem:[%s1 + $0x124] sm:$0xf]
  %v120 = vld [vmem:[%s1 + $0x128] sm:$0xf]
  %v121 = vld [vmem:[%s1 + $0x12c] sm:$0xf]
  %v122 = vld [vmem:[%s1 + $0x130] sm:$0xf]
  %v123 = vld [vmem:[%s1 + $0x134] sm:$0xf]
  %v124 = vld [vmem:[%s1 + $0x138] sm:$0xf]
  %v125 = vld [vmem:[%s1 + $0x13c] sm:$0xf]
  %v126 = vld [vmem:[%s1 + $0x140] sm:$0xf]
  %v127 = vld [vmem:[%s1 + $0x144] sm:$0xf]
  %v128 = vld [vmem:[%s1 + $0x148] sm:$0xf]
  %v129 = vld [vmem:[%s1 + $0x14c] sm:$0xf]
  %v130 = vld [vmem:[%s1 + $0x150] sm:$0xf]
  %v131 = vld [vmem:[%s1 + $0x154] sm:$0xf]
  %v132 = vld [vmem:[%s1 + $0x158] sm:$0xf]
  %v133 = vld [vmem:[%s1 + $0x15c] sm:$0xf]
  %v134 = vld [vmem:[%s1 + $0x160] sm:$0xf]
  %v135 = vld [vmem:[%s1 + $0x164] sm:$0xf]
  %v136 = vld [vmem:[%s1 + $0x168] sm:$0xf]
  %v137 = vld [vmem:[%s1 + $0x16c] sm:$0xf]
  %v138 = vld [vmem:[%s1 + $0x170] sm:$0xf]
  %v139 = vld [vmem:[%s1 + $0x174] sm:$0xf]
  %v140 = vld [vmem:[%s1 + $0x178] sm:$0xf]
  %v141 = vld [vmem:[%s1 + $0x17c] sm:$0xf]
  %v142 = vld [vmem:[%s1 + $0x180] sm:$0xf]
  %v143 = vld [vmem:[%s1 + $0x184] sm:$0xf]
  %v144 = vld [vmem:[%s1 + $0x188] sm:$0xf]
  %v145 = vld [vmem:[%s1 + $0x18c] sm:$0xf]
  %v146 = vld [vmem:[%s1 + $0x190] sm:$0xf]
  %v147 = vld [vmem:[%s1 + $0x194] sm:$0xf]
  %v148 = vld [vmem:[%s1 + $0x198] sm:$0xf]
  %v149 = vld [vmem:[%s1 + $0x19c] sm:$0xf]
  %v150 = vld [vmem:[%s1 + $0x1a0] sm:$0xf]
  %v151 = vld [vmem:[%s1 + $0x1a4] sm:$0xf]
  %v152 = vld [vmem:[%s1 + $0x1a8] sm:$0xf]
  %v153 = vld [vmem:[%s1 + $0x1ac] sm:$0xf]
  %v154 = vld [vmem:[%s1 + $0x1b0] sm:$0xf]
  %v155 = vld [vmem:[%s1 + $0x1b4] sm:$0xf]
  %v156 = vld [vmem:[%s1 + $0x1b8] sm:$0xf]
  %v157 = vld [vmem:[%s1 + $0x1bc] sm:$0xf]
  %v158 = vld [vmem:[%s1 + $0x1c0] sm:$0xf]
  %v159 = vld [vmem:[%s1 + $0x1c4] sm:$0xf]
  %v160 = vld [vmem:[%s1 + $0x1c8] sm:$0xf]
  %v161 = vld [vmem:[%s1 + $0x1cc] sm:$0xf]
  %v162 = vld [vmem:[%s1 + $0x1d0] sm:$0xf]
  %v163 = vld [vmem:[%s1 + $0x1d4] sm:$0xf]
  %v164 = vld [vmem:[%s1 + $0x1d8] sm:$0xf]
  %v165 = vld [vmem:[%s1 + $0x1dc] sm:$0xf]
  %v166 = vld [vmem:[%s1 + $0x1e0] sm:$0xf]
  %v167 = vld [vmem:[%s1 + $0x1e4] sm:$0xf]
  %v168 = vld [vmem:[%s1 + $0x1e8] sm:$0xf]
  %v169 = vld [vmem:[%s1 + $0x1ec] sm:$0xf]
  %v170 = vld [vmem:[%s1 + $0x1f0] sm:$0xf]
  %v171 = vld [vmem:[%s1 + $0x1f4] sm:$0xf]
  %v172 = vld [vmem:[%s1 + $0x1f8] sm:$0xf]
  %v173 = vld [vmem:[%s1 + $0x1fc] sm:$0xf]
  %v174 = vld [vmem:[%s1 + $0x200] sm:$0xf]
  %v175 = vld [vmem:[%s1 + $0x204] sm:$0xf]
  %v176 = vld [vmem:[%s1 + $0x208] sm:$0xf]
  %v177 = vld [vmem:[%s1 + $0x20c] sm:$0xf]
  %v178 = vld [vmem:[%s1 + $0x210] sm:$0xf]
  %v179 = vld [vmem:[%s1 + $0x214] sm:$0xf]
  %v180 = vld [vmem:[%s1 + $0x218] sm:$0xf]
  %v181 = vld [vmem:[%s1 + $0x21c] sm:$0xf]
  %v182 = vld [vmem:[%s1 + $0x220] sm:$0xf]
  %v183 = vld [vmem:[%s1 + $0x224] sm:$0xf]
  %v184 = vld [vmem:[%s1 + $0x228] sm:$0xf]
  %v185 = vld [vmem:[%s1 + $0x22c] sm:$0xf]
  %v186 = vld [vmem:[%s1 + $0x230] sm:$0xf]
  %v187 = vld [vmem:[%s1 + $0x234] sm:$0xf]
  %v188 = vld [vmem:[%s1 + $0x238] sm:$0xf]
  %v189 = vld [vmem:[%s1 + $0x23c] sm:$0xf]
  %v190 = vld [vmem:[%s1 + $0x240] sm:$0xf]
  %v191 = vld [vmem:[%s1 + $0x244] sm:$0xf]
  %v192 = vld [vmem:[%s1 + $0x248] sm:$0xf]
  %v193 = vld [vmem:[%s1 + $0x24c] sm:$0xf]
  %v194 = vld [vmem:[%s1 + $0x250] sm:$0xf]
  %v195 = vld [vmem:[%s1 + $0x254] sm:$0xf]
  %v196 = vld [vmem:[%s1 + $0x258] sm:$0xf]
  %v197 = vld [vmem:[%s1 + $0x25c] sm:$0xf]
  %v198 = vld [vmem:[%s1 + $0x260] sm:$0xf]
  %v199 = vld [vmem:[%s1 + $0x264] sm:$0xf]
  %v200 = vld [vmem:[%s1 + $0x268] sm:$0xf]
  %v201 = vld [vmem:[%s1 + $0x26c] sm:$0xf]
  %v202 = vld [vmem:[%s1 + $0x270] sm:$0xf]
  %v203 = vld [vmem:[%s1 + $0x274] sm:$0xf]
  %v204 = vld [vmem:[%s1 + $0x278] sm:$0xf]
  %v205 = vld [vmem:[%s1 + $0x27c] sm:$0xf]
  %v206 = vld [vmem:[%s1 + $0x280] sm:$0xf]
  %v207 = vld [vmem:[%s1 + $0x284] sm:$0xf]
  %v208 = vld [vmem:[%s1 + $0x288] sm:$0xf]
  %v209 = vld [vmem:[%s1 + $0x28c] sm:$0xf]
  %v210 = vld [vmem:[%s1 + $0x290] sm:$0xf]
  %v211 = vld [vmem:[%s1 + $0x294] sm:$0xf]
  %v212 = vld [vmem:[%s1 + $0x298] sm:$0xf]
  %v213 = vld [vmem:[%s1 + $0x29c] sm:$0xf]
  %v214 = vld [vmem:[%s1 + $0x2a0] sm:$0xf]
  %v215 = vld [vmem:[%s1 + $0x2a4] sm:$0xf]
  %v216 = vld [vmem:[%s1 + $0x2a8] sm:$0xf]
  %v217 = vld [vmem:[%s1 + $0x2ac] sm:$0xf]
  %v218 = vld [vmem:[%s1 + $0x2b0] sm:$0xf]
  %v219 = vld [vmem:[%s1 + $0x2b4] sm:$0xf]
  %v220 = vld [vmem:[%s1 + $0x2b8] sm:$0xf]
  %v221 = vld [vmem:[%s1 + $0x2bc] sm:$0xf]
  %v222 = vld [vmem:[%s1 + $0x2c0] sm:$0xf]
  %v223 = vld [vmem:[%s1 + $0x2c4] sm:$0xf]
  %v224 = vld [vmem:[%s1 + $0x2c8] sm:$0xf]
  %v225 = vld [vmem:[%s1 + $0x2cc] sm:$0xf]
  %v226 = vld [vmem:[%s1 + $0x2d0] sm:$0xf]
  %v227 = vld [vmem:[%s1 + $0x2d4] sm:$0xf]
  %v228 = vld [vmem:[%s1 + $0x2d8] sm:$0xf]
  %v229 = vld [vmem:[%s1 + $0x2dc] sm:$0xf]
  %v230 = vld [vmem:[%s1 + $0x2e0] sm:$0xf]
  %v231 = vld [vmem:[%s1 + $0x2e4] sm:$0xf]
  %v232 = vld [vmem:[%s1 + $0x2e8] sm:$0xf]
  %v233 = vld [vmem:[%s1 + $0x2ec] sm:$0xf]
  %v234 = vld [vmem:[%s1 + $0x2f0] sm:$0xf]
  %v235 = vld [vmem:[%s1 + $0x2f4] sm:$0xf]
  %v236 = vld [vmem:[%s1 + $0x2f8] sm:$0xf]
  %v237 = vld [vmem:[%s1 + $0x2fc] sm:$0xf]
  %v238 = vld [vmem:[%s1 + $0x300] sm:$0xf]
  %v239 = vld [vmem:[%s1 + $0x304] sm:$0xf]
  %v240 = vld [vmem:[%s1 + $0x308] sm:$0xf]
  %v241 = vld [vmem:[%s1 + $0x30c] sm:$0xf]
  %v242 = vld [vmem:[%s1 + $0x310] sm:$0xf]
  %v243 = vld [vmem:[%s1 + $0x314] sm:$0xf]
  %v244 = vld [vmem:[%s1 + $0x318] sm:$0xf]
  %v245 = vld [vmem:[%s1 + $0x31c] sm:$0xf]
  %v246 = vld [vmem:[%s1 + $0x320] sm:$0xf]
  %v247 = vld [vmem:[%s1 + $0x324] sm:$0xf]
  %v248 = vld [vmem:[%s1 + $0x328] sm:$0xf]
  %v249 = vld [vmem:[%s1 + $0x32c] sm:$0xf]
  %v250 = vld [vmem:[%s1 + $0x330] sm:$0xf]
  %v251 = vld [vmem:[%s1 + $0x334] sm:$0xf]
  %v252 = vld [vmem:[%s1 + $0x338] sm:$0xf]
  %v253 = vld [vmem:[%s1 + $0x33c] sm:$0xf]
  %v254 = vld [vmem:[%s1 + $0x340] sm:$0xf]
  %v255 = vld [vmem:[%s1 + $0x344] sm:$0xf]
  %v256 = vld [vmem:[%s1 + $0x348] sm:$0xf]
  %v257 = vld [vmem:[%s1 + $0x34c] sm:$0xf]
  %v258 = vld [vmem:[%s1 + $0x350] sm:$0xf]
  %v259 = vld [vmem:[%s1 + $0x354] sm:$0xf]
  %v260 = vld [vmem:[%s1 + $0x358] sm:$0xf]
  %v261 = vld [vmem:[%s1 + $0x35c] sm:$0xf]
  %v262 = vld [vmem:[%s1 + $0x360] sm:$0xf]
  %v263 = vld [vmem:[%s1 + $0x364] sm:$0xf]
  %v264 = vld [vmem:[%s1 + $0x368] sm:$0xf]
  %v265 = vld [vmem:[%s1 + $0x36c] sm:$0xf]
  %v266 = vld [vmem:[%s1 + $0x370] sm:$0xf]
  %v267 = vld [vmem:[%s1 + $0x374] sm:$0xf]
  %v268 = vld [vmem:[%s1 + $0x378] sm:$0xf]
  %v269 = vld [vmem:[%s1 + $0x37c] sm:$0xf]
  %v270 = vld [vmem:[%s1 + $0x380] sm:$0xf]
  %v271 = vld [vmem:[%s1 + $0x384] sm:$0xf]
  %v272 = vld [vmem:[%s1 + $0x388] sm:$0xf]
  %v273 = vld [vmem:[%s1 + $0x38c] sm:$0xf]
  %v274 = vld [vmem:[%s1 + $0x390] sm:$0xf]
  %v275 = vld [vmem:[%s1 + $0x394] sm:$0xf]
  %v276 = vld [vmem:[%s1 + $0x398] sm:$0xf]
  %v277 = vld [vmem:[%s1 + $0x39c] sm:$0xf]
  %v278 = vld [vmem:[%s1 + $0x3a0] sm:$0xf]
  %v279 = vld [vmem:[%s1 + $0x3a4] sm:$0xf]
  %v280 = vld [vmem:[%s1 + $0x3a8] sm:$0xf]
  %v281 = vld [vmem:[%s1 + $0x3ac] sm:$0xf]
  %v282 = vld [vmem:[%s1 + $0x3b0] sm:$0xf]
  %v283 = vld [vmem:[%s1 + $0x3b4] sm:$0xf]
  %v284 = vld [vmem:[%s1 + $0x3b8] sm:$0xf]
  %v285 = vld [vmem:[%s1 + $0x3bc] sm:$0xf]
  %v286 = vld [vmem:[%s1 + $0x3c0] sm:$0xf]
  %v287 = vld [vmem:[%s1 + $0x3c4] sm:$0xf]
  %v288 = vld [vmem:[%s1 + $0x3c8] sm:$0xf]
  %v289 = vld [vmem:[%s1 + $0x3cc] sm:$0xf]
  %v290 = vld [vmem:[%s1 + $0x3d0] sm:$0xf]
  %v291 = vld [vmem:[%s1 + $0x3d4] sm:$0xf]
  %v292 = vld [vmem:[%s1 + $0x3d8] sm:$0xf]
  %v293 = vld [vmem:[%s1 + $0x3dc] sm:$0xf]
  %v294 = vld [vmem:[%s1 + $0x3e0] sm:$0xf]
  %v295 = vld [vmem:[%s1 + $0x3e4] sm:$0xf]
  %v296 = vld [vmem:[%s1 + $0x3e8] sm:$0xf]
  %v297 = vld [vmem:[%s1 + $0x3ec] sm:$0xf]
  %v298 = vld [vmem:[%s1 + $0x3f0] sm:$0xf]
  %v299 = vld [vmem:[%s1 + $0x3f4] sm:$0xf]
  %v300 = vld [vmem:[%s1 + $0x3f8] sm:$0xf]
  %v301 = vld [vmem:[%s1 + $0x3fc] sm:$0xf]
  %v302 = vld [vmem:[%s1 + $0x400] sm:$0xf]
  %v303 = vld [vmem:[%s1 + $0x404] sm:$0xf]
  %v304 = vld [vmem:[%s1 + $0x408] sm:$0xf]
  %v305 = vld [vmem:[%s1 + $0x40c] sm:$0xf]
  %v306 = vld [vmem:[%s1 + $0x410] sm:$0xf]
  %v307 = vld [vmem:[%s1 + $0x414] sm:$0xf]
  %v308 = vld [vmem:[%s1 + $0x418] sm:$0xf]
  %v309 = vld [vmem:[%s1 + $0x41c] sm:$0xf]
  %v310 = vld [vmem:[%s1 + $0x420] sm:$0xf]
  %v311 = vld [vmem:[%s1 + $0x424] sm:$0xf]
  %v312 = vld [vmem:[%s1 + $0x428] sm:$0xf]
  %v313 = vld [vmem:[%s1 + $0x42c] sm:$0xf]
  %v314 = vld [vmem:[%s1 + $0x430] sm:$0xf]
  %v315 = vld [vmem:[%s1 + $0x434] sm:$0xf]
  %v316 = vld [vmem:[%s1 + $0x438] sm:$0xf]
  %v317 = vld [vmem:[%s1 + $0x43c] sm:$0xf]
  %v318 = vld [vmem:[%s1 + $0x440] sm:$0xf]
  %v319 = vld [vmem:[%s1 + $0x444] sm:$0xf]
  %v320 = vld [vmem:[%s1 + $0x448] sm:$0xf]
  %v321 = vld [vmem:[%s1 + $0x44c] sm:$0xf]
  %v322 = vld [vmem:[%s1 + $0x450] sm:$0xf]
  %v323 = vld [vmem:[%s1 + $0x454] sm:$0xf]
  %v324 = vld [vmem:[%s1 + $0x458] sm:$0xf]
  %v325 = vld [vmem:[%s1 + $0x45c] sm:$0xf]
  %v326 = vld [vmem:[%s1 + $0x460] sm:$0xf]
  %v327 = vld [vmem:[%s1 + $0x464] sm:$0xf]
  %v328 = vld [vmem:[%s1 + $0x468] sm:$0xf]
  %v329 = vld [vmem:[%s1 + $0x46c] sm:$0xf]
  %v330 = vld [vmem:[%s1 + $0x470] sm:$0xf]
  %v331 = vld [vmem:[%s1 + $0x474] sm:$0xf]
  %v332 = vld [vmem:[%s1 + $0x478] sm:$0xf]
  %v333 = vld [vmem:[%s1 + $0x47c] sm:$0xf]
  %v334 = vld [vmem:[%s1 + $0x480] sm:$0xf]
  %v335 = vld [vmem:[%s1 + $0x484] sm:$0xf]
  %v336 = vld [vmem:[%s1 + $0x488] sm:$0xf]
  %v337 = vld [vmem:[%s1 + $0x48c] sm:$0xf]
  %v338 = vld [vmem:[%s1 + $0x490] sm:$0xf]
  %v339 = vld [vmem:[%s1 + $0x494] sm:$0xf]
  %v340 = vld [vmem:[%s1 + $0x498] sm:$0xf]
  %v341 = vld [vmem:[%s1 + $0x49c] sm:$0xf]
  %v342 = vld [vmem:[%s1 + $0x4a0] sm:$0xf]
  %v343 = vld [vmem:[%s1 + $0x4a4] sm:$0xf]
  %v344 = vld [vmem:[%s1 + $0x4a8] sm:$0xf]
  %v345 = vld [vmem:[%s1 + $0x4ac] sm:$0xf]
  %v346 = vld [vmem:[%s1 + $0x4b0] sm:$0xf]
  %v347 = vld [vmem:[%s1 + $0x4b4] sm:$0xf]
  %v348 = vld [vmem:[%s1 + $0x4b8] sm:$0xf]
  %v349 = vld [vmem:[%s1 + $0x4bc] sm:$0xf]
  %v350 = vld [vmem:[%s1 + $0x4c0] sm:$0xf]
  %v351 = vld [vmem:[%s1 + $0x4c4] sm:$0xf]
  %v352 = vld [vmem:[%s1 + $0x4c8] sm:$0xf]
  %v353 = vld [vmem:[%s1 + $0x4cc] sm:$0xf]
  %v354 = vld [vmem:[%s1 + $0x4d0] sm:$0xf]
  %v355 = vld [vmem:[%s1 + $0x4d4] sm:$0xf]
  %v356 = vld [vmem:[%s1 + $0x4d8] sm:$0xf]
  %v357 = vld [vmem:[%s1 + $0x4dc] sm:$0xf]
  %v358 = vld [vmem:[%s1 + $0x4e0] sm:$0xf]
  %v359 = vld [vmem:[%s1 + $0x4e4] sm:$0xf]
  %v360 = vld [vmem:[%s1 + $0x4e8] sm:$0xf]
  %v361 = vld [vmem:[%s1 + $0x4ec] sm:$0xf]
  %v362 = vld [vmem:[%s1 + $0x4f0] sm:$0xf]
  %v363 = vld [vmem:[%s1 + $0x4f4] sm:$0xf]
  %v364 = vld [vmem:[%s1 + $0x4f8] sm:$0xf]
  %v365 = vld [vmem:[%s1 + $0x4fc] sm:$0xf]
  %v366 = vld [vmem:[%s1 + $0x500] sm:$0xf]
  %v367 = vld [vmem:[%s1 + $0x504] sm:$0xf]
  %v368 = vld [vmem:[%s1 + $0x508] sm:$0xf]
  %v369 = vld [vmem:[%s1 + $0x50c] sm:$0xf]
  %v370 = vld [vmem:[%s1 + $0x510] sm:$0xf]
  %v371 = vld [vmem:[%s1 + $0x514] sm:$0xf]
  %v372 = vld [vmem:[%s1 + $0x518] sm:$0xf]
  %v373 = vld [vmem:[%s1 + $0x51c] sm:$0xf]
  %v374 = vld [vmem:[%s1 + $0x520] sm:$0xf]
  %v375 = vld [vmem:[%s1 + $0x524] sm:$0xf]
  %v376 = vld [vmem:[%s1 + $0x528] sm:$0xf]
  %v377 = vld [vmem:[%s1 + $0x52c] sm:$0xf]
  %v378 = vld [vmem:[%s1 + $0x530] sm:$0xf]
  %v379 = vld [vmem:[%s1 + $0x534] sm:$0xf]
  %v380 = vld [vmem:[%s1 + $0x538] sm:$0xf]
  %v381 = vld [vmem:[%s1 + $0x53c] sm:$0xf]
  %v382 = vld [vmem:[%s1 + $0x540] sm:$0xf]
  %v383 = vld [vmem:[%s1 + $0x544] sm:$0xf]
  %v384 = vld [vmem:[%s1 + $0x548] sm:$0xf]
  %v385 = vld [vmem:[%s1 + $0x54c] sm:$0xf]
  %v386 = vld [vmem:[%s1 + $0x550] sm:$0xf]
  %v387 = vld [vmem:[%s1 + $0x554] sm:$0xf]
  %v388 = vld [vmem:[%s1 + $0x558] sm:$0xf]
  %v389 = vld [vmem:[%s1 + $0x55c] sm:$0xf]
  %v390 = vld [vmem:[%s1 + $0x560] sm:$0xf]
  %v391 = vld [vmem:[%s1 + $0x564] sm:$0xf]
  %v392 = vld [vmem:[%s1 + $0x568] sm:$0xf]
  %v393 = vld [vmem:[%s1 + $0x56c] sm:$0xf]
  %v394 = vld [vmem:[%s1 + $0x570] sm:$0xf]
  %v395 = vld [vmem:[%s1 + $0x574] sm:$0xf]
  %v396 = vld [vmem:[%s1 + $0x578] sm:$0xf]
  %v397 = vld [vmem:[%s1 + $0x57c] sm:$0xf]
  %v398 = vld [vmem:[%s1 + $0x580] sm:$0xf]
  %v399 = vld [vmem:[%s1 + $0x584] sm:$0xf]
  %v400 = vld [vmem:[%s1 + $0x588] sm:$0xf]
  %v401 = vld [vmem:[%s1 + $0x58c] sm:$0xf]
  %v402 = vld [vmem:[%s1 + $0x590] sm:$0xf]
  %v403 = vld [vmem:[%s1 + $0x594] sm:$0xf]
  %v404 = vld [vmem:[%s1 + $0x598] sm:$0xf]
  %v405 = vld [vmem:[%s1 + $0x59c] sm:$0xf]
  %v406 = vld [vmem:[%s1 + $0x5a0] sm:$0xf]
  %v407 = vld [vmem:[%s1 + $0x5a4] sm:$0xf]
  %v408 = vld [vmem:[%s1 + $0x5a8] sm:$0xf]
  %v409 = vld [vmem:[%s1 + $0x5ac] sm:$0xf]
  %v410 = vld [vmem:[%s1 + $0x5b0] sm:$0xf]
  %v411 = vld [vmem:[%s1 + $0x5b4] sm:$0xf]
  %v412 = vld [vmem:[%s1 + $0x5b8] sm:$0xf]
  %v413 = vld [vmem:[%s1 + $0x5bc] sm:$0xf]
  %v414 = vld [vmem:[%s1 + $0x5c0] sm:$0xf]
  %v415 = vld [vmem:[%s1 + $0x5c4] sm:$0xf]
  %v416 = vld [vmem:[%s1 + $0x5c8] sm:$0xf]
  %v417 = vld [vmem:[%s1 + $0x5cc] sm:$0xf]
  %v418 = vld [vmem:[%s1 + $0x5d0] sm:$0xf]
  %v419 = vld [vmem:[%s1 + $0x5d4] sm:$0xf]
  %v420 = vld [vmem:[%s1 + $0x5d8] sm:$0xf]
  %v421 = vld [vmem:[%s1 + $0x5dc] sm:$0xf]
  %v422 = vld [vmem:[%s1 + $0x5e0] sm:$0xf]
  %v423 = vld [vmem:[%s1 + $0x5e4] sm:$0xf]
  %v424 = vld [vmem:[%s1 + $0x5e8] sm:$0xf]
  %v425 = vld [vmem:[%s1 + $0x5ec] sm:$0xf]
  %v426 = vld [vmem:[%s1 + $0x5f0] sm:$0xf]
  %v427 = vld [vmem:[%s1 + $0x5f4] sm:$0xf]
  %v428 = vld [vmem:[%s1 + $0x5f8] sm:$0xf]
  %v429 = vld [vmem:[%s1 + $0x5fc] sm:$0xf]
  %v430 = vld [vmem:[%s1 + $0x600] sm:$0xf]
  %v431 = vld [vmem:[%s1 + $0x604] sm:$0xf]
  %v432 = vld [vmem:[%s1 + $0x608] sm:$0xf]
  %v433 = vld [vmem:[%s1 + $0x60c] sm:$0xf]
  %v434 = vld [vmem:[%s1 + $0x610] sm:$0xf]
  %v435 = vld [vmem:[%s1 + $0x614] sm:$0xf]
  %v436 = vld [vmem:[%s1 + $0x618] sm:$0xf]
  %v437 = vld [vmem:[%s1 + $0x61c] sm:$0xf]
  %v438 = vld [vmem:[%s1 + $0x620] sm:$0xf]
  %v439 = vld [vmem:[%s1 + $0x624] sm:$0xf]
  %v440 = vld [vmem:[%s1 + $0x628] sm:$0xf]
  %v441 = vld [vmem:[%s1 + $0x62c] sm:$0xf]
  %v442 = vld [vmem:[%s1 + $0x630] sm:$0xf]
  %v443 = vld [vmem:[%s1 + $0x634] sm:$0xf]
  %v444 = vld [vmem:[%s1 + $0x638] sm:$0xf]
  %v445 = vld [vmem:[%s1 + $0x63c] sm:$0xf]
  %v446 = vld [vmem:[%s1 + $0x640] sm:$0xf]
  %v447 = vld [vmem:[%s1 + $0x644] sm:$0xf]
  %v448 = vld [vmem:[%s1 + $0x648] sm:$0xf]
  %v449 = vld [vmem:[%s1 + $0x64c] sm:$0xf]
  %v450 = vld [vmem:[%s1 + $0x650] sm:$0xf]
  %v451 = vld [vmem:[%s1 + $0x654] sm:$0xf]
  %v452 = vld [vmem:[%s1 + $0x658] sm:$0xf]
  %v453 = vld [vmem:[%s1 + $0x65c] sm:$0xf]
  %v454 = vld [vmem:[%s1 + $0x660] sm:$0xf]
  %v455 = vld [vmem:[%s1 + $0x664] sm:$0xf]
  %v456 = vld [vmem:[%s1 + $0x668] sm:$0xf]
  %v457 = vld [vmem:[%s1 + $0x66c] sm:$0xf]
  %v458 = vld [vmem:[%s1 + $0x670] sm:$0xf]
  %v459 = vld [vmem:[%s1 + $0x674] sm:$0xf]
  %v460 = vld [vmem:[%s1 + $0x678] sm:$0xf]
  %v461 = vld [vmem:[%s1 + $0x67c] sm:$0xf]
  %v462 = vld [vmem:[%s1 + $0x680] sm:$0xf]
  %v463 = vld [vmem:[%s1 + $0x684] sm:$0xf]
  %v464 = vld [vmem:[%s1 + $0x688] sm:$0xf]
  %v465 = vld [vmem:[%s1 + $0x68c] sm:$0xf]
  %v466 = vld [vmem:[%s1 + $0x690] sm:$0xf]
  %v467 = vld [vmem:[%s1 + $0x694] sm:$0xf]
  %v468 = vld [vmem:[%s1 + $0x698] sm:$0xf]
  %v469 = vld [vmem:[%s1 + $0x69c] sm:$0xf]
  %v470 = vld [vmem:[%s1 + $0x6a0] sm:$0xf]
  %v471 = vld [vmem:[%s1 + $0x6a4] sm:$0xf]
  %v472 = vld [vmem:[%s1 + $0x6a8] sm:$0xf]
  %v473 = vld [vmem:[%s1 + $0x6ac] sm:$0xf]
  %v474 = vld [vmem:[%s1 + $0x6b0] sm:$0xf]
  %v475 = vld [vmem:[%s1 + $0x6b4] sm:$0xf]
  %v476 = vld [vmem:[%s1 + $0x6b8] sm:$0xf]
  %v477 = vld [vmem:[%s1 + $0x6bc] sm:$0xf]
  %v478 = vld [vmem:[%s1 + $0x6c0] sm:$0xf]
  %v479 = vld [vmem:[%s1 + $0x6c4] sm:$0xf]
  %v480 = vld [vmem:[%s1 + $0x6c8] sm:$0xf]
  %v481 = vld [vmem:[%s1 + $0x6cc] sm:$0xf]
  %v482 = vld [vmem:[%s1 + $0x6d0] sm:$0xf]
  %v483 = vld [vmem:[%s1 + $0x6d4] sm:$0xf]
  %v484 = vld [vmem:[%s1 + $0x6d8] sm:$0xf]
  %v485 = vld [vmem:[%s1 + $0x6dc] sm:$0xf]
  %v486 = vld [vmem:[%s1 + $0x6e0] sm:$0xf]
  %v487 = vld [vmem:[%s1 + $0x6e4] sm:$0xf]
  %v488 = vld [vmem:[%s1 + $0x6e8] sm:$0xf]
  %v489 = vld [vmem:[%s1 + $0x6ec] sm:$0xf]
  %v490 = vld [vmem:[%s1 + $0x6f0] sm:$0xf]
  %v491 = vld [vmem:[%s1 + $0x6f4] sm:$0xf]
  %v492 = vld [vmem:[%s1 + $0x6f8] sm:$0xf]
  %v493 = vld [vmem:[%s1 + $0x6fc] sm:$0xf]
  %v494 = vld [vmem:[%s1 + $0x700] sm:$0xf]
  %v495 = vld [vmem:[%s1 + $0x704] sm:$0xf]
  %v496 = vld [vmem:[%s1 + $0x708] sm:$0xf]
  %v497 = vld [vmem:[%s1 + $0x70c] sm:$0xf]
  %v498 = vld [vmem:[%s1 + $0x710] sm:$0xf]
  %v499 = vld [vmem:[%s1 + $0x714] sm:$0xf]
  %v500 = vld [vmem:[%s1 + $0x718] sm:$0xf]
  %v501 = vld [vmem:[%s1 + $0x71c] sm:$0xf]
  %v502 = vld [vmem:[%s1 + $0x720] sm:$0xf]
  %v503 = vld [vmem:[%s1 + $0x724] sm:$0xf]
  %v504 = vld [vmem:[%s1 + $0x728] sm:$0xf]
  %v505 = vld [vmem:[%s1 + $0x72c] sm:$0xf]
  %v506 = vld [vmem:[%s1 + $0x730] sm:$0xf]
  %v507 = vld [vmem:[%s1 + $0x734] sm:$0xf]
  %v508 = vld [vmem:[%s1 + $0x738] sm:$0xf]
  %v509 = vld [vmem:[%s1 + $0x73c] sm:$0xf]
  %v510 = vld [vmem:[%s1 + $0x740] sm:$0xf]
  %v511 = vld [vmem:[%s1 + $0x744] sm:$0xf]
  %v512 = vld [vmem:[%s1 + $0x748] sm:$0xf]
  %v513 = vld [vmem:[%s1 + $0x74c] sm:$0xf]
  %v514 = vld [vmem:[%s1 + $0x750] sm:$0xf]
  %v515 = vld [vmem:[%s1 + $0x754] sm:$0xf]
  %v516 = vld [vmem:[%s1 + $0x758] sm:$0xf]
  %v517 = vld [vmem:[%s1 + $0x75c] sm:$0xf]
  %v518 = vld [vmem:[%s1 + $0x760] sm:$0xf]
  %v519 = vld [vmem:[%s1 + $0x764] sm:$0xf]
  %v520 = vld [vmem:[%s1 + $0x768] sm:$0xf]
  %v521 = vld [vmem:[%s1 + $0x76c] sm:$0xf]
  %v522 = vld [vmem:[%s1 + $0x770] sm:$0xf]
  %v523 = vld [vmem:[%s1 + $0x774] sm:$0xf]
  %v524 = vld [vmem:[%s1 + $0x778] sm:$0xf]
  %v525 = vld [vmem:[%s1 + $0x77c] sm:$0xf]
  %v526 = vld [vmem:[%s1 + $0x780] sm:$0xf]
  %v527 = vld [vmem:[%s1 + $0x784] sm:$0xf]
  %v528 = vld [vmem:[%s1 + $0x788] sm:$0xf]
  %v529 = vld [vmem:[%s1 + $0x78c] sm:$0xf]
  %v530 = vld [vmem:[%s1 + $0x790] sm:$0xf]
  %v531 = vld [vmem:[%s1 + $0x794] sm:$0xf]
  %v532 = vld [vmem:[%s1 + $0x798] sm:$0xf]
  %v533 = vld [vmem:[%s1 + $0x79c] sm:$0xf]
  %v534 = vld [vmem:[%s1 + $0x7a0] sm:$0xf]
  %v535 = vld [vmem:[%s1 + $0x7a4] sm:$0xf]
  %v536 = vld [vmem:[%s1 + $0x7a8] sm:$0xf]
  %v537 = vld [vmem:[%s1 + $0x7ac] sm:$0xf]
  %v538 = vld [vmem:[%s1 + $0x7b0] sm:$0xf]
  %v539 = vld [vmem:[%s1 + $0x7b4] sm:$0xf]
  %v540 = vld [vmem:[%s1 + $0x7b8] sm:$0xf]
  %v541 = vld [vmem:[%s1 + $0x7bc] sm:$0xf]
  %v542 = vld [vmem:[%s1 + $0x7c0] sm:$0xf]
  %v543 = vld [vmem:[%s1 + $0x7c4] sm:$0xf]
  %v544 = vld [vmem:[%s1 + $0x7c8] sm:$0xf]
  %v545 = vld [vmem:[%s1 + $0x7cc] sm:$0xf]
  %v546 = vld [vmem:[%s1 + $0x7d0] sm:$0xf]
  %v547 = vld [vmem:[%s1 + $0x7d4] sm:$0xf]
  %v548 = vld [vmem:[%s1 + $0x7d8] sm:$0xf]
  %v549 = vld [vmem:[%s1 + $0x7dc] sm:$0xf]
  %v550 = vld [vmem:[%s1 + $0x7e0] sm:$0xf]
  %v551 = vld [vmem:[%s1 + $0x7e4] sm:$0xf]
  %v552 = vld [vmem:[%s1 + $0x7e8] sm:$0xf]
  %v553 = vld [vmem:[%s1 + $0x7ec] sm:$0xf]
  %v554 = vld [vmem:[%s1 + $0x7f0] sm:$0xf]
  %v555 = vld [vmem:[%s1 + $0x7f4] sm:$0xf]
  %v556 = vld [vmem:[%s1 + $0x7f8] sm:$0xf]
  %v557 = vld [vmem:[%s1 + $0x7fc] sm:$0xf]
  %v558 = vld [vmem:[%s1 + $0x800] sm:$0xf]
  %v559 = vld [vmem:[%s1 + $0x804] sm:$0xf]
  %v560 = vld [vmem:[%s1 + $0x808] sm:$0xf]
  %v561 = vld [vmem:[%s1 + $0x80c] sm:$0xf]
  %v562 = vld [vmem:[%s1 + $0x810] sm:$0xf]
  %v563 = vld [vmem:[%s1 + $0x814] sm:$0xf]
  %v564 = vld [vmem:[%s1 + $0x818] sm:$0xf]
  %v565 = vld [vmem:[%s1 + $0x81c] sm:$0xf]
  %v566 = vld [vmem:[%s1 + $0x820] sm:$0xf]
  %v567 = vld [vmem:[%s1 + $0x824] sm:$0xf]
  %v568 = vld [vmem:[%s1 + $0x828] sm:$0xf]
  %v569 = vld [vmem:[%s1 + $0x82c] sm:$0xf]
  %v570 = vld [vmem:[%s1 + $0x830] sm:$0xf]
  %v571 = vld [vmem:[%s1 + $0x834] sm:$0xf]
  %v572 = vld [vmem:[%s1 + $0x838] sm:$0xf]
  %v573 = vld [vmem:[%s1 + $0x83c] sm:$0xf]
  %v574 = vld [vmem:[%s1 + $0x840] sm:$0xf]
  %v575 = vld [vmem:[%s1 + $0x844] sm:$0xf]
  %v576 = vld [vmem:[%s1 + $0x848] sm:$0xf]
  %v577 = vld [vmem:[%s1 + $0x84c] sm:$0xf]
  %v578 = vld [vmem:[%s1 + $0x850] sm:$0xf]
  %v579 = vld [vmem:[%s1 + $0x854] sm:$0xf]
  %v580 = vld [vmem:[%s1 + $0x858] sm:$0xf]
  %v581 = vld [vmem:[%s1 + $0x85c] sm:$0xf]
  %v582 = vld [vmem:[%s1 + $0x860] sm:$0xf]
  %v583 = vld [vmem:[%s1 + $0x864] sm:$0xf]
  %v584 = vld [vmem:[%s1 + $0x868] sm:$0xf]
  %v585 = vld [vmem:[%s1 + $0x86c] sm:$0xf]
  %v586 = vld [vmem:[%s1 + $0x870] sm:$0xf]
  %v587 = vld [vmem:[%s1 + $0x874] sm:$0xf]
  %v588 = vld [vmem:[%s1 + $0x878] sm:$0xf]
  %v589 = vld [vmem:[%s1 + $0x87c] sm:$0xf]
  %v590 = vld [vmem:[%s1 + $0x880] sm:$0xf]
  %v591 = vld [vmem:[%s1 + $0x884] sm:$0xf]
  %v592 = vld [vmem:[%s1 + $0x888] sm:$0xf]
  %v593 = vld [vmem:[%s1 + $0x88c] sm:$0xf]
  %v594 = vld [vmem:[%s1 + $0x890] sm:$0xf]
  %v595 = vld [vmem:[%s1 + $0x894] sm:$0xf]
  %v596 = vld [vmem:[%s1 + $0x898] sm:$0xf]
  %v597 = vld [vmem:[%s1 + $0x89c] sm:$0xf]
  %v598 = vld [vmem:[%s1 + $0x8a0] sm:$0xf]
  %v599 = vld [vmem:[%s1 + $0x8a4] sm:$0xf]
  %v600 = vld [vmem:[%s1 + $0x8a8] sm:$0xf]
  %v601 = vld [vmem:[%s1 + $0x8ac] sm:$0xf]
  %v602 = vld [vmem:[%s1 + $0x8b0] sm:$0xf]
  %v603 = vld [vmem:[%s1 + $0x8b4] sm:$0xf]
  %v604 = vld [vmem:[%s1 + $0x8b8] sm:$0xf]
  %v605 = vld [vmem:[%s1 + $0x8bc] sm:$0xf]
  %v606 = vld [vmem:[%s1 + $0x8c0] sm:$0xf]
  %v607 = vld [vmem:[%s1 + $0x8c4] sm:$0xf]
  %v608 = vld [vmem:[%s1 + $0x8c8] sm:$0xf]
  %v609 = vld [vmem:[%s1 + $0x8cc] sm:$0xf]
  %v610 = vld [vmem:[%s1 + $0x8d0] sm:$0xf]
  %v611 = vld [vmem:[%s1 + $0x8d4] sm:$0xf]
  %v612 = vld [vmem:[%s1 + $0x8d8] sm:$0xf]
  %v613 = vld [vmem:[%s1 + $0x8dc] sm:$0xf]
  %v614 = vld [vmem:[%s1 + $0x8e0] sm:$0xf]
  %v615 = vld [vmem:[%s1 + $0x8e4] sm:$0xf]
  %v616 = vld [vmem:[%s1 + $0x8e8] sm:$0xf]
  %v617 = vld [vmem:[%s1 + $0x8ec] sm:$0xf]
  %v618 = vld [vmem:[%s1 + $0x8f0] sm:$0xf]
  %v619 = vld [vmem:[%s1 + $0x8f4] sm:$0xf]
  %v620 = vld [vmem:[%s1 + $0x8f8] sm:$0xf]
  %v621 = vld [vmem:[%s1 + $0x8fc] sm:$0xf]
  %v622 = vld [vmem:[%s1 + $0x900] sm:$0xf]
  %v623 = vld [vmem:[%s1 + $0x904] sm:$0xf]
  %v624 = vld [vmem:[%s1 + $0x908] sm:$0xf]
  %v625 = vld [vmem:[%s1 + $0x90c] sm:$0xf]
  %v626 = vld [vmem:[%s1 + $0x910] sm:$0xf]
  %v627 = vld [vmem:[%s1 + $0x914] sm:$0xf]
  %v628 = vld [vmem:[%s1 + $0x918] sm:$0xf]
  %v629 = vld [vmem:[%s1 + $0x91c] sm:$0xf]
  %v630 = vld [vmem:[%s1 + $0x920] sm:$0xf]
  %v631 = vld [vmem:[%s1 + $0x924] sm:$0xf]
  %v632 = vld [vmem:[%s1 + $0x928] sm:$0xf]
  %v633 = vld [vmem:[%s1 + $0x92c] sm:$0xf]
  %v634 = vld [vmem:[%s1 + $0x930] sm:$0xf]
  %v635 = vld [vmem:[%s1 + $0x934] sm:$0xf]
  %v636 = vld [vmem:[%s1 + $0x938] sm:$0xf]
  %v637 = vld [vmem:[%s1 + $0x93c] sm:$0xf]
  %v638 = vld [vmem:[%s1 + $0x940] sm:$0xf]
  %v639 = vld [vmem:[%s1 + $0x944] sm:$0xf]
  %v640 = vld [vmem:[%s1 + $0x948] sm:$0xf]
  %v641 = vld [vmem:[%s1 + $0x94c] sm:$0xf]
  %v642 = vld [vmem:[%s1 + $0x950] sm:$0xf]
  %v643 = vld [vmem:[%s1 + $0x954] sm:$0xf]
  %v644 = vld [vmem:[%s1 + $0x958] sm:$0xf]
  %v645 = vld [vmem:[%s1 + $0x95c] sm:$0xf]
  %v646 = vld [vmem:[%s1 + $0x960] sm:$0xf]
  %v647 = vld [vmem:[%s1 + $0x964] sm:$0xf]
  %v648 = vld [vmem:[%s1 + $0x968] sm:$0xf]
  %v649 = vld [vmem:[%s1 + $0x96c] sm:$0xf]
  %v650 = vld [vmem:[%s1 + $0x970] sm:$0xf]
  %v651 = vld [vmem:[%s1 + $0x974] sm:$0xf]
  %v652 = vld [vmem:[%s1 + $0x978] sm:$0xf]
  %v653 = vld [vmem:[%s1 + $0x97c] sm:$0xf]
  %v654 = vld [vmem:[%s1 + $0x980] sm:$0xf]
  %v655 = vld [vmem:[%s1 + $0x984] sm:$0xf]
  %v656 = vld [vmem:[%s1 + $0x988] sm:$0xf]
  %v657 = vld [vmem:[%s1 + $0x98c] sm:$0xf]
  %v658 = vld [vmem:[%s1 + $0x990] sm:$0xf]
  %v659 = vld [vmem:[%s1 + $0x994] sm:$0xf]
  %v660 = vld [vmem:[%s1 + $0x998] sm:$0xf]
  %v661 = vld [vmem:[%s1 + $0x99c] sm:$0xf]
  %v662 = vld [vmem:[%s1 + $0x9a0] sm:$0xf]
  %v663 = vld [vmem:[%s1 + $0x9a4] sm:$0xf]
  %v664 = vld [vmem:[%s1 + $0x9a8] sm:$0xf]
  %v665 = vld [vmem:[%s1 + $0x9ac] sm:$0xf]
  %v666 = vld [vmem:[%s1 + $0x9b0] sm:$0xf]
  %v667 = vld [vmem:[%s1 + $0x9b4] sm:$0xf]
  %v668 = vld [vmem:[%s1 + $0x9b8] sm:$0xf]
  %v669 = vld [vmem:[%s1 + $0x9bc] sm:$0xf]
  %v670 = vld [vmem:[%s1 + $0x9c0] sm:$0xf]
  %v671 = vld [vmem:[%s1 + $0x9c4] sm:$0xf]
  %v672 = vld [vmem:[%s1 + $0x9c8] sm:$0xf]
  %v673 = vld [vmem:[%s1 + $0x9cc] sm:$0xf]
  %v674 = vld [vmem:[%s1 + $0x9d0] sm:$0xf]
  %v675 = vld [vmem:[%s1 + $0x9d4] sm:$0xf]
  %v676 = vld [vmem:[%s1 + $0x9d8] sm:$0xf]
  %v677 = vld [vmem:[%s1 + $0x9dc] sm:$0xf]
  %v678 = vld [vmem:[%s1 + $0x9e0] sm:$0xf]
  %v679 = vld [vmem:[%s1 + $0x9e4] sm:$0xf]
  %v680 = vld [vmem:[%s1 + $0x9e8] sm:$0xf]
  %v681 = vld [vmem:[%s1 + $0x9ec] sm:$0xf]
  %v682 = vld [vmem:[%s1 + $0x9f0] sm:$0xf]
  %v683 = vld [vmem:[%s1 + $0x9f4] sm:$0xf]
  %v684 = vld [vmem:[%s1 + $0x9f8] sm:$0xf]
  %v685 = vld [vmem:[%s1 + $0x9fc] sm:$0xf]
  %v686 = vld [vmem:[%s1 + $0xa00] sm:$0xf]
  %v687 = vld [vmem:[%s1 + $0xa04] sm:$0xf]
  %v688 = vld [vmem:[%s1 + $0xa08] sm:$0xf]
  %v689 = vld [vmem:[%s1 + $0xa0c] sm:$0xf]
  %v690 = vld [vmem:[%s1 + $0xa10] sm:$0xf]
  %v691 = vld [vmem:[%s1 + $0xa14] sm:$0xf]
  %v692 = vld [vmem:[%s1 + $0xa18] sm:$0xf]
  %v693 = vld [vmem:[%s1 + $0xa1c] sm:$0xf]
  %v694 = vld [vmem:[%s1 + $0xa20] sm:$0xf]
  %v695 = vld [vmem:[%s1 + $0xa24] sm:$0xf]
  %v696 = vld [vmem:[%s1 + $0xa28] sm:$0xf]
  %v697 = vld [vmem:[%s1 + $0xa2c] sm:$0xf]
  %v698 = vld [vmem:[%s1 + $0xa30] sm:$0xf]
  %v699 = vld [vmem:[%s1 + $0xa34] sm:$0xf]
  %v700 = vld [vmem:[%s1 + $0xa38] sm:$0xf]
  %v701 = vld [vmem:[%s1 + $0xa3c] sm:$0xf]
  %v702 = vld [vmem:[%s1 + $0xa40] sm:$0xf]
  %v703 = vld [vmem:[%s1 + $0xa44] sm:$0xf]
  %v704 = vld [vmem:[%s1 + $0xa48] sm:$0xf]
  %v705 = vld [vmem:[%s1 + $0xa4c] sm:$0xf]
  %v706 = vld [vmem:[%s1 + $0xa50] sm:$0xf]
  %v707 = vld [vmem:[%s1 + $0xa54] sm:$0xf]
  %v708 = vld [vmem:[%s1 + $0xa58] sm:$0xf]
  %v709 = vld [vmem:[%s1 + $0xa5c] sm:$0xf]
  %v710 = vld [vmem:[%s1 + $0xa60] sm:$0xf]
  %v711 = vld [vmem:[%s1 + $0xa64] sm:$0xf]
  %v712 = vld [vmem:[%s1 + $0xa68] sm:$0xf]
  %v713 = vld [vmem:[%s1 + $0xa6c] sm:$0xf]
  %v714 = vld [vmem:[%s1 + $0xa70] sm:$0xf]
  %v715 = vld [vmem:[%s1 + $0xa74] sm:$0xf]
  %v716 = vld [vmem:[%s1 + $0xa78] sm:$0xf]
  %v717 = vld [vmem:[%s1 + $0xa7c] sm:$0xf]
  %v718 = vld [vmem:[%s1 + $0xa80] sm:$0xf]
  %v719 = vld [vmem:[%s1 + $0xa84] sm:$0xf]
  %v720 = vld [vmem:[%s1 + $0xa88] sm:$0xf]
  %v721 = vld [vmem:[%s1 + $0xa8c] sm:$0xf]
  %v722 = vld [vmem:[%s1 + $0xa90] sm:$0xf]
  %v723 = vld [vmem:[%s1 + $0xa94] sm:$0xf]
  %v724 = vld [vmem:[%s1 + $0xa98] sm:$0xf]
  %v725 = vld [vmem:[%s1 + $0xa9c] sm:$0xf]
  %v726 = vld [vmem:[%s1 + $0xaa0] sm:$0xf]
  %v727 = vld [vmem:[%s1 + $0xaa4] sm:$0xf]
  %v728 = vld [vmem:[%s1 + $0xaa8] sm:$0xf]
  %v729 = vld [vmem:[%s1 + $0xaac] sm:$0xf]
  %v730 = vld [vmem:[%s1 + $0xab0] sm:$0xf]
  %v731 = vld [vmem:[%s1 + $0xab4] sm:$0xf]
  %v732 = vld [vmem:[%s1 + $0xab8] sm:$0xf]
  %v733 = vld [vmem:[%s1 + $0xabc] sm:$0xf]
  %v734 = vld [vmem:[%s1 + $0xac0] sm:$0xf]
  %v735 = vld [vmem:[%s1 + $0xac4] sm:$0xf]
  %v736 = vld [vmem:[%s1 + $0xac8] sm:$0xf]
  %v737 = vld [vmem:[%s1 + $0xacc] sm:$0xf]
  %v738 = vld [vmem:[%s1 + $0xad0] sm:$0xf]
  %v739 = vld [vmem:[%s1 + $0xad4] sm:$0xf]
  %v740 = vld [vmem:[%s1 + $0xad8] sm:$0xf]
  %v741 = vld [vmem:[%s1 + $0xadc] sm:$0xf]
  %v742 = vld [vmem:[%s1 + $0xae0] sm:$0xf]
  %v743 = vld [vmem:[%s1 + $0xae4] sm:$0xf]
  %v744 = vld [vmem:[%s1 + $0xae8] sm:$0xf]
  %v745 = vld [vmem:[%s1 + $0xaec] sm:$0xf]
  %v746 = vld [vmem:[%s1 + $0xaf0] sm:$0xf]
  %v747 = vld [vmem:[%s1 + $0xaf4] sm:$0xf]
  %v748 = vld [vmem:[%s1 + $0xaf8] sm:$0xf]
  %v749 = vld [vmem:[%s1 + $0xafc] sm:$0xf]
  %v750 = vld [vmem:[%s1 + $0xb00] sm:$0xf]
  %v751 = vld [vmem:[%s1 + $0xb04] sm:$0xf]
  %v752 = vld [vmem:[%s1 + $0xb08] sm:$0xf]
  %v753 = vld [vmem:[%s1 + $0xb0c] sm:$0xf]
  %v754 = vld [vmem:[%s1 + $0xb10] sm:$0xf]
  %v755 = vld [vmem:[%s1 + $0xb14] sm:$0xf]
  %v756 = vld [vmem:[%s1 + $0xb18] sm:$0xf]
  %v757 = vld [vmem:[%s1 + $0xb1c] sm:$0xf]
  %v758 = vld [vmem:[%s1 + $0xb20] sm:$0xf]
  %v759 = vld [vmem:[%s1 + $0xb24] sm:$0xf]
  %v760 = vld [vmem:[%s1 + $0xb28] sm:$0xf]
  %v761 = vld [vmem:[%s1 + $0xb2c] sm:$0xf]
  %v762 = vld [vmem:[%s1 + $0xb30] sm:$0xf]
  %v763 = vld [vmem:[%s1 + $0xb34] sm:$0xf]
  %v764 = vld [vmem:[%s1 + $0xb38] sm:$0xf]
  %v765 = vld [vmem:[%s1 + $0xb3c] sm:$0xf]
  %v766 = vld [vmem:[%s1 + $0xb40] sm:$0xf]
  %v767 = vld [vmem:[%s1 + $0xb44] sm:$0xf]
  %v768 = vld [vmem:[%s1 + $0xb48] sm:$0xf]
  %v769 = vld [vmem:[%s1 + $0xb4c] sm:$0xf]
  %v770 = vld [vmem:[%s1 + $0xb50] sm:$0xf]
  %v771 = vld [vmem:[%s1 + $0xb54] sm:$0xf]
  %v772 = vld [vmem:[%s1 + $0xb58] sm:$0xf]
  %v773 = vld [vmem:[%s1 + $0xb5c] sm:$0xf]
  %v774 = vld [vmem:[%s1 + $0xb60] sm:$0xf]
  %v775 = vld [vmem:[%s1 + $0xb64] sm:$0xf]
  %v776 = vld [vmem:[%s1 + $0xb68] sm:$0xf]
  %v777 = vld [vmem:[%s1 + $0xb6c] sm:$0xf]
  %v778 = vld [vmem:[%s1 + $0xb70] sm:$0xf]
  %v779 = vld [vmem:[%s1 + $0xb74] sm:$0xf]
  %v780 = vld [vmem:[%s1 + $0xb78] sm:$0xf]
  %v781 = vld [vmem:[%s1 + $0xb7c] sm:$0xf]
  %v782 = vld [vmem:[%s1 + $0xb80] sm:$0xf]
  %v783 = vld [vmem:[%s1 + $0xb84] sm:$0xf]
  %v784 = vld [vmem:[%s1 + $0xb88] sm:$0xf]
  %v785 = vld [vmem:[%s1 + $0xb8c] sm:$0xf]
  %v786 = vld [vmem:[%s1 + $0xb90] sm:$0xf]
  %v787 = vld [vmem:[%s1 + $0xb94] sm:$0xf]
  %v788 = vld [vmem:[%s1 + $0xb98] sm:$0xf]
  %v789 = vld [vmem:[%s1 + $0xb9c] sm:$0xf]
  %v790 = vld [vmem:[%s1 + $0xba0] sm:$0xf]
  %v791 = vld [vmem:[%s1 + $0xba4] sm:$0xf]
  %v792 = vld [vmem:[%s1 + $0xba8] sm:$0xf]
  %v793 = vld [vmem:[%s1 + $0xbac] sm:$0xf]
  %v794 = vld [vmem:[%s1 + $0xbb0] sm:$0xf]
  %v795 = vld [vmem:[%s1 + $0xbb4] sm:$0xf]
  %v796 = vld [vmem:[%s1 + $0xbb8] sm:$0xf]
  %v797 = vld [vmem:[%s1 + $0xbbc] sm:$0xf]
  %v798 = vld [vmem:[%s1 + $0xbc0] sm:$0xf]
  %v799 = vld [vmem:[%s1 + $0xbc4] sm:$0xf]
  %v800 = vld [vmem:[%s1 + $0xbc8] sm:$0xf]
  %v801 = vld [vmem:[%s1 + $0xbcc] sm:$0xf]
  %v802 = vld [vmem:[%s1 + $0xbd0] sm:$0xf]
  %v803 = vld [vmem:[%s1 + $0xbd4] sm:$0xf]
  %v804 = vld [vmem:[%s1 + $0xbd8] sm:$0xf]
  %v805 = vld [vmem:[%s1 + $0xbdc] sm:$0xf]
  %v806 = vld [vmem:[%s1 + $0xbe0] sm:$0xf]
  %v807 = vld [vmem:[%s1 + $0xbe4] sm:$0xf]
  %v808 = vld [vmem:[%s1 + $0xbe8] sm:$0xf]
  %v809 = vld [vmem:[%s1 + $0xbec] sm:$0xf]
  %v810 = vld [vmem:[%s1 + $0xbf0] sm:$0xf]
  %v811 = vld [vmem:[%s1 + $0xbf4] sm:$0xf]
  %v812 = vld [vmem:[%s1 + $0xbf8] sm:$0xf]
  %v813 = vld [vmem:[%s1 + $0xbfc] sm:$0xf]
  %v814 = vld [vmem:[%s1 + $0xc00] sm:$0xf]
  %v815 = vld [vmem:[%s1 + $0xc04] sm:$0xf]
  %v816 = vld [vmem:[%s1 + $0xc08] sm:$0xf]
  %v817 = vld [vmem:[%s1 + $0xc0c] sm:$0xf]
  %v818 = vld [vmem:[%s1 + $0xc10] sm:$0xf]
  %v819 = vld [vmem:[%s1 + $0xc14] sm:$0xf]
  %v820 = vld [vmem:[%s1 + $0xc18] sm:$0xf]
  %v821 = vld [vmem:[%s1 + $0xc1c] sm:$0xf]
  %v822 = vld [vmem:[%s1 + $0xc20] sm:$0xf]
  %v823 = vld [vmem:[%s1 + $0xc24] sm:$0xf]
  %v824 = vld [vmem:[%s1 + $0xc28] sm:$0xf]
  %v825 = vld [vmem:[%s1 + $0xc2c] sm:$0xf]
  %v826 = vld [vmem:[%s1 + $0xc30] sm:$0xf]
  %v827 = vld [vmem:[%s1 + $0xc34] sm:$0xf]
  %v828 = vld [vmem:[%s1 + $0xc38] sm:$0xf]
  %v829 = vld [vmem:[%s1 + $0xc3c] sm:$0xf]
  %v830 = vld [vmem:[%s2] sm:$0x1]
  %v831 = vunpack.c.l.bf16 %v830
  %v832 = vlaneseq
  %v833 = vshrl.u32 %v832, 7
  %v834 = vsub.s32 0, %v833
  %v835 = vrot.slane %v831, %v834
  %v861 = vunpack.c.l.b16 %v21
  %v862 = vunpack.c.h.b16 %v21
  %v863 = vunpack.c.l.b16 %v22
  %v864 = vunpack.c.h.b16 %v22
  %v865 = vunpack.c.l.b16 %v23
  %v866 = vunpack.c.h.b16 %v23
  %v867 = vunpack.c.l.b16 %v24
  %v868 = vunpack.c.h.b16 %v24
  %v869 = vunpack.c.l.b16 %v25
  %v870 = vunpack.c.h.b16 %v25
  %v871 = vunpack.c.l.b16 %v26
  %v872 = vunpack.c.h.b16 %v26
  %v873 = vunpack.c.l.b16 %v27
  %v874 = vunpack.c.h.b16 %v27
  %v875 = vunpack.c.l.b16 %v28
  %v876 = vunpack.c.h.b16 %v28
  %v877 = vunpack.c.l.b16 %v29
  %v878 = vunpack.c.h.b16 %v29
  %v879 = vunpack.c.l.b16 %v30
  %v880 = vunpack.c.h.b16 %v30
  %v881 = vunpack.c.l.b16 %v31
  %v882 = vunpack.c.h.b16 %v31
  %v883 = vunpack.c.l.b16 %v32
  %v884 = vunpack.c.h.b16 %v32
  %v885 = vunpack.c.l.b16 %v33
  %v886 = vunpack.c.h.b16 %v33
  %v887 = vunpack.c.l.b16 %v34
  %v888 = vunpack.c.h.b16 %v34
  %v889 = vunpack.c.l.b16 %v35
  %v890 = vunpack.c.h.b16 %v35
  %v891 = vunpack.c.l.b16 %v36
  %v892 = vunpack.c.h.b16 %v36
  %v893 = vunpack.c.l.b16 %v37
  %v894 = vunpack.c.h.b16 %v37
  %v895 = vunpack.c.l.b16 %v38
  %v896 = vunpack.c.h.b16 %v38
  %v897 = vunpack.c.l.b16 %v39
  %v898 = vunpack.c.h.b16 %v39
  %v899 = vunpack.c.l.b16 %v40
  %v900 = vunpack.c.h.b16 %v40
  %v901 = vunpack.c.l.b16 %v41
  %v902 = vunpack.c.h.b16 %v41
  %v903 = vunpack.c.l.b16 %v42
  %v904 = vunpack.c.h.b16 %v42
  %v905 = vunpack.c.l.b16 %v43
  %v906 = vunpack.c.h.b16 %v43
  %v907 = vunpack.c.l.b16 %v44
  %v908 = vunpack.c.h.b16 %v44
  %v909 = vunpack.c.l.b16 %v45
  %v910 = vpack.c.b16 %v861, %v861
  %v911 = vpack.c.b16 %v862, %v862
  %v912 = vpack.c.b16 %v863, %v863
  %v913 = vpack.c.b16 %v864, %v864
  %v914 = vpack.c.b16 %v865, %v865
  %v915 = vpack.c.b16 %v866, %v866
  %v916 = vpack.c.b16 %v867, %v867
  %v917 = vpack.c.b16 %v868, %v868
  %v918 = vpack.c.b16 %v869, %v869
  %v919 = vpack.c.b16 %v870, %v870
  %v920 = vpack.c.b16 %v871, %v871
  %v921 = vpack.c.b16 %v872, %v872
  %v922 = vpack.c.b16 %v873, %v873
  %v923 = vpack.c.b16 %v874, %v874
  %v924 = vpack.c.b16 %v875, %v875
  %v925 = vpack.c.b16 %v876, %v876
  %v926 = vpack.c.b16 %v877, %v877
  %v927 = vpack.c.b16 %v878, %v878
  %v928 = vpack.c.b16 %v879, %v879
  %v929 = vpack.c.b16 %v880, %v880
  %v930 = vpack.c.b16 %v881, %v881
  %v931 = vpack.c.b16 %v882, %v882
  %v932 = vpack.c.b16 %v883, %v883
  %v933 = vpack.c.b16 %v884, %v884
  %v934 = vpack.c.b16 %v885, %v885
  %v935 = vpack.c.b16 %v886, %v886
  %v936 = vpack.c.b16 %v887, %v887
  %v937 = vpack.c.b16 %v888, %v888
  %v938 = vpack.c.b16 %v889, %v889
  %v939 = vpack.c.b16 %v890, %v890
  %v940 = vpack.c.b16 %v891, %v891
  %v941 = vpack.c.b16 %v892, %v892
  %v942 = vpack.c.b16 %v893, %v893
  %v943 = vpack.c.b16 %v894, %v894
  %v944 = vpack.c.b16 %v895, %v895
  %v945 = vpack.c.b16 %v896, %v896
  %v946 = vpack.c.b16 %v897, %v897
  %v947 = vpack.c.b16 %v898, %v898
  %v948 = vpack.c.b16 %v899, %v899
  %v949 = vpack.c.b16 %v900, %v900
  %v950 = vpack.c.b16 %v901, %v901
  %v951 = vpack.c.b16 %v902, %v902
  %v952 = vpack.c.b16 %v903, %v903
  %v953 = vpack.c.b16 %v904, %v904
  %v954 = vpack.c.b16 %v905, %v905
  %v955 = vpack.c.b16 %v906, %v906
  %v956 = vpack.c.b16 %v907, %v907
  %v957 = vpack.c.b16 %v908, %v908
  %v958 = vpack.c.b16 %v909, %v909
  %v1792 = vunpack.c.l.b16 %v46
  %v1793 = vunpack.c.l.b16 %v47
  %v1794 = vunpack.c.l.b16 %v48
  %v1795 = vunpack.c.l.b16 %v49
  %v1796 = vunpack.c.l.b16 %v50
  %v1797 = vunpack.c.l.b16 %v51
  %v1798 = vunpack.c.l.b16 %v52
  %v1799 = vunpack.c.l.b16 %v53
  %v1800 = vunpack.c.l.b16 %v54
  %v1801 = vunpack.c.l.b16 %v55
  %v1802 = vunpack.c.l.b16 %v56
  %v1803 = vunpack.c.l.b16 %v57
  %v1804 = vunpack.c.l.b16 %v58
  %v1805 = vunpack.c.l.b16 %v59
  %v1806 = vunpack.c.l.b16 %v60
  %v1807 = vunpack.c.l.b16 %v61
  %v1808 = vunpack.c.l.b16 %v62
  %v1809 = vunpack.c.l.b16 %v63
  %v1810 = vunpack.c.l.b16 %v64
  %v1811 = vunpack.c.l.b16 %v65
  %v1812 = vunpack.c.l.b16 %v66
  %v1813 = vunpack.c.l.b16 %v67
  %v1814 = vunpack.c.l.b16 %v68
  %v1815 = vunpack.c.l.b16 %v69
  %v1816 = vunpack.c.l.b16 %v70
  %v1817 = vunpack.c.l.b16 %v71
  %v1818 = vunpack.c.l.b16 %v72
  %v1819 = vunpack.c.l.b16 %v73
  %v1820 = vunpack.c.l.b16 %v74
  %v1821 = vunpack.c.l.b16 %v75
  %v1822 = vunpack.c.l.b16 %v76
  %v1823 = vunpack.c.l.b16 %v77
  %v1824 = vunpack.c.l.b16 %v78
  %v1825 = vunpack.c.l.b16 %v79
  %v1826 = vunpack.c.l.b16 %v80
  %v1827 = vunpack.c.l.b16 %v81
  %v1828 = vunpack.c.l.b16 %v82
  %v1829 = vunpack.c.l.b16 %v83
  %v1830 = vunpack.c.l.b16 %v84
  %v1831 = vunpack.c.l.b16 %v85
  %v1832 = vunpack.c.l.b16 %v86
  %v1833 = vunpack.c.l.b16 %v87
  %v1834 = vunpack.c.l.b16 %v88
  %v1835 = vunpack.c.l.b16 %v89
  %v1836 = vunpack.c.l.b16 %v90
  %v1837 = vunpack.c.l.b16 %v91
  %v1838 = vunpack.c.l.b16 %v92
  %v1839 = vunpack.c.l.b16 %v93
  %v1840 = vunpack.c.l.b16 %v94
  %v1841 = vunpack.c.l.b16 %v95
  %v1842 = vunpack.c.l.b16 %v96
  %v1843 = vunpack.c.l.b16 %v97
  %v1844 = vunpack.c.l.b16 %v98
  %v1845 = vunpack.c.l.b16 %v99
  %v1846 = vunpack.c.l.b16 %v100
  %v1847 = vunpack.c.l.b16 %v101
  %v1848 = vunpack.c.l.b16 %v102
  %v1849 = vunpack.c.l.b16 %v103
  %v1850 = vunpack.c.l.b16 %v104
  %v1851 = vunpack.c.l.b16 %v105
  %v1852 = vunpack.c.l.b16 %v106
  %v1853 = vunpack.c.l.b16 %v107
  %v1854 = vunpack.c.l.b16 %v108
  %v1855 = vunpack.c.l.b16 %v109
  %v1856 = vunpack.c.l.b16 %v110
  %v1857 = vunpack.c.l.b16 %v111
  %v1858 = vunpack.c.l.b16 %v112
  %v1859 = vunpack.c.l.b16 %v113
  %v1860 = vunpack.c.l.b16 %v114
  %v1861 = vunpack.c.l.b16 %v115
  %v1862 = vunpack.c.l.b16 %v116
  %v1863 = vunpack.c.l.b16 %v117
  %v1864 = vunpack.c.l.b16 %v118
  %v1865 = vunpack.c.l.b16 %v119
  %v1866 = vunpack.c.l.b16 %v120
  %v1867 = vunpack.c.l.b16 %v121
  %v1868 = vunpack.c.l.b16 %v122
  %v1869 = vunpack.c.l.b16 %v123
  %v1870 = vunpack.c.l.b16 %v124
  %v1871 = vunpack.c.l.b16 %v125
  %v1872 = vunpack.c.l.b16 %v126
  %v1873 = vunpack.c.l.b16 %v127
  %v1874 = vunpack.c.l.b16 %v128
  %v1875 = vunpack.c.l.b16 %v129
  %v1876 = vunpack.c.l.b16 %v130
  %v1877 = vunpack.c.l.b16 %v131
  %v1878 = vunpack.c.l.b16 %v132
  %v1879 = vunpack.c.l.b16 %v133
  %v1880 = vunpack.c.l.b16 %v134
  %v1881 = vunpack.c.l.b16 %v135
  %v1882 = vunpack.c.l.b16 %v136
  %v1883 = vunpack.c.l.b16 %v137
  %v1884 = vunpack.c.l.b16 %v138
  %v1885 = vunpack.c.l.b16 %v139
  %v1886 = vunpack.c.l.b16 %v140
  %v1887 = vunpack.c.l.b16 %v141
  %v1888 = vunpack.c.l.b16 %v142
  %v1889 = vunpack.c.l.b16 %v143
  %v1890 = vunpack.c.l.b16 %v144
  %v1891 = vunpack.c.l.b16 %v145
  %v1892 = vunpack.c.l.b16 %v146
  %v1893 = vunpack.c.l.b16 %v147
  %v1894 = vunpack.c.l.b16 %v148
  %v1895 = vunpack.c.l.b16 %v149
  %v1896 = vunpack.c.l.b16 %v150
  %v1897 = vunpack.c.l.b16 %v151
  %v1898 = vunpack.c.l.b16 %v152
  %v1899 = vunpack.c.l.b16 %v153
  %v1900 = vunpack.c.l.b16 %v154
  %v1901 = vunpack.c.l.b16 %v155
  %v1902 = vunpack.c.l.b16 %v156
  %v1903 = vunpack.c.l.b16 %v157
  %v1904 = vunpack.c.l.b16 %v158
  %v1905 = vunpack.c.l.b16 %v159
  %v1906 = vunpack.c.l.b16 %v160
  %v1907 = vunpack.c.l.b16 %v161
  %v1908 = vunpack.c.l.b16 %v162
  %v1909 = vunpack.c.l.b16 %v163
  %v1910 = vunpack.c.l.b16 %v164
  %v1911 = vunpack.c.l.b16 %v165
  %v1912 = vunpack.c.l.b16 %v166
  %v1913 = vunpack.c.l.b16 %v167
  %v1914 = vunpack.c.l.b16 %v168
  %v1915 = vunpack.c.l.b16 %v169
  %v1916 = vunpack.c.l.b16 %v170
  %v1917 = vunpack.c.l.b16 %v171
  %v1918 = vunpack.c.l.b16 %v172
  %v1919 = vunpack.c.l.b16 %v173
  %v1920 = vunpack.c.l.b16 %v174
  %v1921 = vunpack.c.l.b16 %v175
  %v1922 = vunpack.c.l.b16 %v176
  %v1923 = vunpack.c.l.b16 %v177
  %v1924 = vunpack.c.l.b16 %v178
  %v1925 = vunpack.c.l.b16 %v179
  %v1926 = vunpack.c.l.b16 %v180
  %v1927 = vunpack.c.l.b16 %v181
  %v1928 = vunpack.c.l.b16 %v182
  %v1929 = vunpack.c.l.b16 %v183
  %v1930 = vunpack.c.l.b16 %v184
  %v1931 = vunpack.c.l.b16 %v185
  %v1932 = vunpack.c.l.b16 %v186
  %v1933 = vunpack.c.l.b16 %v187
  %v1934 = vunpack.c.l.b16 %v188
  %v1935 = vunpack.c.l.b16 %v189
  %v1936 = vunpack.c.l.b16 %v190
  %v1937 = vunpack.c.l.b16 %v191
  %v1938 = vunpack.c.l.b16 %v192
  %v1939 = vunpack.c.l.b16 %v193
  %v1940 = vunpack.c.l.b16 %v194
  %v1941 = vunpack.c.l.b16 %v195
  %v1942 = vunpack.c.l.b16 %v196
  %v1943 = vunpack.c.l.b16 %v197
  %v1944 = vunpack.c.l.b16 %v198
  %v1945 = vunpack.c.l.b16 %v199
  %v1946 = vunpack.c.l.b16 %v200
  %v1947 = vunpack.c.l.b16 %v201
  %v1948 = vunpack.c.l.b16 %v202
  %v1949 = vunpack.c.l.b16 %v203
  %v1950 = vunpack.c.l.b16 %v204
  %v1951 = vunpack.c.l.b16 %v205
  %v1952 = vunpack.c.l.b16 %v206
  %v1953 = vunpack.c.l.b16 %v207
  %v1954 = vunpack.c.l.b16 %v208
  %v1955 = vunpack.c.l.b16 %v209
  %v1956 = vunpack.c.l.b16 %v210
  %v1957 = vunpack.c.l.b16 %v211
  %v1958 = vunpack.c.l.b16 %v212
  %v1959 = vunpack.c.l.b16 %v213
  %v1960 = vunpack.c.l.b16 %v214
  %v1961 = vunpack.c.l.b16 %v215
  %v1962 = vunpack.c.l.b16 %v216
  %v1963 = vunpack.c.l.b16 %v217
  %v1964 = vunpack.c.l.b16 %v218
  %v1965 = vunpack.c.l.b16 %v219
  %v1966 = vunpack.c.l.b16 %v220
  %v1967 = vunpack.c.l.b16 %v221
  %v1968 = vunpack.c.l.b16 %v222
  %v1969 = vunpack.c.l.b16 %v223
  %v1970 = vunpack.c.l.b16 %v224
  %v1971 = vunpack.c.l.b16 %v225
  %v1972 = vunpack.c.l.b16 %v226
  %v1973 = vunpack.c.l.b16 %v227
  %v1974 = vunpack.c.l.b16 %v228
  %v1975 = vunpack.c.l.b16 %v229
  %v1976 = vunpack.c.l.b16 %v230
  %v1977 = vunpack.c.l.b16 %v231
  %v1978 = vunpack.c.l.b16 %v232
  %v1979 = vunpack.c.l.b16 %v233
  %v1980 = vunpack.c.l.b16 %v234
  %v1981 = vunpack.c.l.b16 %v235
  %v1982 = vunpack.c.l.b16 %v236
  %v1983 = vunpack.c.l.b16 %v237
  %v1984 = vunpack.c.l.b16 %v238
  %v1985 = vunpack.c.l.b16 %v239
  %v1986 = vunpack.c.l.b16 %v240
  %v1987 = vunpack.c.l.b16 %v241
  %v1988 = vunpack.c.l.b16 %v242
  %v1989 = vunpack.c.l.b16 %v243
  %v1990 = vunpack.c.l.b16 %v244
  %v1991 = vunpack.c.l.b16 %v245
  %v1992 = vunpack.c.l.b16 %v246
  %v1993 = vunpack.c.l.b16 %v247
  %v1994 = vunpack.c.l.b16 %v248
  %v1995 = vunpack.c.l.b16 %v249
  %v1996 = vunpack.c.l.b16 %v250
  %v1997 = vunpack.c.l.b16 %v251
  %v1998 = vunpack.c.l.b16 %v252
  %v1999 = vunpack.c.l.b16 %v253
  %v2000 = vunpack.c.l.b16 %v254
  %v2001 = vunpack.c.l.b16 %v255
  %v2002 = vunpack.c.l.b16 %v256
  %v2003 = vunpack.c.l.b16 %v257
  %v2004 = vunpack.c.l.b16 %v258
  %v2005 = vunpack.c.l.b16 %v259
  %v2006 = vunpack.c.l.b16 %v260
  %v2007 = vunpack.c.l.b16 %v261
  %v2008 = vunpack.c.l.b16 %v262
  %v2009 = vunpack.c.l.b16 %v263
  %v2010 = vunpack.c.l.b16 %v264
  %v2011 = vunpack.c.l.b16 %v265
  %v2012 = vunpack.c.l.b16 %v266
  %v2013 = vunpack.c.l.b16 %v267
  %v2014 = vunpack.c.l.b16 %v268
  %v2015 = vunpack.c.l.b16 %v269
  %v2016 = vunpack.c.l.b16 %v270
  %v2017 = vunpack.c.l.b16 %v271
  %v2018 = vunpack.c.l.b16 %v272
  %v2019 = vunpack.c.l.b16 %v273
  %v2020 = vunpack.c.l.b16 %v274
  %v2021 = vunpack.c.l.b16 %v275
  %v2022 = vunpack.c.l.b16 %v276
  %v2023 = vunpack.c.l.b16 %v277
  %v2024 = vunpack.c.l.b16 %v278
  %v2025 = vunpack.c.l.b16 %v279
  %v2026 = vunpack.c.l.b16 %v280
  %v2027 = vunpack.c.l.b16 %v281
  %v2028 = vunpack.c.l.b16 %v282
  %v2029 = vunpack.c.l.b16 %v283
  %v2030 = vunpack.c.l.b16 %v284
  %v2031 = vunpack.c.l.b16 %v285
  %v2032 = vunpack.c.l.b16 %v286
  %v2033 = vunpack.c.l.b16 %v287
  %v2034 = vunpack.c.l.b16 %v288
  %v2035 = vunpack.c.l.b16 %v289
  %v2036 = vunpack.c.l.b16 %v290
  %v2037 = vunpack.c.l.b16 %v291
  %v2038 = vunpack.c.l.b16 %v292
  %v2039 = vunpack.c.l.b16 %v293
  %v2040 = vunpack.c.l.b16 %v294
  %v2041 = vunpack.c.l.b16 %v295
  %v2042 = vunpack.c.l.b16 %v296
  %v2043 = vunpack.c.l.b16 %v297
  %v2044 = vunpack.c.l.b16 %v298
  %v2045 = vunpack.c.l.b16 %v299
  %v2046 = vunpack.c.l.b16 %v300
  %v2047 = vunpack.c.l.b16 %v301
  %v2048 = vunpack.c.l.b16 %v302
  %v2049 = vunpack.c.l.b16 %v303
  %v2050 = vunpack.c.l.b16 %v304
  %v2051 = vunpack.c.l.b16 %v305
  %v2052 = vunpack.c.l.b16 %v306
  %v2053 = vunpack.c.l.b16 %v307
  %v2054 = vunpack.c.l.b16 %v308
  %v2055 = vunpack.c.l.b16 %v309
  %v2056 = vunpack.c.l.b16 %v310
  %v2057 = vunpack.c.l.b16 %v311
  %v2058 = vunpack.c.l.b16 %v312
  %v2059 = vunpack.c.l.b16 %v313
  %v2060 = vunpack.c.l.b16 %v314
  %v2061 = vunpack.c.l.b16 %v315
  %v2062 = vunpack.c.l.b16 %v316
  %v2063 = vunpack.c.l.b16 %v317
  %v2064 = vunpack.c.l.b16 %v318
  %v2065 = vunpack.c.l.b16 %v319
  %v2066 = vunpack.c.l.b16 %v320
  %v2067 = vunpack.c.l.b16 %v321
  %v2068 = vunpack.c.l.b16 %v322
  %v2069 = vunpack.c.l.b16 %v323
  %v2070 = vunpack.c.l.b16 %v324
  %v2071 = vunpack.c.l.b16 %v325
  %v2072 = vunpack.c.l.b16 %v326
  %v2073 = vunpack.c.l.b16 %v327
  %v2074 = vunpack.c.l.b16 %v328
  %v2075 = vunpack.c.l.b16 %v329
  %v2076 = vunpack.c.l.b16 %v330
  %v2077 = vunpack.c.l.b16 %v331
  %v2078 = vunpack.c.l.b16 %v332
  %v2079 = vunpack.c.l.b16 %v333
  %v2080 = vunpack.c.l.b16 %v334
  %v2081 = vunpack.c.l.b16 %v335
  %v2082 = vunpack.c.l.b16 %v336
  %v2083 = vunpack.c.l.b16 %v337
  %v2084 = vunpack.c.l.b16 %v338
  %v2085 = vunpack.c.l.b16 %v339
  %v2086 = vunpack.c.l.b16 %v340
  %v2087 = vunpack.c.l.b16 %v341
  %v2088 = vunpack.c.l.b16 %v342
  %v2089 = vunpack.c.l.b16 %v343
  %v2090 = vunpack.c.l.b16 %v344
  %v2091 = vunpack.c.l.b16 %v345
  %v2092 = vunpack.c.l.b16 %v346
  %v2093 = vunpack.c.l.b16 %v347
  %v2094 = vunpack.c.l.b16 %v348
  %v2095 = vunpack.c.l.b16 %v349
  %v2096 = vunpack.c.l.b16 %v350
  %v2097 = vunpack.c.l.b16 %v351
  %v2098 = vunpack.c.l.b16 %v352
  %v2099 = vunpack.c.l.b16 %v353
  %v2100 = vunpack.c.l.b16 %v354
  %v2101 = vunpack.c.l.b16 %v355
  %v2102 = vunpack.c.l.b16 %v356
  %v2103 = vunpack.c.l.b16 %v357
  %v2104 = vunpack.c.l.b16 %v358
  %v2105 = vunpack.c.l.b16 %v359
  %v2106 = vunpack.c.l.b16 %v360
  %v2107 = vunpack.c.l.b16 %v361
  %v2108 = vunpack.c.l.b16 %v362
  %v2109 = vunpack.c.l.b16 %v363
  %v2110 = vunpack.c.l.b16 %v364
  %v2111 = vunpack.c.l.b16 %v365
  %v2112 = vunpack.c.l.b16 %v366
  %v2113 = vunpack.c.l.b16 %v367
  %v2114 = vunpack.c.l.b16 %v368
  %v2115 = vunpack.c.l.b16 %v369
  %v2116 = vunpack.c.l.b16 %v370
  %v2117 = vunpack.c.l.b16 %v371
  %v2118 = vunpack.c.l.b16 %v372
  %v2119 = vunpack.c.l.b16 %v373
  %v2120 = vunpack.c.l.b16 %v374
  %v2121 = vunpack.c.l.b16 %v375
  %v2122 = vunpack.c.l.b16 %v376
  %v2123 = vunpack.c.l.b16 %v377
  %v2124 = vunpack.c.l.b16 %v378
  %v2125 = vunpack.c.l.b16 %v379
  %v2126 = vunpack.c.l.b16 %v380
  %v2127 = vunpack.c.l.b16 %v381
  %v2128 = vunpack.c.l.b16 %v382
  %v2129 = vunpack.c.l.b16 %v383
  %v2130 = vunpack.c.l.b16 %v384
  %v2131 = vunpack.c.l.b16 %v385
  %v2132 = vunpack.c.l.b16 %v386
  %v2133 = vunpack.c.l.b16 %v387
  %v2134 = vunpack.c.l.b16 %v388
  %v2135 = vunpack.c.l.b16 %v389
  %v2136 = vunpack.c.l.b16 %v390
  %v2137 = vunpack.c.l.b16 %v391
  %v2138 = vunpack.c.l.b16 %v392
  %v2139 = vunpack.c.l.b16 %v393
  %v2140 = vunpack.c.l.b16 %v394
  %v2141 = vunpack.c.l.b16 %v395
  %v2142 = vunpack.c.l.b16 %v396
  %v2143 = vunpack.c.l.b16 %v397
  %v2144 = vunpack.c.l.b16 %v398
  %v2145 = vunpack.c.l.b16 %v399
  %v2146 = vunpack.c.l.b16 %v400
  %v2147 = vunpack.c.l.b16 %v401
  %v2148 = vunpack.c.l.b16 %v402
  %v2149 = vunpack.c.l.b16 %v403
  %v2150 = vunpack.c.l.b16 %v404
  %v2151 = vunpack.c.l.b16 %v405
  %v2152 = vunpack.c.l.b16 %v406
  %v2153 = vunpack.c.l.b16 %v407
  %v2154 = vunpack.c.l.b16 %v408
  %v2155 = vunpack.c.l.b16 %v409
  %v2156 = vunpack.c.l.b16 %v410
  %v2157 = vunpack.c.l.b16 %v411
  %v2158 = vunpack.c.l.b16 %v412
  %v2159 = vunpack.c.l.b16 %v413
  %v2160 = vunpack.c.l.b16 %v414
  %v2161 = vunpack.c.l.b16 %v415
  %v2162 = vunpack.c.l.b16 %v416
  %v2163 = vunpack.c.l.b16 %v417
  %v2164 = vunpack.c.l.b16 %v418
  %v2165 = vunpack.c.l.b16 %v419
  %v2166 = vunpack.c.l.b16 %v420
  %v2167 = vunpack.c.l.b16 %v421
  %v2168 = vunpack.c.l.b16 %v422
  %v2169 = vunpack.c.l.b16 %v423
  %v2170 = vunpack.c.l.b16 %v424
  %v2171 = vunpack.c.l.b16 %v425
  %v2172 = vunpack.c.l.b16 %v426
  %v2173 = vunpack.c.l.b16 %v427
  %v2174 = vunpack.c.l.b16 %v428
  %v2175 = vunpack.c.l.b16 %v429
  %v2176 = vunpack.c.l.b16 %v430
  %v2177 = vunpack.c.l.b16 %v431
  %v2178 = vunpack.c.l.b16 %v432
  %v2179 = vunpack.c.l.b16 %v433
  %v2180 = vunpack.c.l.b16 %v434
  %v2181 = vunpack.c.l.b16 %v435
  %v2182 = vunpack.c.l.b16 %v436
  %v2183 = vunpack.c.l.b16 %v437
  %v2184 = vunpack.c.l.b16 %v438
  %v2185 = vunpack.c.l.b16 %v439
  %v2186 = vunpack.c.l.b16 %v440
  %v2187 = vunpack.c.l.b16 %v441
  %v2188 = vunpack.c.l.b16 %v442
  %v2189 = vunpack.c.l.b16 %v443
  %v2190 = vunpack.c.l.b16 %v444
  %v2191 = vunpack.c.l.b16 %v445
  %v2192 = vunpack.c.l.b16 %v446
  %v2193 = vunpack.c.l.b16 %v447
  %v2194 = vunpack.c.l.b16 %v448
  %v2195 = vunpack.c.l.b16 %v449
  %v2196 = vunpack.c.l.b16 %v450
  %v2197 = vunpack.c.l.b16 %v451
  %v2198 = vunpack.c.l.b16 %v452
  %v2199 = vunpack.c.l.b16 %v453
  %v2200 = vunpack.c.l.b16 %v454
  %v2201 = vunpack.c.l.b16 %v455
  %v2202 = vunpack.c.l.b16 %v456
  %v2203 = vunpack.c.l.b16 %v457
  %v2204 = vunpack.c.l.b16 %v458
  %v2205 = vunpack.c.l.b16 %v459
  %v2206 = vunpack.c.l.b16 %v460
  %v2207 = vunpack.c.l.b16 %v461
  %v2208 = vunpack.c.l.b16 %v462
  %v2209 = vunpack.c.l.b16 %v463
  %v2210 = vunpack.c.l.b16 %v464
  %v2211 = vunpack.c.l.b16 %v465
  %v2212 = vunpack.c.l.b16 %v466
  %v2213 = vunpack.c.l.b16 %v467
  %v2214 = vunpack.c.l.b16 %v468
  %v2215 = vunpack.c.l.b16 %v469
  %v2216 = vunpack.c.l.b16 %v470
  %v2217 = vunpack.c.l.b16 %v471
  %v2218 = vunpack.c.l.b16 %v472
  %v2219 = vunpack.c.l.b16 %v473
  %v2220 = vunpack.c.l.b16 %v474
  %v2221 = vunpack.c.l.b16 %v475
  %v2222 = vunpack.c.l.b16 %v476
  %v2223 = vunpack.c.l.b16 %v477
  %v2224 = vunpack.c.l.b16 %v478
  %v2225 = vunpack.c.l.b16 %v479
  %v2226 = vunpack.c.l.b16 %v480
  %v2227 = vunpack.c.l.b16 %v481
  %v2228 = vunpack.c.l.b16 %v482
  %v2229 = vunpack.c.l.b16 %v483
  %v2230 = vunpack.c.l.b16 %v484
  %v2231 = vunpack.c.l.b16 %v485
  %v2232 = vunpack.c.l.b16 %v486
  %v2233 = vunpack.c.l.b16 %v487
  %v2234 = vunpack.c.l.b16 %v488
  %v2235 = vunpack.c.l.b16 %v489
  %v2236 = vunpack.c.l.b16 %v490
  %v2237 = vunpack.c.l.b16 %v491
  %v2238 = vunpack.c.l.b16 %v492
  %v2239 = vunpack.c.l.b16 %v493
  %v2240 = vunpack.c.l.b16 %v494
  %v2241 = vunpack.c.l.b16 %v495
  %v2242 = vunpack.c.l.b16 %v496
  %v2243 = vunpack.c.l.b16 %v497
  %v2244 = vunpack.c.l.b16 %v498
  %v2245 = vunpack.c.l.b16 %v499
  %v2246 = vunpack.c.l.b16 %v500
  %v2247 = vunpack.c.l.b16 %v501
  %v2248 = vunpack.c.l.b16 %v502
  %v2249 = vunpack.c.l.b16 %v503
  %v2250 = vunpack.c.l.b16 %v504
  %v2251 = vunpack.c.l.b16 %v505
  %v2252 = vunpack.c.l.b16 %v506
  %v2253 = vunpack.c.l.b16 %v507
  %v2254 = vunpack.c.l.b16 %v508
  %v2255 = vunpack.c.l.b16 %v509
  %v2256 = vunpack.c.l.b16 %v510
  %v2257 = vunpack.c.l.b16 %v511
  %v2258 = vunpack.c.l.b16 %v512
  %v2259 = vunpack.c.l.b16 %v513
  %v2260 = vunpack.c.l.b16 %v514
  %v2261 = vunpack.c.l.b16 %v515
  %v2262 = vunpack.c.l.b16 %v516
  %v2263 = vunpack.c.l.b16 %v517
  %v2264 = vunpack.c.l.b16 %v518
  %v2265 = vunpack.c.l.b16 %v519
  %v2266 = vunpack.c.l.b16 %v520
  %v2267 = vunpack.c.l.b16 %v521
  %v2268 = vunpack.c.l.b16 %v522
  %v2269 = vunpack.c.l.b16 %v523
  %v2270 = vunpack.c.l.b16 %v524
  %v2271 = vunpack.c.l.b16 %v525
  %v2272 = vunpack.c.l.b16 %v526
  %v2273 = vunpack.c.l.b16 %v527
  %v2274 = vunpack.c.l.b16 %v528
  %v2275 = vunpack.c.l.b16 %v529
  %v2276 = vunpack.c.l.b16 %v530
  %v2277 = vunpack.c.l.b16 %v531
  %v2278 = vunpack.c.l.b16 %v532
  %v2279 = vunpack.c.l.b16 %v533
  %v2280 = vunpack.c.l.b16 %v534
  %v2281 = vunpack.c.l.b16 %v535
  %v2282 = vunpack.c.l.b16 %v536
  %v2283 = vunpack.c.l.b16 %v537
  %v2284 = vunpack.c.l.b16 %v538
  %v2285 = vunpack.c.l.b16 %v539
  %v2286 = vunpack.c.l.b16 %v540
  %v2287 = vunpack.c.l.b16 %v541
  %v2288 = vunpack.c.l.b16 %v542
  %v2289 = vunpack.c.l.b16 %v543
  %v2290 = vunpack.c.l.b16 %v544
  %v2291 = vunpack.c.l.b16 %v545
  %v2292 = vunpack.c.l.b16 %v546
  %v2293 = vunpack.c.l.b16 %v547
  %v2294 = vunpack.c.l.b16 %v548
  %v2295 = vunpack.c.l.b16 %v549
  %v2296 = vunpack.c.l.b16 %v550
  %v2297 = vunpack.c.l.b16 %v551
  %v2298 = vunpack.c.l.b16 %v552
  %v2299 = vunpack.c.l.b16 %v553
  %v2300 = vunpack.c.l.b16 %v554
  %v2301 = vunpack.c.l.b16 %v555
  %v2302 = vunpack.c.l.b16 %v556
  %v2303 = vunpack.c.l.b16 %v557
  %v2304 = vunpack.c.l.b16 %v558
  %v2305 = vunpack.c.l.b16 %v559
  %v2306 = vunpack.c.l.b16 %v560
  %v2307 = vunpack.c.l.b16 %v561
  %v2308 = vunpack.c.l.b16 %v562
  %v2309 = vunpack.c.l.b16 %v563
  %v2310 = vunpack.c.l.b16 %v564
  %v2311 = vunpack.c.l.b16 %v565
  %v2312 = vunpack.c.l.b16 %v566
  %v2313 = vunpack.c.l.b16 %v567
  %v2314 = vunpack.c.l.b16 %v568
  %v2315 = vunpack.c.l.b16 %v569
  %v2316 = vunpack.c.l.b16 %v570
  %v2317 = vunpack.c.l.b16 %v571
  %v2318 = vunpack.c.l.b16 %v572
  %v2319 = vunpack.c.l.b16 %v573
  %v2320 = vunpack.c.l.b16 %v574
  %v2321 = vunpack.c.l.b16 %v575
  %v2322 = vunpack.c.l.b16 %v576
  %v2323 = vunpack.c.l.b16 %v577
  %v2324 = vunpack.c.l.b16 %v578
  %v2325 = vunpack.c.l.b16 %v579
  %v2326 = vunpack.c.l.b16 %v580
  %v2327 = vunpack.c.l.b16 %v581
  %v2328 = vunpack.c.l.b16 %v582
  %v2329 = vunpack.c.l.b16 %v583
  %v2330 = vunpack.c.l.b16 %v584
  %v2331 = vunpack.c.l.b16 %v585
  %v2332 = vunpack.c.l.b16 %v586
  %v2333 = vunpack.c.l.b16 %v587
  %v2334 = vunpack.c.l.b16 %v588
  %v2335 = vunpack.c.l.b16 %v589
  %v2336 = vunpack.c.l.b16 %v590
  %v2337 = vunpack.c.l.b16 %v591
  %v2338 = vunpack.c.l.b16 %v592
  %v2339 = vunpack.c.l.b16 %v593
  %v2340 = vunpack.c.l.b16 %v594
  %v2341 = vunpack.c.l.b16 %v595
  %v2342 = vunpack.c.l.b16 %v596
  %v2343 = vunpack.c.l.b16 %v597
  %v2344 = vunpack.c.l.b16 %v598
  %v2345 = vunpack.c.l.b16 %v599
  %v2346 = vunpack.c.l.b16 %v600
  %v2347 = vunpack.c.l.b16 %v601
  %v2348 = vunpack.c.l.b16 %v602
  %v2349 = vunpack.c.l.b16 %v603
  %v2350 = vunpack.c.l.b16 %v604
  %v2351 = vunpack.c.l.b16 %v605
  %v2352 = vunpack.c.l.b16 %v606
  %v2353 = vunpack.c.l.b16 %v607
  %v2354 = vunpack.c.l.b16 %v608
  %v2355 = vunpack.c.l.b16 %v609
  %v2356 = vunpack.c.l.b16 %v610
  %v2357 = vunpack.c.l.b16 %v611
  %v2358 = vunpack.c.l.b16 %v612
  %v2359 = vunpack.c.l.b16 %v613
  %v2360 = vunpack.c.l.b16 %v614
  %v2361 = vunpack.c.l.b16 %v615
  %v2362 = vunpack.c.l.b16 %v616
  %v2363 = vunpack.c.l.b16 %v617
  %v2364 = vunpack.c.l.b16 %v618
  %v2365 = vunpack.c.l.b16 %v619
  %v2366 = vunpack.c.l.b16 %v620
  %v2367 = vunpack.c.l.b16 %v621
  %v2368 = vunpack.c.l.b16 %v622
  %v2369 = vunpack.c.l.b16 %v623
  %v2370 = vunpack.c.l.b16 %v624
  %v2371 = vunpack.c.l.b16 %v625
  %v2372 = vunpack.c.l.b16 %v626
  %v2373 = vunpack.c.l.b16 %v627
  %v2374 = vunpack.c.l.b16 %v628
  %v2375 = vunpack.c.l.b16 %v629
  %v2376 = vunpack.c.l.b16 %v630
  %v2377 = vunpack.c.l.b16 %v631
  %v2378 = vunpack.c.l.b16 %v632
  %v2379 = vunpack.c.l.b16 %v633
  %v2380 = vunpack.c.l.b16 %v634
  %v2381 = vunpack.c.l.b16 %v635
  %v2382 = vunpack.c.l.b16 %v636
  %v2383 = vunpack.c.l.b16 %v637
  %v2384 = vunpack.c.l.b16 %v638
  %v2385 = vunpack.c.l.b16 %v639
  %v2386 = vunpack.c.l.b16 %v640
  %v2387 = vunpack.c.l.b16 %v641
  %v2388 = vunpack.c.l.b16 %v642
  %v2389 = vunpack.c.l.b16 %v643
  %v2390 = vunpack.c.l.b16 %v644
  %v2391 = vunpack.c.l.b16 %v645
  %v2392 = vunpack.c.l.b16 %v646
  %v2393 = vunpack.c.l.b16 %v647
  %v2394 = vunpack.c.l.b16 %v648
  %v2395 = vunpack.c.l.b16 %v649
  %v2396 = vunpack.c.l.b16 %v650
  %v2397 = vunpack.c.l.b16 %v651
  %v2398 = vunpack.c.l.b16 %v652
  %v2399 = vunpack.c.l.b16 %v653
  %v2400 = vunpack.c.l.b16 %v654
  %v2401 = vunpack.c.l.b16 %v655
  %v2402 = vunpack.c.l.b16 %v656
  %v2403 = vunpack.c.l.b16 %v657
  %v2404 = vunpack.c.l.b16 %v658
  %v2405 = vunpack.c.l.b16 %v659
  %v2406 = vunpack.c.l.b16 %v660
  %v2407 = vunpack.c.l.b16 %v661
  %v2408 = vunpack.c.l.b16 %v662
  %v2409 = vunpack.c.l.b16 %v663
  %v2410 = vunpack.c.l.b16 %v664
  %v2411 = vunpack.c.l.b16 %v665
  %v2412 = vunpack.c.l.b16 %v666
  %v2413 = vunpack.c.l.b16 %v667
  %v2414 = vunpack.c.l.b16 %v668
  %v2415 = vunpack.c.l.b16 %v669
  %v2416 = vunpack.c.l.b16 %v670
  %v2417 = vunpack.c.l.b16 %v671
  %v2418 = vunpack.c.l.b16 %v672
  %v2419 = vunpack.c.l.b16 %v673
  %v2420 = vunpack.c.l.b16 %v674
  %v2421 = vunpack.c.l.b16 %v675
  %v2422 = vunpack.c.l.b16 %v676
  %v2423 = vunpack.c.l.b16 %v677
  %v2424 = vunpack.c.l.b16 %v678
  %v2425 = vunpack.c.l.b16 %v679
  %v2426 = vunpack.c.l.b16 %v680
  %v2427 = vunpack.c.l.b16 %v681
  %v2428 = vunpack.c.l.b16 %v682
  %v2429 = vunpack.c.l.b16 %v683
  %v2430 = vunpack.c.l.b16 %v684
  %v2431 = vunpack.c.l.b16 %v685
  %v2432 = vunpack.c.l.b16 %v686
  %v2433 = vunpack.c.l.b16 %v687
  %v2434 = vunpack.c.l.b16 %v688
  %v2435 = vunpack.c.l.b16 %v689
  %v2436 = vunpack.c.l.b16 %v690
  %v2437 = vunpack.c.l.b16 %v691
  %v2438 = vunpack.c.l.b16 %v692
  %v2439 = vunpack.c.l.b16 %v693
  %v2440 = vunpack.c.l.b16 %v694
  %v2441 = vunpack.c.l.b16 %v695
  %v2442 = vunpack.c.l.b16 %v696
  %v2443 = vunpack.c.l.b16 %v697
  %v2444 = vunpack.c.l.b16 %v698
  %v2445 = vunpack.c.l.b16 %v699
  %v2446 = vunpack.c.l.b16 %v700
  %v2447 = vunpack.c.l.b16 %v701
  %v2448 = vunpack.c.l.b16 %v702
  %v2449 = vunpack.c.l.b16 %v703
  %v2450 = vunpack.c.l.b16 %v704
  %v2451 = vunpack.c.l.b16 %v705
  %v2452 = vunpack.c.l.b16 %v706
  %v2453 = vunpack.c.l.b16 %v707
  %v2454 = vunpack.c.l.b16 %v708
  %v2455 = vunpack.c.l.b16 %v709
  %v2456 = vunpack.c.l.b16 %v710
  %v2457 = vunpack.c.l.b16 %v711
  %v2458 = vunpack.c.l.b16 %v712
  %v2459 = vunpack.c.l.b16 %v713
  %v2460 = vunpack.c.l.b16 %v714
  %v2461 = vunpack.c.l.b16 %v715
  %v2462 = vunpack.c.l.b16 %v716
  %v2463 = vunpack.c.l.b16 %v717
  %v2464 = vunpack.c.l.b16 %v718
  %v2465 = vunpack.c.l.b16 %v719
  %v2466 = vunpack.c.l.b16 %v720
  %v2467 = vunpack.c.l.b16 %v721
  %v2468 = vunpack.c.l.b16 %v722
  %v2469 = vunpack.c.l.b16 %v723
  %v2470 = vunpack.c.l.b16 %v724
  %v2471 = vunpack.c.l.b16 %v725
  %v2472 = vunpack.c.l.b16 %v726
  %v2473 = vunpack.c.l.b16 %v727
  %v2474 = vunpack.c.l.b16 %v728
  %v2475 = vunpack.c.l.b16 %v729
  %v2476 = vunpack.c.l.b16 %v730
  %v2477 = vunpack.c.l.b16 %v731
  %v2478 = vunpack.c.l.b16 %v732
  %v2479 = vunpack.c.l.b16 %v733
  %v2480 = vunpack.c.l.b16 %v734
  %v2481 = vunpack.c.l.b16 %v735
  %v2482 = vunpack.c.l.b16 %v736
  %v2483 = vunpack.c.l.b16 %v737
  %v2484 = vunpack.c.l.b16 %v738
  %v2485 = vunpack.c.l.b16 %v739
  %v2486 = vunpack.c.l.b16 %v740
  %v2487 = vunpack.c.l.b16 %v741
  %v2488 = vunpack.c.l.b16 %v742
  %v2489 = vunpack.c.l.b16 %v743
  %v2490 = vunpack.c.l.b16 %v744
  %v2491 = vunpack.c.l.b16 %v745
  %v2492 = vunpack.c.l.b16 %v746
  %v2493 = vunpack.c.l.b16 %v747
  %v2494 = vunpack.c.l.b16 %v748
  %v2495 = vunpack.c.l.b16 %v749
  %v2496 = vunpack.c.l.b16 %v750
  %v2497 = vunpack.c.l.b16 %v751
  %v2498 = vunpack.c.l.b16 %v752
  %v2499 = vunpack.c.l.b16 %v753
  %v2500 = vunpack.c.l.b16 %v754
  %v2501 = vunpack.c.l.b16 %v755
  %v2502 = vunpack.c.l.b16 %v756
  %v2503 = vunpack.c.l.b16 %v757
  %v2504 = vunpack.c.l.b16 %v758
  %v2505 = vunpack.c.l.b16 %v759
  %v2506 = vunpack.c.l.b16 %v760
  %v2507 = vunpack.c.l.b16 %v761
  %v2508 = vunpack.c.l.b16 %v762
  %v2509 = vunpack.c.l.b16 %v763
  %v2510 = vunpack.c.l.b16 %v764
  %v2511 = vunpack.c.l.b16 %v765
  %v2512 = vunpack.c.l.b16 %v766
  %v2513 = vunpack.c.l.b16 %v767
  %v2514 = vunpack.c.l.b16 %v768
  %v2515 = vunpack.c.l.b16 %v769
  %v2516 = vunpack.c.l.b16 %v770
  %v2517 = vunpack.c.l.b16 %v771
  %v2518 = vunpack.c.l.b16 %v772
  %v2519 = vunpack.c.l.b16 %v773
  %v2520 = vunpack.c.l.b16 %v774
  %v2521 = vunpack.c.l.b16 %v775
  %v2522 = vunpack.c.l.b16 %v776
  %v2523 = vunpack.c.l.b16 %v777
  %v2524 = vunpack.c.l.b16 %v778
  %v2525 = vunpack.c.l.b16 %v779
  %v2526 = vunpack.c.l.b16 %v780
  %v2527 = vunpack.c.l.b16 %v781
  %v2528 = vunpack.c.l.b16 %v782
  %v2529 = vunpack.c.l.b16 %v783
  %v2530 = vunpack.c.l.b16 %v784
  %v2531 = vunpack.c.l.b16 %v785
  %v2532 = vunpack.c.l.b16 %v786
  %v2533 = vunpack.c.l.b16 %v787
  %v2534 = vunpack.c.l.b16 %v788
  %v2535 = vunpack.c.l.b16 %v789
  %v2536 = vunpack.c.l.b16 %v790
  %v2537 = vunpack.c.l.b16 %v791
  %v2538 = vunpack.c.l.b16 %v792
  %v2539 = vunpack.c.l.b16 %v793
  %v2540 = vunpack.c.l.b16 %v794
  %v2541 = vunpack.c.l.b16 %v795
  %v2542 = vunpack.c.l.b16 %v796
  %v2543 = vunpack.c.l.b16 %v797
  %v2544 = vunpack.c.l.b16 %v798
  %v2545 = vunpack.c.l.b16 %v799
  %v2546 = vunpack.c.l.b16 %v800
  %v2547 = vunpack.c.l.b16 %v801
  %v2548 = vunpack.c.l.b16 %v802
  %v2549 = vunpack.c.l.b16 %v803
  %v2550 = vunpack.c.l.b16 %v804
  %v2551 = vunpack.c.l.b16 %v805
  %v2552 = vunpack.c.l.b16 %v806
  %v2553 = vunpack.c.l.b16 %v807
  %v2554 = vunpack.c.l.b16 %v808
  %v2555 = vunpack.c.l.b16 %v809
  %v2556 = vunpack.c.l.b16 %v810
  %v2557 = vunpack.c.l.b16 %v811
  %v2558 = vunpack.c.l.b16 %v812
  %v2559 = vunpack.c.l.b16 %v813
  %v2560 = vunpack.c.l.b16 %v814
  %v2561 = vunpack.c.l.b16 %v815
  %v2562 = vunpack.c.l.b16 %v816
  %v2563 = vunpack.c.l.b16 %v817
  %v2564 = vunpack.c.l.b16 %v818
  %v2565 = vunpack.c.l.b16 %v819
  %v2566 = vunpack.c.l.b16 %v820
  %v2567 = vunpack.c.l.b16 %v821
  %v2568 = vunpack.c.l.b16 %v822
  %v2569 = vunpack.c.l.b16 %v823
  %v2570 = vunpack.c.l.b16 %v824
  %v2571 = vunpack.c.l.b16 %v825
  %v2572 = vunpack.c.l.b16 %v826
  %v2573 = vunpack.c.l.b16 %v827
  %v2574 = vunpack.c.l.b16 %v828
  %v2575 = vunpack.c.l.b16 %v829
  %v2576 = vpack.c.b16 %v1793, %v1792
  %v2577 = vpack.c.b16 %v1795, %v1794
  %v2578 = vpack.c.b16 %v1797, %v1796
  %v2579 = vpack.c.b16 %v1799, %v1798
  %v2580 = vpack.c.b16 %v1801, %v1800
  %v2581 = vpack.c.b16 %v1803, %v1802
  %v2582 = vpack.c.b16 %v1805, %v1804
  %v2583 = vpack.c.b16 %v1807, %v1806
  %v2584 = vpack.c.b16 %v1809, %v1808
  %v2585 = vpack.c.b16 %v1811, %v1810
  %v2586 = vpack.c.b16 %v1813, %v1812
  %v2587 = vpack.c.b16 %v1815, %v1814
  %v2588 = vpack.c.b16 %v1817, %v1816
  %v2589 = vpack.c.b16 %v1819, %v1818
  %v2590 = vpack.c.b16 %v1821, %v1820
  %v2591 = vpack.c.b16 %v1823, %v1822
  %v2592 = vpack.c.b16 %v1825, %v1824
  %v2593 = vpack.c.b16 %v1827, %v1826
  %v2594 = vpack.c.b16 %v1829, %v1828
  %v2595 = vpack.c.b16 %v1831, %v1830
  %v2596 = vpack.c.b16 %v1833, %v1832
  %v2597 = vpack.c.b16 %v1835, %v1834
  %v2598 = vpack.c.b16 %v1837, %v1836
  %v2599 = vpack.c.b16 %v1839, %v1838
  %v2600 = vpack.c.b16 %v1841, %v1840
  %v2601 = vpack.c.b16 %v1843, %v1842
  %v2602 = vpack.c.b16 %v1845, %v1844
  %v2603 = vpack.c.b16 %v1847, %v1846
  %v2604 = vpack.c.b16 %v1849, %v1848
  %v2605 = vpack.c.b16 %v1851, %v1850
  %v2606 = vpack.c.b16 %v1853, %v1852
  %v2607 = vpack.c.b16 %v1855, %v1854
  %v2608 = vpack.c.b16 %v1857, %v1856
  %v2609 = vpack.c.b16 %v1859, %v1858
  %v2610 = vpack.c.b16 %v1861, %v1860
  %v2611 = vpack.c.b16 %v1863, %v1862
  %v2612 = vpack.c.b16 %v1865, %v1864
  %v2613 = vpack.c.b16 %v1867, %v1866
  %v2614 = vpack.c.b16 %v1869, %v1868
  %v2615 = vpack.c.b16 %v1871, %v1870
  %v2616 = vpack.c.b16 %v1873, %v1872
  %v2617 = vpack.c.b16 %v1875, %v1874
  %v2618 = vpack.c.b16 %v1877, %v1876
  %v2619 = vpack.c.b16 %v1879, %v1878
  %v2620 = vpack.c.b16 %v1881, %v1880
  %v2621 = vpack.c.b16 %v1883, %v1882
  %v2622 = vpack.c.b16 %v1885, %v1884
  %v2623 = vpack.c.b16 %v1887, %v1886
  %v2624 = vpack.c.b16 %v1889, %v1888
  %v2625 = vpack.c.b16 %v1891, %v1890
  %v2626 = vpack.c.b16 %v1893, %v1892
  %v2627 = vpack.c.b16 %v1895, %v1894
  %v2628 = vpack.c.b16 %v1897, %v1896
  %v2629 = vpack.c.b16 %v1899, %v1898
  %v2630 = vpack.c.b16 %v1901, %v1900
  %v2631 = vpack.c.b16 %v1903, %v1902
  %v2632 = vpack.c.b16 %v1905, %v1904
  %v2633 = vpack.c.b16 %v1907, %v1906
  %v2634 = vpack.c.b16 %v1909, %v1908
  %v2635 = vpack.c.b16 %v1911, %v1910
  %v2636 = vpack.c.b16 %v1913, %v1912
  %v2637 = vpack.c.b16 %v1915, %v1914
  %v2638 = vpack.c.b16 %v1917, %v1916
  %v2639 = vpack.c.b16 %v1919, %v1918
  %v2640 = vpack.c.b16 %v1921, %v1920
  %v2641 = vpack.c.b16 %v1923, %v1922
  %v2642 = vpack.c.b16 %v1925, %v1924
  %v2643 = vpack.c.b16 %v1927, %v1926
  %v2644 = vpack.c.b16 %v1929, %v1928
  %v2645 = vpack.c.b16 %v1931, %v1930
  %v2646 = vpack.c.b16 %v1933, %v1932
  %v2647 = vpack.c.b16 %v1935, %v1934
  %v2648 = vpack.c.b16 %v1937, %v1936
  %v2649 = vpack.c.b16 %v1939, %v1938
  %v2650 = vpack.c.b16 %v1941, %v1940
  %v2651 = vpack.c.b16 %v1943, %v1942
  %v2652 = vpack.c.b16 %v1945, %v1944
  %v2653 = vpack.c.b16 %v1947, %v1946
  %v2654 = vpack.c.b16 %v1949, %v1948
  %v2655 = vpack.c.b16 %v1951, %v1950
  %v2656 = vpack.c.b16 %v1953, %v1952
  %v2657 = vpack.c.b16 %v1955, %v1954
  %v2658 = vpack.c.b16 %v1957, %v1956
  %v2659 = vpack.c.b16 %v1959, %v1958
  %v2660 = vpack.c.b16 %v1961, %v1960
  %v2661 = vpack.c.b16 %v1963, %v1962
  %v2662 = vpack.c.b16 %v1965, %v1964
  %v2663 = vpack.c.b16 %v1967, %v1966
  %v2664 = vpack.c.b16 %v1969, %v1968
  %v2665 = vpack.c.b16 %v1971, %v1970
  %v2666 = vpack.c.b16 %v1973, %v1972
  %v2667 = vpack.c.b16 %v1975, %v1974
  %v2668 = vpack.c.b16 %v1977, %v1976
  %v2669 = vpack.c.b16 %v1979, %v1978
  %v2670 = vpack.c.b16 %v1981, %v1980
  %v2671 = vpack.c.b16 %v1983, %v1982
  %v2672 = vpack.c.b16 %v1985, %v1984
  %v2673 = vpack.c.b16 %v1987, %v1986
  %v2674 = vpack.c.b16 %v1989, %v1988
  %v2675 = vpack.c.b16 %v1991, %v1990
  %v2676 = vpack.c.b16 %v1993, %v1992
  %v2677 = vpack.c.b16 %v1995, %v1994
  %v2678 = vpack.c.b16 %v1997, %v1996
  %v2679 = vpack.c.b16 %v1999, %v1998
  %v2680 = vpack.c.b16 %v2001, %v2000
  %v2681 = vpack.c.b16 %v2003, %v2002
  %v2682 = vpack.c.b16 %v2005, %v2004
  %v2683 = vpack.c.b16 %v2007, %v2006
  %v2684 = vpack.c.b16 %v2009, %v2008
  %v2685 = vpack.c.b16 %v2011, %v2010
  %v2686 = vpack.c.b16 %v2013, %v2012
  %v2687 = vpack.c.b16 %v2015, %v2014
  %v2688 = vpack.c.b16 %v2017, %v2016
  %v2689 = vpack.c.b16 %v2019, %v2018
  %v2690 = vpack.c.b16 %v2021, %v2020
  %v2691 = vpack.c.b16 %v2023, %v2022
  %v2692 = vpack.c.b16 %v2025, %v2024
  %v2693 = vpack.c.b16 %v2027, %v2026
  %v2694 = vpack.c.b16 %v2029, %v2028
  %v2695 = vpack.c.b16 %v2031, %v2030
  %v2696 = vpack.c.b16 %v2033, %v2032
  %v2697 = vpack.c.b16 %v2035, %v2034
  %v2698 = vpack.c.b16 %v2037, %v2036
  %v2699 = vpack.c.b16 %v2039, %v2038
  %v2700 = vpack.c.b16 %v2041, %v2040
  %v2701 = vpack.c.b16 %v2043, %v2042
  %v2702 = vpack.c.b16 %v2045, %v2044
  %v2703 = vpack.c.b16 %v2047, %v2046
  %v2704 = vpack.c.b16 %v2049, %v2048
  %v2705 = vpack.c.b16 %v2051, %v2050
  %v2706 = vpack.c.b16 %v2053, %v2052
  %v2707 = vpack.c.b16 %v2055, %v2054
  %v2708 = vpack.c.b16 %v2057, %v2056
  %v2709 = vpack.c.b16 %v2059, %v2058
  %v2710 = vpack.c.b16 %v2061, %v2060
  %v2711 = vpack.c.b16 %v2063, %v2062
  %v2712 = vpack.c.b16 %v2065, %v2064
  %v2713 = vpack.c.b16 %v2067, %v2066
  %v2714 = vpack.c.b16 %v2069, %v2068
  %v2715 = vpack.c.b16 %v2071, %v2070
  %v2716 = vpack.c.b16 %v2073, %v2072
  %v2717 = vpack.c.b16 %v2075, %v2074
  %v2718 = vpack.c.b16 %v2077, %v2076
  %v2719 = vpack.c.b16 %v2079, %v2078
  %v2720 = vpack.c.b16 %v2081, %v2080
  %v2721 = vpack.c.b16 %v2083, %v2082
  %v2722 = vpack.c.b16 %v2085, %v2084
  %v2723 = vpack.c.b16 %v2087, %v2086
  %v2724 = vpack.c.b16 %v2089, %v2088
  %v2725 = vpack.c.b16 %v2091, %v2090
  %v2726 = vpack.c.b16 %v2093, %v2092
  %v2727 = vpack.c.b16 %v2095, %v2094
  %v2728 = vpack.c.b16 %v2097, %v2096
  %v2729 = vpack.c.b16 %v2099, %v2098
  %v2730 = vpack.c.b16 %v2101, %v2100
  %v2731 = vpack.c.b16 %v2103, %v2102
  %v2732 = vpack.c.b16 %v2105, %v2104
  %v2733 = vpack.c.b16 %v2107, %v2106
  %v2734 = vpack.c.b16 %v2109, %v2108
  %v2735 = vpack.c.b16 %v2111, %v2110
  %v2736 = vpack.c.b16 %v2113, %v2112
  %v2737 = vpack.c.b16 %v2115, %v2114
  %v2738 = vpack.c.b16 %v2117, %v2116
  %v2739 = vpack.c.b16 %v2119, %v2118
  %v2740 = vpack.c.b16 %v2121, %v2120
  %v2741 = vpack.c.b16 %v2123, %v2122
  %v2742 = vpack.c.b16 %v2125, %v2124
  %v2743 = vpack.c.b16 %v2127, %v2126
  %v2744 = vpack.c.b16 %v2129, %v2128
  %v2745 = vpack.c.b16 %v2131, %v2130
  %v2746 = vpack.c.b16 %v2133, %v2132
  %v2747 = vpack.c.b16 %v2135, %v2134
  %v2748 = vpack.c.b16 %v2137, %v2136
  %v2749 = vpack.c.b16 %v2139, %v2138
  %v2750 = vpack.c.b16 %v2141, %v2140
  %v2751 = vpack.c.b16 %v2143, %v2142
  %v2752 = vpack.c.b16 %v2145, %v2144
  %v2753 = vpack.c.b16 %v2147, %v2146
  %v2754 = vpack.c.b16 %v2149, %v2148
  %v2755 = vpack.c.b16 %v2151, %v2150
  %v2756 = vpack.c.b16 %v2153, %v2152
  %v2757 = vpack.c.b16 %v2155, %v2154
  %v2758 = vpack.c.b16 %v2157, %v2156
  %v2759 = vpack.c.b16 %v2159, %v2158
  %v2760 = vpack.c.b16 %v2161, %v2160
  %v2761 = vpack.c.b16 %v2163, %v2162
  %v2762 = vpack.c.b16 %v2165, %v2164
  %v2763 = vpack.c.b16 %v2167, %v2166
  %v2764 = vpack.c.b16 %v2169, %v2168
  %v2765 = vpack.c.b16 %v2171, %v2170
  %v2766 = vpack.c.b16 %v2173, %v2172
  %v2767 = vpack.c.b16 %v2175, %v2174
  %v2768 = vpack.c.b16 %v2177, %v2176
  %v2769 = vpack.c.b16 %v2179, %v2178
  %v2770 = vpack.c.b16 %v2181, %v2180
  %v2771 = vpack.c.b16 %v2183, %v2182
  %v2772 = vpack.c.b16 %v2185, %v2184
  %v2773 = vpack.c.b16 %v2187, %v2186
  %v2774 = vpack.c.b16 %v2189, %v2188
  %v2775 = vpack.c.b16 %v2191, %v2190
  %v2776 = vpack.c.b16 %v2193, %v2192
  %v2777 = vpack.c.b16 %v2195, %v2194
  %v2778 = vpack.c.b16 %v2197, %v2196
  %v2779 = vpack.c.b16 %v2199, %v2198
  %v2780 = vpack.c.b16 %v2201, %v2200
  %v2781 = vpack.c.b16 %v2203, %v2202
  %v2782 = vpack.c.b16 %v2205, %v2204
  %v2783 = vpack.c.b16 %v2207, %v2206
  %v2784 = vpack.c.b16 %v2209, %v2208
  %v2785 = vpack.c.b16 %v2211, %v2210
  %v2786 = vpack.c.b16 %v2213, %v2212
  %v2787 = vpack.c.b16 %v2215, %v2214
  %v2788 = vpack.c.b16 %v2217, %v2216
  %v2789 = vpack.c.b16 %v2219, %v2218
  %v2790 = vpack.c.b16 %v2221, %v2220
  %v2791 = vpack.c.b16 %v2223, %v2222
  %v2792 = vpack.c.b16 %v2225, %v2224
  %v2793 = vpack.c.b16 %v2227, %v2226
  %v2794 = vpack.c.b16 %v2229, %v2228
  %v2795 = vpack.c.b16 %v2231, %v2230
  %v2796 = vpack.c.b16 %v2233, %v2232
  %v2797 = vpack.c.b16 %v2235, %v2234
  %v2798 = vpack.c.b16 %v2237, %v2236
  %v2799 = vpack.c.b16 %v2239, %v2238
  %v2800 = vpack.c.b16 %v2241, %v2240
  %v2801 = vpack.c.b16 %v2243, %v2242
  %v2802 = vpack.c.b16 %v2245, %v2244
  %v2803 = vpack.c.b16 %v2247, %v2246
  %v2804 = vpack.c.b16 %v2249, %v2248
  %v2805 = vpack.c.b16 %v2251, %v2250
  %v2806 = vpack.c.b16 %v2253, %v2252
  %v2807 = vpack.c.b16 %v2255, %v2254
  %v2808 = vpack.c.b16 %v2257, %v2256
  %v2809 = vpack.c.b16 %v2259, %v2258
  %v2810 = vpack.c.b16 %v2261, %v2260
  %v2811 = vpack.c.b16 %v2263, %v2262
  %v2812 = vpack.c.b16 %v2265, %v2264
  %v2813 = vpack.c.b16 %v2267, %v2266
  %v2814 = vpack.c.b16 %v2269, %v2268
  %v2815 = vpack.c.b16 %v2271, %v2270
  %v2816 = vpack.c.b16 %v2273, %v2272
  %v2817 = vpack.c.b16 %v2275, %v2274
  %v2818 = vpack.c.b16 %v2277, %v2276
  %v2819 = vpack.c.b16 %v2279, %v2278
  %v2820 = vpack.c.b16 %v2281, %v2280
  %v2821 = vpack.c.b16 %v2283, %v2282
  %v2822 = vpack.c.b16 %v2285, %v2284
  %v2823 = vpack.c.b16 %v2287, %v2286
  %v2824 = vpack.c.b16 %v2289, %v2288
  %v2825 = vpack.c.b16 %v2291, %v2290
  %v2826 = vpack.c.b16 %v2293, %v2292
  %v2827 = vpack.c.b16 %v2295, %v2294
  %v2828 = vpack.c.b16 %v2297, %v2296
  %v2829 = vpack.c.b16 %v2299, %v2298
  %v2830 = vpack.c.b16 %v2301, %v2300
  %v2831 = vpack.c.b16 %v2303, %v2302
  %v2832 = vpack.c.b16 %v2305, %v2304
  %v2833 = vpack.c.b16 %v2307, %v2306
  %v2834 = vpack.c.b16 %v2309, %v2308
  %v2835 = vpack.c.b16 %v2311, %v2310
  %v2836 = vpack.c.b16 %v2313, %v2312
  %v2837 = vpack.c.b16 %v2315, %v2314
  %v2838 = vpack.c.b16 %v2317, %v2316
  %v2839 = vpack.c.b16 %v2319, %v2318
  %v2840 = vpack.c.b16 %v2321, %v2320
  %v2841 = vpack.c.b16 %v2323, %v2322
  %v2842 = vpack.c.b16 %v2325, %v2324
  %v2843 = vpack.c.b16 %v2327, %v2326
  %v2844 = vpack.c.b16 %v2329, %v2328
  %v2845 = vpack.c.b16 %v2331, %v2330
  %v2846 = vpack.c.b16 %v2333, %v2332
  %v2847 = vpack.c.b16 %v2335, %v2334
  %v2848 = vpack.c.b16 %v2337, %v2336
  %v2849 = vpack.c.b16 %v2339, %v2338
  %v2850 = vpack.c.b16 %v2341, %v2340
  %v2851 = vpack.c.b16 %v2343, %v2342
  %v2852 = vpack.c.b16 %v2345, %v2344
  %v2853 = vpack.c.b16 %v2347, %v2346
  %v2854 = vpack.c.b16 %v2349, %v2348
  %v2855 = vpack.c.b16 %v2351, %v2350
  %v2856 = vpack.c.b16 %v2353, %v2352
  %v2857 = vpack.c.b16 %v2355, %v2354
  %v2858 = vpack.c.b16 %v2357, %v2356
  %v2859 = vpack.c.b16 %v2359, %v2358
  %v2860 = vpack.c.b16 %v2361, %v2360
  %v2861 = vpack.c.b16 %v2363, %v2362
  %v2862 = vpack.c.b16 %v2365, %v2364
  %v2863 = vpack.c.b16 %v2367, %v2366
  %v2864 = vpack.c.b16 %v2369, %v2368
  %v2865 = vpack.c.b16 %v2371, %v2370
  %v2866 = vpack.c.b16 %v2373, %v2372
  %v2867 = vpack.c.b16 %v2375, %v2374
  %v2868 = vpack.c.b16 %v2377, %v2376
  %v2869 = vpack.c.b16 %v2379, %v2378
  %v2870 = vpack.c.b16 %v2381, %v2380
  %v2871 = vpack.c.b16 %v2383, %v2382
  %v2872 = vpack.c.b16 %v2385, %v2384
  %v2873 = vpack.c.b16 %v2387, %v2386
  %v2874 = vpack.c.b16 %v2389, %v2388
  %v2875 = vpack.c.b16 %v2391, %v2390
  %v2876 = vpack.c.b16 %v2393, %v2392
  %v2877 = vpack.c.b16 %v2395, %v2394
  %v2878 = vpack.c.b16 %v2397, %v2396
  %v2879 = vpack.c.b16 %v2399, %v2398
  %v2880 = vpack.c.b16 %v2401, %v2400
  %v2881 = vpack.c.b16 %v2403, %v2402
  %v2882 = vpack.c.b16 %v2405, %v2404
  %v2883 = vpack.c.b16 %v2407, %v2406
  %v2884 = vpack.c.b16 %v2409, %v2408
  %v2885 = vpack.c.b16 %v2411, %v2410
  %v2886 = vpack.c.b16 %v2413, %v2412
  %v2887 = vpack.c.b16 %v2415, %v2414
  %v2888 = vpack.c.b16 %v2417, %v2416
  %v2889 = vpack.c.b16 %v2419, %v2418
  %v2890 = vpack.c.b16 %v2421, %v2420
  %v2891 = vpack.c.b16 %v2423, %v2422
  %v2892 = vpack.c.b16 %v2425, %v2424
  %v2893 = vpack.c.b16 %v2427, %v2426
  %v2894 = vpack.c.b16 %v2429, %v2428
  %v2895 = vpack.c.b16 %v2431, %v2430
  %v2896 = vpack.c.b16 %v2433, %v2432
  %v2897 = vpack.c.b16 %v2435, %v2434
  %v2898 = vpack.c.b16 %v2437, %v2436
  %v2899 = vpack.c.b16 %v2439, %v2438
  %v2900 = vpack.c.b16 %v2441, %v2440
  %v2901 = vpack.c.b16 %v2443, %v2442
  %v2902 = vpack.c.b16 %v2445, %v2444
  %v2903 = vpack.c.b16 %v2447, %v2446
  %v2904 = vpack.c.b16 %v2449, %v2448
  %v2905 = vpack.c.b16 %v2451, %v2450
  %v2906 = vpack.c.b16 %v2453, %v2452
  %v2907 = vpack.c.b16 %v2455, %v2454
  %v2908 = vpack.c.b16 %v2457, %v2456
  %v2909 = vpack.c.b16 %v2459, %v2458
  %v2910 = vpack.c.b16 %v2461, %v2460
  %v2911 = vpack.c.b16 %v2463, %v2462
  %v2912 = vpack.c.b16 %v2465, %v2464
  %v2913 = vpack.c.b16 %v2467, %v2466
  %v2914 = vpack.c.b16 %v2469, %v2468
  %v2915 = vpack.c.b16 %v2471, %v2470
  %v2916 = vpack.c.b16 %v2473, %v2472
  %v2917 = vpack.c.b16 %v2475, %v2474
  %v2918 = vpack.c.b16 %v2477, %v2476
  %v2919 = vpack.c.b16 %v2479, %v2478
  %v2920 = vpack.c.b16 %v2481, %v2480
  %v2921 = vpack.c.b16 %v2483, %v2482
  %v2922 = vpack.c.b16 %v2485, %v2484
  %v2923 = vpack.c.b16 %v2487, %v2486
  %v2924 = vpack.c.b16 %v2489, %v2488
  %v2925 = vpack.c.b16 %v2491, %v2490
  %v2926 = vpack.c.b16 %v2493, %v2492
  %v2927 = vpack.c.b16 %v2495, %v2494
  %v2928 = vpack.c.b16 %v2497, %v2496
  %v2929 = vpack.c.b16 %v2499, %v2498
  %v2930 = vpack.c.b16 %v2501, %v2500
  %v2931 = vpack.c.b16 %v2503, %v2502
  %v2932 = vpack.c.b16 %v2505, %v2504
  %v2933 = vpack.c.b16 %v2507, %v2506
  %v2934 = vpack.c.b16 %v2509, %v2508
  %v2935 = vpack.c.b16 %v2511, %v2510
  %v2936 = vpack.c.b16 %v2513, %v2512
  %v2937 = vpack.c.b16 %v2515, %v2514
  %v2938 = vpack.c.b16 %v2517, %v2516
  %v2939 = vpack.c.b16 %v2519, %v2518
  %v2940 = vpack.c.b16 %v2521, %v2520
  %v2941 = vpack.c.b16 %v2523, %v2522
  %v2942 = vpack.c.b16 %v2525, %v2524
  %v2943 = vpack.c.b16 %v2527, %v2526
  %v2944 = vpack.c.b16 %v2529, %v2528
  %v2945 = vpack.c.b16 %v2531, %v2530
  %v2946 = vpack.c.b16 %v2533, %v2532
  %v2947 = vpack.c.b16 %v2535, %v2534
  %v2948 = vpack.c.b16 %v2537, %v2536
  %v2949 = vpack.c.b16 %v2539, %v2538
  %v2950 = vpack.c.b16 %v2541, %v2540
  %v2951 = vpack.c.b16 %v2543, %v2542
  %v2952 = vpack.c.b16 %v2545, %v2544
  %v2953 = vpack.c.b16 %v2547, %v2546
  %v2954 = vpack.c.b16 %v2549, %v2548
  %v2955 = vpack.c.b16 %v2551, %v2550
  %v2956 = vpack.c.b16 %v2553, %v2552
  %v2957 = vpack.c.b16 %v2555, %v2554
  %v2958 = vpack.c.b16 %v2557, %v2556
  %v2959 = vpack.c.b16 %v2559, %v2558
  %v2960 = vpack.c.b16 %v2561, %v2560
  %v2961 = vpack.c.b16 %v2563, %v2562
  %v2962 = vpack.c.b16 %v2565, %v2564
  %v2963 = vpack.c.b16 %v2567, %v2566
  %v2964 = vpack.c.b16 %v2569, %v2568
  %v2965 = vpack.c.b16 %v2571, %v2570
  %v2966 = vpack.c.b16 %v2573, %v2572
  %v2967 = vpack.c.b16 %v2575, %v2574
  %3360 = vmatprep.subr.bf16.mxu0 0
  %3361 = vmatpush1.bf16.msra.mxu0 %v2576
  %3362 = vmatprep.subr.bf16.mxu0 0
  %3363 = vmatpush1.bf16.msra.mxu0 %v2577
  %3364 = vmatprep.subr.bf16.mxu0 0
  %3365 = vmatpush1.bf16.msra.mxu0 %v2578
  %3366 = vmatprep.subr.bf16.mxu0 0
  %3367 = vmatpush1.bf16.msra.mxu0 %v2579
  %3368 = vmatprep.subr.bf16.mxu0 0
  %3369 = vmatpush1.bf16.msra.mxu0 %v2580
  %3370 = vmatprep.subr.bf16.mxu0 0
  %3371 = vmatpush1.bf16.msra.mxu0 %v2581
  %3372 = vmatprep.subr.bf16.mxu0 0
  %3373 = vmatpush1.bf16.msra.mxu0 %v2582
  %3374 = vmatprep.subr.bf16.mxu0 0
  %3375 = vmatpush1.bf16.msra.mxu0 %v2583
  %3376 = vmatprep.subr.bf16.mxu0 0
  %3377 = vmatpush1.bf16.msra.mxu0 %v2584
  %3378 = vmatprep.subr.bf16.mxu0 0
  %3379 = vmatpush1.bf16.msra.mxu0 %v2585
  %3380 = vmatprep.subr.bf16.mxu0 0
  %3381 = vmatpush1.bf16.msra.mxu0 %v2586
  %3382 = vmatprep.subr.bf16.mxu0 0
  %3383 = vmatpush1.bf16.msra.mxu0 %v2587
  %3384 = vmatprep.subr.bf16.mxu0 0
  %3385 = vmatpush1.bf16.msra.mxu0 %v2588
  %3386 = vmatprep.subr.bf16.mxu0 0
  %3387 = vmatpush1.bf16.msra.mxu0 %v2589
  %3388 = vmatprep.subr.bf16.mxu0 0
  %3389 = vmatpush1.bf16.msra.mxu0 %v2590
  %3390 = vmatprep.subr.bf16.mxu0 0
  %3391 = vmatpush1.bf16.msra.mxu0 %v2591
  %3392 = vmatprep.mubr.bf16.mxu0 %v911
  %3393 = vmatmul.mubr.bf16.gmra.mrb[0].mxu0 %v910
  %v3394 = vpop.f32.mrb[0].mxu0
  %v3395 = vadd.f32 %v835, %v3394
  %v3396 = vpop.f32.mrb[0].mxu0
  %v3397 = vpop.f32.mrb[0].mxu0
  %v3398 = vpop.f32.mrb[0].mxu0
  %3399 = vdwg.mxu0
  %3400 = vmatprep.subr.bf16.mxu0 0
  %3401 = vmatpush1.bf16.msra.mxu0 %v2592
  %3402 = vmatprep.subr.bf16.mxu0 0
  %3403 = vmatpush1.bf16.msra.mxu0 %v2593
  %3404 = vmatprep.subr.bf16.mxu0 0
  %3405 = vmatpush1.bf16.msra.mxu0 %v2594
  %3406 = vmatprep.subr.bf16.mxu0 0
  %3407 = vmatpush1.bf16.msra.mxu0 %v2595
  %3408 = vmatprep.subr.bf16.mxu0 0
  %3409 = vmatpush1.bf16.msra.mxu0 %v2596
  %3410 = vmatprep.subr.bf16.mxu0 0
  %3411 = vmatpush1.bf16.msra.mxu0 %v2597
  %3412 = vmatprep.subr.bf16.mxu0 0
  %3413 = vmatpush1.bf16.msra.mxu0 %v2598
  %3414 = vmatprep.subr.bf16.mxu0 0
  %3415 = vmatpush1.bf16.msra.mxu0 %v2599
  %3416 = vmatprep.subr.bf16.mxu0 0
  %3417 = vmatpush1.bf16.msra.mxu0 %v2600
  %3418 = vmatprep.subr.bf16.mxu0 0
  %3419 = vmatpush1.bf16.msra.mxu0 %v2601
  %3420 = vmatprep.subr.bf16.mxu0 0
  %3421 = vmatpush1.bf16.msra.mxu0 %v2602
  %3422 = vmatprep.subr.bf16.mxu0 0
  %3423 = vmatpush1.bf16.msra.mxu0 %v2603
  %3424 = vmatprep.subr.bf16.mxu0 0
  %3425 = vmatpush1.bf16.msra.mxu0 %v2604
  %3426 = vmatprep.subr.bf16.mxu0 0
  %3427 = vmatpush1.bf16.msra.mxu0 %v2605
  %3428 = vmatprep.subr.bf16.mxu0 0
  %3429 = vmatpush1.bf16.msra.mxu0 %v2606
  %3430 = vmatprep.subr.bf16.mxu0 0
  %3431 = vmatpush1.bf16.msra.mxu0 %v2607
  %3432 = vmatprep.mubr.bf16.mxu0 %v913
  %3433 = vmatmul.mubr.bf16.gmra.mrb[0].mxu0 %v912
  %v3434 = vpop.f32.mrb[0].mxu0
  %v3435 = vadd.f32 %v3395, %v3434
  %v3436 = vpop.f32.mrb[0].mxu0
  %v3437 = vpop.f32.mrb[0].mxu0
  %v3438 = vpop.f32.mrb[0].mxu0
  %3439 = vdwg.mxu0
  %3440 = vmatprep.subr.bf16.mxu0 0
  %3441 = vmatpush1.bf16.msra.mxu0 %v2608
  %3442 = vmatprep.subr.bf16.mxu0 0
  %3443 = vmatpush1.bf16.msra.mxu0 %v2609
  %3444 = vmatprep.subr.bf16.mxu0 0
  %3445 = vmatpush1.bf16.msra.mxu0 %v2610
  %3446 = vmatprep.subr.bf16.mxu0 0
  %3447 = vmatpush1.bf16.msra.mxu0 %v2611
  %3448 = vmatprep.subr.bf16.mxu0 0
  %3449 = vmatpush1.bf16.msra.mxu0 %v2612
  %3450 = vmatprep.subr.bf16.mxu0 0
  %3451 = vmatpush1.bf16.msra.mxu0 %v2613
  %3452 = vmatprep.subr.bf16.mxu0 0
  %3453 = vmatpush1.bf16.msra.mxu0 %v2614
  %3454 = vmatprep.subr.bf16.mxu0 0
  %3455 = vmatpush1.bf16.msra.mxu0 %v2615
  %3456 = vmatprep.subr.bf16.mxu0 0
  %3457 = vmatpush1.bf16.msra.mxu0 %v2616
  %3458 = vmatprep.subr.bf16.mxu0 0
  %3459 = vmatpush1.bf16.msra.mxu0 %v2617
  %3460 = vmatprep.subr.bf16.mxu0 0
  %3461 = vmatpush1.bf16.msra.mxu0 %v2618
  %3462 = vmatprep.subr.bf16.mxu0 0
  %3463 = vmatpush1.bf16.msra.mxu0 %v2619
  %3464 = vmatprep.subr.bf16.mxu0 0
  %3465 = vmatpush1.bf16.msra.mxu0 %v2620
  %3466 = vmatprep.subr.bf16.mxu0 0
  %3467 = vmatpush1.bf16.msra.mxu0 %v2621
  %3468 = vmatprep.subr.bf16.mxu0 0
  %3469 = vmatpush1.bf16.msra.mxu0 %v2622
  %3470 = vmatprep.subr.bf16.mxu0 0
  %3471 = vmatpush1.bf16.msra.mxu0 %v2623
  %3472 = vmatprep.mubr.bf16.mxu0 %v915
  %3473 = vmatmul.mubr.bf16.gmra.mrb[0].mxu0 %v914
  %v3474 = vpop.f32.mrb[0].mxu0
  %v3475 = vadd.f32 %v3435, %v3474
  %v3476 = vpop.f32.mrb[0].mxu0
  %v3477 = vpop.f32.mrb[0].mxu0
  %v3478 = vpop.f32.mrb[0].mxu0
  %3479 = vdwg.mxu0
  %3480 = vmatprep.subr.bf16.mxu0 0
  %3481 = vmatpush1.bf16.msra.mxu0 %v2624
  %3482 = vmatprep.subr.bf16.mxu0 0
  %3483 = vmatpush1.bf16.msra.mxu0 %v2625
  %3484 = vmatprep.subr.bf16.mxu0 0
  %3485 = vmatpush1.bf16.msra.mxu0 %v2626
  %3486 = vmatprep.subr.bf16.mxu0 0
  %3487 = vmatpush1.bf16.msra.mxu0 %v2627
  %3488 = vmatprep.subr.bf16.mxu0 0
  %3489 = vmatpush1.bf16.msra.mxu0 %v2628
  %3490 = vmatprep.subr.bf16.mxu0 0
  %3491 = vmatpush1.bf16.msra.mxu0 %v2629
  %3492 = vmatprep.subr.bf16.mxu0 0
  %3493 = vmatpush1.bf16.msra.mxu0 %v2630
  %3494 = vmatprep.subr.bf16.mxu0 0
  %3495 = vmatpush1.bf16.msra.mxu0 %v2631
  %3496 = vmatprep.subr.bf16.mxu0 0
  %3497 = vmatpush1.bf16.msra.mxu0 %v2632
  %3498 = vmatprep.subr.bf16.mxu0 0
  %3499 = vmatpush1.bf16.msra.mxu0 %v2633
  %3500 = vmatprep.subr.bf16.mxu0 0
  %3501 = vmatpush1.bf16.msra.mxu0 %v2634
  %3502 = vmatprep.subr.bf16.mxu0 0
  %3503 = vmatpush1.bf16.msra.mxu0 %v2635
  %3504 = vmatprep.subr.bf16.mxu0 0
  %3505 = vmatpush1.bf16.msra.mxu0 %v2636
  %3506 = vmatprep.subr.bf16.mxu0 0
  %3507 = vmatpush1.bf16.msra.mxu0 %v2637
  %3508 = vmatprep.subr.bf16.mxu0 0
  %3509 = vmatpush1.bf16.msra.mxu0 %v2638
  %3510 = vmatprep.subr.bf16.mxu0 0
  %3511 = vmatpush1.bf16.msra.mxu0 %v2639
  %3512 = vmatprep.mubr.bf16.mxu0 %v917
  %3513 = vmatmul.mubr.bf16.gmra.mrb[0].mxu0 %v916
  %v3514 = vpop.f32.mrb[0].mxu0
  %v3515 = vadd.f32 %v3475, %v3514
  %v3516 = vpop.f32.mrb[0].mxu0
  %v3517 = vpop.f32.mrb[0].mxu0
  %v3518 = vpop.f32.mrb[0].mxu0
  %3519 = vdwg.mxu0
  %3520 = vmatprep.subr.bf16.mxu0 0
  %3521 = vmatpush1.bf16.msra.mxu0 %v2640
  %3522 = vmatprep.subr.bf16.mxu0 0
  %3523 = vmatpush1.bf16.msra.mxu0 %v2641
  %3524 = vmatprep.subr.bf16.mxu0 0
  %3525 = vmatpush1.bf16.msra.mxu0 %v2642
  %3526 = vmatprep.subr.bf16.mxu0 0
  %3527 = vmatpush1.bf16.msra.mxu0 %v2643
  %3528 = vmatprep.subr.bf16.mxu0 0
  %3529 = vmatpush1.bf16.msra.mxu0 %v2644
  %3530 = vmatprep.subr.bf16.mxu0 0
  %3531 = vmatpush1.bf16.msra.mxu0 %v2645
  %3532 = vmatprep.subr.bf16.mxu0 0
  %3533 = vmatpush1.bf16.msra.mxu0 %v2646
  %3534 = vmatprep.subr.bf16.mxu0 0
  %3535 = vmatpush1.bf16.msra.mxu0 %v2647
  %3536 = vmatprep.subr.bf16.mxu0 0
  %3537 = vmatpush1.bf16.msra.mxu0 %v2648
  %3538 = vmatprep.subr.bf16.mxu0 0
  %3539 = vmatpush1.bf16.msra.mxu0 %v2649
  %3540 = vmatprep.subr.bf16.mxu0 0
  %3541 = vmatpush1.bf16.msra.mxu0 %v2650
  %3542 = vmatprep.subr.bf16.mxu0 0
  %3543 = vmatpush1.bf16.msra.mxu0 %v2651
  %3544 = vmatprep.subr.bf16.mxu0 0
  %3545 = vmatpush1.bf16.msra.mxu0 %v2652
  %3546 = vmatprep.subr.bf16.mxu0 0
  %3547 = vmatpush1.bf16.msra.mxu0 %v2653
  %3548 = vmatprep.subr.bf16.mxu0 0
  %3549 = vmatpush1.bf16.msra.mxu0 %v2654
  %3550 = vmatprep.subr.bf16.mxu0 0
  %3551 = vmatpush1.bf16.msra.mxu0 %v2655
  %3552 = vmatprep.mubr.bf16.mxu0 %v919
  %3553 = vmatmul.mubr.bf16.gmra.mrb[0].mxu0 %v918
  %v3554 = vpop.f32.mrb[0].mxu0
  %v3555 = vadd.f32 %v3515, %v3554
  %v3556 = vpop.f32.mrb[0].mxu0
  %v3557 = vpop.f32.mrb[0].mxu0
  %v3558 = vpop.f32.mrb[0].mxu0
  %3559 = vdwg.mxu0
  %3560 = vmatprep.subr.bf16.mxu0 0
  %3561 = vmatpush1.bf16.msra.mxu0 %v2656
  %3562 = vmatprep.subr.bf16.mxu0 0
  %3563 = vmatpush1.bf16.msra.mxu0 %v2657
  %3564 = vmatprep.subr.bf16.mxu0 0
  %3565 = vmatpush1.bf16.msra.mxu0 %v2658
  %3566 = vmatprep.subr.bf16.mxu0 0
  %3567 = vmatpush1.bf16.msra.mxu0 %v2659
  %3568 = vmatprep.subr.bf16.mxu0 0
  %3569 = vmatpush1.bf16.msra.mxu0 %v2660
  %3570 = vmatprep.subr.bf16.mxu0 0
  %3571 = vmatpush1.bf16.msra.mxu0 %v2661
  %3572 = vmatprep.subr.bf16.mxu0 0
  %3573 = vmatpush1.bf16.msra.mxu0 %v2662
  %3574 = vmatprep.subr.bf16.mxu0 0
  %3575 = vmatpush1.bf16.msra.mxu0 %v2663
  %3576 = vmatprep.subr.bf16.mxu0 0
  %3577 = vmatpush1.bf16.msra.mxu0 %v2664
  %3578 = vmatprep.subr.bf16.mxu0 0
  %3579 = vmatpush1.bf16.msra.mxu0 %v2665
  %3580 = vmatprep.subr.bf16.mxu0 0
  %3581 = vmatpush1.bf16.msra.mxu0 %v2666
  %3582 = vmatprep.subr.bf16.mxu0 0
  %3583 = vmatpush1.bf16.msra.mxu0 %v2667
  %3584 = vmatprep.subr.bf16.mxu0 0
  %3585 = vmatpush1.bf16.msra.mxu0 %v2668
  %3586 = vmatprep.subr.bf16.mxu0 0
  %3587 = vmatpush1.bf16.msra.mxu0 %v2669
  %3588 = vmatprep.subr.bf16.mxu0 0
  %3589 = vmatpush1.bf16.msra.mxu0 %v2670
  %3590 = vmatprep.subr.bf16.mxu0 0
  %3591 = vmatpush1.bf16.msra.mxu0 %v2671
  %3592 = vmatprep.mubr.bf16.mxu0 %v921
  %3593 = vmatmul.mubr.bf16.gmra.mrb[0].mxu0 %v920
  %v3594 = vpop.f32.mrb[0].mxu0
  %v3595 = vadd.f32 %v3555, %v3594
  %v3596 = vpop.f32.mrb[0].mxu0
  %v3597 = vpop.f32.mrb[0].mxu0
  %v3598 = vpop.f32.mrb[0].mxu0
  %3599 = vdwg.mxu0
  %3600 = vmatprep.subr.bf16.mxu0 0
  %3601 = vmatpush1.bf16.msra.mxu0 %v2672
  %3602 = vmatprep.subr.bf16.mxu0 0
  %3603 = vmatpush1.bf16.msra.mxu0 %v2673
  %3604 = vmatprep.subr.bf16.mxu0 0
  %3605 = vmatpush1.bf16.msra.mxu0 %v2674
  %3606 = vmatprep.subr.bf16.mxu0 0
  %3607 = vmatpush1.bf16.msra.mxu0 %v2675
  %3608 = vmatprep.subr.bf16.mxu0 0
  %3609 = vmatpush1.bf16.msra.mxu0 %v2676
  %3610 = vmatprep.subr.bf16.mxu0 0
  %3611 = vmatpush1.bf16.msra.mxu0 %v2677
  %3612 = vmatprep.subr.bf16.mxu0 0
  %3613 = vmatpush1.bf16.msra.mxu0 %v2678
  %3614 = vmatprep.subr.bf16.mxu0 0
  %3615 = vmatpush1.bf16.msra.mxu0 %v2679
  %3616 = vmatprep.subr.bf16.mxu0 0
  %3617 = vmatpush1.bf16.msra.mxu0 %v2680
  %3618 = vmatprep.subr.bf16.mxu0 0
  %3619 = vmatpush1.bf16.msra.mxu0 %v2681
  %3620 = vmatprep.subr.bf16.mxu0 0
  %3621 = vmatpush1.bf16.msra.mxu0 %v2682
  %3622 = vmatprep.subr.bf16.mxu0 0
  %3623 = vmatpush1.bf16.msra.mxu0 %v2683
  %3624 = vmatprep.subr.bf16.mxu0 0
  %3625 = vmatpush1.bf16.msra.mxu0 %v2684
  %3626 = vmatprep.subr.bf16.mxu0 0
  %3627 = vmatpush1.bf16.msra.mxu0 %v2685
  %3628 = vmatprep.subr.bf16.mxu0 0
  %3629 = vmatpush1.bf16.msra.mxu0 %v2686
  %3630 = vmatprep.subr.bf16.mxu0 0
  %3631 = vmatpush1.bf16.msra.mxu0 %v2687
  %3632 = vmatprep.mubr.bf16.mxu0 %v923
  %3633 = vmatmul.mubr.bf16.gmra.mrb[0].mxu0 %v922
  %v3634 = vpop.f32.mrb[0].mxu0
  %v3635 = vadd.f32 %v3595, %v3634
  %v3636 = vpop.f32.mrb[0].mxu0
  %v3637 = vpop.f32.mrb[0].mxu0
  %v3638 = vpop.f32.mrb[0].mxu0
  %3639 = vdwg.mxu0
  %3640 = vmatprep.subr.bf16.mxu0 0
  %3641 = vmatpush1.bf16.msra.mxu0 %v2688
  %3642 = vmatprep.subr.bf16.mxu0 0
  %3643 = vmatpush1.bf16.msra.mxu0 %v2689
  %3644 = vmatprep.subr.bf16.mxu0 0
  %3645 = vmatpush1.bf16.msra.mxu0 %v2690
  %3646 = vmatprep.subr.bf16.mxu0 0
  %3647 = vmatpush1.bf16.msra.mxu0 %v2691
  %3648 = vmatprep.subr.bf16.mxu0 0
  %3649 = vmatpush1.bf16.msra.mxu0 %v2692
  %3650 = vmatprep.subr.bf16.mxu0 0
  %3651 = vmatpush1.bf16.msra.mxu0 %v2693
  %3652 = vmatprep.subr.bf16.mxu0 0
  %3653 = vmatpush1.bf16.msra.mxu0 %v2694
  %3654 = vmatprep.subr.bf16.mxu0 0
  %3655 = vmatpush1.bf16.msra.mxu0 %v2695
  %3656 = vmatprep.subr.bf16.mxu0 0
  %3657 = vmatpush1.bf16.msra.mxu0 %v2696
  %3658 = vmatprep.subr.bf16.mxu0 0
  %3659 = vmatpush1.bf16.msra.mxu0 %v2697
  %3660 = vmatprep.subr.bf16.mxu0 0
  %3661 = vmatpush1.bf16.msra.mxu0 %v2698
  %3662 = vmatprep.subr.bf16.mxu0 0
  %3663 = vmatpush1.bf16.msra.mxu0 %v2699
  %3664 = vmatprep.subr.bf16.mxu0 0
  %3665 = vmatpush1.bf16.msra.mxu0 %v2700
  %3666 = vmatprep.subr.bf16.mxu0 0
  %3667 = vmatpush1.bf16.msra.mxu0 %v2701
  %3668 = vmatprep.subr.bf16.mxu0 0
  %3669 = vmatpush1.bf16.msra.mxu0 %v2702
  %3670 = vmatprep.subr.bf16.mxu0 0
  %3671 = vmatpush1.bf16.msra.mxu0 %v2703
  %3672 = vmatprep.mubr.bf16.mxu0 %v925
  %3673 = vmatmul.mubr.bf16.gmra.mrb[0].mxu0 %v924
  %v3674 = vpop.f32.mrb[0].mxu0
  %v3675 = vadd.f32 %v3635, %v3674
  %v3676 = vpop.f32.mrb[0].mxu0
  %v3677 = vpop.f32.mrb[0].mxu0
  %v3678 = vpop.f32.mrb[0].mxu0
  %3679 = vdwg.mxu0
  %3680 = vmatprep.subr.bf16.mxu0 0
  %3681 = vmatpush1.bf16.msra.mxu0 %v2704
  %3682 = vmatprep.subr.bf16.mxu0 0
  %3683 = vmatpush1.bf16.msra.mxu0 %v2705
  %3684 = vmatprep.subr.bf16.mxu0 0
  %3685 = vmatpush1.bf16.msra.mxu0 %v2706
  %3686 = vmatprep.subr.bf16.mxu0 0
  %3687 = vmatpush1.bf16.msra.mxu0 %v2707
  %3688 = vmatprep.subr.bf16.mxu0 0
  %3689 = vmatpush1.bf16.msra.mxu0 %v2708
  %3690 = vmatprep.subr.bf16.mxu0 0
  %3691 = vmatpush1.bf16.msra.mxu0 %v2709
  %3692 = vmatprep.subr.bf16.mxu0 0
  %3693 = vmatpush1.bf16.msra.mxu0 %v2710
  %3694 = vmatprep.subr.bf16.mxu0 0
  %3695 = vmatpush1.bf16.msra.mxu0 %v2711
  %3696 = vmatprep.subr.bf16.mxu0 0
  %3697 = vmatpush1.bf16.msra.mxu0 %v2712
  %3698 = vmatprep.subr.bf16.mxu0 0
  %3699 = vmatpush1.bf16.msra.mxu0 %v2713
  %3700 = vmatprep.subr.bf16.mxu0 0
  %3701 = vmatpush1.bf16.msra.mxu0 %v2714
  %3702 = vmatprep.subr.bf16.mxu0 0
  %3703 = vmatpush1.bf16.msra.mxu0 %v2715
  %3704 = vmatprep.subr.bf16.mxu0 0
  %3705 = vmatpush1.bf16.msra.mxu0 %v2716
  %3706 = vmatprep.subr.bf16.mxu0 0
  %3707 = vmatpush1.bf16.msra.mxu0 %v2717
  %3708 = vmatprep.subr.bf16.mxu0 0
  %3709 = vmatpush1.bf16.msra.mxu0 %v2718
  %3710 = vmatprep.subr.bf16.mxu0 0
  %3711 = vmatpush1.bf16.msra.mxu0 %v2719
  %3712 = vmatprep.mubr.bf16.mxu0 %v927
  %3713 = vmatmul.mubr.bf16.gmra.mrb[0].mxu0 %v926
  %v3714 = vpop.f32.mrb[0].mxu0
  %v3715 = vadd.f32 %v3675, %v3714
  %v3716 = vpop.f32.mrb[0].mxu0
  %v3717 = vpop.f32.mrb[0].mxu0
  %v3718 = vpop.f32.mrb[0].mxu0
  %3719 = vdwg.mxu0
  %3720 = vmatprep.subr.bf16.mxu0 0
  %3721 = vmatpush1.bf16.msra.mxu0 %v2720
  %3722 = vmatprep.subr.bf16.mxu0 0
  %3723 = vmatpush1.bf16.msra.mxu0 %v2721
  %3724 = vmatprep.subr.bf16.mxu0 0
  %3725 = vmatpush1.bf16.msra.mxu0 %v2722
  %3726 = vmatprep.subr.bf16.mxu0 0
  %3727 = vmatpush1.bf16.msra.mxu0 %v2723
  %3728 = vmatprep.subr.bf16.mxu0 0
  %3729 = vmatpush1.bf16.msra.mxu0 %v2724
  %3730 = vmatprep.subr.bf16.mxu0 0
  %3731 = vmatpush1.bf16.msra.mxu0 %v2725
  %3732 = vmatprep.subr.bf16.mxu0 0
  %3733 = vmatpush1.bf16.msra.mxu0 %v2726
  %3734 = vmatprep.subr.bf16.mxu0 0
  %3735 = vmatpush1.bf16.msra.mxu0 %v2727
  %3736 = vmatprep.subr.bf16.mxu0 0
  %3737 = vmatpush1.bf16.msra.mxu0 %v2728
  %3738 = vmatprep.subr.bf16.mxu0 0
  %3739 = vmatpush1.bf16.msra.mxu0 %v2729
  %3740 = vmatprep.subr.bf16.mxu0 0
  %3741 = vmatpush1.bf16.msra.mxu0 %v2730
  %3742 = vmatprep.subr.bf16.mxu0 0
  %3743 = vmatpush1.bf16.msra.mxu0 %v2731
  %3744 = vmatprep.subr.bf16.mxu0 0
  %3745 = vmatpush1.bf16.msra.mxu0 %v2732
  %3746 = vmatprep.subr.bf16.mxu0 0
  %3747 = vmatpush1.bf16.msra.mxu0 %v2733
  %3748 = vmatprep.subr.bf16.mxu0 0
  %3749 = vmatpush1.bf16.msra.mxu0 %v2734
  %3750 = vmatprep.subr.bf16.mxu0 0
  %3751 = vmatpush1.bf16.msra.mxu0 %v2735
  %3752 = vmatprep.mubr.bf16.mxu0 %v929
  %3753 = vmatmul.mubr.bf16.gmra.mrb[0].mxu0 %v928
  %v3754 = vpop.f32.mrb[0].mxu0
  %v3755 = vadd.f32 %v3715, %v3754
  %v3756 = vpop.f32.mrb[0].mxu0
  %v3757 = vpop.f32.mrb[0].mxu0
  %v3758 = vpop.f32.mrb[0].mxu0
  %3759 = vdwg.mxu0
  %3760 = vmatprep.subr.bf16.mxu0 0
  %3761 = vmatpush1.bf16.msra.mxu0 %v2736
  %3762 = vmatprep.subr.bf16.mxu0 0
  %3763 = vmatpush1.bf16.msra.mxu0 %v2737
  %3764 = vmatprep.subr.bf16.mxu0 0
  %3765 = vmatpush1.bf16.msra.mxu0 %v2738
  %3766 = vmatprep.subr.bf16.mxu0 0
  %3767 = vmatpush1.bf16.msra.mxu0 %v2739
  %3768 = vmatprep.subr.bf16.mxu0 0
  %3769 = vmatpush1.bf16.msra.mxu0 %v2740
  %3770 = vmatprep.subr.bf16.mxu0 0
  %3771 = vmatpush1.bf16.msra.mxu0 %v2741
  %3772 = vmatprep.subr.bf16.mxu0 0
  %3773 = vmatpush1.bf16.msra.mxu0 %v2742
  %3774 = vmatprep.subr.bf16.mxu0 0
  %3775 = vmatpush1.bf16.msra.mxu0 %v2743
  %3776 = vmatprep.subr.bf16.mxu0 0
  %3777 = vmatpush1.bf16.msra.mxu0 %v2744
  %3778 = vmatprep.subr.bf16.mxu0 0
  %3779 = vmatpush1.bf16.msra.mxu0 %v2745
  %3780 = vmatprep.subr.bf16.mxu0 0
  %3781 = vmatpush1.bf16.msra.mxu0 %v2746
  %3782 = vmatprep.subr.bf16.mxu0 0
  %3783 = vmatpush1.bf16.msra.mxu0 %v2747
  %3784 = vmatprep.subr.bf16.mxu0 0
  %3785 = vmatpush1.bf16.msra.mxu0 %v2748
  %3786 = vmatprep.subr.bf16.mxu0 0
  %3787 = vmatpush1.bf16.msra.mxu0 %v2749
  %3788 = vmatprep.subr.bf16.mxu0 0
  %3789 = vmatpush1.bf16.msra.mxu0 %v2750
  %3790 = vmatprep.subr.bf16.mxu0 0
  %3791 = vmatpush1.bf16.msra.mxu0 %v2751
  %3792 = vmatprep.mubr.bf16.mxu0 %v931
  %3793 = vmatmul.mubr.bf16.gmra.mrb[0].mxu0 %v930
  %v3794 = vpop.f32.mrb[0].mxu0
  %v3795 = vadd.f32 %v3755, %v3794
  %v3796 = vpop.f32.mrb[0].mxu0
  %v3797 = vpop.f32.mrb[0].mxu0
  %v3798 = vpop.f32.mrb[0].mxu0
  %3799 = vdwg.mxu0
  %3800 = vmatprep.subr.bf16.mxu0 0
  %3801 = vmatpush1.bf16.msra.mxu0 %v2752
  %3802 = vmatprep.subr.bf16.mxu0 0
  %3803 = vmatpush1.bf16.msra.mxu0 %v2753
  %3804 = vmatprep.subr.bf16.mxu0 0
  %3805 = vmatpush1.bf16.msra.mxu0 %v2754
  %3806 = vmatprep.subr.bf16.mxu0 0
  %3807 = vmatpush1.bf16.msra.mxu0 %v2755
  %3808 = vmatprep.subr.bf16.mxu0 0
  %3809 = vmatpush1.bf16.msra.mxu0 %v2756
  %3810 = vmatprep.subr.bf16.mxu0 0
  %3811 = vmatpush1.bf16.msra.mxu0 %v2757
  %3812 = vmatprep.subr.bf16.mxu0 0
  %3813 = vmatpush1.bf16.msra.mxu0 %v2758
  %3814 = vmatprep.subr.bf16.mxu0 0
  %3815 = vmatpush1.bf16.msra.mxu0 %v2759
  %3816 = vmatprep.subr.bf16.mxu0 0
  %3817 = vmatpush1.bf16.msra.mxu0 %v2760
  %3818 = vmatprep.subr.bf16.mxu0 0
  %3819 = vmatpush1.bf16.msra.mxu0 %v2761
  %3820 = vmatprep.subr.bf16.mxu0 0
  %3821 = vmatpush1.bf16.msra.mxu0 %v2762
  %3822 = vmatprep.subr.bf16.mxu0 0
  %3823 = vmatpush1.bf16.msra.mxu0 %v2763
  %3824 = vmatprep.subr.bf16.mxu0 0
  %3825 = vmatpush1.bf16.msra.mxu0 %v2764
  %3826 = vmatprep.subr.bf16.mxu0 0
  %3827 = vmatpush1.bf16.msra.mxu0 %v2765
  %3828 = vmatprep.subr.bf16.mxu0 0
  %3829 = vmatpush1.bf16.msra.mxu0 %v2766
  %3830 = vmatprep.subr.bf16.mxu0 0
  %3831 = vmatpush1.bf16.msra.mxu0 %v2767
  %3832 = vmatprep.mubr.bf16.mxu0 %v933
  %3833 = vmatmul.mubr.bf16.gmra.mrb[0].mxu0 %v932
  %v3834 = vpop.f32.mrb[0].mxu0
  %v3835 = vadd.f32 %v3795, %v3834
  %v3836 = vpop.f32.mrb[0].mxu0
  %v3837 = vpop.f32.mrb[0].mxu0
  %v3838 = vpop.f32.mrb[0].mxu0
  %3839 = vdwg.mxu0
  %3840 = vmatprep.subr.bf16.mxu0 0
  %3841 = vmatpush1.bf16.msra.mxu0 %v2768
  %3842 = vmatprep.subr.bf16.mxu0 0
  %3843 = vmatpush1.bf16.msra.mxu0 %v2769
  %3844 = vmatprep.subr.bf16.mxu0 0
  %3845 = vmatpush1.bf16.msra.mxu0 %v2770
  %3846 = vmatprep.subr.bf16.mxu0 0
  %3847 = vmatpush1.bf16.msra.mxu0 %v2771
  %3848 = vmatprep.subr.bf16.mxu0 0
  %3849 = vmatpush1.bf16.msra.mxu0 %v2772
  %3850 = vmatprep.subr.bf16.mxu0 0
  %3851 = vmatpush1.bf16.msra.mxu0 %v2773
  %3852 = vmatprep.subr.bf16.mxu0 0
  %3853 = vmatpush1.bf16.msra.mxu0 %v2774
  %3854 = vmatprep.subr.bf16.mxu0 0
  %3855 = vmatpush1.bf16.msra.mxu0 %v2775
  %3856 = vmatprep.subr.bf16.mxu0 0
  %3857 = vmatpush1.bf16.msra.mxu0 %v2776
  %3858 = vmatprep.subr.bf16.mxu0 0
  %3859 = vmatpush1.bf16.msra.mxu0 %v2777
  %3860 = vmatprep.subr.bf16.mxu0 0
  %3861 = vmatpush1.bf16.msra.mxu0 %v2778
  %3862 = vmatprep.subr.bf16.mxu0 0
  %3863 = vmatpush1.bf16.msra.mxu0 %v2779
  %3864 = vmatprep.subr.bf16.mxu0 0
  %3865 = vmatpush1.bf16.msra.mxu0 %v2780
  %3866 = vmatprep.subr.bf16.mxu0 0
  %3867 = vmatpush1.bf16.msra.mxu0 %v2781
  %3868 = vmatprep.subr.bf16.mxu0 0
  %3869 = vmatpush1.bf16.msra.mxu0 %v2782
  %3870 = vmatprep.subr.bf16.mxu0 0
  %3871 = vmatpush1.bf16.msra.mxu0 %v2783
  %3872 = vmatprep.mubr.bf16.mxu0 %v935
  %3873 = vmatmul.mubr.bf16.gmra.mrb[0].mxu0 %v934
  %v3874 = vpop.f32.mrb[0].mxu0
  %v3875 = vadd.f32 %v3835, %v3874
  %v3876 = vpop.f32.mrb[0].mxu0
  %v3877 = vpop.f32.mrb[0].mxu0
  %v3878 = vpop.f32.mrb[0].mxu0
  %3879 = vdwg.mxu0
  %3880 = vmatprep.subr.bf16.mxu0 0
  %3881 = vmatpush1.bf16.msra.mxu0 %v2784
  %3882 = vmatprep.subr.bf16.mxu0 0
  %3883 = vmatpush1.bf16.msra.mxu0 %v2785
  %3884 = vmatprep.subr.bf16.mxu0 0
  %3885 = vmatpush1.bf16.msra.mxu0 %v2786
  %3886 = vmatprep.subr.bf16.mxu0 0
  %3887 = vmatpush1.bf16.msra.mxu0 %v2787
  %3888 = vmatprep.subr.bf16.mxu0 0
  %3889 = vmatpush1.bf16.msra.mxu0 %v2788
  %3890 = vmatprep.subr.bf16.mxu0 0
  %3891 = vmatpush1.bf16.msra.mxu0 %v2789
  %3892 = vmatprep.subr.bf16.mxu0 0
  %3893 = vmatpush1.bf16.msra.mxu0 %v2790
  %3894 = vmatprep.subr.bf16.mxu0 0
  %3895 = vmatpush1.bf16.msra.mxu0 %v2791
  %3896 = vmatprep.subr.bf16.mxu0 0
  %3897 = vmatpush1.bf16.msra.mxu0 %v2792
  %3898 = vmatprep.subr.bf16.mxu0 0
  %3899 = vmatpush1.bf16.msra.mxu0 %v2793
  %3900 = vmatprep.subr.bf16.mxu0 0
  %3901 = vmatpush1.bf16.msra.mxu0 %v2794
  %3902 = vmatprep.subr.bf16.mxu0 0
  %3903 = vmatpush1.bf16.msra.mxu0 %v2795
  %3904 = vmatprep.subr.bf16.mxu0 0
  %3905 = vmatpush1.bf16.msra.mxu0 %v2796
  %3906 = vmatprep.subr.bf16.mxu0 0
  %3907 = vmatpush1.bf16.msra.mxu0 %v2797
  %3908 = vmatprep.subr.bf16.mxu0 0
  %3909 = vmatpush1.bf16.msra.mxu0 %v2798
  %3910 = vmatprep.subr.bf16.mxu0 0
  %3911 = vmatpush1.bf16.msra.mxu0 %v2799
  %3912 = vmatprep.mubr.bf16.mxu0 %v937
  %3913 = vmatmul.mubr.bf16.gmra.mrb[0].mxu0 %v936
  %v3914 = vpop.f32.mrb[0].mxu0
  %v3915 = vadd.f32 %v3875, %v3914
  %v3916 = vpop.f32.mrb[0].mxu0
  %v3917 = vpop.f32.mrb[0].mxu0
  %v3918 = vpop.f32.mrb[0].mxu0
  %3919 = vdwg.mxu0
  %3920 = vmatprep.subr.bf16.mxu0 0
  %3921 = vmatpush1.bf16.msra.mxu0 %v2800
  %3922 = vmatprep.subr.bf16.mxu0 0
  %3923 = vmatpush1.bf16.msra.mxu0 %v2801
  %3924 = vmatprep.subr.bf16.mxu0 0
  %3925 = vmatpush1.bf16.msra.mxu0 %v2802
  %3926 = vmatprep.subr.bf16.mxu0 0
  %3927 = vmatpush1.bf16.msra.mxu0 %v2803
  %3928 = vmatprep.subr.bf16.mxu0 0
  %3929 = vmatpush1.bf16.msra.mxu0 %v2804
  %3930 = vmatprep.subr.bf16.mxu0 0
  %3931 = vmatpush1.bf16.msra.mxu0 %v2805
  %3932 = vmatprep.subr.bf16.mxu0 0
  %3933 = vmatpush1.bf16.msra.mxu0 %v2806
  %3934 = vmatprep.subr.bf16.mxu0 0
  %3935 = vmatpush1.bf16.msra.mxu0 %v2807
  %3936 = vmatprep.subr.bf16.mxu0 0
  %3937 = vmatpush1.bf16.msra.mxu0 %v2808
  %3938 = vmatprep.subr.bf16.mxu0 0
  %3939 = vmatpush1.bf16.msra.mxu0 %v2809
  %3940 = vmatprep.subr.bf16.mxu0 0
  %3941 = vmatpush1.bf16.msra.mxu0 %v2810
  %3942 = vmatprep.subr.bf16.mxu0 0
  %3943 = vmatpush1.bf16.msra.mxu0 %v2811
  %3944 = vmatprep.subr.bf16.mxu0 0
  %3945 = vmatpush1.bf16.msra.mxu0 %v2812
  %3946 = vmatprep.subr.bf16.mxu0 0
  %3947 = vmatpush1.bf16.msra.mxu0 %v2813
  %3948 = vmatprep.subr.bf16.mxu0 0
  %3949 = vmatpush1.bf16.msra.mxu0 %v2814
  %3950 = vmatprep.subr.bf16.mxu0 0
  %3951 = vmatpush1.bf16.msra.mxu0 %v2815
  %3952 = vmatprep.mubr.bf16.mxu0 %v939
  %3953 = vmatmul.mubr.bf16.gmra.mrb[0].mxu0 %v938
  %v3954 = vpop.f32.mrb[0].mxu0
  %v3955 = vadd.f32 %v3915, %v3954
  %v3956 = vpop.f32.mrb[0].mxu0
  %v3957 = vpop.f32.mrb[0].mxu0
  %v3958 = vpop.f32.mrb[0].mxu0
  %3959 = vdwg.mxu0
  %3960 = vmatprep.subr.bf16.mxu0 0
  %3961 = vmatpush1.bf16.msra.mxu0 %v2816
  %3962 = vmatprep.subr.bf16.mxu0 0
  %3963 = vmatpush1.bf16.msra.mxu0 %v2817
  %3964 = vmatprep.subr.bf16.mxu0 0
  %3965 = vmatpush1.bf16.msra.mxu0 %v2818
  %3966 = vmatprep.subr.bf16.mxu0 0
  %3967 = vmatpush1.bf16.msra.mxu0 %v2819
  %3968 = vmatprep.subr.bf16.mxu0 0
  %3969 = vmatpush1.bf16.msra.mxu0 %v2820
  %3970 = vmatprep.subr.bf16.mxu0 0
  %3971 = vmatpush1.bf16.msra.mxu0 %v2821
  %3972 = vmatprep.subr.bf16.mxu0 0
  %3973 = vmatpush1.bf16.msra.mxu0 %v2822
  %3974 = vmatprep.subr.bf16.mxu0 0
  %3975 = vmatpush1.bf16.msra.mxu0 %v2823
  %3976 = vmatprep.subr.bf16.mxu0 0
  %3977 = vmatpush1.bf16.msra.mxu0 %v2824
  %3978 = vmatprep.subr.bf16.mxu0 0
  %3979 = vmatpush1.bf16.msra.mxu0 %v2825
  %3980 = vmatprep.subr.bf16.mxu0 0
  %3981 = vmatpush1.bf16.msra.mxu0 %v2826
  %3982 = vmatprep.subr.bf16.mxu0 0
  %3983 = vmatpush1.bf16.msra.mxu0 %v2827
  %3984 = vmatprep.subr.bf16.mxu0 0
  %3985 = vmatpush1.bf16.msra.mxu0 %v2828
  %3986 = vmatprep.subr.bf16.mxu0 0
  %3987 = vmatpush1.bf16.msra.mxu0 %v2829
  %3988 = vmatprep.subr.bf16.mxu0 0
  %3989 = vmatpush1.bf16.msra.mxu0 %v2830
  %3990 = vmatprep.subr.bf16.mxu0 0
  %3991 = vmatpush1.bf16.msra.mxu0 %v2831
  %3992 = vmatprep.mubr.bf16.mxu0 %v941
  %3993 = vmatmul.mubr.bf16.gmra.mrb[0].mxu0 %v940
  %v3994 = vpop.f32.mrb[0].mxu0
  %v3995 = vadd.f32 %v3955, %v3994
  %v3996 = vpop.f32.mrb[0].mxu0
  %v3997 = vpop.f32.mrb[0].mxu0
  %v3998 = vpop.f32.mrb[0].mxu0
  %3999 = vdwg.mxu0
  %4000 = vmatprep.subr.bf16.mxu0 0
  %4001 = vmatpush1.bf16.msra.mxu0 %v2832
  %4002 = vmatprep.subr.bf16.mxu0 0
  %4003 = vmatpush1.bf16.msra.mxu0 %v2833
  %4004 = vmatprep.subr.bf16.mxu0 0
  %4005 = vmatpush1.bf16.msra.mxu0 %v2834
  %4006 = vmatprep.subr.bf16.mxu0 0
  %4007 = vmatpush1.bf16.msra.mxu0 %v2835
  %4008 = vmatprep.subr.bf16.mxu0 0
  %4009 = vmatpush1.bf16.msra.mxu0 %v2836
  %4010 = vmatprep.subr.bf16.mxu0 0
  %4011 = vmatpush1.bf16.msra.mxu0 %v2837
  %4012 = vmatprep.subr.bf16.mxu0 0
  %4013 = vmatpush1.bf16.msra.mxu0 %v2838
  %4014 = vmatprep.subr.bf16.mxu0 0
  %4015 = vmatpush1.bf16.msra.mxu0 %v2839
  %4016 = vmatprep.subr.bf16.mxu0 0
  %4017 = vmatpush1.bf16.msra.mxu0 %v2840
  %4018 = vmatprep.subr.bf16.mxu0 0
  %4019 = vmatpush1.bf16.msra.mxu0 %v2841
  %4020 = vmatprep.subr.bf16.mxu0 0
  %4021 = vmatpush1.bf16.msra.mxu0 %v2842
  %4022 = vmatprep.subr.bf16.mxu0 0
  %4023 = vmatpush1.bf16.msra.mxu0 %v2843
  %4024 = vmatprep.subr.bf16.mxu0 0
  %4025 = vmatpush1.bf16.msra.mxu0 %v2844
  %4026 = vmatprep.subr.bf16.mxu0 0
  %4027 = vmatpush1.bf16.msra.mxu0 %v2845
  %4028 = vmatprep.subr.bf16.mxu0 0
  %4029 = vmatpush1.bf16.msra.mxu0 %v2846
  %4030 = vmatprep.subr.bf16.mxu0 0
  %4031 = vmatpush1.bf16.msra.mxu0 %v2847
  %4032 = vmatprep.mubr.bf16.mxu0 %v943
  %4033 = vmatmul.mubr.bf16.gmra.mrb[0].mxu0 %v942
  %v4034 = vpop.f32.mrb[0].mxu0
  %v4035 = vadd.f32 %v3995, %v4034
  %v4036 = vpop.f32.mrb[0].mxu0
  %v4037 = vpop.f32.mrb[0].mxu0
  %v4038 = vpop.f32.mrb[0].mxu0
  %4039 = vdwg.mxu0
  %4040 = vmatprep.subr.bf16.mxu0 0
  %4041 = vmatpush1.bf16.msra.mxu0 %v2848
  %4042 = vmatprep.subr.bf16.mxu0 0
  %4043 = vmatpush1.bf16.msra.mxu0 %v2849
  %4044 = vmatprep.subr.bf16.mxu0 0
  %4045 = vmatpush1.bf16.msra.mxu0 %v2850
  %4046 = vmatprep.subr.bf16.mxu0 0
  %4047 = vmatpush1.bf16.msra.mxu0 %v2851
  %4048 = vmatprep.subr.bf16.mxu0 0
  %4049 = vmatpush1.bf16.msra.mxu0 %v2852
  %4050 = vmatprep.subr.bf16.mxu0 0
  %4051 = vmatpush1.bf16.msra.mxu0 %v2853
  %4052 = vmatprep.subr.bf16.mxu0 0
  %4053 = vmatpush1.bf16.msra.mxu0 %v2854
  %4054 = vmatprep.subr.bf16.mxu0 0
  %4055 = vmatpush1.bf16.msra.mxu0 %v2855
  %4056 = vmatprep.subr.bf16.mxu0 0
  %4057 = vmatpush1.bf16.msra.mxu0 %v2856
  %4058 = vmatprep.subr.bf16.mxu0 0
  %4059 = vmatpush1.bf16.msra.mxu0 %v2857
  %4060 = vmatprep.subr.bf16.mxu0 0
  %4061 = vmatpush1.bf16.msra.mxu0 %v2858
  %4062 = vmatprep.subr.bf16.mxu0 0
  %4063 = vmatpush1.bf16.msra.mxu0 %v2859
  %4064 = vmatprep.subr.bf16.mxu0 0
  %4065 = vmatpush1.bf16.msra.mxu0 %v2860
  %4066 = vmatprep.subr.bf16.mxu0 0
  %4067 = vmatpush1.bf16.msra.mxu0 %v2861
  %4068 = vmatprep.subr.bf16.mxu0 0
  %4069 = vmatpush1.bf16.msra.mxu0 %v2862
  %4070 = vmatprep.subr.bf16.mxu0 0
  %4071 = vmatpush1.bf16.msra.mxu0 %v2863
  %4072 = vmatprep.mubr.bf16.mxu0 %v945
  %4073 = vmatmul.mubr.bf16.gmra.mrb[0].mxu0 %v944
  %v4074 = vpop.f32.mrb[0].mxu0
  %v4075 = vadd.f32 %v4035, %v4074
  %v4076 = vpop.f32.mrb[0].mxu0
  %v4077 = vpop.f32.mrb[0].mxu0
  %v4078 = vpop.f32.mrb[0].mxu0
  %4079 = vdwg.mxu0
  %4080 = vmatprep.subr.bf16.mxu0 0
  %4081 = vmatpush1.bf16.msra.mxu0 %v2864
  %4082 = vmatprep.subr.bf16.mxu0 0
  %4083 = vmatpush1.bf16.msra.mxu0 %v2865
  %4084 = vmatprep.subr.bf16.mxu0 0
  %4085 = vmatpush1.bf16.msra.mxu0 %v2866
  %4086 = vmatprep.subr.bf16.mxu0 0
  %4087 = vmatpush1.bf16.msra.mxu0 %v2867
  %4088 = vmatprep.subr.bf16.mxu0 0
  %4089 = vmatpush1.bf16.msra.mxu0 %v2868
  %4090 = vmatprep.subr.bf16.mxu0 0
  %4091 = vmatpush1.bf16.msra.mxu0 %v2869
  %4092 = vmatprep.subr.bf16.mxu0 0
  %4093 = vmatpush1.bf16.msra.mxu0 %v2870
  %4094 = vmatprep.subr.bf16.mxu0 0
  %4095 = vmatpush1.bf16.msra.mxu0 %v2871
  %4096 = vmatprep.subr.bf16.mxu0 0
  %4097 = vmatpush1.bf16.msra.mxu0 %v2872
  %4098 = vmatprep.subr.bf16.mxu0 0
  %4099 = vmatpush1.bf16.msra.mxu0 %v2873
  %4100 = vmatprep.subr.bf16.mxu0 0
  %4101 = vmatpush1.bf16.msra.mxu0 %v2874
  %4102 = vmatprep.subr.bf16.mxu0 0
  %4103 = vmatpush1.bf16.msra.mxu0 %v2875
  %4104 = vmatprep.subr.bf16.mxu0 0
  %4105 = vmatpush1.bf16.msra.mxu0 %v2876
  %4106 = vmatprep.subr.bf16.mxu0 0
  %4107 = vmatpush1.bf16.msra.mxu0 %v2877
  %4108 = vmatprep.subr.bf16.mxu0 0
  %4109 = vmatpush1.bf16.msra.mxu0 %v2878
  %4110 = vmatprep.subr.bf16.mxu0 0
  %4111 = vmatpush1.bf16.msra.mxu0 %v2879
  %4112 = vmatprep.mubr.bf16.mxu0 %v947
  %4113 = vmatmul.mubr.bf16.gmra.mrb[0].mxu0 %v946
  %v4114 = vpop.f32.mrb[0].mxu0
  %v4115 = vadd.f32 %v4075, %v4114
  %v4116 = vpop.f32.mrb[0].mxu0
  %v4117 = vpop.f32.mrb[0].mxu0
  %v4118 = vpop.f32.mrb[0].mxu0
  %4119 = vdwg.mxu0
  %4120 = vmatprep.subr.bf16.mxu0 0
  %4121 = vmatpush1.bf16.msra.mxu0 %v2880
  %4122 = vmatprep.subr.bf16.mxu0 0
  %4123 = vmatpush1.bf16.msra.mxu0 %v2881
  %4124 = vmatprep.subr.bf16.mxu0 0
  %4125 = vmatpush1.bf16.msra.mxu0 %v2882
  %4126 = vmatprep.subr.bf16.mxu0 0
  %4127 = vmatpush1.bf16.msra.mxu0 %v2883
  %4128 = vmatprep.subr.bf16.mxu0 0
  %4129 = vmatpush1.bf16.msra.mxu0 %v2884
  %4130 = vmatprep.subr.bf16.mxu0 0
  %4131 = vmatpush1.bf16.msra.mxu0 %v2885
  %4132 = vmatprep.subr.bf16.mxu0 0
  %4133 = vmatpush1.bf16.msra.mxu0 %v2886
  %4134 = vmatprep.subr.bf16.mxu0 0
  %4135 = vmatpush1.bf16.msra.mxu0 %v2887
  %4136 = vmatprep.subr.bf16.mxu0 0
  %4137 = vmatpush1.bf16.msra.mxu0 %v2888
  %4138 = vmatprep.subr.bf16.mxu0 0
  %4139 = vmatpush1.bf16.msra.mxu0 %v2889
  %4140 = vmatprep.subr.bf16.mxu0 0
  %4141 = vmatpush1.bf16.msra.mxu0 %v2890
  %4142 = vmatprep.subr.bf16.mxu0 0
  %4143 = vmatpush1.bf16.msra.mxu0 %v2891
  %4144 = vmatprep.subr.bf16.mxu0 0
  %4145 = vmatpush1.bf16.msra.mxu0 %v2892
  %4146 = vmatprep.subr.bf16.mxu0 0
  %4147 = vmatpush1.bf16.msra.mxu0 %v2893
  %4148 = vmatprep.subr.bf16.mxu0 0
  %4149 = vmatpush1.bf16.msra.mxu0 %v2894
  %4150 = vmatprep.subr.bf16.mxu0 0
  %4151 = vmatpush1.bf16.msra.mxu0 %v2895
  %4152 = vmatprep.mubr.bf16.mxu0 %v949
  %4153 = vmatmul.mubr.bf16.gmra.mrb[0].mxu0 %v948
  %v4154 = vpop.f32.mrb[0].mxu0
  %v4155 = vadd.f32 %v4115, %v4154
  %v4156 = vpop.f32.mrb[0].mxu0
  %v4157 = vpop.f32.mrb[0].mxu0
  %v4158 = vpop.f32.mrb[0].mxu0
  %4159 = vdwg.mxu0
  %4160 = vmatprep.subr.bf16.mxu0 0
  %4161 = vmatpush1.bf16.msra.mxu0 %v2896
  %4162 = vmatprep.subr.bf16.mxu0 0
  %4163 = vmatpush1.bf16.msra.mxu0 %v2897
  %4164 = vmatprep.subr.bf16.mxu0 0
  %4165 = vmatpush1.bf16.msra.mxu0 %v2898
  %4166 = vmatprep.subr.bf16.mxu0 0
  %4167 = vmatpush1.bf16.msra.mxu0 %v2899
  %4168 = vmatprep.subr.bf16.mxu0 0
  %4169 = vmatpush1.bf16.msra.mxu0 %v2900
  %4170 = vmatprep.subr.bf16.mxu0 0
  %4171 = vmatpush1.bf16.msra.mxu0 %v2901
  %4172 = vmatprep.subr.bf16.mxu0 0
  %4173 = vmatpush1.bf16.msra.mxu0 %v2902
  %4174 = vmatprep.subr.bf16.mxu0 0
  %4175 = vmatpush1.bf16.msra.mxu0 %v2903
  %4176 = vmatprep.subr.bf16.mxu0 0
  %4177 = vmatpush1.bf16.msra.mxu0 %v2904
  %4178 = vmatprep.subr.bf16.mxu0 0
  %4179 = vmatpush1.bf16.msra.mxu0 %v2905
  %4180 = vmatprep.subr.bf16.mxu0 0
  %4181 = vmatpush1.bf16.msra.mxu0 %v2906
  %4182 = vmatprep.subr.bf16.mxu0 0
  %4183 = vmatpush1.bf16.msra.mxu0 %v2907
  %4184 = vmatprep.subr.bf16.mxu0 0
  %4185 = vmatpush1.bf16.msra.mxu0 %v2908
  %4186 = vmatprep.subr.bf16.mxu0 0
  %4187 = vmatpush1.bf16.msra.mxu0 %v2909
  %4188 = vmatprep.subr.bf16.mxu0 0
  %4189 = vmatpush1.bf16.msra.mxu0 %v2910
  %4190 = vmatprep.subr.bf16.mxu0 0
  %4191 = vmatpush1.bf16.msra.mxu0 %v2911
  %4192 = vmatprep.mubr.bf16.mxu0 %v951
  %4193 = vmatmul.mubr.bf16.gmra.mrb[0].mxu0 %v950
  %v4194 = vpop.f32.mrb[0].mxu0
  %v4195 = vadd.f32 %v4155, %v4194
  %v4196 = vpop.f32.mrb[0].mxu0
  %v4197 = vpop.f32.mrb[0].mxu0
  %v4198 = vpop.f32.mrb[0].mxu0
  %4199 = vdwg.mxu0
  %4200 = vmatprep.subr.bf16.mxu0 0
  %4201 = vmatpush1.bf16.msra.mxu0 %v2912
  %4202 = vmatprep.subr.bf16.mxu0 0
  %4203 = vmatpush1.bf16.msra.mxu0 %v2913
  %4204 = vmatprep.subr.bf16.mxu0 0
  %4205 = vmatpush1.bf16.msra.mxu0 %v2914
  %4206 = vmatprep.subr.bf16.mxu0 0
  %4207 = vmatpush1.bf16.msra.mxu0 %v2915
  %4208 = vmatprep.subr.bf16.mxu0 0
  %4209 = vmatpush1.bf16.msra.mxu0 %v2916
  %4210 = vmatprep.subr.bf16.mxu0 0
  %4211 = vmatpush1.bf16.msra.mxu0 %v2917
  %4212 = vmatprep.subr.bf16.mxu0 0
  %4213 = vmatpush1.bf16.msra.mxu0 %v2918
  %4214 = vmatprep.subr.bf16.mxu0 0
  %4215 = vmatpush1.bf16.msra.mxu0 %v2919
  %4216 = vmatprep.subr.bf16.mxu0 0
  %4217 = vmatpush1.bf16.msra.mxu0 %v2920
  %4218 = vmatprep.subr.bf16.mxu0 0
  %4219 = vmatpush1.bf16.msra.mxu0 %v2921
  %4220 = vmatprep.subr.bf16.mxu0 0
  %4221 = vmatpush1.bf16.msra.mxu0 %v2922
  %4222 = vmatprep.subr.bf16.mxu0 0
  %4223 = vmatpush1.bf16.msra.mxu0 %v2923
  %4224 = vmatprep.subr.bf16.mxu0 0
  %4225 = vmatpush1.bf16.msra.mxu0 %v2924
  %4226 = vmatprep.subr.bf16.mxu0 0
  %4227 = vmatpush1.bf16.msra.mxu0 %v2925
  %4228 = vmatprep.subr.bf16.mxu0 0
  %4229 = vmatpush1.bf16.msra.mxu0 %v2926
  %4230 = vmatprep.subr.bf16.mxu0 0
  %4231 = vmatpush1.bf16.msra.mxu0 %v2927
  %4232 = vmatprep.mubr.bf16.mxu0 %v953
  %4233 = vmatmul.mubr.bf16.gmra.mrb[0].mxu0 %v952
  %v4234 = vpop.f32.mrb[0].mxu0
  %v4235 = vadd.f32 %v4195, %v4234
  %v4236 = vpop.f32.mrb[0].mxu0
  %v4237 = vpop.f32.mrb[0].mxu0
  %v4238 = vpop.f32.mrb[0].mxu0
  %4239 = vdwg.mxu0
  %4240 = vmatprep.subr.bf16.mxu0 0
  %4241 = vmatpush1.bf16.msra.mxu0 %v2928
  %4242 = vmatprep.subr.bf16.mxu0 0
  %4243 = vmatpush1.bf16.msra.mxu0 %v2929
  %4244 = vmatprep.subr.bf16.mxu0 0
  %4245 = vmatpush1.bf16.msra.mxu0 %v2930
  %4246 = vmatprep.subr.bf16.mxu0 0
  %4247 = vmatpush1.bf16.msra.mxu0 %v2931
  %4248 = vmatprep.subr.bf16.mxu0 0
  %4249 = vmatpush1.bf16.msra.mxu0 %v2932
  %4250 = vmatprep.subr.bf16.mxu0 0
  %4251 = vmatpush1.bf16.msra.mxu0 %v2933
  %4252 = vmatprep.subr.bf16.mxu0 0
  %4253 = vmatpush1.bf16.msra.mxu0 %v2934
  %4254 = vmatprep.subr.bf16.mxu0 0
  %4255 = vmatpush1.bf16.msra.mxu0 %v2935
  %4256 = vmatprep.subr.bf16.mxu0 0
  %4257 = vmatpush1.bf16.msra.mxu0 %v2936
  %4258 = vmatprep.subr.bf16.mxu0 0
  %4259 = vmatpush1.bf16.msra.mxu0 %v2937
  %4260 = vmatprep.subr.bf16.mxu0 0
  %4261 = vmatpush1.bf16.msra.mxu0 %v2938
  %4262 = vmatprep.subr.bf16.mxu0 0
  %4263 = vmatpush1.bf16.msra.mxu0 %v2939
  %4264 = vmatprep.subr.bf16.mxu0 0
  %4265 = vmatpush1.bf16.msra.mxu0 %v2940
  %4266 = vmatprep.subr.bf16.mxu0 0
  %4267 = vmatpush1.bf16.msra.mxu0 %v2941
  %4268 = vmatprep.subr.bf16.mxu0 0
  %4269 = vmatpush1.bf16.msra.mxu0 %v2942
  %4270 = vmatprep.subr.bf16.mxu0 0
  %4271 = vmatpush1.bf16.msra.mxu0 %v2943
  %4272 = vmatprep.mubr.bf16.mxu0 %v955
  %4273 = vmatmul.mubr.bf16.gmra.mrb[0].mxu0 %v954
  %v4274 = vpop.f32.mrb[0].mxu0
  %v4275 = vadd.f32 %v4235, %v4274
  %v4276 = vpop.f32.mrb[0].mxu0
  %v4277 = vpop.f32.mrb[0].mxu0
  %v4278 = vpop.f32.mrb[0].mxu0
  %4279 = vdwg.mxu0
  %4280 = vmatprep.subr.bf16.mxu0 0
  %4281 = vmatpush1.bf16.msra.mxu0 %v2944
  %4282 = vmatprep.subr.bf16.mxu0 0
  %4283 = vmatpush1.bf16.msra.mxu0 %v2945
  %4284 = vmatprep.subr.bf16.mxu0 0
  %4285 = vmatpush1.bf16.msra.mxu0 %v2946
  %4286 = vmatprep.subr.bf16.mxu0 0
  %4287 = vmatpush1.bf16.msra.mxu0 %v2947
  %4288 = vmatprep.subr.bf16.mxu0 0
  %4289 = vmatpush1.bf16.msra.mxu0 %v2948
  %4290 = vmatprep.subr.bf16.mxu0 0
  %4291 = vmatpush1.bf16.msra.mxu0 %v2949
  %4292 = vmatprep.subr.bf16.mxu0 0
  %4293 = vmatpush1.bf16.msra.mxu0 %v2950
  %4294 = vmatprep.subr.bf16.mxu0 0
  %4295 = vmatpush1.bf16.msra.mxu0 %v2951
  %4296 = vmatprep.subr.bf16.mxu0 0
  %4297 = vmatpush1.bf16.msra.mxu0 %v2952
  %4298 = vmatprep.subr.bf16.mxu0 0
  %4299 = vmatpush1.bf16.msra.mxu0 %v2953
  %4300 = vmatprep.subr.bf16.mxu0 0
  %4301 = vmatpush1.bf16.msra.mxu0 %v2954
  %4302 = vmatprep.subr.bf16.mxu0 0
  %4303 = vmatpush1.bf16.msra.mxu0 %v2955
  %4304 = vmatprep.subr.bf16.mxu0 0
  %4305 = vmatpush1.bf16.msra.mxu0 %v2956
  %4306 = vmatprep.subr.bf16.mxu0 0
  %4307 = vmatpush1.bf16.msra.mxu0 %v2957
  %4308 = vmatprep.subr.bf16.mxu0 0
  %4309 = vmatpush1.bf16.msra.mxu0 %v2958
  %4310 = vmatprep.subr.bf16.mxu0 0
  %4311 = vmatpush1.bf16.msra.mxu0 %v2959
  %4312 = vmatprep.mubr.bf16.mxu0 %v957
  %4313 = vmatmul.mubr.bf16.gmra.mrb[0].mxu0 %v956
  %v4314 = vpop.f32.mrb[0].mxu0
  %v4315 = vadd.f32 %v4275, %v4314
  %v4316 = vpop.f32.mrb[0].mxu0
  %v4317 = vpop.f32.mrb[0].mxu0
  %v4318 = vpop.f32.mrb[0].mxu0
  %4319 = vdwg.mxu0
  %4320 = vmatprep.subr.bf16.mxu0 0
  %4321 = vmatpush1.bf16.msra.mxu0 %v2960
  %4322 = vmatprep.subr.bf16.mxu0 0
  %4323 = vmatpush1.bf16.msra.mxu0 %v2961
  %4324 = vmatprep.subr.bf16.mxu0 0
  %4325 = vmatpush1.bf16.msra.mxu0 %v2962
  %4326 = vmatprep.subr.bf16.mxu0 0
  %4327 = vmatpush1.bf16.msra.mxu0 %v2963
  %4328 = vmatprep.subr.bf16.mxu0 0
  %4329 = vmatpush1.bf16.msra.mxu0 %v2964
  %4330 = vmatprep.subr.bf16.mxu0 0
  %4331 = vmatpush1.bf16.msra.mxu0 %v2965
  %4332 = vmatprep.subr.bf16.mxu0 0
  %4333 = vmatpush1.bf16.msra.mxu0 %v2966
  %4334 = vmatprep.subr.bf16.mxu0 0
  %4335 = vmatpush1.bf16.msra.mxu0 %v2967
  %4336 = vmatprep.subr.bf16.mxu0 0
  %4337 = vmatpush1.bf16.msra.mxu0 0
  %4338 = vmatprep.subr.bf16.mxu0 0
  %4339 = vmatpush1.bf16.msra.mxu0 0
  %4340 = vmatprep.subr.bf16.mxu0 0
  %4341 = vmatpush1.bf16.msra.mxu0 0
  %4342 = vmatprep.subr.bf16.mxu0 0
  %4343 = vmatpush1.bf16.msra.mxu0 0
  %4344 = vmatprep.subr.bf16.mxu0 0
  %4345 = vmatpush1.bf16.msra.mxu0 0
  %4346 = vmatprep.subr.bf16.mxu0 0
  %4347 = vmatpush1.bf16.msra.mxu0 0
  %4348 = vmatprep.subr.bf16.mxu0 0
  %4349 = vmatpush1.bf16.msra.mxu0 0
  %4350 = vmatprep.subr.bf16.mxu0 0
  %4351 = vmatpush1.bf16.msra.mxu0 0
  %4352 = vmatprep.mubr.bf16.mxu0 0
  %4353 = vmatmul.mubr.bf16.gmra.mrb[0].mxu0 %v958
  %v4354 = vpop.f32.mrb[0].mxu0
  %v4355 = vadd.f32 %v4315, %v4354
  %v4356 = vpop.f32.mrb[0].mxu0
  %v4357 = vpop.f32.mrb[0].mxu0
  %v4358 = vpop.f32.mrb[0].mxu0
  %4359 = vdwg.mxu0
  %v4360 = vpack.c.bf16 %v4355, %v4355
  %v4361 = vld [vmem:[%s3] sm:$0xff]
  %v4362 = vld [vmem:[%s3 + $0x8] sm:$0xff]
  %v4363 = vld [vmem:[%s3 + $0x10] sm:$0xff]
  %v4364 = vld [vmem:[%s3 + $0x18] sm:$0xff]
  %v4365 = vld [vmem:[%s3 + $0x20] sm:$0xff]
  %v4366 = vld [vmem:[%s3 + $0x28] sm:$0xff]
  %v4367 = vld [vmem:[%s3 + $0x30] sm:$0xff]
  %v4368 = vld [vmem:[%s3 + $0x38] sm:$0xff]
  %v4369 = vld [vmem:[%s3 + $0x40] sm:$0xff]
  %v4370 = vld [vmem:[%s3 + $0x48] sm:$0xff]
  %v4371 = vld [vmem:[%s3 + $0x50] sm:$0xff]
  %v4372 = vld [vmem:[%s3 + $0x58] sm:$0xff]
  %v4373 = vld [vmem:[%s3 + $0x60] sm:$0xff]
  %v4374 = vld [vmem:[%s3 + $0x68] sm:$0xff]
  %v4375 = vld [vmem:[%s3 + $0x70] sm:$0xff]
  %v4376 = vld [vmem:[%s3 + $0x78] sm:$0xff]
  %v4377 = vld [vmem:[%s3 + $0x80] sm:$0xff]
  %v4378 = vld [vmem:[%s3 + $0x88] sm:$0xff]
  %v4379 = vld [vmem:[%s3 + $0x90] sm:$0xff]
  %v4380 = vld [vmem:[%s3 + $0x98] sm:$0xff]
  %v4381 = vld [vmem:[%s3 + $0xa0] sm:$0xff]
  %v4382 = vld [vmem:[%s3 + $0xa8] sm:$0xff]
  %v4383 = vld [vmem:[%s3 + $0xb0] sm:$0xff]
  %v4384 = vld [vmem:[%s3 + $0xb8] sm:$0xff]
  %v4385 = vld [vmem:[%s3 + $0xc0] sm:$0xf]
  %v4386 = vld [vmem:[%s3 + $0xc4] sm:$0xff]
  %v4387 = vld [vmem:[%s3 + $0xcc] sm:$0xff]
  %v4388 = vld [vmem:[%s3 + $0xd4] sm:$0xff]
  %v4389 = vld [vmem:[%s3 + $0xdc] sm:$0xff]
  %v4390 = vld [vmem:[%s3 + $0xe4] sm:$0xff]
  %v4391 = vld [vmem:[%s3 + $0xec] sm:$0xff]
  %v4392 = vld [vmem:[%s3 + $0xf4] sm:$0xff]
  %v4393 = vld [vmem:[%s3 + $0xfc] sm:$0xff]
  %v4394 = vld [vmem:[%s3 + $0x104] sm:$0xff]
  %v4395 = vld [vmem:[%s3 + $0x10c] sm:$0xff]
  %v4396 = vld [vmem:[%s3 + $0x114] sm:$0xff]
  %v4397 = vld [vmem:[%s3 + $0x11c] sm:$0xff]
  %v4398 = vld [vmem:[%s3 + $0x124] sm:$0xff]
  %v4399 = vld [vmem:[%s3 + $0x12c] sm:$0xff]
  %v4400 = vld [vmem:[%s3 + $0x134] sm:$0xff]
  %v4401 = vld [vmem:[%s3 + $0x13c] sm:$0xff]
  %v4402 = vld [vmem:[%s3 + $0x144] sm:$0xff]
  %v4403 = vld [vmem:[%s3 + $0x14c] sm:$0xff]
  %v4404 = vld [vmem:[%s3 + $0x154] sm:$0xff]
  %v4405 = vld [vmem:[%s3 + $0x15c] sm:$0xff]
  %v4406 = vld [vmem:[%s3 + $0x164] sm:$0xff]
  %v4407 = vld [vmem:[%s3 + $0x16c] sm:$0xff]
  %v4408 = vld [vmem:[%s3 + $0x174] sm:$0xff]
  %v4409 = vld [vmem:[%s3 + $0x17c] sm:$0xff]
  %v4410 = vld [vmem:[%s3 + $0x184] sm:$0xf]
  %v4411 = vld [vmem:[%s3 + $0x188] sm:$0xff]
  %v4412 = vld [vmem:[%s3 + $0x190] sm:$0xff]
  %v4413 = vld [vmem:[%s3 + $0x198] sm:$0xff]
  %v4414 = vld [vmem:[%s3 + $0x1a0] sm:$0xff]
  %v4415 = vld [vmem:[%s3 + $0x1a8] sm:$0xff]
  %v4416 = vld [vmem:[%s3 + $0x1b0] sm:$0xff]
  %v4417 = vld [vmem:[%s3 + $0x1b8] sm:$0xff]
  %v4418 = vld [vmem:[%s3 + $0x1c0] sm:$0xff]
  %v4419 = vld [vmem:[%s3 + $0x1c8] sm:$0xff]
  %v4420 = vld [vmem:[%s3 + $0x1d0] sm:$0xff]
  %v4421 = vld [vmem:[%s3 + $0x1d8] sm:$0xff]
  %v4422 = vld [vmem:[%s3 + $0x1e0] sm:$0xff]
  %v4423 = vld [vmem:[%s3 + $0x1e8] sm:$0xff]
  %v4424 = vld [vmem:[%s3 + $0x1f0] sm:$0xff]
  %v4425 = vld [vmem:[%s3 + $0x1f8] sm:$0xff]
  %v4426 = vld [vmem:[%s3 + $0x200] sm:$0xff]
  %v4427 = vld [vmem:[%s3 + $0x208] sm:$0xff]
  %v4428 = vld [vmem:[%s3 + $0x210] sm:$0xff]
  %v4429 = vld [vmem:[%s3 + $0x218] sm:$0xff]
  %v4430 = vld [vmem:[%s3 + $0x220] sm:$0xff]
  %v4431 = vld [vmem:[%s3 + $0x228] sm:$0xff]
  %v4432 = vld [vmem:[%s3 + $0x230] sm:$0xff]
  %v4433 = vld [vmem:[%s3 + $0x238] sm:$0xff]
  %v4434 = vld [vmem:[%s3 + $0x240] sm:$0xff]
  %v4435 = vld [vmem:[%s3 + $0x248] sm:$0xf]
  %v4436 = vld [vmem:[%s3 + $0x24c] sm:$0xff]
  %v4437 = vld [vmem:[%s3 + $0x254] sm:$0xff]
  %v4438 = vld [vmem:[%s3 + $0x25c] sm:$0xff]
  %v4439 = vld [vmem:[%s3 + $0x264] sm:$0xff]
  %v4440 = vld [vmem:[%s3 + $0x26c] sm:$0xff]
  %v4441 = vld [vmem:[%s3 + $0x274] sm:$0xff]
  %v4442 = vld [vmem:[%s3 + $0x27c] sm:$0xff]
  %v4443 = vld [vmem:[%s3 + $0x284] sm:$0xff]
  %v4444 = vld [vmem:[%s3 + $0x28c] sm:$0xff]
  %v4445 = vld [vmem:[%s3 + $0x294] sm:$0xff]
  %v4446 = vld [vmem:[%s3 + $0x29c] sm:$0xff]
  %v4447 = vld [vmem:[%s3 + $0x2a4] sm:$0xff]
  %v4448 = vld [vmem:[%s3 + $0x2ac] sm:$0xff]
  %v4449 = vld [vmem:[%s3 + $0x2b4] sm:$0xff]
  %v4450 = vld [vmem:[%s3 + $0x2bc] sm:$0xff]
  %v4451 = vld [vmem:[%s3 + $0x2c4] sm:$0xff]
  %v4452 = vld [vmem:[%s3 + $0x2cc] sm:$0xff]
  %v4453 = vld [vmem:[%s3 + $0x2d4] sm:$0xff]
  %v4454 = vld [vmem:[%s3 + $0x2dc] sm:$0xff]
  %v4455 = vld [vmem:[%s3 + $0x2e4] sm:$0xff]
  %v4456 = vld [vmem:[%s3 + $0x2ec] sm:$0xff]
  %v4457 = vld [vmem:[%s3 + $0x2f4] sm:$0xff]
  %v4458 = vld [vmem:[%s3 + $0x2fc] sm:$0xff]
  %v4459 = vld [vmem:[%s3 + $0x304] sm:$0xff]
  %v4460 = vld [vmem:[%s3 + $0x30c] sm:$0xf]
  %v4461 = vld [vmem:[%s3 + $0x310] sm:$0xff]
  %v4462 = vld [vmem:[%s3 + $0x318] sm:$0xff]
  %v4463 = vld [vmem:[%s3 + $0x320] sm:$0xff]
  %v4464 = vld [vmem:[%s3 + $0x328] sm:$0xff]
  %v4465 = vld [vmem:[%s3 + $0x330] sm:$0xff]
  %v4466 = vld [vmem:[%s3 + $0x338] sm:$0xff]
  %v4467 = vld [vmem:[%s3 + $0x340] sm:$0xff]
  %v4468 = vld [vmem:[%s3 + $0x348] sm:$0xff]
  %v4469 = vld [vmem:[%s3 + $0x350] sm:$0xff]
  %v4470 = vld [vmem:[%s3 + $0x358] sm:$0xff]
  %v4471 = vld [vmem:[%s3 + $0x360] sm:$0xff]
  %v4472 = vld [vmem:[%s3 + $0x368] sm:$0xff]
  %v4473 = vld [vmem:[%s3 + $0x370] sm:$0xff]
  %v4474 = vld [vmem:[%s3 + $0x378] sm:$0xff]
  %v4475 = vld [vmem:[%s3 + $0x380] sm:$0xff]
  %v4476 = vld [vmem:[%s3 + $0x388] sm:$0xff]
  %v4477 = vld [vmem:[%s3 + $0x390] sm:$0xff]
  %v4478 = vld [vmem:[%s3 + $0x398] sm:$0xff]
  %v4479 = vld [vmem:[%s3 + $0x3a0] sm:$0xff]
  %v4480 = vld [vmem:[%s3 + $0x3a8] sm:$0xff]
  %v4481 = vld [vmem:[%s3 + $0x3b0] sm:$0xff]
  %v4482 = vld [vmem:[%s3 + $0x3b8] sm:$0xff]
  %v4483 = vld [vmem:[%s3 + $0x3c0] sm:$0xff]
  %v4484 = vld [vmem:[%s3 + $0x3c8] sm:$0xff]
  %v4485 = vld [vmem:[%s3 + $0x3d0] sm:$0xf]
  %v4486 = vld [vmem:[%s3 + $0x3d4] sm:$0xff]
  %v4487 = vld [vmem:[%s3 + $0x3dc] sm:$0xff]
  %v4488 = vld [vmem:[%s3 + $0x3e4] sm:$0xff]
  %v4489 = vld [vmem:[%s3 + $0x3ec] sm:$0xff]
  %v4490 = vld [vmem:[%s3 + $0x3f4] sm:$0xff]
  %v4491 = vld [vmem:[%s3 + $0x3fc] sm:$0xff]
  %v4492 = vld [vmem:[%s3 + $0x404] sm:$0xff]
  %v4493 = vld [vmem:[%s3 + $0x40c] sm:$0xff]
  %v4494 = vld [vmem:[%s3 + $0x414] sm:$0xff]
  %v4495 = vld [vmem:[%s3 + $0x41c] sm:$0xff]
  %v4496 = vld [vmem:[%s3 + $0x424] sm:$0xff]
  %v4497 = vld [vmem:[%s3 + $0x42c] sm:$0xff]
  %v4498 = vld [vmem:[%s3 + $0x434] sm:$0xff]
  %v4499 = vld [vmem:[%s3 + $0x43c] sm:$0xff]
  %v4500 = vld [vmem:[%s3 + $0x444] sm:$0xff]
  %v4501 = vld [vmem:[%s3 + $0x44c] sm:$0xff]
  %v4502 = vld [vmem:[%s3 + $0x454] sm:$0xff]
  %v4503 = vld [vmem:[%s3 + $0x45c] sm:$0xff]
  %v4504 = vld [vmem:[%s3 + $0x464] sm:$0xff]
  %v4505 = vld [vmem:[%s3 + $0x46c] sm:$0xff]
  %v4506 = vld [vmem:[%s3 + $0x474] sm:$0xff]
  %v4507 = vld [vmem:[%s3 + $0x47c] sm:$0xff]
  %v4508 = vld [vmem:[%s3 + $0x484] sm:$0xff]
  %v4509 = vld [vmem:[%s3 + $0x48c] sm:$0xff]
  %v4510 = vld [vmem:[%s3 + $0x494] sm:$0xf]
  %v4511 = vld [vmem:[%s3 + $0x498] sm:$0xff]
  %v4512 = vld [vmem:[%s3 + $0x4a0] sm:$0xff]
  %v4513 = vld [vmem:[%s3 + $0x4a8] sm:$0xff]
  %v4514 = vld [vmem:[%s3 + $0x4b0] sm:$0xff]
  %v4515 = vld [vmem:[%s3 + $0x4b8] sm:$0xff]
  %v4516 = vld [vmem:[%s3 + $0x4c0] sm:$0xff]
  %v4517 = vld [vmem:[%s3 + $0x4c8] sm:$0xff]
  %v4518 = vld [vmem:[%s3 + $0x4d0] sm:$0xff]
  %v4519 = vld [vmem:[%s3 + $0x4d8] sm:$0xff]
  %v4520 = vld [vmem:[%s3 + $0x4e0] sm:$0xff]
  %v4521 = vld [vmem:[%s3 + $0x4e8] sm:$0xff]
  %v4522 = vld [vmem:[%s3 + $0x4f0] sm:$0xff]
  %v4523 = vld [vmem:[%s3 + $0x4f8] sm:$0xff]
  %v4524 = vld [vmem:[%s3 + $0x500] sm:$0xff]
  %v4525 = vld [vmem:[%s3 + $0x508] sm:$0xff]
  %v4526 = vld [vmem:[%s3 + $0x510] sm:$0xff]
  %v4527 = vld [vmem:[%s3 + $0x518] sm:$0xff]
  %v4528 = vld [vmem:[%s3 + $0x520] sm:$0xff]
  %v4529 = vld [vmem:[%s3 + $0x528] sm:$0xff]
  %v4530 = vld [vmem:[%s3 + $0x530] sm:$0xff]
  %v4531 = vld [vmem:[%s3 + $0x538] sm:$0xff]
  %v4532 = vld [vmem:[%s3 + $0x540] sm:$0xff]
  %v4533 = vld [vmem:[%s3 + $0x548] sm:$0xff]
  %v4534 = vld [vmem:[%s3 + $0x550] sm:$0xff]
  %v4535 = vld [vmem:[%s3 + $0x558] sm:$0xf]
  %v4536 = vld [vmem:[%s3 + $0x55c] sm:$0xff]
  %v4537 = vld [vmem:[%s3 + $0x564] sm:$0xff]
  %v4538 = vld [vmem:[%s3 + $0x56c] sm:$0xff]
  %v4539 = vld [vmem:[%s3 + $0x574] sm:$0xff]
  %v4540 = vld [vmem:[%s3 + $0x57c] sm:$0xff]
  %v4541 = vld [vmem:[%s3 + $0x584] sm:$0xff]
  %v4542 = vld [vmem:[%s3 + $0x58c] sm:$0xff]
  %v4543 = vld [vmem:[%s3 + $0x594] sm:$0xff]
  %v4544 = vld [vmem:[%s3 + $0x59c] sm:$0xff]
  %v4545 = vld [vmem:[%s3 + $0x5a4] sm:$0xff]
  %v4546 = vld [vmem:[%s3 + $0x5ac] sm:$0xff]
  %v4547 = vld [vmem:[%s3 + $0x5b4] sm:$0xff]
  %v4548 = vld [vmem:[%s3 + $0x5bc] sm:$0xff]
  %v4549 = vld [vmem:[%s3 + $0x5c4] sm:$0xff]
  %v4550 = vld [vmem:[%s3 + $0x5cc] sm:$0xff]
  %v4551 = vld [vmem:[%s3 + $0x5d4] sm:$0xff]
  %v4552 = vld [vmem:[%s3 + $0x5dc] sm:$0xff]
  %v4553 = vld [vmem:[%s3 + $0x5e4] sm:$0xff]
  %v4554 = vld [vmem:[%s3 + $0x5ec] sm:$0xff]
  %v4555 = vld [vmem:[%s3 + $0x5f4] sm:$0xff]
  %v4556 = vld [vmem:[%s3 + $0x5fc] sm:$0xff]
  %v4557 = vld [vmem:[%s3 + $0x604] sm:$0xff]
  %v4558 = vld [vmem:[%s3 + $0x60c] sm:$0xff]
  %v4559 = vld [vmem:[%s3 + $0x614] sm:$0xff]
  %v4560 = vld [vmem:[%s3 + $0x61c] sm:$0xf]
  %v4561 = vld [vmem:[%s3 + $0x620] sm:$0xff]
  %v4562 = vld [vmem:[%s3 + $0x628] sm:$0xff]
  %v4563 = vld [vmem:[%s3 + $0x630] sm:$0xff]
  %v4564 = vld [vmem:[%s3 + $0x638] sm:$0xff]
  %v4565 = vld [vmem:[%s3 + $0x640] sm:$0xff]
  %v4566 = vld [vmem:[%s3 + $0x648] sm:$0xff]
  %v4567 = vld [vmem:[%s3 + $0x650] sm:$0xff]
  %v4568 = vld [vmem:[%s3 + $0x658] sm:$0xff]
  %v4569 = vld [vmem:[%s3 + $0x660] sm:$0xff]
  %v4570 = vld [vmem:[%s3 + $0x668] sm:$0xff]
  %v4571 = vld [vmem:[%s3 + $0x670] sm:$0xff]
  %v4572 = vld [vmem:[%s3 + $0x678] sm:$0xff]
  %v4573 = vld [vmem:[%s3 + $0x680] sm:$0xff]
  %v4574 = vld [vmem:[%s3 + $0x688] sm:$0xff]
  %v4575 = vld [vmem:[%s3 + $0x690] sm:$0xff]
  %v4576 = vld [vmem:[%s3 + $0x698] sm:$0xff]
  %v4577 = vld [vmem:[%s3 + $0x6a0] sm:$0xff]
  %v4578 = vld [vmem:[%s3 + $0x6a8] sm:$0xff]
  %v4579 = vld [vmem:[%s3 + $0x6b0] sm:$0xff]
  %v4580 = vld [vmem:[%s3 + $0x6b8] sm:$0xff]
  %v4581 = vld [vmem:[%s3 + $0x6c0] sm:$0xff]
  %v4582 = vld [vmem:[%s3 + $0x6c8] sm:$0xff]
  %v4583 = vld [vmem:[%s3 + $0x6d0] sm:$0xff]
  %v4584 = vld [vmem:[%s3 + $0x6d8] sm:$0xff]
  %v4585 = vld [vmem:[%s3 + $0x6e0] sm:$0xf]
  %v4586 = vld [vmem:[%s3 + $0x6e4] sm:$0xff]
  %v4587 = vld [vmem:[%s3 + $0x6ec] sm:$0xff]
  %v4588 = vld [vmem:[%s3 + $0x6f4] sm:$0xff]
  %v4589 = vld [vmem:[%s3 + $0x6fc] sm:$0xff]
  %v4590 = vld [vmem:[%s3 + $0x704] sm:$0xff]
  %v4591 = vld [vmem:[%s3 + $0x70c] sm:$0xff]
  %v4592 = vld [vmem:[%s3 + $0x714] sm:$0xff]
  %v4593 = vld [vmem:[%s3 + $0x71c] sm:$0xff]
  %v4594 = vld [vmem:[%s3 + $0x724] sm:$0xff]
  %v4595 = vld [vmem:[%s3 + $0x72c] sm:$0xff]
  %v4596 = vld [vmem:[%s3 + $0x734] sm:$0xff]
  %v4597 = vld [vmem:[%s3 + $0x73c] sm:$0xff]
  %v4598 = vld [vmem:[%s3 + $0x744] sm:$0xff]
  %v4599 = vld [vmem:[%s3 + $0x74c] sm:$0xff]
  %v4600 = vld [vmem:[%s3 + $0x754] sm:$0xff]
  %v4601 = vld [vmem:[%s3 + $0x75c] sm:$0xff]
  %v4602 = vld [vmem:[%s3 + $0x764] sm:$0xff]
  %v4603 = vld [vmem:[%s3 + $0x76c] sm:$0xff]
  %v4604 = vld [vmem:[%s3 + $0x774] sm:$0xff]
  %v4605 = vld [vmem:[%s3 + $0x77c] sm:$0xff]
  %v4606 = vld [vmem:[%s3 + $0x784] sm:$0xff]
  %v4607 = vld [vmem:[%s3 + $0x78c] sm:$0xff]
  %v4608 = vld [vmem:[%s3 + $0x794] sm:$0xff]
  %v4609 = vld [vmem:[%s3 + $0x79c] sm:$0xff]
  %v4610 = vld [vmem:[%s3 + $0x7a4] sm:$0xf]
  %v4611 = vld [vmem:[%s3 + $0x7a8] sm:$0xff]
  %v4612 = vld [vmem:[%s3 + $0x7b0] sm:$0xff]
  %v4613 = vld [vmem:[%s3 + $0x7b8] sm:$0xff]
  %v4614 = vld [vmem:[%s3 + $0x7c0] sm:$0xff]
  %v4615 = vld [vmem:[%s3 + $0x7c8] sm:$0xff]
  %v4616 = vld [vmem:[%s3 + $0x7d0] sm:$0xff]
  %v4617 = vld [vmem:[%s3 + $0x7d8] sm:$0xff]
  %v4618 = vld [vmem:[%s3 + $0x7e0] sm:$0xff]
  %v4619 = vld [vmem:[%s3 + $0x7e8] sm:$0xff]
  %v4620 = vld [vmem:[%s3 + $0x7f0] sm:$0xff]
  %v4621 = vld [vmem:[%s3 + $0x7f8] sm:$0xff]
  %v4622 = vld [vmem:[%s3 + $0x800] sm:$0xff]
  %v4623 = vld [vmem:[%s3 + $0x808] sm:$0xff]
  %v4624 = vld [vmem:[%s3 + $0x810] sm:$0xff]
  %v4625 = vld [vmem:[%s3 + $0x818] sm:$0xff]
  %v4626 = vld [vmem:[%s3 + $0x820] sm:$0xff]
  %v4627 = vld [vmem:[%s3 + $0x828] sm:$0xff]
  %v4628 = vld [vmem:[%s3 + $0x830] sm:$0xff]
  %v4629 = vld [vmem:[%s3 + $0x838] sm:$0xff]
  %v4630 = vld [vmem:[%s3 + $0x840] sm:$0xff]
  %v4631 = vld [vmem:[%s3 + $0x848] sm:$0xff]
  %v4632 = vld [vmem:[%s3 + $0x850] sm:$0xff]
  %v4633 = vld [vmem:[%s3 + $0x858] sm:$0xff]
  %v4634 = vld [vmem:[%s3 + $0x860] sm:$0xff]
  %v4635 = vld [vmem:[%s3 + $0x868] sm:$0xf]
  %v4636 = vld [vmem:[%s3 + $0x86c] sm:$0xff]
  %v4637 = vld [vmem:[%s3 + $0x874] sm:$0xff]
  %v4638 = vld [vmem:[%s3 + $0x87c] sm:$0xff]
  %v4639 = vld [vmem:[%s3 + $0x884] sm:$0xff]
  %v4640 = vld [vmem:[%s3 + $0x88c] sm:$0xff]
  %v4641 = vld [vmem:[%s3 + $0x894] sm:$0xff]
  %v4642 = vld [vmem:[%s3 + $0x89c] sm:$0xff]
  %v4643 = vld [vmem:[%s3 + $0x8a4] sm:$0xff]
  %v4644 = vld [vmem:[%s3 + $0x8ac] sm:$0xff]
  %v4645 = vld [vmem:[%s3 + $0x8b4] sm:$0xff]
  %v4646 = vld [vmem:[%s3 + $0x8bc] sm:$0xff]
  %v4647 = vld [vmem:[%s3 + $0x8c4] sm:$0xff]
  %v4648 = vld [vmem:[%s3 + $0x8cc] sm:$0xff]
  %v4649 = vld [vmem:[%s3 + $0x8d4] sm:$0xff]
  %v4650 = vld [vmem:[%s3 + $0x8dc] sm:$0xff]
  %v4651 = vld [vmem:[%s3 + $0x8e4] sm:$0xff]
  %v4652 = vld [vmem:[%s3 + $0x8ec] sm:$0xff]
  %v4653 = vld [vmem:[%s3 + $0x8f4] sm:$0xff]
  %v4654 = vld [vmem:[%s3 + $0x8fc] sm:$0xff]
  %v4655 = vld [vmem:[%s3 + $0x904] sm:$0xff]
  %v4656 = vld [vmem:[%s3 + $0x90c] sm:$0xff]
  %v4657 = vld [vmem:[%s3 + $0x914] sm:$0xff]
  %v4658 = vld [vmem:[%s3 + $0x91c] sm:$0xff]
  %v4659 = vld [vmem:[%s3 + $0x924] sm:$0xff]
  %v4660 = vld [vmem:[%s3 + $0x92c] sm:$0xf]
  %v4661 = vld [vmem:[%s3 + $0x930] sm:$0xff]
  %v4662 = vld [vmem:[%s3 + $0x938] sm:$0xff]
  %v4663 = vld [vmem:[%s3 + $0x940] sm:$0xff]
  %v4664 = vld [vmem:[%s3 + $0x948] sm:$0xff]
  %v4665 = vld [vmem:[%s3 + $0x950] sm:$0xff]
  %v4666 = vld [vmem:[%s3 + $0x958] sm:$0xff]
  %v4667 = vld [vmem:[%s3 + $0x960] sm:$0xff]
  %v4668 = vld [vmem:[%s3 + $0x968] sm:$0xff]
  %v4669 = vld [vmem:[%s3 + $0x970] sm:$0xff]
  %v4670 = vld [vmem:[%s3 + $0x978] sm:$0xff]
  %v4671 = vld [vmem:[%s3 + $0x980] sm:$0xff]
  %v4672 = vld [vmem:[%s3 + $0x988] sm:$0xff]
  %v4673 = vld [vmem:[%s3 + $0x990] sm:$0xff]
  %v4674 = vld [vmem:[%s3 + $0x998] sm:$0xff]
  %v4675 = vld [vmem:[%s3 + $0x9a0] sm:$0xff]
  %v4676 = vld [vmem:[%s3 + $0x9a8] sm:$0xff]
  %v4677 = vld [vmem:[%s3 + $0x9b0] sm:$0xff]
  %v4678 = vld [vmem:[%s3 + $0x9b8] sm:$0xff]
  %v4679 = vld [vmem:[%s3 + $0x9c0] sm:$0xff]
  %v4680 = vld [vmem:[%s3 + $0x9c8] sm:$0xff]
  %v4681 = vld [vmem:[%s3 + $0x9d0] sm:$0xff]
  %v4682 = vld [vmem:[%s3 + $0x9d8] sm:$0xff]
  %v4683 = vld [vmem:[%s3 + $0x9e0] sm:$0xff]
  %v4684 = vld [vmem:[%s3 + $0x9e8] sm:$0xff]
  %v4685 = vld [vmem:[%s3 + $0x9f0] sm:$0xf]
  %v4686 = vld [vmem:[%s3 + $0x9f4] sm:$0xff]
  %v4687 = vld [vmem:[%s3 + $0x9fc] sm:$0xff]
  %v4688 = vld [vmem:[%s3 + $0xa04] sm:$0xff]
  %v4689 = vld [vmem:[%s3 + $0xa0c] sm:$0xff]
  %v4690 = vld [vmem:[%s3 + $0xa14] sm:$0xff]
  %v4691 = vld [vmem:[%s3 + $0xa1c] sm:$0xff]
  %v4692 = vld [vmem:[%s3 + $0xa24] sm:$0xff]
  %v4693 = vld [vmem:[%s3 + $0xa2c] sm:$0xff]
  %v4694 = vld [vmem:[%s3 + $0xa34] sm:$0xff]
  %v4695 = vld [vmem:[%s3 + $0xa3c] sm:$0xff]
  %v4696 = vld [vmem:[%s3 + $0xa44] sm:$0xff]
  %v4697 = vld [vmem:[%s3 + $0xa4c] sm:$0xff]
  %v4698 = vld [vmem:[%s3 + $0xa54] sm:$0xff]
  %v4699 = vld [vmem:[%s3 + $0xa5c] sm:$0xff]
  %v4700 = vld [vmem:[%s3 + $0xa64] sm:$0xff]
  %v4701 = vld [vmem:[%s3 + $0xa6c] sm:$0xff]
  %v4702 = vld [vmem:[%s3 + $0xa74] sm:$0xff]
  %v4703 = vld [vmem:[%s3 + $0xa7c] sm:$0xff]
  %v4704 = vld [vmem:[%s3 + $0xa84] sm:$0xff]
  %v4705 = vld [vmem:[%s3 + $0xa8c] sm:$0xff]
  %v4706 = vld [vmem:[%s3 + $0xa94] sm:$0xff]
  %v4707 = vld [vmem:[%s3 + $0xa9c] sm:$0xff]
  %v4708 = vld [vmem:[%s3 + $0xaa4] sm:$0xff]
  %v4709 = vld [vmem:[%s3 + $0xaac] sm:$0xff]
  %v4710 = vld [vmem:[%s3 + $0xab4] sm:$0xf]
  %v4711 = vld [vmem:[%s3 + $0xab8] sm:$0xff]
  %v4712 = vld [vmem:[%s3 + $0xac0] sm:$0xff]
  %v4713 = vld [vmem:[%s3 + $0xac8] sm:$0xff]
  %v4714 = vld [vmem:[%s3 + $0xad0] sm:$0xff]
  %v4715 = vld [vmem:[%s3 + $0xad8] sm:$0xff]
  %v4716 = vld [vmem:[%s3 + $0xae0] sm:$0xff]
  %v4717 = vld [vmem:[%s3 + $0xae8] sm:$0xff]
  %v4718 = vld [vmem:[%s3 + $0xaf0] sm:$0xff]
  %v4719 = vld [vmem:[%s3 + $0xaf8] sm:$0xff]
  %v4720 = vld [vmem:[%s3 + $0xb00] sm:$0xff]
  %v4721 = vld [vmem:[%s3 + $0xb08] sm:$0xff]
  %v4722 = vld [vmem:[%s3 + $0xb10] sm:$0xff]
  %v4723 = vld [vmem:[%s3 + $0xb18] sm:$0xff]
  %v4724 = vld [vmem:[%s3 + $0xb20] sm:$0xff]
  %v4725 = vld [vmem:[%s3 + $0xb28] sm:$0xff]
  %v4726 = vld [vmem:[%s3 + $0xb30] sm:$0xff]
  %v4727 = vld [vmem:[%s3 + $0xb38] sm:$0xff]
  %v4728 = vld [vmem:[%s3 + $0xb40] sm:$0xff]
  %v4729 = vld [vmem:[%s3 + $0xb48] sm:$0xff]
  %v4730 = vld [vmem:[%s3 + $0xb50] sm:$0xff]
  %v4731 = vld [vmem:[%s3 + $0xb58] sm:$0xff]
  %v4732 = vld [vmem:[%s3 + $0xb60] sm:$0xff]
  %v4733 = vld [vmem:[%s3 + $0xb68] sm:$0xff]
  %v4734 = vld [vmem:[%s3 + $0xb70] sm:$0xff]
  %v4735 = vld [vmem:[%s3 + $0xb78] sm:$0xf]
  %v4736 = vld [vmem:[%s3 + $0xb7c] sm:$0xff]
  %v4737 = vld [vmem:[%s3 + $0xb84] sm:$0xff]
  %v4738 = vld [vmem:[%s3 + $0xb8c] sm:$0xff]
  %v4739 = vld [vmem:[%s3 + $0xb94] sm:$0xff]
  %v4740 = vld [vmem:[%s3 + $0xb9c] sm:$0xff]
  %v4741 = vld [vmem:[%s3 + $0xba4] sm:$0xff]
  %v4742 = vld [vmem:[%s3 + $0xbac] sm:$0xff]
  %v4743 = vld [vmem:[%s3 + $0xbb4] sm:$0xff]
  %v4744 = vld [vmem:[%s3 + $0xbbc] sm:$0xff]
  %v4745 = vld [vmem:[%s3 + $0xbc4] sm:$0xff]
  %v4746 = vld [vmem:[%s3 + $0xbcc] sm:$0xff]
  %v4747 = vld [vmem:[%s3 + $0xbd4] sm:$0xff]
  %v4748 = vld [vmem:[%s3 + $0xbdc] sm:$0xff]
  %v4749 = vld [vmem:[%s3 + $0xbe4] sm:$0xff]
  %v4750 = vld [vmem:[%s3 + $0xbec] sm:$0xff]
  %v4751 = vld [vmem:[%s3 + $0xbf4] sm:$0xff]
  %v4752 = vld [vmem:[%s3 + $0xbfc] sm:$0xff]
  %v4753 = vld [vmem:[%s3 + $0xc04] sm:$0xff]
  %v4754 = vld [vmem:[%s3 + $0xc0c] sm:$0xff]
  %v4755 = vld [vmem:[%s3 + $0xc14] sm:$0xff]
  %v4756 = vld [vmem:[%s3 + $0xc1c] sm:$0xff]
  %v4757 = vld [vmem:[%s3 + $0xc24] sm:$0xff]
  %v4758 = vld [vmem:[%s3 + $0xc2c] sm:$0xff]
  %v4759 = vld [vmem:[%s3 + $0xc34] sm:$0xff]
  %v4760 = vld [vmem:[%s3 + $0xc3c] sm:$0xf]
  %v4761 = vld [vmem:[%s4] sm:$0xff]
  %v4762 = vld [vmem:[%s4 + $0x8] sm:$0xff]
  %v4763 = vld [vmem:[%s4 + $0x10] sm:$0xff]
  %v4764 = vld [vmem:[%s4 + $0x18] sm:$0xff]
  %v4765 = vld [vmem:[%s4 + $0x20] sm:$0xff]
  %v4766 = vld [vmem:[%s4 + $0x28] sm:$0xff]
  %v4767 = vld [vmem:[%s4 + $0x30] sm:$0x1]
  %v4768 = vunpack.c.l.bf16 %v4761
  %v4769 = vunpack.c.h.bf16 %v4761
  %v4770 = vunpack.c.l.bf16 %v4762
  %v4771 = vunpack.c.h.bf16 %v4762
  %v4772 = vunpack.c.l.bf16 %v4763
  %v4773 = vunpack.c.h.bf16 %v4763
  %v4774 = vunpack.c.l.bf16 %v4764
  %v4775 = vunpack.c.h.bf16 %v4764
  %v4776 = vunpack.c.l.bf16 %v4765
  %v4777 = vunpack.c.h.bf16 %v4765
  %v4778 = vunpack.c.l.bf16 %v4766
  %v4779 = vunpack.c.h.bf16 %v4766
  %v4780 = vunpack.c.l.bf16 %v4767
  %v4794 = vlaneseq
  %v4795 = vshrl.u32 %v4794, 7
  %v4796 = vsub.s32 0, %v4795
  %v4797 = vrot.slane %v4768, %v4796
  %v4798 = vlaneseq
  %v4799 = vshrl.u32 %v4798, 7
  %v4800 = vsub.s32 2, %v4799
  %v4801 = vrot.slane %v4768, %v4800
  %v4802 = vlaneseq
  %v4803 = vshrl.u32 %v4802, 7
  %v4804 = vsub.s32 4, %v4803
  %v4805 = vrot.slane %v4768, %v4804
  %v4806 = vlaneseq
  %v4807 = vshrl.u32 %v4806, 7
  %v4808 = vsub.s32 6, %v4807
  %v4809 = vrot.slane %v4768, %v4808
  %v4810 = vlaneseq
  %v4811 = vshrl.u32 %v4810, 7
  %v4812 = vsub.s32 0, %v4811
  %v4813 = vrot.slane %v4769, %v4812
  %v4814 = vlaneseq
  %v4815 = vshrl.u32 %v4814, 7
  %v4816 = vsub.s32 2, %v4815
  %v4817 = vrot.slane %v4769, %v4816
  %v4818 = vlaneseq
  %v4819 = vshrl.u32 %v4818, 7
  %v4820 = vsub.s32 4, %v4819
  %v4821 = vrot.slane %v4769, %v4820
  %v4822 = vlaneseq
  %v4823 = vshrl.u32 %v4822, 7
  %v4824 = vsub.s32 6, %v4823
  %v4825 = vrot.slane %v4769, %v4824
  %v4826 = vlaneseq
  %v4827 = vshrl.u32 %v4826, 7
  %v4828 = vsub.s32 0, %v4827
  %v4829 = vrot.slane %v4770, %v4828
  %v4830 = vlaneseq
  %v4831 = vshrl.u32 %v4830, 7
  %v4832 = vsub.s32 2, %v4831
  %v4833 = vrot.slane %v4770, %v4832
  %v4834 = vlaneseq
  %v4835 = vshrl.u32 %v4834, 7
  %v4836 = vsub.s32 4, %v4835
  %v4837 = vrot.slane %v4770, %v4836
  %v4838 = vlaneseq
  %v4839 = vshrl.u32 %v4838, 7
  %v4840 = vsub.s32 6, %v4839
  %v4841 = vrot.slane %v4770, %v4840
  %v4842 = vlaneseq
  %v4843 = vshrl.u32 %v4842, 7
  %v4844 = vsub.s32 0, %v4843
  %v4845 = vrot.slane %v4771, %v4844
  %v4846 = vlaneseq
  %v4847 = vshrl.u32 %v4846, 7
  %v4848 = vsub.s32 2, %v4847
  %v4849 = vrot.slane %v4771, %v4848
  %v4850 = vlaneseq
  %v4851 = vshrl.u32 %v4850, 7
  %v4852 = vsub.s32 4, %v4851
  %v4853 = vrot.slane %v4771, %v4852
  %v4854 = vlaneseq
  %v4855 = vshrl.u32 %v4854, 7
  %v4856 = vsub.s32 6, %v4855
  %v4857 = vrot.slane %v4771, %v4856
  %v4858 = vlaneseq
  %v4859 = vshrl.u32 %v4858, 7
  %v4860 = vsub.s32 0, %v4859
  %v4861 = vrot.slane %v4772, %v4860
  %v4862 = vlaneseq
  %v4863 = vshrl.u32 %v4862, 7
  %v4864 = vsub.s32 2, %v4863
  %v4865 = vrot.slane %v4772, %v4864
  %v4866 = vlaneseq
  %v4867 = vshrl.u32 %v4866, 7
  %v4868 = vsub.s32 4, %v4867
  %v4869 = vrot.slane %v4772, %v4868
  %v4870 = vlaneseq
  %v4871 = vshrl.u32 %v4870, 7
  %v4872 = vsub.s32 6, %v4871
  %v4873 = vrot.slane %v4772, %v4872
  %v4874 = vlaneseq
  %v4875 = vshrl.u32 %v4874, 7
  %v4876 = vsub.s32 0, %v4875
  %v4877 = vrot.slane %v4773, %v4876
  %v4878 = vlaneseq
  %v4879 = vshrl.u32 %v4878, 7
  %v4880 = vsub.s32 2, %v4879
  %v4881 = vrot.slane %v4773, %v4880
  %v4882 = vlaneseq
  %v4883 = vshrl.u32 %v4882, 7
  %v4884 = vsub.s32 4, %v4883
  %v4885 = vrot.slane %v4773, %v4884
  %v4886 = vlaneseq
  %v4887 = vshrl.u32 %v4886, 7
  %v4888 = vsub.s32 6, %v4887
  %v4889 = vrot.slane %v4773, %v4888
  %v4890 = vlaneseq
  %v4891 = vshrl.u32 %v4890, 7
  %v4892 = vsub.s32 0, %v4891
  %v4893 = vrot.slane %v4774, %v4892
  %v4894 = vlaneseq
  %v4895 = vshrl.u32 %v4894, 7
  %v4896 = vsub.s32 2, %v4895
  %v4897 = vrot.slane %v4774, %v4896
  %v4898 = vlaneseq
  %v4899 = vshrl.u32 %v4898, 7
  %v4900 = vsub.s32 4, %v4899
  %v4901 = vrot.slane %v4774, %v4900
  %v4902 = vlaneseq
  %v4903 = vshrl.u32 %v4902, 7
  %v4904 = vsub.s32 6, %v4903
  %v4905 = vrot.slane %v4774, %v4904
  %v4906 = vlaneseq
  %v4907 = vshrl.u32 %v4906, 7
  %v4908 = vsub.s32 0, %v4907
  %v4909 = vrot.slane %v4775, %v4908
  %v4910 = vlaneseq
  %v4911 = vshrl.u32 %v4910, 7
  %v4912 = vsub.s32 2, %v4911
  %v4913 = vrot.slane %v4775, %v4912
  %v4914 = vlaneseq
  %v4915 = vshrl.u32 %v4914, 7
  %v4916 = vsub.s32 4, %v4915
  %v4917 = vrot.slane %v4775, %v4916
  %v4918 = vlaneseq
  %v4919 = vshrl.u32 %v4918, 7
  %v4920 = vsub.s32 6, %v4919
  %v4921 = vrot.slane %v4775, %v4920
  %v4922 = vlaneseq
  %v4923 = vshrl.u32 %v4922, 7
  %v4924 = vsub.s32 0, %v4923
  %v4925 = vrot.slane %v4776, %v4924
  %v4926 = vlaneseq
  %v4927 = vshrl.u32 %v4926, 7
  %v4928 = vsub.s32 2, %v4927
  %v4929 = vrot.slane %v4776, %v4928
  %v4930 = vlaneseq
  %v4931 = vshrl.u32 %v4930, 7
  %v4932 = vsub.s32 4, %v4931
  %v4933 = vrot.slane %v4776, %v4932
  %v4934 = vlaneseq
  %v4935 = vshrl.u32 %v4934, 7
  %v4936 = vsub.s32 6, %v4935
  %v4937 = vrot.slane %v4776, %v4936
  %v4938 = vlaneseq
  %v4939 = vshrl.u32 %v4938, 7
  %v4940 = vsub.s32 0, %v4939
  %v4941 = vrot.slane %v4777, %v4940
  %v4942 = vlaneseq
  %v4943 = vshrl.u32 %v4942, 7
  %v4944 = vsub.s32 2, %v4943
  %v4945 = vrot.slane %v4777, %v4944
  %v4946 = vlaneseq
  %v4947 = vshrl.u32 %v4946, 7
  %v4948 = vsub.s32 4, %v4947
  %v4949 = vrot.slane %v4777, %v4948
  %v4950 = vlaneseq
  %v4951 = vshrl.u32 %v4950, 7
  %v4952 = vsub.s32 6, %v4951
  %v4953 = vrot.slane %v4777, %v4952
  %v4954 = vlaneseq
  %v4955 = vshrl.u32 %v4954, 7
  %v4956 = vsub.s32 0, %v4955
  %v4957 = vrot.slane %v4778, %v4956
  %v4958 = vlaneseq
  %v4959 = vshrl.u32 %v4958, 7
  %v4960 = vsub.s32 2, %v4959
  %v4961 = vrot.slane %v4778, %v4960
  %v4962 = vlaneseq
  %v4963 = vshrl.u32 %v4962, 7
  %v4964 = vsub.s32 4, %v4963
  %v4965 = vrot.slane %v4778, %v4964
  %v4966 = vlaneseq
  %v4967 = vshrl.u32 %v4966, 7
  %v4968 = vsub.s32 6, %v4967
  %v4969 = vrot.slane %v4778, %v4968
  %v4970 = vlaneseq
  %v4971 = vshrl.u32 %v4970, 7
  %v4972 = vsub.s32 0, %v4971
  %v4973 = vrot.slane %v4779, %v4972
  %v4974 = vlaneseq
  %v4975 = vshrl.u32 %v4974, 7
  %v4976 = vsub.s32 2, %v4975
  %v4977 = vrot.slane %v4779, %v4976
  %v4978 = vlaneseq
  %v4979 = vshrl.u32 %v4978, 7
  %v4980 = vsub.s32 4, %v4979
  %v4981 = vrot.slane %v4779, %v4980
  %v4982 = vlaneseq
  %v4983 = vshrl.u32 %v4982, 7
  %v4984 = vsub.s32 6, %v4983
  %v4985 = vrot.slane %v4779, %v4984
  %v4986 = vlaneseq
  %v4987 = vshrl.u32 %v4986, 7
  %v4988 = vsub.s32 0, %v4987
  %v4989 = vrot.slane %v4780, %v4988
  %v5039 = vlaneseq
  %v5040 = vshrl.u32 %v5039, 7
  %v5041 = vsub.s32 0, %v5040
  %v5042 = vrot.slane %v4797, %v5041
  %v5043 = vlaneseq
  %v5044 = vshrl.u32 %v5043, 7
  %v5045 = vsub.s32 0, %v5044
  %v5046 = vrot.slane %v4801, %v5045
  %v5047 = vlaneseq
  %v5048 = vshrl.u32 %v5047, 7
  %v5049 = vsub.s32 0, %v5048
  %v5050 = vrot.slane %v4805, %v5049
  %v5051 = vlaneseq
  %v5052 = vshrl.u32 %v5051, 7
  %v5053 = vsub.s32 0, %v5052
  %v5054 = vrot.slane %v4809, %v5053
  %v5055 = vlaneseq
  %v5056 = vshrl.u32 %v5055, 7
  %v5057 = vsub.s32 0, %v5056
  %v5058 = vrot.slane %v4813, %v5057
  %v5059 = vlaneseq
  %v5060 = vshrl.u32 %v5059, 7
  %v5061 = vsub.s32 0, %v5060
  %v5062 = vrot.slane %v4817, %v5061
  %v5063 = vlaneseq
  %v5064 = vshrl.u32 %v5063, 7
  %v5065 = vsub.s32 0, %v5064
  %v5066 = vrot.slane %v4821, %v5065
  %v5067 = vlaneseq
  %v5068 = vshrl.u32 %v5067, 7
  %v5069 = vsub.s32 0, %v5068
  %v5070 = vrot.slane %v4825, %v5069
  %v5071 = vlaneseq
  %v5072 = vshrl.u32 %v5071, 7
  %v5073 = vsub.s32 0, %v5072
  %v5074 = vrot.slane %v4829, %v5073
  %v5075 = vlaneseq
  %v5076 = vshrl.u32 %v5075, 7
  %v5077 = vsub.s32 0, %v5076
  %v5078 = vrot.slane %v4833, %v5077
  %v5079 = vlaneseq
  %v5080 = vshrl.u32 %v5079, 7
  %v5081 = vsub.s32 0, %v5080
  %v5082 = vrot.slane %v4837, %v5081
  %v5083 = vlaneseq
  %v5084 = vshrl.u32 %v5083, 7
  %v5085 = vsub.s32 0, %v5084
  %v5086 = vrot.slane %v4841, %v5085
  %v5087 = vlaneseq
  %v5088 = vshrl.u32 %v5087, 7
  %v5089 = vsub.s32 0, %v5088
  %v5090 = vrot.slane %v4845, %v5089
  %v5091 = vlaneseq
  %v5092 = vshrl.u32 %v5091, 7
  %v5093 = vsub.s32 0, %v5092
  %v5094 = vrot.slane %v4849, %v5093
  %v5095 = vlaneseq
  %v5096 = vshrl.u32 %v5095, 7
  %v5097 = vsub.s32 0, %v5096
  %v5098 = vrot.slane %v4853, %v5097
  %v5099 = vlaneseq
  %v5100 = vshrl.u32 %v5099, 7
  %v5101 = vsub.s32 0, %v5100
  %v5102 = vrot.slane %v4857, %v5101
  %v5103 = vlaneseq
  %v5104 = vshrl.u32 %v5103, 7
  %v5105 = vsub.s32 0, %v5104
  %v5106 = vrot.slane %v4861, %v5105
  %v5107 = vlaneseq
  %v5108 = vshrl.u32 %v5107, 7
  %v5109 = vsub.s32 0, %v5108
  %v5110 = vrot.slane %v4865, %v5109
  %v5111 = vlaneseq
  %v5112 = vshrl.u32 %v5111, 7
  %v5113 = vsub.s32 0, %v5112
  %v5114 = vrot.slane %v4869, %v5113
  %v5115 = vlaneseq
  %v5116 = vshrl.u32 %v5115, 7
  %v5117 = vsub.s32 0, %v5116
  %v5118 = vrot.slane %v4873, %v5117
  %v5119 = vlaneseq
  %v5120 = vshrl.u32 %v5119, 7
  %v5121 = vsub.s32 0, %v5120
  %v5122 = vrot.slane %v4877, %v5121
  %v5123 = vlaneseq
  %v5124 = vshrl.u32 %v5123, 7
  %v5125 = vsub.s32 0, %v5124
  %v5126 = vrot.slane %v4881, %v5125
  %v5127 = vlaneseq
  %v5128 = vshrl.u32 %v5127, 7
  %v5129 = vsub.s32 0, %v5128
  %v5130 = vrot.slane %v4885, %v5129
  %v5131 = vlaneseq
  %v5132 = vshrl.u32 %v5131, 7
  %v5133 = vsub.s32 0, %v5132
  %v5134 = vrot.slane %v4889, %v5133
  %v5135 = vlaneseq
  %v5136 = vshrl.u32 %v5135, 7
  %v5137 = vsub.s32 0, %v5136
  %v5138 = vrot.slane %v4893, %v5137
  %v5139 = vlaneseq
  %v5140 = vshrl.u32 %v5139, 7
  %v5141 = vsub.s32 0, %v5140
  %v5142 = vrot.slane %v4897, %v5141
  %v5143 = vlaneseq
  %v5144 = vshrl.u32 %v5143, 7
  %v5145 = vsub.s32 0, %v5144
  %v5146 = vrot.slane %v4901, %v5145
  %v5147 = vlaneseq
  %v5148 = vshrl.u32 %v5147, 7
  %v5149 = vsub.s32 0, %v5148
  %v5150 = vrot.slane %v4905, %v5149
  %v5151 = vlaneseq
  %v5152 = vshrl.u32 %v5151, 7
  %v5153 = vsub.s32 0, %v5152
  %v5154 = vrot.slane %v4909, %v5153
  %v5155 = vlaneseq
  %v5156 = vshrl.u32 %v5155, 7
  %v5157 = vsub.s32 0, %v5156
  %v5158 = vrot.slane %v4913, %v5157
  %v5159 = vlaneseq
  %v5160 = vshrl.u32 %v5159, 7
  %v5161 = vsub.s32 0, %v5160
  %v5162 = vrot.slane %v4917, %v5161
  %v5163 = vlaneseq
  %v5164 = vshrl.u32 %v5163, 7
  %v5165 = vsub.s32 0, %v5164
  %v5166 = vrot.slane %v4921, %v5165
  %v5167 = vlaneseq
  %v5168 = vshrl.u32 %v5167, 7
  %v5169 = vsub.s32 0, %v5168
  %v5170 = vrot.slane %v4925, %v5169
  %v5171 = vlaneseq
  %v5172 = vshrl.u32 %v5171, 7
  %v5173 = vsub.s32 0, %v5172
  %v5174 = vrot.slane %v4929, %v5173
  %v5175 = vlaneseq
  %v5176 = vshrl.u32 %v5175, 7
  %v5177 = vsub.s32 0, %v5176
  %v5178 = vrot.slane %v4933, %v5177
  %v5179 = vlaneseq
  %v5180 = vshrl.u32 %v5179, 7
  %v5181 = vsub.s32 0, %v5180
  %v5182 = vrot.slane %v4937, %v5181
  %v5183 = vlaneseq
  %v5184 = vshrl.u32 %v5183, 7
  %v5185 = vsub.s32 0, %v5184
  %v5186 = vrot.slane %v4941, %v5185
  %v5187 = vlaneseq
  %v5188 = vshrl.u32 %v5187, 7
  %v5189 = vsub.s32 0, %v5188
  %v5190 = vrot.slane %v4945, %v5189
  %v5191 = vlaneseq
  %v5192 = vshrl.u32 %v5191, 7
  %v5193 = vsub.s32 0, %v5192
  %v5194 = vrot.slane %v4949, %v5193
  %v5195 = vlaneseq
  %v5196 = vshrl.u32 %v5195, 7
  %v5197 = vsub.s32 0, %v5196
  %v5198 = vrot.slane %v4953, %v5197
  %v5199 = vlaneseq
  %v5200 = vshrl.u32 %v5199, 7
  %v5201 = vsub.s32 0, %v5200
  %v5202 = vrot.slane %v4957, %v5201
  %v5203 = vlaneseq
  %v5204 = vshrl.u32 %v5203, 7
  %v5205 = vsub.s32 0, %v5204
  %v5206 = vrot.slane %v4961, %v5205
  %v5207 = vlaneseq
  %v5208 = vshrl.u32 %v5207, 7
  %v5209 = vsub.s32 0, %v5208
  %v5210 = vrot.slane %v4965, %v5209
  %v5211 = vlaneseq
  %v5212 = vshrl.u32 %v5211, 7
  %v5213 = vsub.s32 0, %v5212
  %v5214 = vrot.slane %v4969, %v5213
  %v5215 = vlaneseq
  %v5216 = vshrl.u32 %v5215, 7
  %v5217 = vsub.s32 0, %v5216
  %v5218 = vrot.slane %v4973, %v5217
  %v5219 = vlaneseq
  %v5220 = vshrl.u32 %v5219, 7
  %v5221 = vsub.s32 0, %v5220
  %v5222 = vrot.slane %v4977, %v5221
  %v5223 = vlaneseq
  %v5224 = vshrl.u32 %v5223, 7
  %v5225 = vsub.s32 0, %v5224
  %v5226 = vrot.slane %v4981, %v5225
  %v5227 = vlaneseq
  %v5228 = vshrl.u32 %v5227, 7
  %v5229 = vsub.s32 0, %v5228
  %v5230 = vrot.slane %v4985, %v5229
  %v5231 = vlaneseq
  %v5232 = vshrl.u32 %v5231, 7
  %v5233 = vsub.s32 0, %v5232
  %v5234 = vrot.slane %v4989, %v5233
  %v5635 = vunpack.c.l.b16 %v4361
  %v5636 = vunpack.c.h.b16 %v4361
  %v5637 = vunpack.c.l.b16 %v4362
  %v5638 = vunpack.c.h.b16 %v4362
  %v5639 = vunpack.c.l.b16 %v4363
  %v5640 = vunpack.c.h.b16 %v4363
  %v5641 = vunpack.c.l.b16 %v4364
  %v5642 = vunpack.c.h.b16 %v4364
  %v5643 = vunpack.c.l.b16 %v4365
  %v5644 = vunpack.c.h.b16 %v4365
  %v5645 = vunpack.c.l.b16 %v4366
  %v5646 = vunpack.c.h.b16 %v4366
  %v5647 = vunpack.c.l.b16 %v4367
  %v5648 = vunpack.c.h.b16 %v4367
  %v5649 = vunpack.c.l.b16 %v4368
  %v5650 = vunpack.c.h.b16 %v4368
  %v5651 = vunpack.c.l.b16 %v4369
  %v5652 = vunpack.c.h.b16 %v4369
  %v5653 = vunpack.c.l.b16 %v4370
  %v5654 = vunpack.c.h.b16 %v4370
  %v5655 = vunpack.c.l.b16 %v4371
  %v5656 = vunpack.c.h.b16 %v4371
  %v5657 = vunpack.c.l.b16 %v4372
  %v5658 = vunpack.c.h.b16 %v4372
  %v5659 = vunpack.c.l.b16 %v4373
  %v5660 = vunpack.c.h.b16 %v4373
  %v5661 = vunpack.c.l.b16 %v4374
  %v5662 = vunpack.c.h.b16 %v4374
  %v5663 = vunpack.c.l.b16 %v4375
  %v5664 = vunpack.c.h.b16 %v4375
  %v5665 = vunpack.c.l.b16 %v4376
  %v5666 = vunpack.c.h.b16 %v4376
  %v5667 = vunpack.c.l.b16 %v4377
  %v5668 = vunpack.c.h.b16 %v4377
  %v5669 = vunpack.c.l.b16 %v4378
  %v5670 = vunpack.c.h.b16 %v4378
  %v5671 = vunpack.c.l.b16 %v4379
  %v5672 = vunpack.c.h.b16 %v4379
  %v5673 = vunpack.c.l.b16 %v4380
  %v5674 = vunpack.c.h.b16 %v4380
  %v5675 = vunpack.c.l.b16 %v4381
  %v5676 = vunpack.c.h.b16 %v4381
  %v5677 = vunpack.c.l.b16 %v4382
  %v5678 = vunpack.c.h.b16 %v4382
  %v5679 = vunpack.c.l.b16 %v4383
  %v5680 = vunpack.c.h.b16 %v4383
  %v5681 = vunpack.c.l.b16 %v4384
  %v5682 = vunpack.c.h.b16 %v4384
  %v5683 = vunpack.c.l.b16 %v4385
  %v5684 = vunpack.c.l.b16 %v4386
  %v5685 = vunpack.c.h.b16 %v4386
  %v5686 = vunpack.c.l.b16 %v4387
  %v5687 = vunpack.c.h.b16 %v4387
  %v5688 = vunpack.c.l.b16 %v4388
  %v5689 = vunpack.c.h.b16 %v4388
  %v5690 = vunpack.c.l.b16 %v4389
  %v5691 = vunpack.c.h.b16 %v4389
  %v5692 = vunpack.c.l.b16 %v4390
  %v5693 = vunpack.c.h.b16 %v4390
  %v5694 = vunpack.c.l.b16 %v4391
  %v5695 = vunpack.c.h.b16 %v4391
  %v5696 = vunpack.c.l.b16 %v4392
  %v5697 = vunpack.c.h.b16 %v4392
  %v5698 = vunpack.c.l.b16 %v4393
  %v5699 = vunpack.c.h.b16 %v4393
  %v5700 = vunpack.c.l.b16 %v4394
  %v5701 = vunpack.c.h.b16 %v4394
  %v5702 = vunpack.c.l.b16 %v4395
  %v5703 = vunpack.c.h.b16 %v4395
  %v5704 = vunpack.c.l.b16 %v4396
  %v5705 = vunpack.c.h.b16 %v4396
  %v5706 = vunpack.c.l.b16 %v4397
  %v5707 = vunpack.c.h.b16 %v4397
  %v5708 = vunpack.c.l.b16 %v4398
  %v5709 = vunpack.c.h.b16 %v4398
  %v5710 = vunpack.c.l.b16 %v4399
  %v5711 = vunpack.c.h.b16 %v4399
  %v5712 = vunpack.c.l.b16 %v4400
  %v5713 = vunpack.c.h.b16 %v4400
  %v5714 = vunpack.c.l.b16 %v4401
  %v5715 = vunpack.c.h.b16 %v4401
  %v5716 = vunpack.c.l.b16 %v4402
  %v5717 = vunpack.c.h.b16 %v4402
  %v5718 = vunpack.c.l.b16 %v4403
  %v5719 = vunpack.c.h.b16 %v4403
  %v5720 = vunpack.c.l.b16 %v4404
  %v5721 = vunpack.c.h.b16 %v4404
  %v5722 = vunpack.c.l.b16 %v4405
  %v5723 = vunpack.c.h.b16 %v4405
  %v5724 = vunpack.c.l.b16 %v4406
  %v5725 = vunpack.c.h.b16 %v4406
  %v5726 = vunpack.c.l.b16 %v4407
  %v5727 = vunpack.c.h.b16 %v4407
  %v5728 = vunpack.c.l.b16 %v4408
  %v5729 = vunpack.c.h.b16 %v4408
  %v5730 = vunpack.c.l.b16 %v4409
  %v5731 = vunpack.c.h.b16 %v4409
  %v5732 = vunpack.c.l.b16 %v4410
  %v5733 = vunpack.c.l.b16 %v4411
  %v5734 = vunpack.c.h.b16 %v4411
  %v5735 = vunpack.c.l.b16 %v4412
  %v5736 = vunpack.c.h.b16 %v4412
  %v5737 = vunpack.c.l.b16 %v4413
  %v5738 = vunpack.c.h.b16 %v4413
  %v5739 = vunpack.c.l.b16 %v4414
  %v5740 = vunpack.c.h.b16 %v4414
  %v5741 = vunpack.c.l.b16 %v4415
  %v5742 = vunpack.c.h.b16 %v4415
  %v5743 = vunpack.c.l.b16 %v4416
  %v5744 = vunpack.c.h.b16 %v4416
  %v5745 = vunpack.c.l.b16 %v4417
  %v5746 = vunpack.c.h.b16 %v4417
  %v5747 = vunpack.c.l.b16 %v4418
  %v5748 = vunpack.c.h.b16 %v4418
  %v5749 = vunpack.c.l.b16 %v4419
  %v5750 = vunpack.c.h.b16 %v4419
  %v5751 = vunpack.c.l.b16 %v4420
  %v5752 = vunpack.c.h.b16 %v4420
  %v5753 = vunpack.c.l.b16 %v4421
  %v5754 = vunpack.c.h.b16 %v4421
  %v5755 = vunpack.c.l.b16 %v4422
  %v5756 = vunpack.c.h.b16 %v4422
  %v5757 = vunpack.c.l.b16 %v4423
  %v5758 = vunpack.c.h.b16 %v4423
  %v5759 = vunpack.c.l.b16 %v4424
  %v5760 = vunpack.c.h.b16 %v4424
  %v5761 = vunpack.c.l.b16 %v4425
  %v5762 = vunpack.c.h.b16 %v4425
  %v5763 = vunpack.c.l.b16 %v4426
  %v5764 = vunpack.c.h.b16 %v4426
  %v5765 = vunpack.c.l.b16 %v4427
  %v5766 = vunpack.c.h.b16 %v4427
  %v5767 = vunpack.c.l.b16 %v4428
  %v5768 = vunpack.c.h.b16 %v4428
  %v5769 = vunpack.c.l.b16 %v4429
  %v5770 = vunpack.c.h.b16 %v4429
  %v5771 = vunpack.c.l.b16 %v4430
  %v5772 = vunpack.c.h.b16 %v4430
  %v5773 = vunpack.c.l.b16 %v4431
  %v5774 = vunpack.c.h.b16 %v4431
  %v5775 = vunpack.c.l.b16 %v4432
  %v5776 = vunpack.c.h.b16 %v4432
  %v5777 = vunpack.c.l.b16 %v4433
  %v5778 = vunpack.c.h.b16 %v4433
  %v5779 = vunpack.c.l.b16 %v4434
  %v5780 = vunpack.c.h.b16 %v4434
  %v5781 = vunpack.c.l.b16 %v4435
  %v5782 = vunpack.c.l.b16 %v4436
  %v5783 = vunpack.c.h.b16 %v4436
  %v5784 = vunpack.c.l.b16 %v4437
  %v5785 = vunpack.c.h.b16 %v4437
  %v5786 = vunpack.c.l.b16 %v4438
  %v5787 = vunpack.c.h.b16 %v4438
  %v5788 = vunpack.c.l.b16 %v4439
  %v5789 = vunpack.c.h.b16 %v4439
  %v5790 = vunpack.c.l.b16 %v4440
  %v5791 = vunpack.c.h.b16 %v4440
  %v5792 = vunpack.c.l.b16 %v4441
  %v5793 = vunpack.c.h.b16 %v4441
  %v5794 = vunpack.c.l.b16 %v4442
  %v5795 = vunpack.c.h.b16 %v4442
  %v5796 = vunpack.c.l.b16 %v4443
  %v5797 = vunpack.c.h.b16 %v4443
  %v5798 = vunpack.c.l.b16 %v4444
  %v5799 = vunpack.c.h.b16 %v4444
  %v5800 = vunpack.c.l.b16 %v4445
  %v5801 = vunpack.c.h.b16 %v4445
  %v5802 = vunpack.c.l.b16 %v4446
  %v5803 = vunpack.c.h.b16 %v4446
  %v5804 = vunpack.c.l.b16 %v4447
  %v5805 = vunpack.c.h.b16 %v4447
  %v5806 = vunpack.c.l.b16 %v4448
  %v5807 = vunpack.c.h.b16 %v4448
  %v5808 = vunpack.c.l.b16 %v4449
  %v5809 = vunpack.c.h.b16 %v4449
  %v5810 = vunpack.c.l.b16 %v4450
  %v5811 = vunpack.c.h.b16 %v4450
  %v5812 = vunpack.c.l.b16 %v4451
  %v5813 = vunpack.c.h.b16 %v4451
  %v5814 = vunpack.c.l.b16 %v4452
  %v5815 = vunpack.c.h.b16 %v4452
  %v5816 = vunpack.c.l.b16 %v4453
  %v5817 = vunpack.c.h.b16 %v4453
  %v5818 = vunpack.c.l.b16 %v4454
  %v5819 = vunpack.c.h.b16 %v4454
  %v5820 = vunpack.c.l.b16 %v4455
  %v5821 = vunpack.c.h.b16 %v4455
  %v5822 = vunpack.c.l.b16 %v4456
  %v5823 = vunpack.c.h.b16 %v4456
  %v5824 = vunpack.c.l.b16 %v4457
  %v5825 = vunpack.c.h.b16 %v4457
  %v5826 = vunpack.c.l.b16 %v4458
  %v5827 = vunpack.c.h.b16 %v4458
  %v5828 = vunpack.c.l.b16 %v4459
  %v5829 = vunpack.c.h.b16 %v4459
  %v5830 = vunpack.c.l.b16 %v4460
  %v5831 = vunpack.c.l.b16 %v4461
  %v5832 = vunpack.c.h.b16 %v4461
  %v5833 = vunpack.c.l.b16 %v4462
  %v5834 = vunpack.c.h.b16 %v4462
  %v5835 = vunpack.c.l.b16 %v4463
  %v5836 = vunpack.c.h.b16 %v4463
  %v5837 = vunpack.c.l.b16 %v4464
  %v5838 = vunpack.c.h.b16 %v4464
  %v5839 = vunpack.c.l.b16 %v4465
  %v5840 = vunpack.c.h.b16 %v4465
  %v5841 = vunpack.c.l.b16 %v4466
  %v5842 = vunpack.c.h.b16 %v4466
  %v5843 = vunpack.c.l.b16 %v4467
  %v5844 = vunpack.c.h.b16 %v4467
  %v5845 = vunpack.c.l.b16 %v4468
  %v5846 = vunpack.c.h.b16 %v4468
  %v5847 = vunpack.c.l.b16 %v4469
  %v5848 = vunpack.c.h.b16 %v4469
  %v5849 = vunpack.c.l.b16 %v4470
  %v5850 = vunpack.c.h.b16 %v4470
  %v5851 = vunpack.c.l.b16 %v4471
  %v5852 = vunpack.c.h.b16 %v4471
  %v5853 = vunpack.c.l.b16 %v4472
  %v5854 = vunpack.c.h.b16 %v4472
  %v5855 = vunpack.c.l.b16 %v4473
  %v5856 = vunpack.c.h.b16 %v4473
  %v5857 = vunpack.c.l.b16 %v4474
  %v5858 = vunpack.c.h.b16 %v4474
  %v5859 = vunpack.c.l.b16 %v4475
  %v5860 = vunpack.c.h.b16 %v4475
  %v5861 = vunpack.c.l.b16 %v4476
  %v5862 = vunpack.c.h.b16 %v4476
  %v5863 = vunpack.c.l.b16 %v4477
  %v5864 = vunpack.c.h.b16 %v4477
  %v5865 = vunpack.c.l.b16 %v4478
  %v5866 = vunpack.c.h.b16 %v4478
  %v5867 = vunpack.c.l.b16 %v4479
  %v5868 = vunpack.c.h.b16 %v4479
  %v5869 = vunpack.c.l.b16 %v4480
  %v5870 = vunpack.c.h.b16 %v4480
  %v5871 = vunpack.c.l.b16 %v4481
  %v5872 = vunpack.c.h.b16 %v4481
  %v5873 = vunpack.c.l.b16 %v4482
  %v5874 = vunpack.c.h.b16 %v4482
  %v5875 = vunpack.c.l.b16 %v4483
  %v5876 = vunpack.c.h.b16 %v4483
  %v5877 = vunpack.c.l.b16 %v4484
  %v5878 = vunpack.c.h.b16 %v4484
  %v5879 = vunpack.c.l.b16 %v4485
  %v5880 = vunpack.c.l.b16 %v4486
  %v5881 = vunpack.c.h.b16 %v4486
  %v5882 = vunpack.c.l.b16 %v4487
  %v5883 = vunpack.c.h.b16 %v4487
  %v5884 = vunpack.c.l.b16 %v4488
  %v5885 = vunpack.c.h.b16 %v4488
  %v5886 = vunpack.c.l.b16 %v4489
  %v5887 = vunpack.c.h.b16 %v4489
  %v5888 = vunpack.c.l.b16 %v4490
  %v5889 = vunpack.c.h.b16 %v4490
  %v5890 = vunpack.c.l.b16 %v4491
  %v5891 = vunpack.c.h.b16 %v4491
  %v5892 = vunpack.c.l.b16 %v4492
  %v5893 = vunpack.c.h.b16 %v4492
  %v5894 = vunpack.c.l.b16 %v4493
  %v5895 = vunpack.c.h.b16 %v4493
  %v5896 = vunpack.c.l.b16 %v4494
  %v5897 = vunpack.c.h.b16 %v4494
  %v5898 = vunpack.c.l.b16 %v4495
  %v5899 = vunpack.c.h.b16 %v4495
  %v5900 = vunpack.c.l.b16 %v4496
  %v5901 = vunpack.c.h.b16 %v4496
  %v5902 = vunpack.c.l.b16 %v4497
  %v5903 = vunpack.c.h.b16 %v4497
  %v5904 = vunpack.c.l.b16 %v4498
  %v5905 = vunpack.c.h.b16 %v4498
  %v5906 = vunpack.c.l.b16 %v4499
  %v5907 = vunpack.c.h.b16 %v4499
  %v5908 = vunpack.c.l.b16 %v4500
  %v5909 = vunpack.c.h.b16 %v4500
  %v5910 = vunpack.c.l.b16 %v4501
  %v5911 = vunpack.c.h.b16 %v4501
  %v5912 = vunpack.c.l.b16 %v4502
  %v5913 = vunpack.c.h.b16 %v4502
  %v5914 = vunpack.c.l.b16 %v4503
  %v5915 = vunpack.c.h.b16 %v4503
  %v5916 = vunpack.c.l.b16 %v4504
  %v5917 = vunpack.c.h.b16 %v4504
  %v5918 = vunpack.c.l.b16 %v4505
  %v5919 = vunpack.c.h.b16 %v4505
  %v5920 = vunpack.c.l.b16 %v4506
  %v5921 = vunpack.c.h.b16 %v4506
  %v5922 = vunpack.c.l.b16 %v4507
  %v5923 = vunpack.c.h.b16 %v4507
  %v5924 = vunpack.c.l.b16 %v4508
  %v5925 = vunpack.c.h.b16 %v4508
  %v5926 = vunpack.c.l.b16 %v4509
  %v5927 = vunpack.c.h.b16 %v4509
  %v5928 = vunpack.c.l.b16 %v4510
  %v5929 = vunpack.c.l.b16 %v4511
  %v5930 = vunpack.c.h.b16 %v4511
  %v5931 = vunpack.c.l.b16 %v4512
  %v5932 = vunpack.c.h.b16 %v4512
  %v5933 = vunpack.c.l.b16 %v4513
  %v5934 = vunpack.c.h.b16 %v4513
  %v5935 = vunpack.c.l.b16 %v4514
  %v5936 = vunpack.c.h.b16 %v4514
  %v5937 = vunpack.c.l.b16 %v4515
  %v5938 = vunpack.c.h.b16 %v4515
  %v5939 = vunpack.c.l.b16 %v4516
  %v5940 = vunpack.c.h.b16 %v4516
  %v5941 = vunpack.c.l.b16 %v4517
  %v5942 = vunpack.c.h.b16 %v4517
  %v5943 = vunpack.c.l.b16 %v4518
  %v5944 = vunpack.c.h.b16 %v4518
  %v5945 = vunpack.c.l.b16 %v4519
  %v5946 = vunpack.c.h.b16 %v4519
  %v5947 = vunpack.c.l.b16 %v4520
  %v5948 = vunpack.c.h.b16 %v4520
  %v5949 = vunpack.c.l.b16 %v4521
  %v5950 = vunpack.c.h.b16 %v4521
  %v5951 = vunpack.c.l.b16 %v4522
  %v5952 = vunpack.c.h.b16 %v4522
  %v5953 = vunpack.c.l.b16 %v4523
  %v5954 = vunpack.c.h.b16 %v4523
  %v5955 = vunpack.c.l.b16 %v4524
  %v5956 = vunpack.c.h.b16 %v4524
  %v5957 = vunpack.c.l.b16 %v4525
  %v5958 = vunpack.c.h.b16 %v4525
  %v5959 = vunpack.c.l.b16 %v4526
  %v5960 = vunpack.c.h.b16 %v4526
  %v5961 = vunpack.c.l.b16 %v4527
  %v5962 = vunpack.c.h.b16 %v4527
  %v5963 = vunpack.c.l.b16 %v4528
  %v5964 = vunpack.c.h.b16 %v4528
  %v5965 = vunpack.c.l.b16 %v4529
  %v5966 = vunpack.c.h.b16 %v4529
  %v5967 = vunpack.c.l.b16 %v4530
  %v5968 = vunpack.c.h.b16 %v4530
  %v5969 = vunpack.c.l.b16 %v4531
  %v5970 = vunpack.c.h.b16 %v4531
  %v5971 = vunpack.c.l.b16 %v4532
  %v5972 = vunpack.c.h.b16 %v4532
  %v5973 = vunpack.c.l.b16 %v4533
  %v5974 = vunpack.c.h.b16 %v4533
  %v5975 = vunpack.c.l.b16 %v4534
  %v5976 = vunpack.c.h.b16 %v4534
  %v5977 = vunpack.c.l.b16 %v4535
  %v5978 = vunpack.c.l.b16 %v4536
  %v5979 = vunpack.c.h.b16 %v4536
  %v5980 = vunpack.c.l.b16 %v4537
  %v5981 = vunpack.c.h.b16 %v4537
  %v5982 = vunpack.c.l.b16 %v4538
  %v5983 = vunpack.c.h.b16 %v4538
  %v5984 = vunpack.c.l.b16 %v4539
  %v5985 = vunpack.c.h.b16 %v4539
  %v5986 = vunpack.c.l.b16 %v4540
  %v5987 = vunpack.c.h.b16 %v4540
  %v5988 = vunpack.c.l.b16 %v4541
  %v5989 = vunpack.c.h.b16 %v4541
  %v5990 = vunpack.c.l.b16 %v4542
  %v5991 = vunpack.c.h.b16 %v4542
  %v5992 = vunpack.c.l.b16 %v4543
  %v5993 = vunpack.c.h.b16 %v4543
  %v5994 = vunpack.c.l.b16 %v4544
  %v5995 = vunpack.c.h.b16 %v4544
  %v5996 = vunpack.c.l.b16 %v4545
  %v5997 = vunpack.c.h.b16 %v4545
  %v5998 = vunpack.c.l.b16 %v4546
  %v5999 = vunpack.c.h.b16 %v4546
  %v6000 = vunpack.c.l.b16 %v4547
  %v6001 = vunpack.c.h.b16 %v4547
  %v6002 = vunpack.c.l.b16 %v4548
  %v6003 = vunpack.c.h.b16 %v4548
  %v6004 = vunpack.c.l.b16 %v4549
  %v6005 = vunpack.c.h.b16 %v4549
  %v6006 = vunpack.c.l.b16 %v4550
  %v6007 = vunpack.c.h.b16 %v4550
  %v6008 = vunpack.c.l.b16 %v4551
  %v6009 = vunpack.c.h.b16 %v4551
  %v6010 = vunpack.c.l.b16 %v4552
  %v6011 = vunpack.c.h.b16 %v4552
  %v6012 = vunpack.c.l.b16 %v4553
  %v6013 = vunpack.c.h.b16 %v4553
  %v6014 = vunpack.c.l.b16 %v4554
  %v6015 = vunpack.c.h.b16 %v4554
  %v6016 = vunpack.c.l.b16 %v4555
  %v6017 = vunpack.c.h.b16 %v4555
  %v6018 = vunpack.c.l.b16 %v4556
  %v6019 = vunpack.c.h.b16 %v4556
  %v6020 = vunpack.c.l.b16 %v4557
  %v6021 = vunpack.c.h.b16 %v4557
  %v6022 = vunpack.c.l.b16 %v4558
  %v6023 = vunpack.c.h.b16 %v4558
  %v6024 = vunpack.c.l.b16 %v4559
  %v6025 = vunpack.c.h.b16 %v4559
  %v6026 = vunpack.c.l.b16 %v4560
  %v6027 = vunpack.c.l.b16 %v4561
  %v6028 = vunpack.c.h.b16 %v4561
  %v6029 = vunpack.c.l.b16 %v4562
  %v6030 = vunpack.c.h.b16 %v4562
  %v6031 = vunpack.c.l.b16 %v4563
  %v6032 = vunpack.c.h.b16 %v4563
  %v6033 = vunpack.c.l.b16 %v4564
  %v6034 = vunpack.c.h.b16 %v4564
  %v6035 = vunpack.c.l.b16 %v4565
  %v6036 = vunpack.c.h.b16 %v4565
  %v6037 = vunpack.c.l.b16 %v4566
  %v6038 = vunpack.c.h.b16 %v4566
  %v6039 = vunpack.c.l.b16 %v4567
  %v6040 = vunpack.c.h.b16 %v4567
  %v6041 = vunpack.c.l.b16 %v4568
  %v6042 = vunpack.c.h.b16 %v4568
  %v6043 = vunpack.c.l.b16 %v4569
  %v6044 = vunpack.c.h.b16 %v4569
  %v6045 = vunpack.c.l.b16 %v4570
  %v6046 = vunpack.c.h.b16 %v4570
  %v6047 = vunpack.c.l.b16 %v4571
  %v6048 = vunpack.c.h.b16 %v4571
  %v6049 = vunpack.c.l.b16 %v4572
  %v6050 = vunpack.c.h.b16 %v4572
  %v6051 = vunpack.c.l.b16 %v4573
  %v6052 = vunpack.c.h.b16 %v4573
  %v6053 = vunpack.c.l.b16 %v4574
  %v6054 = vunpack.c.h.b16 %v4574
  %v6055 = vunpack.c.l.b16 %v4575
  %v6056 = vunpack.c.h.b16 %v4575
  %v6057 = vunpack.c.l.b16 %v4576
  %v6058 = vunpack.c.h.b16 %v4576
  %v6059 = vunpack.c.l.b16 %v4577
  %v6060 = vunpack.c.h.b16 %v4577
  %v6061 = vunpack.c.l.b16 %v4578
  %v6062 = vunpack.c.h.b16 %v4578
  %v6063 = vunpack.c.l.b16 %v4579
  %v6064 = vunpack.c.h.b16 %v4579
  %v6065 = vunpack.c.l.b16 %v4580
  %v6066 = vunpack.c.h.b16 %v4580
  %v6067 = vunpack.c.l.b16 %v4581
  %v6068 = vunpack.c.h.b16 %v4581
  %v6069 = vunpack.c.l.b16 %v4582
  %v6070 = vunpack.c.h.b16 %v4582
  %v6071 = vunpack.c.l.b16 %v4583
  %v6072 = vunpack.c.h.b16 %v4583
  %v6073 = vunpack.c.l.b16 %v4584
  %v6074 = vunpack.c.h.b16 %v4584
  %v6075 = vunpack.c.l.b16 %v4585
  %v6076 = vunpack.c.l.b16 %v4586
  %v6077 = vunpack.c.h.b16 %v4586
  %v6078 = vunpack.c.l.b16 %v4587
  %v6079 = vunpack.c.h.b16 %v4587
  %v6080 = vunpack.c.l.b16 %v4588
  %v6081 = vunpack.c.h.b16 %v4588
  %v6082 = vunpack.c.l.b16 %v4589
  %v6083 = vunpack.c.h.b16 %v4589
  %v6084 = vunpack.c.l.b16 %v4590
  %v6085 = vunpack.c.h.b16 %v4590
  %v6086 = vunpack.c.l.b16 %v4591
  %v6087 = vunpack.c.h.b16 %v4591
  %v6088 = vunpack.c.l.b16 %v4592
  %v6089 = vunpack.c.h.b16 %v4592
  %v6090 = vunpack.c.l.b16 %v4593
  %v6091 = vunpack.c.h.b16 %v4593
  %v6092 = vunpack.c.l.b16 %v4594
  %v6093 = vunpack.c.h.b16 %v4594
  %v6094 = vunpack.c.l.b16 %v4595
  %v6095 = vunpack.c.h.b16 %v4595
  %v6096 = vunpack.c.l.b16 %v4596
  %v6097 = vunpack.c.h.b16 %v4596
  %v6098 = vunpack.c.l.b16 %v4597
  %v6099 = vunpack.c.h.b16 %v4597
  %v6100 = vunpack.c.l.b16 %v4598
  %v6101 = vunpack.c.h.b16 %v4598
  %v6102 = vunpack.c.l.b16 %v4599
  %v6103 = vunpack.c.h.b16 %v4599
  %v6104 = vunpack.c.l.b16 %v4600
  %v6105 = vunpack.c.h.b16 %v4600
  %v6106 = vunpack.c.l.b16 %v4601
  %v6107 = vunpack.c.h.b16 %v4601
  %v6108 = vunpack.c.l.b16 %v4602
  %v6109 = vunpack.c.h.b16 %v4602
  %v6110 = vunpack.c.l.b16 %v4603
  %v6111 = vunpack.c.h.b16 %v4603
  %v6112 = vunpack.c.l.b16 %v4604
  %v6113 = vunpack.c.h.b16 %v4604
  %v6114 = vunpack.c.l.b16 %v4605
  %v6115 = vunpack.c.h.b16 %v4605
  %v6116 = vunpack.c.l.b16 %v4606
  %v6117 = vunpack.c.h.b16 %v4606
  %v6118 = vunpack.c.l.b16 %v4607
  %v6119 = vunpack.c.h.b16 %v4607
  %v6120 = vunpack.c.l.b16 %v4608
  %v6121 = vunpack.c.h.b16 %v4608
  %v6122 = vunpack.c.l.b16 %v4609
  %v6123 = vunpack.c.h.b16 %v4609
  %v6124 = vunpack.c.l.b16 %v4610
  %v6125 = vunpack.c.l.b16 %v4611
  %v6126 = vunpack.c.h.b16 %v4611
  %v6127 = vunpack.c.l.b16 %v4612
  %v6128 = vunpack.c.h.b16 %v4612
  %v6129 = vunpack.c.l.b16 %v4613
  %v6130 = vunpack.c.h.b16 %v4613
  %v6131 = vunpack.c.l.b16 %v4614
  %v6132 = vunpack.c.h.b16 %v4614
  %v6133 = vunpack.c.l.b16 %v4615
  %v6134 = vunpack.c.h.b16 %v4615
  %v6135 = vunpack.c.l.b16 %v4616
  %v6136 = vunpack.c.h.b16 %v4616
  %v6137 = vunpack.c.l.b16 %v4617
  %v6138 = vunpack.c.h.b16 %v4617
  %v6139 = vunpack.c.l.b16 %v4618
  %v6140 = vunpack.c.h.b16 %v4618
  %v6141 = vunpack.c.l.b16 %v4619
  %v6142 = vunpack.c.h.b16 %v4619
  %v6143 = vunpack.c.l.b16 %v4620
  %v6144 = vunpack.c.h.b16 %v4620
  %v6145 = vunpack.c.l.b16 %v4621
  %v6146 = vunpack.c.h.b16 %v4621
  %v6147 = vunpack.c.l.b16 %v4622
  %v6148 = vunpack.c.h.b16 %v4622
  %v6149 = vunpack.c.l.b16 %v4623
  %v6150 = vunpack.c.h.b16 %v4623
  %v6151 = vunpack.c.l.b16 %v4624
  %v6152 = vunpack.c.h.b16 %v4624
  %v6153 = vunpack.c.l.b16 %v4625
  %v6154 = vunpack.c.h.b16 %v4625
  %v6155 = vunpack.c.l.b16 %v4626
  %v6156 = vunpack.c.h.b16 %v4626
  %v6157 = vunpack.c.l.b16 %v4627
  %v6158 = vunpack.c.h.b16 %v4627
  %v6159 = vunpack.c.l.b16 %v4628
  %v6160 = vunpack.c.h.b16 %v4628
  %v6161 = vunpack.c.l.b16 %v4629
  %v6162 = vunpack.c.h.b16 %v4629
  %v6163 = vunpack.c.l.b16 %v4630
  %v6164 = vunpack.c.h.b16 %v4630
  %v6165 = vunpack.c.l.b16 %v4631
  %v6166 = vunpack.c.h.b16 %v4631
  %v6167 = vunpack.c.l.b16 %v4632
  %v6168 = vunpack.c.h.b16 %v4632
  %v6169 = vunpack.c.l.b16 %v4633
  %v6170 = vunpack.c.h.b16 %v4633
  %v6171 = vunpack.c.l.b16 %v4634
  %v6172 = vunpack.c.h.b16 %v4634
  %v6173 = vunpack.c.l.b16 %v4635
  %v6174 = vunpack.c.l.b16 %v4636
  %v6175 = vunpack.c.h.b16 %v4636
  %v6176 = vunpack.c.l.b16 %v4637
  %v6177 = vunpack.c.h.b16 %v4637
  %v6178 = vunpack.c.l.b16 %v4638
  %v6179 = vunpack.c.h.b16 %v4638
  %v6180 = vunpack.c.l.b16 %v4639
  %v6181 = vunpack.c.h.b16 %v4639
  %v6182 = vunpack.c.l.b16 %v4640
  %v6183 = vunpack.c.h.b16 %v4640
  %v6184 = vunpack.c.l.b16 %v4641
  %v6185 = vunpack.c.h.b16 %v4641
  %v6186 = vunpack.c.l.b16 %v4642
  %v6187 = vunpack.c.h.b16 %v4642
  %v6188 = vunpack.c.l.b16 %v4643
  %v6189 = vunpack.c.h.b16 %v4643
  %v6190 = vunpack.c.l.b16 %v4644
  %v6191 = vunpack.c.h.b16 %v4644
  %v6192 = vunpack.c.l.b16 %v4645
  %v6193 = vunpack.c.h.b16 %v4645
  %v6194 = vunpack.c.l.b16 %v4646
  %v6195 = vunpack.c.h.b16 %v4646
  %v6196 = vunpack.c.l.b16 %v4647
  %v6197 = vunpack.c.h.b16 %v4647
  %v6198 = vunpack.c.l.b16 %v4648
  %v6199 = vunpack.c.h.b16 %v4648
  %v6200 = vunpack.c.l.b16 %v4649
  %v6201 = vunpack.c.h.b16 %v4649
  %v6202 = vunpack.c.l.b16 %v4650
  %v6203 = vunpack.c.h.b16 %v4650
  %v6204 = vunpack.c.l.b16 %v4651
  %v6205 = vunpack.c.h.b16 %v4651
  %v6206 = vunpack.c.l.b16 %v4652
  %v6207 = vunpack.c.h.b16 %v4652
  %v6208 = vunpack.c.l.b16 %v4653
  %v6209 = vunpack.c.h.b16 %v4653
  %v6210 = vunpack.c.l.b16 %v4654
  %v6211 = vunpack.c.h.b16 %v4654
  %v6212 = vunpack.c.l.b16 %v4655
  %v6213 = vunpack.c.h.b16 %v4655
  %v6214 = vunpack.c.l.b16 %v4656
  %v6215 = vunpack.c.h.b16 %v4656
  %v6216 = vunpack.c.l.b16 %v4657
  %v6217 = vunpack.c.h.b16 %v4657
  %v6218 = vunpack.c.l.b16 %v4658
  %v6219 = vunpack.c.h.b16 %v4658
  %v6220 = vunpack.c.l.b16 %v4659
  %v6221 = vunpack.c.h.b16 %v4659
  %v6222 = vunpack.c.l.b16 %v4660
  %v6223 = vunpack.c.l.b16 %v4661
  %v6224 = vunpack.c.h.b16 %v4661
  %v6225 = vunpack.c.l.b16 %v4662
  %v6226 = vunpack.c.h.b16 %v4662
  %v6227 = vunpack.c.l.b16 %v4663
  %v6228 = vunpack.c.h.b16 %v4663
  %v6229 = vunpack.c.l.b16 %v4664
  %v6230 = vunpack.c.h.b16 %v4664
  %v6231 = vunpack.c.l.b16 %v4665
  %v6232 = vunpack.c.h.b16 %v4665
  %v6233 = vunpack.c.l.b16 %v4666
  %v6234 = vunpack.c.h.b16 %v4666
  %v6235 = vunpack.c.l.b16 %v4667
  %v6236 = vunpack.c.h.b16 %v4667
  %v6237 = vunpack.c.l.b16 %v4668
  %v6238 = vunpack.c.h.b16 %v4668
  %v6239 = vunpack.c.l.b16 %v4669
  %v6240 = vunpack.c.h.b16 %v4669
  %v6241 = vunpack.c.l.b16 %v4670
  %v6242 = vunpack.c.h.b16 %v4670
  %v6243 = vunpack.c.l.b16 %v4671
  %v6244 = vunpack.c.h.b16 %v4671
  %v6245 = vunpack.c.l.b16 %v4672
  %v6246 = vunpack.c.h.b16 %v4672
  %v6247 = vunpack.c.l.b16 %v4673
  %v6248 = vunpack.c.h.b16 %v4673
  %v6249 = vunpack.c.l.b16 %v4674
  %v6250 = vunpack.c.h.b16 %v4674
  %v6251 = vunpack.c.l.b16 %v4675
  %v6252 = vunpack.c.h.b16 %v4675
  %v6253 = vunpack.c.l.b16 %v4676
  %v6254 = vunpack.c.h.b16 %v4676
  %v6255 = vunpack.c.l.b16 %v4677
  %v6256 = vunpack.c.h.b16 %v4677
  %v6257 = vunpack.c.l.b16 %v4678
  %v6258 = vunpack.c.h.b16 %v4678
  %v6259 = vunpack.c.l.b16 %v4679
  %v6260 = vunpack.c.h.b16 %v4679
  %v6261 = vunpack.c.l.b16 %v4680
  %v6262 = vunpack.c.h.b16 %v4680
  %v6263 = vunpack.c.l.b16 %v4681
  %v6264 = vunpack.c.h.b16 %v4681
  %v6265 = vunpack.c.l.b16 %v4682
  %v6266 = vunpack.c.h.b16 %v4682
  %v6267 = vunpack.c.l.b16 %v4683
  %v6268 = vunpack.c.h.b16 %v4683
  %v6269 = vunpack.c.l.b16 %v4684
  %v6270 = vunpack.c.h.b16 %v4684
  %v6271 = vunpack.c.l.b16 %v4685
  %v6272 = vunpack.c.l.b16 %v4686
  %v6273 = vunpack.c.h.b16 %v4686
  %v6274 = vunpack.c.l.b16 %v4687
  %v6275 = vunpack.c.h.b16 %v4687
  %v6276 = vunpack.c.l.b16 %v4688
  %v6277 = vunpack.c.h.b16 %v4688
  %v6278 = vunpack.c.l.b16 %v4689
  %v6279 = vunpack.c.h.b16 %v4689
  %v6280 = vunpack.c.l.b16 %v4690
  %v6281 = vunpack.c.h.b16 %v4690
  %v6282 = vunpack.c.l.b16 %v4691
  %v6283 = vunpack.c.h.b16 %v4691
  %v6284 = vunpack.c.l.b16 %v4692
  %v6285 = vunpack.c.h.b16 %v4692
  %v6286 = vunpack.c.l.b16 %v4693
  %v6287 = vunpack.c.h.b16 %v4693
  %v6288 = vunpack.c.l.b16 %v4694
  %v6289 = vunpack.c.h.b16 %v4694
  %v6290 = vunpack.c.l.b16 %v4695
  %v6291 = vunpack.c.h.b16 %v4695
  %v6292 = vunpack.c.l.b16 %v4696
  %v6293 = vunpack.c.h.b16 %v4696
  %v6294 = vunpack.c.l.b16 %v4697
  %v6295 = vunpack.c.h.b16 %v4697
  %v6296 = vunpack.c.l.b16 %v4698
  %v6297 = vunpack.c.h.b16 %v4698
  %v6298 = vunpack.c.l.b16 %v4699
  %v6299 = vunpack.c.h.b16 %v4699
  %v6300 = vunpack.c.l.b16 %v4700
  %v6301 = vunpack.c.h.b16 %v4700
  %v6302 = vunpack.c.l.b16 %v4701
  %v6303 = vunpack.c.h.b16 %v4701
  %v6304 = vunpack.c.l.b16 %v4702
  %v6305 = vunpack.c.h.b16 %v4702
  %v6306 = vunpack.c.l.b16 %v4703
  %v6307 = vunpack.c.h.b16 %v4703
  %v6308 = vunpack.c.l.b16 %v4704
  %v6309 = vunpack.c.h.b16 %v4704
  %v6310 = vunpack.c.l.b16 %v4705
  %v6311 = vunpack.c.h.b16 %v4705
  %v6312 = vunpack.c.l.b16 %v4706
  %v6313 = vunpack.c.h.b16 %v4706
  %v6314 = vunpack.c.l.b16 %v4707
  %v6315 = vunpack.c.h.b16 %v4707
  %v6316 = vunpack.c.l.b16 %v4708
  %v6317 = vunpack.c.h.b16 %v4708
  %v6318 = vunpack.c.l.b16 %v4709
  %v6319 = vunpack.c.h.b16 %v4709
  %v6320 = vunpack.c.l.b16 %v4710
  %v6321 = vunpack.c.l.b16 %v4711
  %v6322 = vunpack.c.h.b16 %v4711
  %v6323 = vunpack.c.l.b16 %v4712
  %v6324 = vunpack.c.h.b16 %v4712
  %v6325 = vunpack.c.l.b16 %v4713
  %v6326 = vunpack.c.h.b16 %v4713
  %v6327 = vunpack.c.l.b16 %v4714
  %v6328 = vunpack.c.h.b16 %v4714
  %v6329 = vunpack.c.l.b16 %v4715
  %v6330 = vunpack.c.h.b16 %v4715
  %v6331 = vunpack.c.l.b16 %v4716
  %v6332 = vunpack.c.h.b16 %v4716
  %v6333 = vunpack.c.l.b16 %v4717
  %v6334 = vunpack.c.h.b16 %v4717
  %v6335 = vunpack.c.l.b16 %v4718
  %v6336 = vunpack.c.h.b16 %v4718
  %v6337 = vunpack.c.l.b16 %v4719
  %v6338 = vunpack.c.h.b16 %v4719
  %v6339 = vunpack.c.l.b16 %v4720
  %v6340 = vunpack.c.h.b16 %v4720
  %v6341 = vunpack.c.l.b16 %v4721
  %v6342 = vunpack.c.h.b16 %v4721
  %v6343 = vunpack.c.l.b16 %v4722
  %v6344 = vunpack.c.h.b16 %v4722
  %v6345 = vunpack.c.l.b16 %v4723
  %v6346 = vunpack.c.h.b16 %v4723
  %v6347 = vunpack.c.l.b16 %v4724
  %v6348 = vunpack.c.h.b16 %v4724
  %v6349 = vunpack.c.l.b16 %v4725
  %v6350 = vunpack.c.h.b16 %v4725
  %v6351 = vunpack.c.l.b16 %v4726
  %v6352 = vunpack.c.h.b16 %v4726
  %v6353 = vunpack.c.l.b16 %v4727
  %v6354 = vunpack.c.h.b16 %v4727
  %v6355 = vunpack.c.l.b16 %v4728
  %v6356 = vunpack.c.h.b16 %v4728
  %v6357 = vunpack.c.l.b16 %v4729
  %v6358 = vunpack.c.h.b16 %v4729
  %v6359 = vunpack.c.l.b16 %v4730
  %v6360 = vunpack.c.h.b16 %v4730
  %v6361 = vunpack.c.l.b16 %v4731
  %v6362 = vunpack.c.h.b16 %v4731
  %v6363 = vunpack.c.l.b16 %v4732
  %v6364 = vunpack.c.h.b16 %v4732
  %v6365 = vunpack.c.l.b16 %v4733
  %v6366 = vunpack.c.h.b16 %v4733
  %v6367 = vunpack.c.l.b16 %v4734
  %v6368 = vunpack.c.h.b16 %v4734
  %v6369 = vunpack.c.l.b16 %v4735
  %v6370 = vunpack.c.l.b16 %v4736
  %v6371 = vunpack.c.h.b16 %v4736
  %v6372 = vunpack.c.l.b16 %v4737
  %v6373 = vunpack.c.h.b16 %v4737
  %v6374 = vunpack.c.l.b16 %v4738
  %v6375 = vunpack.c.h.b16 %v4738
  %v6376 = vunpack.c.l.b16 %v4739
  %v6377 = vunpack.c.h.b16 %v4739
  %v6378 = vunpack.c.l.b16 %v4740
  %v6379 = vunpack.c.h.b16 %v4740
  %v6380 = vunpack.c.l.b16 %v4741
  %v6381 = vunpack.c.h.b16 %v4741
  %v6382 = vunpack.c.l.b16 %v4742
  %v6383 = vunpack.c.h.b16 %v4742
  %v6384 = vunpack.c.l.b16 %v4743
  %v6385 = vunpack.c.h.b16 %v4743
  %v6386 = vunpack.c.l.b16 %v4744
  %v6387 = vunpack.c.h.b16 %v4744
  %v6388 = vunpack.c.l.b16 %v4745
  %v6389 = vunpack.c.h.b16 %v4745
  %v6390 = vunpack.c.l.b16 %v4746
  %v6391 = vunpack.c.h.b16 %v4746
  %v6392 = vunpack.c.l.b16 %v4747
  %v6393 = vunpack.c.h.b16 %v4747
  %v6394 = vunpack.c.l.b16 %v4748
  %v6395 = vunpack.c.h.b16 %v4748
  %v6396 = vunpack.c.l.b16 %v4749
  %v6397 = vunpack.c.h.b16 %v4749
  %v6398 = vunpack.c.l.b16 %v4750
  %v6399 = vunpack.c.h.b16 %v4750
  %v6400 = vunpack.c.l.b16 %v4751
  %v6401 = vunpack.c.h.b16 %v4751
  %v6402 = vunpack.c.l.b16 %v4752
  %v6403 = vunpack.c.h.b16 %v4752
  %v6404 = vunpack.c.l.b16 %v4753
  %v6405 = vunpack.c.h.b16 %v4753
  %v6406 = vunpack.c.l.b16 %v4754
  %v6407 = vunpack.c.h.b16 %v4754
  %v6408 = vunpack.c.l.b16 %v4755
  %v6409 = vunpack.c.h.b16 %v4755
  %v6410 = vunpack.c.l.b16 %v4756
  %v6411 = vunpack.c.h.b16 %v4756
  %v6412 = vunpack.c.l.b16 %v4757
  %v6413 = vunpack.c.h.b16 %v4757
  %v6414 = vunpack.c.l.b16 %v4758
  %v6415 = vunpack.c.h.b16 %v4758
  %v6416 = vunpack.c.l.b16 %v4759
  %v6417 = vunpack.c.h.b16 %v4759
  %v6418 = vunpack.c.l.b16 %v4760
  %v6419 = vpack.c.b16 %v5684, %v5635
  %v6420 = vpack.c.b16 %v5685, %v5636
  %v6421 = vpack.c.b16 %v5686, %v5637
  %v6422 = vpack.c.b16 %v5687, %v5638
  %v6423 = vpack.c.b16 %v5688, %v5639
  %v6424 = vpack.c.b16 %v5689, %v5640
  %v6425 = vpack.c.b16 %v5690, %v5641
  %v6426 = vpack.c.b16 %v5691, %v5642
  %v6427 = vpack.c.b16 %v5692, %v5643
  %v6428 = vpack.c.b16 %v5693, %v5644
  %v6429 = vpack.c.b16 %v5694, %v5645
  %v6430 = vpack.c.b16 %v5695, %v5646
  %v6431 = vpack.c.b16 %v5696, %v5647
  %v6432 = vpack.c.b16 %v5697, %v5648
  %v6433 = vpack.c.b16 %v5698, %v5649
  %v6434 = vpack.c.b16 %v5699, %v5650
  %v6435 = vpack.c.b16 %v5700, %v5651
  %v6436 = vpack.c.b16 %v5701, %v5652
  %v6437 = vpack.c.b16 %v5702, %v5653
  %v6438 = vpack.c.b16 %v5703, %v5654
  %v6439 = vpack.c.b16 %v5704, %v5655
  %v6440 = vpack.c.b16 %v5705, %v5656
  %v6441 = vpack.c.b16 %v5706, %v5657
  %v6442 = vpack.c.b16 %v5707, %v5658
  %v6443 = vpack.c.b16 %v5708, %v5659
  %v6444 = vpack.c.b16 %v5709, %v5660
  %v6445 = vpack.c.b16 %v5710, %v5661
  %v6446 = vpack.c.b16 %v5711, %v5662
  %v6447 = vpack.c.b16 %v5712, %v5663
  %v6448 = vpack.c.b16 %v5713, %v5664
  %v6449 = vpack.c.b16 %v5714, %v5665
  %v6450 = vpack.c.b16 %v5715, %v5666
  %v6451 = vpack.c.b16 %v5716, %v5667
  %v6452 = vpack.c.b16 %v5717, %v5668
  %v6453 = vpack.c.b16 %v5718, %v5669
  %v6454 = vpack.c.b16 %v5719, %v5670
  %v6455 = vpack.c.b16 %v5720, %v5671
  %v6456 = vpack.c.b16 %v5721, %v5672
  %v6457 = vpack.c.b16 %v5722, %v5673
  %v6458 = vpack.c.b16 %v5723, %v5674
  %v6459 = vpack.c.b16 %v5724, %v5675
  %v6460 = vpack.c.b16 %v5725, %v5676
  %v6461 = vpack.c.b16 %v5726, %v5677
  %v6462 = vpack.c.b16 %v5727, %v5678
  %v6463 = vpack.c.b16 %v5728, %v5679
  %v6464 = vpack.c.b16 %v5729, %v5680
  %v6465 = vpack.c.b16 %v5730, %v5681
  %v6466 = vpack.c.b16 %v5731, %v5682
  %v6467 = vpack.c.b16 %v5732, %v5683
  %v6468 = vpack.c.b16 %v5782, %v5733
  %v6469 = vpack.c.b16 %v5783, %v5734
  %v6470 = vpack.c.b16 %v5784, %v5735
  %v6471 = vpack.c.b16 %v5785, %v5736
  %v6472 = vpack.c.b16 %v5786, %v5737
  %v6473 = vpack.c.b16 %v5787, %v5738
  %v6474 = vpack.c.b16 %v5788, %v5739
  %v6475 = vpack.c.b16 %v5789, %v5740
  %v6476 = vpack.c.b16 %v5790, %v5741
  %v6477 = vpack.c.b16 %v5791, %v5742
  %v6478 = vpack.c.b16 %v5792, %v5743
  %v6479 = vpack.c.b16 %v5793, %v5744
  %v6480 = vpack.c.b16 %v5794, %v5745
  %v6481 = vpack.c.b16 %v5795, %v5746
  %v6482 = vpack.c.b16 %v5796, %v5747
  %v6483 = vpack.c.b16 %v5797, %v5748
  %v6484 = vpack.c.b16 %v5798, %v5749
  %v6485 = vpack.c.b16 %v5799, %v5750
  %v6486 = vpack.c.b16 %v5800, %v5751
  %v6487 = vpack.c.b16 %v5801, %v5752
  %v6488 = vpack.c.b16 %v5802, %v5753
  %v6489 = vpack.c.b16 %v5803, %v5754
  %v6490 = vpack.c.b16 %v5804, %v5755
  %v6491 = vpack.c.b16 %v5805, %v5756
  %v6492 = vpack.c.b16 %v5806, %v5757
  %v6493 = vpack.c.b16 %v5807, %v5758
  %v6494 = vpack.c.b16 %v5808, %v5759
  %v6495 = vpack.c.b16 %v5809, %v5760
  %v6496 = vpack.c.b16 %v5810, %v5761
  %v6497 = vpack.c.b16 %v5811, %v5762
  %v6498 = vpack.c.b16 %v5812, %v5763
  %v6499 = vpack.c.b16 %v5813, %v5764
  %v6500 = vpack.c.b16 %v5814, %v5765
  %v6501 = vpack.c.b16 %v5815, %v5766
  %v6502 = vpack.c.b16 %v5816, %v5767
  %v6503 = vpack.c.b16 %v5817, %v5768
  %v6504 = vpack.c.b16 %v5818, %v5769
  %v6505 = vpack.c.b16 %v5819, %v5770
  %v6506 = vpack.c.b16 %v5820, %v5771
  %v6507 = vpack.c.b16 %v5821, %v5772
  %v6508 = vpack.c.b16 %v5822, %v5773
  %v6509 = vpack.c.b16 %v5823, %v5774
  %v6510 = vpack.c.b16 %v5824, %v5775
  %v6511 = vpack.c.b16 %v5825, %v5776
  %v6512 = vpack.c.b16 %v5826, %v5777
  %v6513 = vpack.c.b16 %v5827, %v5778
  %v6514 = vpack.c.b16 %v5828, %v5779
  %v6515 = vpack.c.b16 %v5829, %v5780
  %v6516 = vpack.c.b16 %v5830, %v5781
  %v6517 = vpack.c.b16 %v5880, %v5831
  %v6518 = vpack.c.b16 %v5881, %v5832
  %v6519 = vpack.c.b16 %v5882, %v5833
  %v6520 = vpack.c.b16 %v5883, %v5834
  %v6521 = vpack.c.b16 %v5884, %v5835
  %v6522 = vpack.c.b16 %v5885, %v5836
  %v6523 = vpack.c.b16 %v5886, %v5837
  %v6524 = vpack.c.b16 %v5887, %v5838
  %v6525 = vpack.c.b16 %v5888, %v5839
  %v6526 = vpack.c.b16 %v5889, %v5840
  %v6527 = vpack.c.b16 %v5890, %v5841
  %v6528 = vpack.c.b16 %v5891, %v5842
  %v6529 = vpack.c.b16 %v5892, %v5843
  %v6530 = vpack.c.b16 %v5893, %v5844
  %v6531 = vpack.c.b16 %v5894, %v5845
  %v6532 = vpack.c.b16 %v5895, %v5846
  %v6533 = vpack.c.b16 %v5896, %v5847
  %v6534 = vpack.c.b16 %v5897, %v5848
  %v6535 = vpack.c.b16 %v5898, %v5849
  %v6536 = vpack.c.b16 %v5899, %v5850
  %v6537 = vpack.c.b16 %v5900, %v5851
  %v6538 = vpack.c.b16 %v5901, %v5852
  %v6539 = vpack.c.b16 %v5902, %v5853
  %v6540 = vpack.c.b16 %v5903, %v5854
  %v6541 = vpack.c.b16 %v5904, %v5855
  %v6542 = vpack.c.b16 %v5905, %v5856
  %v6543 = vpack.c.b16 %v5906, %v5857
  %v6544 = vpack.c.b16 %v5907, %v5858
  %v6545 = vpack.c.b16 %v5908, %v5859
  %v6546 = vpack.c.b16 %v5909, %v5860
  %v6547 = vpack.c.b16 %v5910, %v5861
  %v6548 = vpack.c.b16 %v5911, %v5862
  %v6549 = vpack.c.b16 %v5912, %v5863
  %v6550 = vpack.c.b16 %v5913, %v5864
  %v6551 = vpack.c.b16 %v5914, %v5865
  %v6552 = vpack.c.b16 %v5915, %v5866
  %v6553 = vpack.c.b16 %v5916, %v5867
  %v6554 = vpack.c.b16 %v5917, %v5868
  %v6555 = vpack.c.b16 %v5918, %v5869
  %v6556 = vpack.c.b16 %v5919, %v5870
  %v6557 = vpack.c.b16 %v5920, %v5871
  %v6558 = vpack.c.b16 %v5921, %v5872
  %v6559 = vpack.c.b16 %v5922, %v5873
  %v6560 = vpack.c.b16 %v5923, %v5874
  %v6561 = vpack.c.b16 %v5924, %v5875
  %v6562 = vpack.c.b16 %v5925, %v5876
  %v6563 = vpack.c.b16 %v5926, %v5877
  %v6564 = vpack.c.b16 %v5927, %v5878
  %v6565 = vpack.c.b16 %v5928, %v5879
  %v6566 = vpack.c.b16 %v5978, %v5929
  %v6567 = vpack.c.b16 %v5979, %v5930
  %v6568 = vpack.c.b16 %v5980, %v5931
  %v6569 = vpack.c.b16 %v5981, %v5932
  %v6570 = vpack.c.b16 %v5982, %v5933
  %v6571 = vpack.c.b16 %v5983, %v5934
  %v6572 = vpack.c.b16 %v5984, %v5935
  %v6573 = vpack.c.b16 %v5985, %v5936
  %v6574 = vpack.c.b16 %v5986, %v5937
  %v6575 = vpack.c.b16 %v5987, %v5938
  %v6576 = vpack.c.b16 %v5988, %v5939
  %v6577 = vpack.c.b16 %v5989, %v5940
  %v6578 = vpack.c.b16 %v5990, %v5941
  %v6579 = vpack.c.b16 %v5991, %v5942
  %v6580 = vpack.c.b16 %v5992, %v5943
  %v6581 = vpack.c.b16 %v5993, %v5944
  %v6582 = vpack.c.b16 %v5994, %v5945
  %v6583 = vpack.c.b16 %v5995, %v5946
  %v6584 = vpack.c.b16 %v5996, %v5947
  %v6585 = vpack.c.b16 %v5997, %v5948
  %v6586 = vpack.c.b16 %v5998, %v5949
  %v6587 = vpack.c.b16 %v5999, %v5950
  %v6588 = vpack.c.b16 %v6000, %v5951
  %v6589 = vpack.c.b16 %v6001, %v5952
  %v6590 = vpack.c.b16 %v6002, %v5953
  %v6591 = vpack.c.b16 %v6003, %v5954
  %v6592 = vpack.c.b16 %v6004, %v5955
  %v6593 = vpack.c.b16 %v6005, %v5956
  %v6594 = vpack.c.b16 %v6006, %v5957
  %v6595 = vpack.c.b16 %v6007, %v5958
  %v6596 = vpack.c.b16 %v6008, %v5959
  %v6597 = vpack.c.b16 %v6009, %v5960
  %v6598 = vpack.c.b16 %v6010, %v5961
  %v6599 = vpack.c.b16 %v6011, %v5962
  %v6600 = vpack.c.b16 %v6012, %v5963
  %v6601 = vpack.c.b16 %v6013, %v5964
  %v6602 = vpack.c.b16 %v6014, %v5965
  %v6603 = vpack.c.b16 %v6015, %v5966
  %v6604 = vpack.c.b16 %v6016, %v5967
  %v6605 = vpack.c.b16 %v6017, %v5968
  %v6606 = vpack.c.b16 %v6018, %v5969
  %v6607 = vpack.c.b16 %v6019, %v5970
  %v6608 = vpack.c.b16 %v6020, %v5971
  %v6609 = vpack.c.b16 %v6021, %v5972
  %v6610 = vpack.c.b16 %v6022, %v5973
  %v6611 = vpack.c.b16 %v6023, %v5974
  %v6612 = vpack.c.b16 %v6024, %v5975
  %v6613 = vpack.c.b16 %v6025, %v5976
  %v6614 = vpack.c.b16 %v6026, %v5977
  %v6615 = vpack.c.b16 %v6076, %v6027
  %v6616 = vpack.c.b16 %v6077, %v6028
  %v6617 = vpack.c.b16 %v6078, %v6029
  %v6618 = vpack.c.b16 %v6079, %v6030
  %v6619 = vpack.c.b16 %v6080, %v6031
  %v6620 = vpack.c.b16 %v6081, %v6032
  %v6621 = vpack.c.b16 %v6082, %v6033
  %v6622 = vpack.c.b16 %v6083, %v6034
  %v6623 = vpack.c.b16 %v6084, %v6035
  %v6624 = vpack.c.b16 %v6085, %v6036
  %v6625 = vpack.c.b16 %v6086, %v6037
  %v6626 = vpack.c.b16 %v6087, %v6038
  %v6627 = vpack.c.b16 %v6088, %v6039
  %v6628 = vpack.c.b16 %v6089, %v6040
  %v6629 = vpack.c.b16 %v6090, %v6041
  %v6630 = vpack.c.b16 %v6091, %v6042
  %v6631 = vpack.c.b16 %v6092, %v6043
  %v6632 = vpack.c.b16 %v6093, %v6044
  %v6633 = vpack.c.b16 %v6094, %v6045
  %v6634 = vpack.c.b16 %v6095, %v6046
  %v6635 = vpack.c.b16 %v6096, %v6047
  %v6636 = vpack.c.b16 %v6097, %v6048
  %v6637 = vpack.c.b16 %v6098, %v6049
  %v6638 = vpack.c.b16 %v6099, %v6050
  %v6639 = vpack.c.b16 %v6100, %v6051
  %v6640 = vpack.c.b16 %v6101, %v6052
  %v6641 = vpack.c.b16 %v6102, %v6053
  %v6642 = vpack.c.b16 %v6103, %v6054
  %v6643 = vpack.c.b16 %v6104, %v6055
  %v6644 = vpack.c.b16 %v6105, %v6056
  %v6645 = vpack.c.b16 %v6106, %v6057
  %v6646 = vpack.c.b16 %v6107, %v6058
  %v6647 = vpack.c.b16 %v6108, %v6059
  %v6648 = vpack.c.b16 %v6109, %v6060
  %v6649 = vpack.c.b16 %v6110, %v6061
  %v6650 = vpack.c.b16 %v6111, %v6062
  %v6651 = vpack.c.b16 %v6112, %v6063
  %v6652 = vpack.c.b16 %v6113, %v6064
  %v6653 = vpack.c.b16 %v6114, %v6065
  %v6654 = vpack.c.b16 %v6115, %v6066
  %v6655 = vpack.c.b16 %v6116, %v6067
  %v6656 = vpack.c.b16 %v6117, %v6068
  %v6657 = vpack.c.b16 %v6118, %v6069
  %v6658 = vpack.c.b16 %v6119, %v6070
  %v6659 = vpack.c.b16 %v6120, %v6071
  %v6660 = vpack.c.b16 %v6121, %v6072
  %v6661 = vpack.c.b16 %v6122, %v6073
  %v6662 = vpack.c.b16 %v6123, %v6074
  %v6663 = vpack.c.b16 %v6124, %v6075
  %v6664 = vpack.c.b16 %v6174, %v6125
  %v6665 = vpack.c.b16 %v6175, %v6126
  %v6666 = vpack.c.b16 %v6176, %v6127
  %v6667 = vpack.c.b16 %v6177, %v6128
  %v6668 = vpack.c.b16 %v6178, %v6129
  %v6669 = vpack.c.b16 %v6179, %v6130
  %v6670 = vpack.c.b16 %v6180, %v6131
  %v6671 = vpack.c.b16 %v6181, %v6132
  %v6672 = vpack.c.b16 %v6182, %v6133
  %v6673 = vpack.c.b16 %v6183, %v6134
  %v6674 = vpack.c.b16 %v6184, %v6135
  %v6675 = vpack.c.b16 %v6185, %v6136
  %v6676 = vpack.c.b16 %v6186, %v6137
  %v6677 = vpack.c.b16 %v6187, %v6138
  %v6678 = vpack.c.b16 %v6188, %v6139
  %v6679 = vpack.c.b16 %v6189, %v6140
  %v6680 = vpack.c.b16 %v6190, %v6141
  %v6681 = vpack.c.b16 %v6191, %v6142
  %v6682 = vpack.c.b16 %v6192, %v6143
  %v6683 = vpack.c.b16 %v6193, %v6144
  %v6684 = vpack.c.b16 %v6194, %v6145
  %v6685 = vpack.c.b16 %v6195, %v6146
  %v6686 = vpack.c.b16 %v6196, %v6147
  %v6687 = vpack.c.b16 %v6197, %v6148
  %v6688 = vpack.c.b16 %v6198, %v6149
  %v6689 = vpack.c.b16 %v6199, %v6150
  %v6690 = vpack.c.b16 %v6200, %v6151
  %v6691 = vpack.c.b16 %v6201, %v6152
  %v6692 = vpack.c.b16 %v6202, %v6153
  %v6693 = vpack.c.b16 %v6203, %v6154
  %v6694 = vpack.c.b16 %v6204, %v6155
  %v6695 = vpack.c.b16 %v6205, %v6156
  %v6696 = vpack.c.b16 %v6206, %v6157
  %v6697 = vpack.c.b16 %v6207, %v6158
  %v6698 = vpack.c.b16 %v6208, %v6159
  %v6699 = vpack.c.b16 %v6209, %v6160
  %v6700 = vpack.c.b16 %v6210, %v6161
  %v6701 = vpack.c.b16 %v6211, %v6162
  %v6702 = vpack.c.b16 %v6212, %v6163
  %v6703 = vpack.c.b16 %v6213, %v6164
  %v6704 = vpack.c.b16 %v6214, %v6165
  %v6705 = vpack.c.b16 %v6215, %v6166
  %v6706 = vpack.c.b16 %v6216, %v6167
  %v6707 = vpack.c.b16 %v6217, %v6168
  %v6708 = vpack.c.b16 %v6218, %v6169
  %v6709 = vpack.c.b16 %v6219, %v6170
  %v6710 = vpack.c.b16 %v6220, %v6171
  %v6711 = vpack.c.b16 %v6221, %v6172
  %v6712 = vpack.c.b16 %v6222, %v6173
  %v6713 = vpack.c.b16 %v6272, %v6223
  %v6714 = vpack.c.b16 %v6273, %v6224
  %v6715 = vpack.c.b16 %v6274, %v6225
  %v6716 = vpack.c.b16 %v6275, %v6226
  %v6717 = vpack.c.b16 %v6276, %v6227
  %v6718 = vpack.c.b16 %v6277, %v6228
  %v6719 = vpack.c.b16 %v6278, %v6229
  %v6720 = vpack.c.b16 %v6279, %v6230
  %v6721 = vpack.c.b16 %v6280, %v6231
  %v6722 = vpack.c.b16 %v6281, %v6232
  %v6723 = vpack.c.b16 %v6282, %v6233
  %v6724 = vpack.c.b16 %v6283, %v6234
  %v6725 = vpack.c.b16 %v6284, %v6235
  %v6726 = vpack.c.b16 %v6285, %v6236
  %v6727 = vpack.c.b16 %v6286, %v6237
  %v6728 = vpack.c.b16 %v6287, %v6238
  %v6729 = vpack.c.b16 %v6288, %v6239
  %v6730 = vpack.c.b16 %v6289, %v6240
  %v6731 = vpack.c.b16 %v6290, %v6241
  %v6732 = vpack.c.b16 %v6291, %v6242
  %v6733 = vpack.c.b16 %v6292, %v6243
  %v6734 = vpack.c.b16 %v6293, %v6244
  %v6735 = vpack.c.b16 %v6294, %v6245
  %v6736 = vpack.c.b16 %v6295, %v6246
  %v6737 = vpack.c.b16 %v6296, %v6247
  %v6738 = vpack.c.b16 %v6297, %v6248
  %v6739 = vpack.c.b16 %v6298, %v6249
  %v6740 = vpack.c.b16 %v6299, %v6250
  %v6741 = vpack.c.b16 %v6300, %v6251
  %v6742 = vpack.c.b16 %v6301, %v6252
  %v6743 = vpack.c.b16 %v6302, %v6253
  %v6744 = vpack.c.b16 %v6303, %v6254
  %v6745 = vpack.c.b16 %v6304, %v6255
  %v6746 = vpack.c.b16 %v6305, %v6256
  %v6747 = vpack.c.b16 %v6306, %v6257
  %v6748 = vpack.c.b16 %v6307, %v6258
  %v6749 = vpack.c.b16 %v6308, %v6259
  %v6750 = vpack.c.b16 %v6309, %v6260
  %v6751 = vpack.c.b16 %v6310, %v6261
  %v6752 = vpack.c.b16 %v6311, %v6262
  %v6753 = vpack.c.b16 %v6312, %v6263
  %v6754 = vpack.c.b16 %v6313, %v6264
  %v6755 = vpack.c.b16 %v6314, %v6265
  %v6756 = vpack.c.b16 %v6315, %v6266
  %v6757 = vpack.c.b16 %v6316, %v6267
  %v6758 = vpack.c.b16 %v6317, %v6268
  %v6759 = vpack.c.b16 %v6318, %v6269
  %v6760 = vpack.c.b16 %v6319, %v6270
  %v6761 = vpack.c.b16 %v6320, %v6271
  %v6762 = vpack.c.b16 %v6370, %v6321
  %v6763 = vpack.c.b16 %v6371, %v6322
  %v6764 = vpack.c.b16 %v6372, %v6323
  %v6765 = vpack.c.b16 %v6373, %v6324
  %v6766 = vpack.c.b16 %v6374, %v6325
  %v6767 = vpack.c.b16 %v6375, %v6326
  %v6768 = vpack.c.b16 %v6376, %v6327
  %v6769 = vpack.c.b16 %v6377, %v6328
  %v6770 = vpack.c.b16 %v6378, %v6329
  %v6771 = vpack.c.b16 %v6379, %v6330
  %v6772 = vpack.c.b16 %v6380, %v6331
  %v6773 = vpack.c.b16 %v6381, %v6332
  %v6774 = vpack.c.b16 %v6382, %v6333
  %v6775 = vpack.c.b16 %v6383, %v6334
  %v6776 = vpack.c.b16 %v6384, %v6335
  %v6777 = vpack.c.b16 %v6385, %v6336
  %v6778 = vpack.c.b16 %v6386, %v6337
  %v6779 = vpack.c.b16 %v6387, %v6338
  %v6780 = vpack.c.b16 %v6388, %v6339
  %v6781 = vpack.c.b16 %v6389, %v6340
  %v6782 = vpack.c.b16 %v6390, %v6341
  %v6783 = vpack.c.b16 %v6391, %v6342
  %v6784 = vpack.c.b16 %v6392, %v6343
  %v6785 = vpack.c.b16 %v6393, %v6344
  %v6786 = vpack.c.b16 %v6394, %v6345
  %v6787 = vpack.c.b16 %v6395, %v6346
  %v6788 = vpack.c.b16 %v6396, %v6347
  %v6789 = vpack.c.b16 %v6397, %v6348
  %v6790 = vpack.c.b16 %v6398, %v6349
  %v6791 = vpack.c.b16 %v6399, %v6350
  %v6792 = vpack.c.b16 %v6400, %v6351
  %v6793 = vpack.c.b16 %v6401, %v6352
  %v6794 = vpack.c.b16 %v6402, %v6353
  %v6795 = vpack.c.b16 %v6403, %v6354
  %v6796 = vpack.c.b16 %v6404, %v6355
  %v6797 = vpack.c.b16 %v6405, %v6356
  %v6798 = vpack.c.b16 %v6406, %v6357
  %v6799 = vpack.c.b16 %v6407, %v6358
  %v6800 = vpack.c.b16 %v6408, %v6359
  %v6801 = vpack.c.b16 %v6409, %v6360
  %v6802 = vpack.c.b16 %v6410, %v6361
  %v6803 = vpack.c.b16 %v6411, %v6362
  %v6804 = vpack.c.b16 %v6412, %v6363
  %v6805 = vpack.c.b16 %v6413, %v6364
  %v6806 = vpack.c.b16 %v6414, %v6365
  %v6807 = vpack.c.b16 %v6415, %v6366
  %v6808 = vpack.c.b16 %v6416, %v6367
  %v6809 = vpack.c.b16 %v6417, %v6368
  %v6810 = vpack.c.b16 %v6418, %v6369
  %7203 = vmatprep.subr.bf16.mxu0 %v6420
  %7204 = vmatpush1.bf16.msra.mxu0 %v6419
  %7205 = vmatprep.subr.bf16.mxu0 %v6469
  %7206 = vmatpush1.bf16.msra.mxu0 %v6468
  %7207 = vmatprep.subr.bf16.mxu0 %v6518
  %7208 = vmatpush1.bf16.msra.mxu0 %v6517
  %7209 = vmatprep.subr.bf16.mxu0 %v6567
  %7210 = vmatpush1.bf16.msra.mxu0 %v6566
  %7211 = vmatprep.subr.bf16.mxu0 %v6616
  %7212 = vmatpush1.bf16.msra.mxu0 %v6615
  %7213 = vmatprep.subr.bf16.mxu0 %v6665
  %7214 = vmatpush1.bf16.msra.mxu0 %v6664
  %7215 = vmatprep.subr.bf16.mxu0 %v6714
  %7216 = vmatpush1.bf16.msra.mxu0 %v6713
  %7217 = vmatprep.subr.bf16.mxu0 %v6763
  %7218 = vmatpush1.bf16.msra.mxu0 %v6762
  %7219 = vmatprep.subr.bf16.mxu0 0
  %7220 = vmatpush1.bf16.msra.mxu0 0
  %7221 = vmatprep.subr.bf16.mxu0 0
  %7222 = vmatpush1.bf16.msra.mxu0 0
  %7223 = vmatprep.subr.bf16.mxu0 0
  %7224 = vmatpush1.bf16.msra.mxu0 0
  %7225 = vmatprep.subr.bf16.mxu0 0
  %7226 = vmatpush1.bf16.msra.mxu0 0
  %7227 = vmatprep.subr.bf16.mxu0 0
  %7228 = vmatpush1.bf16.msra.mxu0 0
  %7229 = vmatprep.subr.bf16.mxu0 0
  %7230 = vmatpush1.bf16.msra.mxu0 0
  %7231 = vmatprep.subr.bf16.mxu0 0
  %7232 = vmatpush1.bf16.msra.mxu0 0
  %7233 = vmatprep.subr.bf16.mxu0 0
  %7234 = vmatpush1.bf16.msra.mxu0 0
  %7235 = vmatprep.mubr.bf16.mxu0 0
  %7236 = vmatmul.mubr.bf16.gmra.mrb[0].mxu0 %v4360
  %v7237 = vpop.f32.mrb[0].mxu0
  %v7238 = vadd.f32 %v5042, %v7237
  %v7239 = vpop.f32.mrb[0].mxu0
  %v7240 = vadd.f32 %v5046, %v7239
  %v7241 = vpop.f32.mrb[0].mxu0
  %v7242 = vpop.f32.mrb[0].mxu0
  %7243 = vdwg.mxu0
  %7244 = vmatprep.subr.bf16.mxu0 %v6422
  %7245 = vmatpush1.bf16.msra.mxu0 %v6421
  %7246 = vmatprep.subr.bf16.mxu0 %v6471
  %7247 = vmatpush1.bf16.msra.mxu0 %v6470
  %7248 = vmatprep.subr.bf16.mxu0 %v6520
  %7249 = vmatpush1.bf16.msra.mxu0 %v6519
  %7250 = vmatprep.subr.bf16.mxu0 %v6569
  %7251 = vmatpush1.bf16.msra.mxu0 %v6568
  %7252 = vmatprep.subr.bf16.mxu0 %v6618
  %7253 = vmatpush1.bf16.msra.mxu0 %v6617
  %7254 = vmatprep.subr.bf16.mxu0 %v6667
  %7255 = vmatpush1.bf16.msra.mxu0 %v6666
  %7256 = vmatprep.subr.bf16.mxu0 %v6716
  %7257 = vmatpush1.bf16.msra.mxu0 %v6715
  %7258 = vmatprep.subr.bf16.mxu0 %v6765
  %7259 = vmatpush1.bf16.msra.mxu0 %v6764
  %7260 = vmatprep.subr.bf16.mxu0 0
  %7261 = vmatpush1.bf16.msra.mxu0 0
  %7262 = vmatprep.subr.bf16.mxu0 0
  %7263 = vmatpush1.bf16.msra.mxu0 0
  %7264 = vmatprep.subr.bf16.mxu0 0
  %7265 = vmatpush1.bf16.msra.mxu0 0
  %7266 = vmatprep.subr.bf16.mxu0 0
  %7267 = vmatpush1.bf16.msra.mxu0 0
  %7268 = vmatprep.subr.bf16.mxu0 0
  %7269 = vmatpush1.bf16.msra.mxu0 0
  %7270 = vmatprep.subr.bf16.mxu0 0
  %7271 = vmatpush1.bf16.msra.mxu0 0
  %7272 = vmatprep.subr.bf16.mxu0 0
  %7273 = vmatpush1.bf16.msra.mxu0 0
  %7274 = vmatprep.subr.bf16.mxu0 0
  %7275 = vmatpush1.bf16.msra.mxu0 0
  %7276 = vmatprep.mubr.bf16.mxu0 0
  %7277 = vmatmul.mubr.bf16.gmra.mrb[0].mxu0 %v4360
  %v7278 = vpop.f32.mrb[0].mxu0
  %v7279 = vadd.f32 %v5050, %v7278
  %v7280 = vpop.f32.mrb[0].mxu0
  %v7281 = vadd.f32 %v5054, %v7280
  %v7282 = vpop.f32.mrb[0].mxu0
  %v7283 = vpop.f32.mrb[0].mxu0
  %7284 = vdwg.mxu0
  %7285 = vmatprep.subr.bf16.mxu0 %v6424
  %7286 = vmatpush1.bf16.msra.mxu0 %v6423
  %7287 = vmatprep.subr.bf16.mxu0 %v6473
  %7288 = vmatpush1.bf16.msra.mxu0 %v6472
  %7289 = vmatprep.subr.bf16.mxu0 %v6522
  %7290 = vmatpush1.bf16.msra.mxu0 %v6521
  %7291 = vmatprep.subr.bf16.mxu0 %v6571
  %7292 = vmatpush1.bf16.msra.mxu0 %v6570
  %7293 = vmatprep.subr.bf16.mxu0 %v6620
  %7294 = vmatpush1.bf16.msra.mxu0 %v6619
  %7295 = vmatprep.subr.bf16.mxu0 %v6669
  %7296 = vmatpush1.bf16.msra.mxu0 %v6668
  %7297 = vmatprep.subr.bf16.mxu0 %v6718
  %7298 = vmatpush1.bf16.msra.mxu0 %v6717
  %7299 = vmatprep.subr.bf16.mxu0 %v6767
  %7300 = vmatpush1.bf16.msra.mxu0 %v6766
  %7301 = vmatprep.subr.bf16.mxu0 0
  %7302 = vmatpush1.bf16.msra.mxu0 0
  %7303 = vmatprep.subr.bf16.mxu0 0
  %7304 = vmatpush1.bf16.msra.mxu0 0
  %7305 = vmatprep.subr.bf16.mxu0 0
  %7306 = vmatpush1.bf16.msra.mxu0 0
  %7307 = vmatprep.subr.bf16.mxu0 0
  %7308 = vmatpush1.bf16.msra.mxu0 0
  %7309 = vmatprep.subr.bf16.mxu0 0
  %7310 = vmatpush1.bf16.msra.mxu0 0
  %7311 = vmatprep.subr.bf16.mxu0 0
  %7312 = vmatpush1.bf16.msra.mxu0 0
  %7313 = vmatprep.subr.bf16.mxu0 0
  %7314 = vmatpush1.bf16.msra.mxu0 0
  %7315 = vmatprep.subr.bf16.mxu0 0
  %7316 = vmatpush1.bf16.msra.mxu0 0
  %7317 = vmatprep.mubr.bf16.mxu0 0
  %7318 = vmatmul.mubr.bf16.gmra.mrb[0].mxu0 %v4360
  %v7319 = vpop.f32.mrb[0].mxu0
  %v7320 = vadd.f32 %v5058, %v7319
  %v7321 = vpop.f32.mrb[0].mxu0
  %v7322 = vadd.f32 %v5062, %v7321
  %v7323 = vpop.f32.mrb[0].mxu0
  %v7324 = vpop.f32.mrb[0].mxu0
  %7325 = vdwg.mxu0
  %7326 = vmatprep.subr.bf16.mxu0 %v6426
  %7327 = vmatpush1.bf16.msra.mxu0 %v6425
  %7328 = vmatprep.subr.bf16.mxu0 %v6475
  %7329 = vmatpush1.bf16.msra.mxu0 %v6474
  %7330 = vmatprep.subr.bf16.mxu0 %v6524
  %7331 = vmatpush1.bf16.msra.mxu0 %v6523
  %7332 = vmatprep.subr.bf16.mxu0 %v6573
  %7333 = vmatpush1.bf16.msra.mxu0 %v6572
  %7334 = vmatprep.subr.bf16.mxu0 %v6622
  %7335 = vmatpush1.bf16.msra.mxu0 %v6621
  %7336 = vmatprep.subr.bf16.mxu0 %v6671
  %7337 = vmatpush1.bf16.msra.mxu0 %v6670
  %7338 = vmatprep.subr.bf16.mxu0 %v6720
  %7339 = vmatpush1.bf16.msra.mxu0 %v6719
  %7340 = vmatprep.subr.bf16.mxu0 %v6769
  %7341 = vmatpush1.bf16.msra.mxu0 %v6768
  %7342 = vmatprep.subr.bf16.mxu0 0
  %7343 = vmatpush1.bf16.msra.mxu0 0
  %7344 = vmatprep.subr.bf16.mxu0 0
  %7345 = vmatpush1.bf16.msra.mxu0 0
  %7346 = vmatprep.subr.bf16.mxu0 0
  %7347 = vmatpush1.bf16.msra.mxu0 0
  %7348 = vmatprep.subr.bf16.mxu0 0
  %7349 = vmatpush1.bf16.msra.mxu0 0
  %7350 = vmatprep.subr.bf16.mxu0 0
  %7351 = vmatpush1.bf16.msra.mxu0 0
  %7352 = vmatprep.subr.bf16.mxu0 0
  %7353 = vmatpush1.bf16.msra.mxu0 0
  %7354 = vmatprep.subr.bf16.mxu0 0
  %7355 = vmatpush1.bf16.msra.mxu0 0
  %7356 = vmatprep.subr.bf16.mxu0 0
  %7357 = vmatpush1.bf16.msra.mxu0 0
  %7358 = vmatprep.mubr.bf16.mxu0 0
  %7359 = vmatmul.mubr.bf16.gmra.mrb[0].mxu0 %v4360
  %v7360 = vpop.f32.mrb[0].mxu0
  %v7361 = vadd.f32 %v5066, %v7360
  %v7362 = vpop.f32.mrb[0].mxu0
  %v7363 = vadd.f32 %v5070, %v7362
  %v7364 = vpop.f32.mrb[0].mxu0
  %v7365 = vpop.f32.mrb[0].mxu0
  %7366 = vdwg.mxu0
  %7367 = vmatprep.subr.bf16.mxu0 %v6428
  %7368 = vmatpush1.bf16.msra.mxu0 %v6427
  %7369 = vmatprep.subr.bf16.mxu0 %v6477
  %7370 = vmatpush1.bf16.msra.mxu0 %v6476
  %7371 = vmatprep.subr.bf16.mxu0 %v6526
  %7372 = vmatpush1.bf16.msra.mxu0 %v6525
  %7373 = vmatprep.subr.bf16.mxu0 %v6575
  %7374 = vmatpush1.bf16.msra.mxu0 %v6574
  %7375 = vmatprep.subr.bf16.mxu0 %v6624
  %7376 = vmatpush1.bf16.msra.mxu0 %v6623
  %7377 = vmatprep.subr.bf16.mxu0 %v6673
  %7378 = vmatpush1.bf16.msra.mxu0 %v6672
  %7379 = vmatprep.subr.bf16.mxu0 %v6722
  %7380 = vmatpush1.bf16.msra.mxu0 %v6721
  %7381 = vmatprep.subr.bf16.mxu0 %v6771
  %7382 = vmatpush1.bf16.msra.mxu0 %v6770
  %7383 = vmatprep.subr.bf16.mxu0 0
  %7384 = vmatpush1.bf16.msra.mxu0 0
  %7385 = vmatprep.subr.bf16.mxu0 0
  %7386 = vmatpush1.bf16.msra.mxu0 0
  %7387 = vmatprep.subr.bf16.mxu0 0
  %7388 = vmatpush1.bf16.msra.mxu0 0
  %7389 = vmatprep.subr.bf16.mxu0 0
  %7390 = vmatpush1.bf16.msra.mxu0 0
  %7391 = vmatprep.subr.bf16.mxu0 0
  %7392 = vmatpush1.bf16.msra.mxu0 0
  %7393 = vmatprep.subr.bf16.mxu0 0
  %7394 = vmatpush1.bf16.msra.mxu0 0
  %7395 = vmatprep.subr.bf16.mxu0 0
  %7396 = vmatpush1.bf16.msra.mxu0 0
  %7397 = vmatprep.subr.bf16.mxu0 0
  %7398 = vmatpush1.bf16.msra.mxu0 0
  %7399 = vmatprep.mubr.bf16.mxu0 0
  %7400 = vmatmul.mubr.bf16.gmra.mrb[0].mxu0 %v4360
  %v7401 = vpop.f32.mrb[0].mxu0
  %v7402 = vadd.f32 %v5074, %v7401
  %v7403 = vpop.f32.mrb[0].mxu0
  %v7404 = vadd.f32 %v5078, %v7403
  %v7405 = vpop.f32.mrb[0].mxu0
  %v7406 = vpop.f32.mrb[0].mxu0
  %7407 = vdwg.mxu0
  %7408 = vmatprep.subr.bf16.mxu0 %v6430
  %7409 = vmatpush1.bf16.msra.mxu0 %v6429
  %7410 = vmatprep.subr.bf16.mxu0 %v6479
  %7411 = vmatpush1.bf16.msra.mxu0 %v6478
  %7412 = vmatprep.subr.bf16.mxu0 %v6528
  %7413 = vmatpush1.bf16.msra.mxu0 %v6527
  %7414 = vmatprep.subr.bf16.mxu0 %v6577
  %7415 = vmatpush1.bf16.msra.mxu0 %v6576
  %7416 = vmatprep.subr.bf16.mxu0 %v6626
  %7417 = vmatpush1.bf16.msra.mxu0 %v6625
  %7418 = vmatprep.subr.bf16.mxu0 %v6675
  %7419 = vmatpush1.bf16.msra.mxu0 %v6674
  %7420 = vmatprep.subr.bf16.mxu0 %v6724
  %7421 = vmatpush1.bf16.msra.mxu0 %v6723
  %7422 = vmatprep.subr.bf16.mxu0 %v6773
  %7423 = vmatpush1.bf16.msra.mxu0 %v6772
  %7424 = vmatprep.subr.bf16.mxu0 0
  %7425 = vmatpush1.bf16.msra.mxu0 0
  %7426 = vmatprep.subr.bf16.mxu0 0
  %7427 = vmatpush1.bf16.msra.mxu0 0
  %7428 = vmatprep.subr.bf16.mxu0 0
  %7429 = vmatpush1.bf16.msra.mxu0 0
  %7430 = vmatprep.subr.bf16.mxu0 0
  %7431 = vmatpush1.bf16.msra.mxu0 0
  %7432 = vmatprep.subr.bf16.mxu0 0
  %7433 = vmatpush1.bf16.msra.mxu0 0
  %7434 = vmatprep.subr.bf16.mxu0 0
  %7435 = vmatpush1.bf16.msra.mxu0 0
  %7436 = vmatprep.subr.bf16.mxu0 0
  %7437 = vmatpush1.bf16.msra.mxu0 0
  %7438 = vmatprep.subr.bf16.mxu0 0
  %7439 = vmatpush1.bf16.msra.mxu0 0
  %7440 = vmatprep.mubr.bf16.mxu0 0
  %7441 = vmatmul.mubr.bf16.gmra.mrb[0].mxu0 %v4360
  %v7442 = vpop.f32.mrb[0].mxu0
  %v7443 = vadd.f32 %v5082, %v7442
  %v7444 = vpop.f32.mrb[0].mxu0
  %v7445 = vadd.f32 %v5086, %v7444
  %v7446 = vpop.f32.mrb[0].mxu0
  %v7447 = vpop.f32.mrb[0].mxu0
  %7448 = vdwg.mxu0
  %7449 = vmatprep.subr.bf16.mxu0 %v6432
  %7450 = vmatpush1.bf16.msra.mxu0 %v6431
  %7451 = vmatprep.subr.bf16.mxu0 %v6481
  %7452 = vmatpush1.bf16.msra.mxu0 %v6480
  %7453 = vmatprep.subr.bf16.mxu0 %v6530
  %7454 = vmatpush1.bf16.msra.mxu0 %v6529
  %7455 = vmatprep.subr.bf16.mxu0 %v6579
  %7456 = vmatpush1.bf16.msra.mxu0 %v6578
  %7457 = vmatprep.subr.bf16.mxu0 %v6628
  %7458 = vmatpush1.bf16.msra.mxu0 %v6627
  %7459 = vmatprep.subr.bf16.mxu0 %v6677
  %7460 = vmatpush1.bf16.msra.mxu0 %v6676
  %7461 = vmatprep.subr.bf16.mxu0 %v6726
  %7462 = vmatpush1.bf16.msra.mxu0 %v6725
  %7463 = vmatprep.subr.bf16.mxu0 %v6775
  %7464 = vmatpush1.bf16.msra.mxu0 %v6774
  %7465 = vmatprep.subr.bf16.mxu0 0
  %7466 = vmatpush1.bf16.msra.mxu0 0
  %7467 = vmatprep.subr.bf16.mxu0 0
  %7468 = vmatpush1.bf16.msra.mxu0 0
  %7469 = vmatprep.subr.bf16.mxu0 0
  %7470 = vmatpush1.bf16.msra.mxu0 0
  %7471 = vmatprep.subr.bf16.mxu0 0
  %7472 = vmatpush1.bf16.msra.mxu0 0
  %7473 = vmatprep.subr.bf16.mxu0 0
  %7474 = vmatpush1.bf16.msra.mxu0 0
  %7475 = vmatprep.subr.bf16.mxu0 0
  %7476 = vmatpush1.bf16.msra.mxu0 0
  %7477 = vmatprep.subr.bf16.mxu0 0
  %7478 = vmatpush1.bf16.msra.mxu0 0
  %7479 = vmatprep.subr.bf16.mxu0 0
  %7480 = vmatpush1.bf16.msra.mxu0 0
  %7481 = vmatprep.mubr.bf16.mxu0 0
  %7482 = vmatmul.mubr.bf16.gmra.mrb[0].mxu0 %v4360
  %v7483 = vpop.f32.mrb[0].mxu0
  %v7484 = vadd.f32 %v5090, %v7483
  %v7485 = vpop.f32.mrb[0].mxu0
  %v7486 = vadd.f32 %v5094, %v7485
  %v7487 = vpop.f32.mrb[0].mxu0
  %v7488 = vpop.f32.mrb[0].mxu0
  %7489 = vdwg.mxu0
  %7490 = vmatprep.subr.bf16.mxu0 %v6434
  %7491 = vmatpush1.bf16.msra.mxu0 %v6433
  %7492 = vmatprep.subr.bf16.mxu0 %v6483
  %7493 = vmatpush1.bf16.msra.mxu0 %v6482
  %7494 = vmatprep.subr.bf16.mxu0 %v6532
  %7495 = vmatpush1.bf16.msra.mxu0 %v6531
  %7496 = vmatprep.subr.bf16.mxu0 %v6581
  %7497 = vmatpush1.bf16.msra.mxu0 %v6580
  %7498 = vmatprep.subr.bf16.mxu0 %v6630
  %7499 = vmatpush1.bf16.msra.mxu0 %v6629
  %7500 = vmatprep.subr.bf16.mxu0 %v6679
  %7501 = vmatpush1.bf16.msra.mxu0 %v6678
  %7502 = vmatprep.subr.bf16.mxu0 %v6728
  %7503 = vmatpush1.bf16.msra.mxu0 %v6727
  %7504 = vmatprep.subr.bf16.mxu0 %v6777
  %7505 = vmatpush1.bf16.msra.mxu0 %v6776
  %7506 = vmatprep.subr.bf16.mxu0 0
  %7507 = vmatpush1.bf16.msra.mxu0 0
  %7508 = vmatprep.subr.bf16.mxu0 0
  %7509 = vmatpush1.bf16.msra.mxu0 0
  %7510 = vmatprep.subr.bf16.mxu0 0
  %7511 = vmatpush1.bf16.msra.mxu0 0
  %7512 = vmatprep.subr.bf16.mxu0 0
  %7513 = vmatpush1.bf16.msra.mxu0 0
  %7514 = vmatprep.subr.bf16.mxu0 0
  %7515 = vmatpush1.bf16.msra.mxu0 0
  %7516 = vmatprep.subr.bf16.mxu0 0
  %7517 = vmatpush1.bf16.msra.mxu0 0
  %7518 = vmatprep.subr.bf16.mxu0 0
  %7519 = vmatpush1.bf16.msra.mxu0 0
  %7520 = vmatprep.subr.bf16.mxu0 0
  %7521 = vmatpush1.bf16.msra.mxu0 0
  %7522 = vmatprep.mubr.bf16.mxu0 0
  %7523 = vmatmul.mubr.bf16.gmra.mrb[0].mxu0 %v4360
  %v7524 = vpop.f32.mrb[0].mxu0
  %v7525 = vadd.f32 %v5098, %v7524
  %v7526 = vpop.f32.mrb[0].mxu0
  %v7527 = vadd.f32 %v5102, %v7526
  %v7528 = vpop.f32.mrb[0].mxu0
  %v7529 = vpop.f32.mrb[0].mxu0
  %7530 = vdwg.mxu0
  %7531 = vmatprep.subr.bf16.mxu0 %v6436
  %7532 = vmatpush1.bf16.msra.mxu0 %v6435
  %7533 = vmatprep.subr.bf16.mxu0 %v6485
  %7534 = vmatpush1.bf16.msra.mxu0 %v6484
  %7535 = vmatprep.subr.bf16.mxu0 %v6534
  %7536 = vmatpush1.bf16.msra.mxu0 %v6533
  %7537 = vmatprep.subr.bf16.mxu0 %v6583
  %7538 = vmatpush1.bf16.msra.mxu0 %v6582
  %7539 = vmatprep.subr.bf16.mxu0 %v6632
  %7540 = vmatpush1.bf16.msra.mxu0 %v6631
  %7541 = vmatprep.subr.bf16.mxu0 %v6681
  %7542 = vmatpush1.bf16.msra.mxu0 %v6680
  %7543 = vmatprep.subr.bf16.mxu0 %v6730
  %7544 = vmatpush1.bf16.msra.mxu0 %v6729
  %7545 = vmatprep.subr.bf16.mxu0 %v6779
  %7546 = vmatpush1.bf16.msra.mxu0 %v6778
  %7547 = vmatprep.subr.bf16.mxu0 0
  %7548 = vmatpush1.bf16.msra.mxu0 0
  %7549 = vmatprep.subr.bf16.mxu0 0
  %7550 = vmatpush1.bf16.msra.mxu0 0
  %7551 = vmatprep.subr.bf16.mxu0 0
  %7552 = vmatpush1.bf16.msra.mxu0 0
  %7553 = vmatprep.subr.bf16.mxu0 0
  %7554 = vmatpush1.bf16.msra.mxu0 0
  %7555 = vmatprep.subr.bf16.mxu0 0
  %7556 = vmatpush1.bf16.msra.mxu0 0
  %7557 = vmatprep.subr.bf16.mxu0 0
  %7558 = vmatpush1.bf16.msra.mxu0 0
  %7559 = vmatprep.subr.bf16.mxu0 0
  %7560 = vmatpush1.bf16.msra.mxu0 0
  %7561 = vmatprep.subr.bf16.mxu0 0
  %7562 = vmatpush1.bf16.msra.mxu0 0
  %7563 = vmatprep.mubr.bf16.mxu0 0
  %7564 = vmatmul.mubr.bf16.gmra.mrb[0].mxu0 %v4360
  %v7565 = vpop.f32.mrb[0].mxu0
  %v7566 = vadd.f32 %v5106, %v7565
  %v7567 = vpop.f32.mrb[0].mxu0
  %v7568 = vadd.f32 %v5110, %v7567
  %v7569 = vpop.f32.mrb[0].mxu0
  %v7570 = vpop.f32.mrb[0].mxu0
  %7571 = vdwg.mxu0
  %7572 = vmatprep.subr.bf16.mxu0 %v6438
  %7573 = vmatpush1.bf16.msra.mxu0 %v6437
  %7574 = vmatprep.subr.bf16.mxu0 %v6487
  %7575 = vmatpush1.bf16.msra.mxu0 %v6486
  %7576 = vmatprep.subr.bf16.mxu0 %v6536
  %7577 = vmatpush1.bf16.msra.mxu0 %v6535
  %7578 = vmatprep.subr.bf16.mxu0 %v6585
  %7579 = vmatpush1.bf16.msra.mxu0 %v6584
  %7580 = vmatprep.subr.bf16.mxu0 %v6634
  %7581 = vmatpush1.bf16.msra.mxu0 %v6633
  %7582 = vmatprep.subr.bf16.mxu0 %v6683
  %7583 = vmatpush1.bf16.msra.mxu0 %v6682
  %7584 = vmatprep.subr.bf16.mxu0 %v6732
  %7585 = vmatpush1.bf16.msra.mxu0 %v6731
  %7586 = vmatprep.subr.bf16.mxu0 %v6781
  %7587 = vmatpush1.bf16.msra.mxu0 %v6780
  %7588 = vmatprep.subr.bf16.mxu0 0
  %7589 = vmatpush1.bf16.msra.mxu0 0
  %7590 = vmatprep.subr.bf16.mxu0 0
  %7591 = vmatpush1.bf16.msra.mxu0 0
  %7592 = vmatprep.subr.bf16.mxu0 0
  %7593 = vmatpush1.bf16.msra.mxu0 0
  %7594 = vmatprep.subr.bf16.mxu0 0
  %7595 = vmatpush1.bf16.msra.mxu0 0
  %7596 = vmatprep.subr.bf16.mxu0 0
  %7597 = vmatpush1.bf16.msra.mxu0 0
  %7598 = vmatprep.subr.bf16.mxu0 0
  %7599 = vmatpush1.bf16.msra.mxu0 0
  %7600 = vmatprep.subr.bf16.mxu0 0
  %7601 = vmatpush1.bf16.msra.mxu0 0
  %7602 = vmatprep.subr.bf16.mxu0 0
  %7603 = vmatpush1.bf16.msra.mxu0 0
  %7604 = vmatprep.mubr.bf16.mxu0 0
  %7605 = vmatmul.mubr.bf16.gmra.mrb[0].mxu0 %v4360
  %v7606 = vpop.f32.mrb[0].mxu0
  %v7607 = vadd.f32 %v5114, %v7606
  %v7608 = vpop.f32.mrb[0].mxu0
  %v7609 = vadd.f32 %v5118, %v7608
  %v7610 = vpop.f32.mrb[0].mxu0
  %v7611 = vpop.f32.mrb[0].mxu0
  %7612 = vdwg.mxu0
  %7613 = vmatprep.subr.bf16.mxu0 %v6440
  %7614 = vmatpush1.bf16.msra.mxu0 %v6439
  %7615 = vmatprep.subr.bf16.mxu0 %v6489
  %7616 = vmatpush1.bf16.msra.mxu0 %v6488
  %7617 = vmatprep.subr.bf16.mxu0 %v6538
  %7618 = vmatpush1.bf16.msra.mxu0 %v6537
  %7619 = vmatprep.subr.bf16.mxu0 %v6587
  %7620 = vmatpush1.bf16.msra.mxu0 %v6586
  %7621 = vmatprep.subr.bf16.mxu0 %v6636
  %7622 = vmatpush1.bf16.msra.mxu0 %v6635
  %7623 = vmatprep.subr.bf16.mxu0 %v6685
  %7624 = vmatpush1.bf16.msra.mxu0 %v6684
  %7625 = vmatprep.subr.bf16.mxu0 %v6734
  %7626 = vmatpush1.bf16.msra.mxu0 %v6733
  %7627 = vmatprep.subr.bf16.mxu0 %v6783
  %7628 = vmatpush1.bf16.msra.mxu0 %v6782
  %7629 = vmatprep.subr.bf16.mxu0 0
  %7630 = vmatpush1.bf16.msra.mxu0 0
  %7631 = vmatprep.subr.bf16.mxu0 0
  %7632 = vmatpush1.bf16.msra.mxu0 0
  %7633 = vmatprep.subr.bf16.mxu0 0
  %7634 = vmatpush1.bf16.msra.mxu0 0
  %7635 = vmatprep.subr.bf16.mxu0 0
  %7636 = vmatpush1.bf16.msra.mxu0 0
  %7637 = vmatprep.subr.bf16.mxu0 0
  %7638 = vmatpush1.bf16.msra.mxu0 0
  %7639 = vmatprep.subr.bf16.mxu0 0
  %7640 = vmatpush1.bf16.msra.mxu0 0
  %7641 = vmatprep.subr.bf16.mxu0 0
  %7642 = vmatpush1.bf16.msra.mxu0 0
  %7643 = vmatprep.subr.bf16.mxu0 0
  %7644 = vmatpush1.bf16.msra.mxu0 0
  %7645 = vmatprep.mubr.bf16.mxu0 0
  %7646 = vmatmul.mubr.bf16.gmra.mrb[0].mxu0 %v4360
  %v7647 = vpop.f32.mrb[0].mxu0
  %v7648 = vadd.f32 %v5122, %v7647
  %v7649 = vpop.f32.mrb[0].mxu0
  %v7650 = vadd.f32 %v5126, %v7649
  %v7651 = vpop.f32.mrb[0].mxu0
  %v7652 = vpop.f32.mrb[0].mxu0
  %7653 = vdwg.mxu0
  %7654 = vmatprep.subr.bf16.mxu0 %v6442
  %7655 = vmatpush1.bf16.msra.mxu0 %v6441
  %7656 = vmatprep.subr.bf16.mxu0 %v6491
  %7657 = vmatpush1.bf16.msra.mxu0 %v6490
  %7658 = vmatprep.subr.bf16.mxu0 %v6540
  %7659 = vmatpush1.bf16.msra.mxu0 %v6539
  %7660 = vmatprep.subr.bf16.mxu0 %v6589
  %7661 = vmatpush1.bf16.msra.mxu0 %v6588
  %7662 = vmatprep.subr.bf16.mxu0 %v6638
  %7663 = vmatpush1.bf16.msra.mxu0 %v6637
  %7664 = vmatprep.subr.bf16.mxu0 %v6687
  %7665 = vmatpush1.bf16.msra.mxu0 %v6686
  %7666 = vmatprep.subr.bf16.mxu0 %v6736
  %7667 = vmatpush1.bf16.msra.mxu0 %v6735
  %7668 = vmatprep.subr.bf16.mxu0 %v6785
  %7669 = vmatpush1.bf16.msra.mxu0 %v6784
  %7670 = vmatprep.subr.bf16.mxu0 0
  %7671 = vmatpush1.bf16.msra.mxu0 0
  %7672 = vmatprep.subr.bf16.mxu0 0
  %7673 = vmatpush1.bf16.msra.mxu0 0
  %7674 = vmatprep.subr.bf16.mxu0 0
  %7675 = vmatpush1.bf16.msra.mxu0 0
  %7676 = vmatprep.subr.bf16.mxu0 0
  %7677 = vmatpush1.bf16.msra.mxu0 0
  %7678 = vmatprep.subr.bf16.mxu0 0
  %7679 = vmatpush1.bf16.msra.mxu0 0
  %7680 = vmatprep.subr.bf16.mxu0 0
  %7681 = vmatpush1.bf16.msra.mxu0 0
  %7682 = vmatprep.subr.bf16.mxu0 0
  %7683 = vmatpush1.bf16.msra.mxu0 0
  %7684 = vmatprep.subr.bf16.mxu0 0
  %7685 = vmatpush1.bf16.msra.mxu0 0
  %7686 = vmatprep.mubr.bf16.mxu0 0
  %7687 = vmatmul.mubr.bf16.gmra.mrb[0].mxu0 %v4360
  %v7688 = vpop.f32.mrb[0].mxu0
  %v7689 = vadd.f32 %v5130, %v7688
  %v7690 = vpop.f32.mrb[0].mxu0
  %v7691 = vadd.f32 %v5134, %v7690
  %v7692 = vpop.f32.mrb[0].mxu0
  %v7693 = vpop.f32.mrb[0].mxu0
  %7694 = vdwg.mxu0
  %7695 = vmatprep.subr.bf16.mxu0 %v6444
  %7696 = vmatpush1.bf16.msra.mxu0 %v6443
  %7697 = vmatprep.subr.bf16.mxu0 %v6493
  %7698 = vmatpush1.bf16.msra.mxu0 %v6492
  %7699 = vmatprep.subr.bf16.mxu0 %v6542
  %7700 = vmatpush1.bf16.msra.mxu0 %v6541
  %7701 = vmatprep.subr.bf16.mxu0 %v6591
  %7702 = vmatpush1.bf16.msra.mxu0 %v6590
  %7703 = vmatprep.subr.bf16.mxu0 %v6640
  %7704 = vmatpush1.bf16.msra.mxu0 %v6639
  %7705 = vmatprep.subr.bf16.mxu0 %v6689
  %7706 = vmatpush1.bf16.msra.mxu0 %v6688
  %7707 = vmatprep.subr.bf16.mxu0 %v6738
  %7708 = vmatpush1.bf16.msra.mxu0 %v6737
  %7709 = vmatprep.subr.bf16.mxu0 %v6787
  %7710 = vmatpush1.bf16.msra.mxu0 %v6786
  %7711 = vmatprep.subr.bf16.mxu0 0
  %7712 = vmatpush1.bf16.msra.mxu0 0
  %7713 = vmatprep.subr.bf16.mxu0 0
  %7714 = vmatpush1.bf16.msra.mxu0 0
  %7715 = vmatprep.subr.bf16.mxu0 0
  %7716 = vmatpush1.bf16.msra.mxu0 0
  %7717 = vmatprep.subr.bf16.mxu0 0
  %7718 = vmatpush1.bf16.msra.mxu0 0
  %7719 = vmatprep.subr.bf16.mxu0 0
  %7720 = vmatpush1.bf16.msra.mxu0 0
  %7721 = vmatprep.subr.bf16.mxu0 0
  %7722 = vmatpush1.bf16.msra.mxu0 0
  %7723 = vmatprep.subr.bf16.mxu0 0
  %7724 = vmatpush1.bf16.msra.mxu0 0
  %7725 = vmatprep.subr.bf16.mxu0 0
  %7726 = vmatpush1.bf16.msra.mxu0 0
  %7727 = vmatprep.mubr.bf16.mxu0 0
  %7728 = vmatmul.mubr.bf16.gmra.mrb[0].mxu0 %v4360
  %v7729 = vpop.f32.mrb[0].mxu0
  %v7730 = vadd.f32 %v5138, %v7729
  %v7731 = vpop.f32.mrb[0].mxu0
  %v7732 = vadd.f32 %v5142, %v7731
  %v7733 = vpop.f32.mrb[0].mxu0
  %v7734 = vpop.f32.mrb[0].mxu0
  %7735 = vdwg.mxu0
  %7736 = vmatprep.subr.bf16.mxu0 %v6446
  %7737 = vmatpush1.bf16.msra.mxu0 %v6445
  %7738 = vmatprep.subr.bf16.mxu0 %v6495
  %7739 = vmatpush1.bf16.msra.mxu0 %v6494
  %7740 = vmatprep.subr.bf16.mxu0 %v6544
  %7741 = vmatpush1.bf16.msra.mxu0 %v6543
  %7742 = vmatprep.subr.bf16.mxu0 %v6593
  %7743 = vmatpush1.bf16.msra.mxu0 %v6592
  %7744 = vmatprep.subr.bf16.mxu0 %v6642
  %7745 = vmatpush1.bf16.msra.mxu0 %v6641
  %7746 = vmatprep.subr.bf16.mxu0 %v6691
  %7747 = vmatpush1.bf16.msra.mxu0 %v6690
  %7748 = vmatprep.subr.bf16.mxu0 %v6740
  %7749 = vmatpush1.bf16.msra.mxu0 %v6739
  %7750 = vmatprep.subr.bf16.mxu0 %v6789
  %7751 = vmatpush1.bf16.msra.mxu0 %v6788
  %7752 = vmatprep.subr.bf16.mxu0 0
  %7753 = vmatpush1.bf16.msra.mxu0 0
  %7754 = vmatprep.subr.bf16.mxu0 0
  %7755 = vmatpush1.bf16.msra.mxu0 0
  %7756 = vmatprep.subr.bf16.mxu0 0
  %7757 = vmatpush1.bf16.msra.mxu0 0
  %7758 = vmatprep.subr.bf16.mxu0 0
  %7759 = vmatpush1.bf16.msra.mxu0 0
  %7760 = vmatprep.subr.bf16.mxu0 0
  %7761 = vmatpush1.bf16.msra.mxu0 0
  %7762 = vmatprep.subr.bf16.mxu0 0
  %7763 = vmatpush1.bf16.msra.mxu0 0
  %7764 = vmatprep.subr.bf16.mxu0 0
  %7765 = vmatpush1.bf16.msra.mxu0 0
  %7766 = vmatprep.subr.bf16.mxu0 0
  %7767 = vmatpush1.bf16.msra.mxu0 0
  %7768 = vmatprep.mubr.bf16.mxu0 0
  %7769 = vmatmul.mubr.bf16.gmra.mrb[0].mxu0 %v4360
  %v7770 = vpop.f32.mrb[0].mxu0
  %v7771 = vadd.f32 %v5146, %v7770
  %v7772 = vpop.f32.mrb[0].mxu0
  %v7773 = vadd.f32 %v5150, %v7772
  %v7774 = vpop.f32.mrb[0].mxu0
  %v7775 = vpop.f32.mrb[0].mxu0
  %7776 = vdwg.mxu0
  %7777 = vmatprep.subr.bf16.mxu0 %v6448
  %7778 = vmatpush1.bf16.msra.mxu0 %v6447
  %7779 = vmatprep.subr.bf16.mxu0 %v6497
  %7780 = vmatpush1.bf16.msra.mxu0 %v6496
  %7781 = vmatprep.subr.bf16.mxu0 %v6546
  %7782 = vmatpush1.bf16.msra.mxu0 %v6545
  %7783 = vmatprep.subr.bf16.mxu0 %v6595
  %7784 = vmatpush1.bf16.msra.mxu0 %v6594
  %7785 = vmatprep.subr.bf16.mxu0 %v6644
  %7786 = vmatpush1.bf16.msra.mxu0 %v6643
  %7787 = vmatprep.subr.bf16.mxu0 %v6693
  %7788 = vmatpush1.bf16.msra.mxu0 %v6692
  %7789 = vmatprep.subr.bf16.mxu0 %v6742
  %7790 = vmatpush1.bf16.msra.mxu0 %v6741
  %7791 = vmatprep.subr.bf16.mxu0 %v6791
  %7792 = vmatpush1.bf16.msra.mxu0 %v6790
  %7793 = vmatprep.subr.bf16.mxu0 0
  %7794 = vmatpush1.bf16.msra.mxu0 0
  %7795 = vmatprep.subr.bf16.mxu0 0
  %7796 = vmatpush1.bf16.msra.mxu0 0
  %7797 = vmatprep.subr.bf16.mxu0 0
  %7798 = vmatpush1.bf16.msra.mxu0 0
  %7799 = vmatprep.subr.bf16.mxu0 0
  %7800 = vmatpush1.bf16.msra.mxu0 0
  %7801 = vmatprep.subr.bf16.mxu0 0
  %7802 = vmatpush1.bf16.msra.mxu0 0
  %7803 = vmatprep.subr.bf16.mxu0 0
  %7804 = vmatpush1.bf16.msra.mxu0 0
  %7805 = vmatprep.subr.bf16.mxu0 0
  %7806 = vmatpush1.bf16.msra.mxu0 0
  %7807 = vmatprep.subr.bf16.mxu0 0
  %7808 = vmatpush1.bf16.msra.mxu0 0
  %7809 = vmatprep.mubr.bf16.mxu0 0
  %7810 = vmatmul.mubr.bf16.gmra.mrb[0].mxu0 %v4360
  %v7811 = vpop.f32.mrb[0].mxu0
  %v7812 = vadd.f32 %v5154, %v7811
  %v7813 = vpop.f32.mrb[0].mxu0
  %v7814 = vadd.f32 %v5158, %v7813
  %v7815 = vpop.f32.mrb[0].mxu0
  %v7816 = vpop.f32.mrb[0].mxu0
  %7817 = vdwg.mxu0
  %7818 = vmatprep.subr.bf16.mxu0 %v6450
  %7819 = vmatpush1.bf16.msra.mxu0 %v6449
  %7820 = vmatprep.subr.bf16.mxu0 %v6499
  %7821 = vmatpush1.bf16.msra.mxu0 %v6498
  %7822 = vmatprep.subr.bf16.mxu0 %v6548
  %7823 = vmatpush1.bf16.msra.mxu0 %v6547
  %7824 = vmatprep.subr.bf16.mxu0 %v6597
  %7825 = vmatpush1.bf16.msra.mxu0 %v6596
  %7826 = vmatprep.subr.bf16.mxu0 %v6646
  %7827 = vmatpush1.bf16.msra.mxu0 %v6645
  %7828 = vmatprep.subr.bf16.mxu0 %v6695
  %7829 = vmatpush1.bf16.msra.mxu0 %v6694
  %7830 = vmatprep.subr.bf16.mxu0 %v6744
  %7831 = vmatpush1.bf16.msra.mxu0 %v6743
  %7832 = vmatprep.subr.bf16.mxu0 %v6793
  %7833 = vmatpush1.bf16.msra.mxu0 %v6792
  %7834 = vmatprep.subr.bf16.mxu0 0
  %7835 = vmatpush1.bf16.msra.mxu0 0
  %7836 = vmatprep.subr.bf16.mxu0 0
  %7837 = vmatpush1.bf16.msra.mxu0 0
  %7838 = vmatprep.subr.bf16.mxu0 0
  %7839 = vmatpush1.bf16.msra.mxu0 0
  %7840 = vmatprep.subr.bf16.mxu0 0
  %7841 = vmatpush1.bf16.msra.mxu0 0
  %7842 = vmatprep.subr.bf16.mxu0 0
  %7843 = vmatpush1.bf16.msra.mxu0 0
  %7844 = vmatprep.subr.bf16.mxu0 0
  %7845 = vmatpush1.bf16.msra.mxu0 0
  %7846 = vmatprep.subr.bf16.mxu0 0
  %7847 = vmatpush1.bf16.msra.mxu0 0
  %7848 = vmatprep.subr.bf16.mxu0 0
  %7849 = vmatpush1.bf16.msra.mxu0 0
  %7850 = vmatprep.mubr.bf16.mxu0 0
  %7851 = vmatmul.mubr.bf16.gmra.mrb[0].mxu0 %v4360
  %v7852 = vpop.f32.mrb[0].mxu0
  %v7853 = vadd.f32 %v5162, %v7852
  %v7854 = vpop.f32.mrb[0].mxu0
  %v7855 = vadd.f32 %v5166, %v7854
  %v7856 = vpop.f32.mrb[0].mxu0
  %v7857 = vpop.f32.mrb[0].mxu0
  %7858 = vdwg.mxu0
  %7859 = vmatprep.subr.bf16.mxu0 %v6452
  %7860 = vmatpush1.bf16.msra.mxu0 %v6451
  %7861 = vmatprep.subr.bf16.mxu0 %v6501
  %7862 = vmatpush1.bf16.msra.mxu0 %v6500
  %7863 = vmatprep.subr.bf16.mxu0 %v6550
  %7864 = vmatpush1.bf16.msra.mxu0 %v6549
  %7865 = vmatprep.subr.bf16.mxu0 %v6599
  %7866 = vmatpush1.bf16.msra.mxu0 %v6598
  %7867 = vmatprep.subr.bf16.mxu0 %v6648
  %7868 = vmatpush1.bf16.msra.mxu0 %v6647
  %7869 = vmatprep.subr.bf16.mxu0 %v6697
  %7870 = vmatpush1.bf16.msra.mxu0 %v6696
  %7871 = vmatprep.subr.bf16.mxu0 %v6746
  %7872 = vmatpush1.bf16.msra.mxu0 %v6745
  %7873 = vmatprep.subr.bf16.mxu0 %v6795
  %7874 = vmatpush1.bf16.msra.mxu0 %v6794
  %7875 = vmatprep.subr.bf16.mxu0 0
  %7876 = vmatpush1.bf16.msra.mxu0 0
  %7877 = vmatprep.subr.bf16.mxu0 0
  %7878 = vmatpush1.bf16.msra.mxu0 0
  %7879 = vmatprep.subr.bf16.mxu0 0
  %7880 = vmatpush1.bf16.msra.mxu0 0
  %7881 = vmatprep.subr.bf16.mxu0 0
  %7882 = vmatpush1.bf16.msra.mxu0 0
  %7883 = vmatprep.subr.bf16.mxu0 0
  %7884 = vmatpush1.bf16.msra.mxu0 0
  %7885 = vmatprep.subr.bf16.mxu0 0
  %7886 = vmatpush1.bf16.msra.mxu0 0
  %7887 = vmatprep.subr.bf16.mxu0 0
  %7888 = vmatpush1.bf16.msra.mxu0 0
  %7889 = vmatprep.subr.bf16.mxu0 0
  %7890 = vmatpush1.bf16.msra.mxu0 0
  %7891 = vmatprep.mubr.bf16.mxu0 0
  %7892 = vmatmul.mubr.bf16.gmra.mrb[0].mxu0 %v4360
  %v7893 = vpop.f32.mrb[0].mxu0
  %v7894 = vadd.f32 %v5170, %v7893
  %v7895 = vpop.f32.mrb[0].mxu0
  %v7896 = vadd.f32 %v5174, %v7895
  %v7897 = vpop.f32.mrb[0].mxu0
  %v7898 = vpop.f32.mrb[0].mxu0
  %7899 = vdwg.mxu0
  %7900 = vmatprep.subr.bf16.mxu0 %v6454
  %7901 = vmatpush1.bf16.msra.mxu0 %v6453
  %7902 = vmatprep.subr.bf16.mxu0 %v6503
  %7903 = vmatpush1.bf16.msra.mxu0 %v6502
  %7904 = vmatprep.subr.bf16.mxu0 %v6552
  %7905 = vmatpush1.bf16.msra.mxu0 %v6551
  %7906 = vmatprep.subr.bf16.mxu0 %v6601
  %7907 = vmatpush1.bf16.msra.mxu0 %v6600
  %7908 = vmatprep.subr.bf16.mxu0 %v6650
  %7909 = vmatpush1.bf16.msra.mxu0 %v6649
  %7910 = vmatprep.subr.bf16.mxu0 %v6699
  %7911 = vmatpush1.bf16.msra.mxu0 %v6698
  %7912 = vmatprep.subr.bf16.mxu0 %v6748
  %7913 = vmatpush1.bf16.msra.mxu0 %v6747
  %7914 = vmatprep.subr.bf16.mxu0 %v6797
  %7915 = vmatpush1.bf16.msra.mxu0 %v6796
  %7916 = vmatprep.subr.bf16.mxu0 0
  %7917 = vmatpush1.bf16.msra.mxu0 0
  %7918 = vmatprep.subr.bf16.mxu0 0
  %7919 = vmatpush1.bf16.msra.mxu0 0
  %7920 = vmatprep.subr.bf16.mxu0 0
  %7921 = vmatpush1.bf16.msra.mxu0 0
  %7922 = vmatprep.subr.bf16.mxu0 0
  %7923 = vmatpush1.bf16.msra.mxu0 0
  %7924 = vmatprep.subr.bf16.mxu0 0
  %7925 = vmatpush1.bf16.msra.mxu0 0
  %7926 = vmatprep.subr.bf16.mxu0 0
  %7927 = vmatpush1.bf16.msra.mxu0 0
  %7928 = vmatprep.subr.bf16.mxu0 0
  %7929 = vmatpush1.bf16.msra.mxu0 0
  %7930 = vmatprep.subr.bf16.mxu0 0
  %7931 = vmatpush1.bf16.msra.mxu0 0
  %7932 = vmatprep.mubr.bf16.mxu0 0
  %7933 = vmatmul.mubr.bf16.gmra.mrb[0].mxu0 %v4360
  %v7934 = vpop.f32.mrb[0].mxu0
  %v7935 = vadd.f32 %v5178, %v7934
  %v7936 = vpop.f32.mrb[0].mxu0
  %v7937 = vadd.f32 %v5182, %v7936
  %v7938 = vpop.f32.mrb[0].mxu0
  %v7939 = vpop.f32.mrb[0].mxu0
  %7940 = vdwg.mxu0
  %7941 = vmatprep.subr.bf16.mxu0 %v6456
  %7942 = vmatpush1.bf16.msra.mxu0 %v6455
  %7943 = vmatprep.subr.bf16.mxu0 %v6505
  %7944 = vmatpush1.bf16.msra.mxu0 %v6504
  %7945 = vmatprep.subr.bf16.mxu0 %v6554
  %7946 = vmatpush1.bf16.msra.mxu0 %v6553
  %7947 = vmatprep.subr.bf16.mxu0 %v6603
  %7948 = vmatpush1.bf16.msra.mxu0 %v6602
  %7949 = vmatprep.subr.bf16.mxu0 %v6652
  %7950 = vmatpush1.bf16.msra.mxu0 %v6651
  %7951 = vmatprep.subr.bf16.mxu0 %v6701
  %7952 = vmatpush1.bf16.msra.mxu0 %v6700
  %7953 = vmatprep.subr.bf16.mxu0 %v6750
  %7954 = vmatpush1.bf16.msra.mxu0 %v6749
  %7955 = vmatprep.subr.bf16.mxu0 %v6799
  %7956 = vmatpush1.bf16.msra.mxu0 %v6798
  %7957 = vmatprep.subr.bf16.mxu0 0
  %7958 = vmatpush1.bf16.msra.mxu0 0
  %7959 = vmatprep.subr.bf16.mxu0 0
  %7960 = vmatpush1.bf16.msra.mxu0 0
  %7961 = vmatprep.subr.bf16.mxu0 0
  %7962 = vmatpush1.bf16.msra.mxu0 0
  %7963 = vmatprep.subr.bf16.mxu0 0
  %7964 = vmatpush1.bf16.msra.mxu0 0
  %7965 = vmatprep.subr.bf16.mxu0 0
  %7966 = vmatpush1.bf16.msra.mxu0 0
  %7967 = vmatprep.subr.bf16.mxu0 0
  %7968 = vmatpush1.bf16.msra.mxu0 0
  %7969 = vmatprep.subr.bf16.mxu0 0
  %7970 = vmatpush1.bf16.msra.mxu0 0
  %7971 = vmatprep.subr.bf16.mxu0 0
  %7972 = vmatpush1.bf16.msra.mxu0 0
  %7973 = vmatprep.mubr.bf16.mxu0 0
  %7974 = vmatmul.mubr.bf16.gmra.mrb[0].mxu0 %v4360
  %v7975 = vpop.f32.mrb[0].mxu0
  %v7976 = vadd.f32 %v5186, %v7975
  %v7977 = vpop.f32.mrb[0].mxu0
  %v7978 = vadd.f32 %v5190, %v7977
  %v7979 = vpop.f32.mrb[0].mxu0
  %v7980 = vpop.f32.mrb[0].mxu0
  %7981 = vdwg.mxu0
  %7982 = vmatprep.subr.bf16.mxu0 %v6458
  %7983 = vmatpush1.bf16.msra.mxu0 %v6457
  %7984 = vmatprep.subr.bf16.mxu0 %v6507
  %7985 = vmatpush1.bf16.msra.mxu0 %v6506
  %7986 = vmatprep.subr.bf16.mxu0 %v6556
  %7987 = vmatpush1.bf16.msra.mxu0 %v6555
  %7988 = vmatprep.subr.bf16.mxu0 %v6605
  %7989 = vmatpush1.bf16.msra.mxu0 %v6604
  %7990 = vmatprep.subr.bf16.mxu0 %v6654
  %7991 = vmatpush1.bf16.msra.mxu0 %v6653
  %7992 = vmatprep.subr.bf16.mxu0 %v6703
  %7993 = vmatpush1.bf16.msra.mxu0 %v6702
  %7994 = vmatprep.subr.bf16.mxu0 %v6752
  %7995 = vmatpush1.bf16.msra.mxu0 %v6751
  %7996 = vmatprep.subr.bf16.mxu0 %v6801
  %7997 = vmatpush1.bf16.msra.mxu0 %v6800
  %7998 = vmatprep.subr.bf16.mxu0 0
  %7999 = vmatpush1.bf16.msra.mxu0 0
  %8000 = vmatprep.subr.bf16.mxu0 0
  %8001 = vmatpush1.bf16.msra.mxu0 0
  %8002 = vmatprep.subr.bf16.mxu0 0
  %8003 = vmatpush1.bf16.msra.mxu0 0
  %8004 = vmatprep.subr.bf16.mxu0 0
  %8005 = vmatpush1.bf16.msra.mxu0 0
  %8006 = vmatprep.subr.bf16.mxu0 0
  %8007 = vmatpush1.bf16.msra.mxu0 0
  %8008 = vmatprep.subr.bf16.mxu0 0
  %8009 = vmatpush1.bf16.msra.mxu0 0
  %8010 = vmatprep.subr.bf16.mxu0 0
  %8011 = vmatpush1.bf16.msra.mxu0 0
  %8012 = vmatprep.subr.bf16.mxu0 0
  %8013 = vmatpush1.bf16.msra.mxu0 0
  %8014 = vmatprep.mubr.bf16.mxu0 0
  %8015 = vmatmul.mubr.bf16.gmra.mrb[0].mxu0 %v4360
  %v8016 = vpop.f32.mrb[0].mxu0
  %v8017 = vadd.f32 %v5194, %v8016
  %v8018 = vpop.f32.mrb[0].mxu0
  %v8019 = vadd.f32 %v5198, %v8018
  %v8020 = vpop.f32.mrb[0].mxu0
  %v8021 = vpop.f32.mrb[0].mxu0
  %8022 = vdwg.mxu0
  %8023 = vmatprep.subr.bf16.mxu0 %v6460
  %8024 = vmatpush1.bf16.msra.mxu0 %v6459
  %8025 = vmatprep.subr.bf16.mxu0 %v6509
  %8026 = vmatpush1.bf16.msra.mxu0 %v6508
  %8027 = vmatprep.subr.bf16.mxu0 %v6558
  %8028 = vmatpush1.bf16.msra.mxu0 %v6557
  %8029 = vmatprep.subr.bf16.mxu0 %v6607
  %8030 = vmatpush1.bf16.msra.mxu0 %v6606
  %8031 = vmatprep.subr.bf16.mxu0 %v6656
  %8032 = vmatpush1.bf16.msra.mxu0 %v6655
  %8033 = vmatprep.subr.bf16.mxu0 %v6705
  %8034 = vmatpush1.bf16.msra.mxu0 %v6704
  %8035 = vmatprep.subr.bf16.mxu0 %v6754
  %8036 = vmatpush1.bf16.msra.mxu0 %v6753
  %8037 = vmatprep.subr.bf16.mxu0 %v6803
  %8038 = vmatpush1.bf16.msra.mxu0 %v6802
  %8039 = vmatprep.subr.bf16.mxu0 0
  %8040 = vmatpush1.bf16.msra.mxu0 0
  %8041 = vmatprep.subr.bf16.mxu0 0
  %8042 = vmatpush1.bf16.msra.mxu0 0
  %8043 = vmatprep.subr.bf16.mxu0 0
  %8044 = vmatpush1.bf16.msra.mxu0 0
  %8045 = vmatprep.subr.bf16.mxu0 0
  %8046 = vmatpush1.bf16.msra.mxu0 0
  %8047 = vmatprep.subr.bf16.mxu0 0
  %8048 = vmatpush1.bf16.msra.mxu0 0
  %8049 = vmatprep.subr.bf16.mxu0 0
  %8050 = vmatpush1.bf16.msra.mxu0 0
  %8051 = vmatprep.subr.bf16.mxu0 0
  %8052 = vmatpush1.bf16.msra.mxu0 0
  %8053 = vmatprep.subr.bf16.mxu0 0
  %8054 = vmatpush1.bf16.msra.mxu0 0
  %8055 = vmatprep.mubr.bf16.mxu0 0
  %8056 = vmatmul.mubr.bf16.gmra.mrb[0].mxu0 %v4360
  %v8057 = vpop.f32.mrb[0].mxu0
  %v8058 = vadd.f32 %v5202, %v8057
  %v8059 = vpop.f32.mrb[0].mxu0
  %v8060 = vadd.f32 %v5206, %v8059
  %v8061 = vpop.f32.mrb[0].mxu0
  %v8062 = vpop.f32.mrb[0].mxu0
  %8063 = vdwg.mxu0
  %8064 = vmatprep.subr.bf16.mxu0 %v6462
  %8065 = vmatpush1.bf16.msra.mxu0 %v6461
  %8066 = vmatprep.subr.bf16.mxu0 %v6511
  %8067 = vmatpush1.bf16.msra.mxu0 %v6510
  %8068 = vmatprep.subr.bf16.mxu0 %v6560
  %8069 = vmatpush1.bf16.msra.mxu0 %v6559
  %8070 = vmatprep.subr.bf16.mxu0 %v6609
  %8071 = vmatpush1.bf16.msra.mxu0 %v6608
  %8072 = vmatprep.subr.bf16.mxu0 %v6658
  %8073 = vmatpush1.bf16.msra.mxu0 %v6657
  %8074 = vmatprep.subr.bf16.mxu0 %v6707
  %8075 = vmatpush1.bf16.msra.mxu0 %v6706
  %8076 = vmatprep.subr.bf16.mxu0 %v6756
  %8077 = vmatpush1.bf16.msra.mxu0 %v6755
  %8078 = vmatprep.subr.bf16.mxu0 %v6805
  %8079 = vmatpush1.bf16.msra.mxu0 %v6804
  %8080 = vmatprep.subr.bf16.mxu0 0
  %8081 = vmatpush1.bf16.msra.mxu0 0
  %8082 = vmatprep.subr.bf16.mxu0 0
  %8083 = vmatpush1.bf16.msra.mxu0 0
  %8084 = vmatprep.subr.bf16.mxu0 0
  %8085 = vmatpush1.bf16.msra.mxu0 0
  %8086 = vmatprep.subr.bf16.mxu0 0
  %8087 = vmatpush1.bf16.msra.mxu0 0
  %8088 = vmatprep.subr.bf16.mxu0 0
  %8089 = vmatpush1.bf16.msra.mxu0 0
  %8090 = vmatprep.subr.bf16.mxu0 0
  %8091 = vmatpush1.bf16.msra.mxu0 0
  %8092 = vmatprep.subr.bf16.mxu0 0
  %8093 = vmatpush1.bf16.msra.mxu0 0
  %8094 = vmatprep.subr.bf16.mxu0 0
  %8095 = vmatpush1.bf16.msra.mxu0 0
  %8096 = vmatprep.mubr.bf16.mxu0 0
  %8097 = vmatmul.mubr.bf16.gmra.mrb[0].mxu0 %v4360
  %v8098 = vpop.f32.mrb[0].mxu0
  %v8099 = vadd.f32 %v5210, %v8098
  %v8100 = vpop.f32.mrb[0].mxu0
  %v8101 = vadd.f32 %v5214, %v8100
  %v8102 = vpop.f32.mrb[0].mxu0
  %v8103 = vpop.f32.mrb[0].mxu0
  %8104 = vdwg.mxu0
  %8105 = vmatprep.subr.bf16.mxu0 %v6464
  %8106 = vmatpush1.bf16.msra.mxu0 %v6463
  %8107 = vmatprep.subr.bf16.mxu0 %v6513
  %8108 = vmatpush1.bf16.msra.mxu0 %v6512
  %8109 = vmatprep.subr.bf16.mxu0 %v6562
  %8110 = vmatpush1.bf16.msra.mxu0 %v6561
  %8111 = vmatprep.subr.bf16.mxu0 %v6611
  %8112 = vmatpush1.bf16.msra.mxu0 %v6610
  %8113 = vmatprep.subr.bf16.mxu0 %v6660
  %8114 = vmatpush1.bf16.msra.mxu0 %v6659
  %8115 = vmatprep.subr.bf16.mxu0 %v6709
  %8116 = vmatpush1.bf16.msra.mxu0 %v6708
  %8117 = vmatprep.subr.bf16.mxu0 %v6758
  %8118 = vmatpush1.bf16.msra.mxu0 %v6757
  %8119 = vmatprep.subr.bf16.mxu0 %v6807
  %8120 = vmatpush1.bf16.msra.mxu0 %v6806
  %8121 = vmatprep.subr.bf16.mxu0 0
  %8122 = vmatpush1.bf16.msra.mxu0 0
  %8123 = vmatprep.subr.bf16.mxu0 0
  %8124 = vmatpush1.bf16.msra.mxu0 0
  %8125 = vmatprep.subr.bf16.mxu0 0
  %8126 = vmatpush1.bf16.msra.mxu0 0
  %8127 = vmatprep.subr.bf16.mxu0 0
  %8128 = vmatpush1.bf16.msra.mxu0 0
  %8129 = vmatprep.subr.bf16.mxu0 0
  %8130 = vmatpush1.bf16.msra.mxu0 0
  %8131 = vmatprep.subr.bf16.mxu0 0
  %8132 = vmatpush1.bf16.msra.mxu0 0
  %8133 = vmatprep.subr.bf16.mxu0 0
  %8134 = vmatpush1.bf16.msra.mxu0 0
  %8135 = vmatprep.subr.bf16.mxu0 0
  %8136 = vmatpush1.bf16.msra.mxu0 0
  %8137 = vmatprep.mubr.bf16.mxu0 0
  %8138 = vmatmul.mubr.bf16.gmra.mrb[0].mxu0 %v4360
  %v8139 = vpop.f32.mrb[0].mxu0
  %v8140 = vadd.f32 %v5218, %v8139
  %v8141 = vpop.f32.mrb[0].mxu0
  %v8142 = vadd.f32 %v5222, %v8141
  %v8143 = vpop.f32.mrb[0].mxu0
  %v8144 = vpop.f32.mrb[0].mxu0
  %8145 = vdwg.mxu0
  %8146 = vmatprep.subr.bf16.mxu0 %v6466
  %8147 = vmatpush1.bf16.msra.mxu0 %v6465
  %8148 = vmatprep.subr.bf16.mxu0 %v6515
  %8149 = vmatpush1.bf16.msra.mxu0 %v6514
  %8150 = vmatprep.subr.bf16.mxu0 %v6564
  %8151 = vmatpush1.bf16.msra.mxu0 %v6563
  %8152 = vmatprep.subr.bf16.mxu0 %v6613
  %8153 = vmatpush1.bf16.msra.mxu0 %v6612
  %8154 = vmatprep.subr.bf16.mxu0 %v6662
  %8155 = vmatpush1.bf16.msra.mxu0 %v6661
  %8156 = vmatprep.subr.bf16.mxu0 %v6711
  %8157 = vmatpush1.bf16.msra.mxu0 %v6710
  %8158 = vmatprep.subr.bf16.mxu0 %v6760
  %8159 = vmatpush1.bf16.msra.mxu0 %v6759
  %8160 = vmatprep.subr.bf16.mxu0 %v6809
  %8161 = vmatpush1.bf16.msra.mxu0 %v6808
  %8162 = vmatprep.subr.bf16.mxu0 0
  %8163 = vmatpush1.bf16.msra.mxu0 0
  %8164 = vmatprep.subr.bf16.mxu0 0
  %8165 = vmatpush1.bf16.msra.mxu0 0
  %8166 = vmatprep.subr.bf16.mxu0 0
  %8167 = vmatpush1.bf16.msra.mxu0 0
  %8168 = vmatprep.subr.bf16.mxu0 0
  %8169 = vmatpush1.bf16.msra.mxu0 0
  %8170 = vmatprep.subr.bf16.mxu0 0
  %8171 = vmatpush1.bf16.msra.mxu0 0
  %8172 = vmatprep.subr.bf16.mxu0 0
  %8173 = vmatpush1.bf16.msra.mxu0 0
  %8174 = vmatprep.subr.bf16.mxu0 0
  %8175 = vmatpush1.bf16.msra.mxu0 0
  %8176 = vmatprep.subr.bf16.mxu0 0
  %8177 = vmatpush1.bf16.msra.mxu0 0
  %8178 = vmatprep.mubr.bf16.mxu0 0
  %8179 = vmatmul.mubr.bf16.gmra.mrb[0].mxu0 %v4360
  %v8180 = vpop.f32.mrb[0].mxu0
  %v8181 = vadd.f32 %v5226, %v8180
  %v8182 = vpop.f32.mrb[0].mxu0
  %v8183 = vadd.f32 %v5230, %v8182
  %v8184 = vpop.f32.mrb[0].mxu0
  %v8185 = vpop.f32.mrb[0].mxu0
  %8186 = vdwg.mxu0
  %8187 = vmatprep.subr.bf16.mxu0 0
  %8188 = vmatpush1.bf16.msra.mxu0 %v6467
  %8189 = vmatprep.subr.bf16.mxu0 0
  %8190 = vmatpush1.bf16.msra.mxu0 %v6516
  %8191 = vmatprep.subr.bf16.mxu0 0
  %8192 = vmatpush1.bf16.msra.mxu0 %v6565
  %8193 = vmatprep.subr.bf16.mxu0 0
  %8194 = vmatpush1.bf16.msra.mxu0 %v6614
  %8195 = vmatprep.subr.bf16.mxu0 0
  %8196 = vmatpush1.bf16.msra.mxu0 %v6663
  %8197 = vmatprep.subr.bf16.mxu0 0
  %8198 = vmatpush1.bf16.msra.mxu0 %v6712
  %8199 = vmatprep.subr.bf16.mxu0 0
  %8200 = vmatpush1.bf16.msra.mxu0 %v6761
  %8201 = vmatprep.subr.bf16.mxu0 0
  %8202 = vmatpush1.bf16.msra.mxu0 %v6810
  %8203 = vmatprep.subr.bf16.mxu0 0
  %8204 = vmatpush1.bf16.msra.mxu0 0
  %8205 = vmatprep.subr.bf16.mxu0 0
  %8206 = vmatpush1.bf16.msra.mxu0 0
  %8207 = vmatprep.subr.bf16.mxu0 0
  %8208 = vmatpush1.bf16.msra.mxu0 0
  %8209 = vmatprep.subr.bf16.mxu0 0
  %8210 = vmatpush1.bf16.msra.mxu0 0
  %8211 = vmatprep.subr.bf16.mxu0 0
  %8212 = vmatpush1.bf16.msra.mxu0 0
  %8213 = vmatprep.subr.bf16.mxu0 0
  %8214 = vmatpush1.bf16.msra.mxu0 0
  %8215 = vmatprep.subr.bf16.mxu0 0
  %8216 = vmatpush1.bf16.msra.mxu0 0
  %8217 = vmatprep.subr.bf16.mxu0 0
  %8218 = vmatpush1.bf16.msra.mxu0 0
  %8219 = vmatprep.mubr.bf16.mxu0 0
  %8220 = vmatmul.mubr.bf16.gmra.mrb[0].mxu0 %v4360
  %v8221 = vpop.f32.mrb[0].mxu0
  %v8222 = vadd.f32 %v5234, %v8221
  %v8223 = vpop.f32.mrb[0].mxu0
  %v8224 = vpop.f32.mrb[0].mxu0
  %v8225 = vpop.f32.mrb[0].mxu0
  %8226 = vdwg.mxu0
  %v8227 = vpack.c.bf16 %v7238, %v7238
  %v8228 = vpack.c.bf16 %v7240, %v7240
  %v8229 = vpack.c.bf16 %v7279, %v7279
  %v8230 = vpack.c.bf16 %v7281, %v7281
  %v8231 = vpack.c.bf16 %v7320, %v7320
  %v8232 = vpack.c.bf16 %v7322, %v7322
  %v8233 = vpack.c.bf16 %v7361, %v7361
  %v8234 = vpack.c.bf16 %v7363, %v7363
  %v8235 = vpack.c.bf16 %v7402, %v7402
  %v8236 = vpack.c.bf16 %v7404, %v7404
  %v8237 = vpack.c.bf16 %v7443, %v7443
  %v8238 = vpack.c.bf16 %v7445, %v7445
  %v8239 = vpack.c.bf16 %v7484, %v7484
  %v8240 = vpack.c.bf16 %v7486, %v7486
  %v8241 = vpack.c.bf16 %v7525, %v7525
  %v8242 = vpack.c.bf16 %v7527, %v7527
  %v8243 = vpack.c.bf16 %v7566, %v7566
  %v8244 = vpack.c.bf16 %v7568, %v7568
  %v8245 = vpack.c.bf16 %v7607, %v7607
  %v8246 = vpack.c.bf16 %v7609, %v7609
  %v8247 = vpack.c.bf16 %v7648, %v7648
  %v8248 = vpack.c.bf16 %v7650, %v7650
  %v8249 = vpack.c.bf16 %v7689, %v7689
  %v8250 = vpack.c.bf16 %v7691, %v7691
  %v8251 = vpack.c.bf16 %v7730, %v7730
  %v8252 = vpack.c.bf16 %v7732, %v7732
  %v8253 = vpack.c.bf16 %v7771, %v7771
  %v8254 = vpack.c.bf16 %v7773, %v7773
  %v8255 = vpack.c.bf16 %v7812, %v7812
  %v8256 = vpack.c.bf16 %v7814, %v7814
  %v8257 = vpack.c.bf16 %v7853, %v7853
  %v8258 = vpack.c.bf16 %v7855, %v7855
  %v8259 = vpack.c.bf16 %v7894, %v7894
  %v8260 = vpack.c.bf16 %v7896, %v7896
  %v8261 = vpack.c.bf16 %v7935, %v7935
  %v8262 = vpack.c.bf16 %v7937, %v7937
  %v8263 = vpack.c.bf16 %v7976, %v7976
  %v8264 = vpack.c.bf16 %v7978, %v7978
  %v8265 = vpack.c.bf16 %v8017, %v8017
  %v8266 = vpack.c.bf16 %v8019, %v8019
  %v8267 = vpack.c.bf16 %v8058, %v8058
  %v8268 = vpack.c.bf16 %v8060, %v8060
  %v8269 = vpack.c.bf16 %v8099, %v8099
  %v8270 = vpack.c.bf16 %v8101, %v8101
  %v8271 = vpack.c.bf16 %v8140, %v8140
  %v8272 = vpack.c.bf16 %v8142, %v8142
  %v8273 = vpack.c.bf16 %v8181, %v8181
  %v8274 = vpack.c.bf16 %v8183, %v8183
  %v8275 = vpack.c.bf16 %v8222, %v8222
  %v8325 = vunpack.c.l.b16 %v8227
  %v8326 = vunpack.c.l.b16 %v8228
  %v8327 = vunpack.c.l.b16 %v8229
  %v8328 = vunpack.c.l.b16 %v8230
  %v8329 = vunpack.c.l.b16 %v8231
  %v8330 = vunpack.c.l.b16 %v8232
  %v8331 = vunpack.c.l.b16 %v8233
  %v8332 = vunpack.c.l.b16 %v8234
  %v8333 = vunpack.c.l.b16 %v8235
  %v8334 = vunpack.c.l.b16 %v8236
  %v8335 = vunpack.c.l.b16 %v8237
  %v8336 = vunpack.c.l.b16 %v8238
  %v8337 = vunpack.c.l.b16 %v8239
  %v8338 = vunpack.c.l.b16 %v8240
  %v8339 = vunpack.c.l.b16 %v8241
  %v8340 = vunpack.c.l.b16 %v8242
  %v8341 = vunpack.c.l.b16 %v8243
  %v8342 = vunpack.c.l.b16 %v8244
  %v8343 = vunpack.c.l.b16 %v8245
  %v8344 = vunpack.c.l.b16 %v8246
  %v8345 = vunpack.c.l.b16 %v8247
  %v8346 = vunpack.c.l.b16 %v8248
  %v8347 = vunpack.c.l.b16 %v8249
  %v8348 = vunpack.c.l.b16 %v8250
  %v8349 = vunpack.c.l.b16 %v8251
  %v8350 = vunpack.c.l.b16 %v8252
  %v8351 = vunpack.c.l.b16 %v8253
  %v8352 = vunpack.c.l.b16 %v8254
  %v8353 = vunpack.c.l.b16 %v8255
  %v8354 = vunpack.c.l.b16 %v8256
  %v8355 = vunpack.c.l.b16 %v8257
  %v8356 = vunpack.c.l.b16 %v8258
  %v8357 = vunpack.c.l.b16 %v8259
  %v8358 = vunpack.c.l.b16 %v8260
  %v8359 = vunpack.c.l.b16 %v8261
  %v8360 = vunpack.c.l.b16 %v8262
  %v8361 = vunpack.c.l.b16 %v8263
  %v8362 = vunpack.c.l.b16 %v8264
  %v8363 = vunpack.c.l.b16 %v8265
  %v8364 = vunpack.c.l.b16 %v8266
  %v8365 = vunpack.c.l.b16 %v8267
  %v8366 = vunpack.c.l.b16 %v8268
  %v8367 = vunpack.c.l.b16 %v8269
  %v8368 = vunpack.c.l.b16 %v8270
  %v8369 = vunpack.c.l.b16 %v8271
  %v8370 = vunpack.c.l.b16 %v8272
  %v8371 = vunpack.c.l.b16 %v8273
  %v8372 = vunpack.c.l.b16 %v8274
  %v8373 = vunpack.c.l.b16 %v8275
  %v8374 = vpack.c.b16 %v8326, %v8325
  %v8375 = vpack.c.b16 %v8328, %v8327
  %v8376 = vpack.c.b16 %v8330, %v8329
  %v8377 = vpack.c.b16 %v8332, %v8331
  %v8378 = vpack.c.b16 %v8334, %v8333
  %v8379 = vpack.c.b16 %v8336, %v8335
  %v8380 = vpack.c.b16 %v8338, %v8337
  %v8381 = vpack.c.b16 %v8340, %v8339
  %v8382 = vpack.c.b16 %v8342, %v8341
  %v8383 = vpack.c.b16 %v8344, %v8343
  %v8384 = vpack.c.b16 %v8346, %v8345
  %v8385 = vpack.c.b16 %v8348, %v8347
  %v8386 = vpack.c.b16 %v8350, %v8349
  %v8387 = vpack.c.b16 %v8352, %v8351
  %v8388 = vpack.c.b16 %v8354, %v8353
  %v8389 = vpack.c.b16 %v8356, %v8355
  %v8390 = vpack.c.b16 %v8358, %v8357
  %v8391 = vpack.c.b16 %v8360, %v8359
  %v8392 = vpack.c.b16 %v8362, %v8361
  %v8393 = vpack.c.b16 %v8364, %v8363
  %v8394 = vpack.c.b16 %v8366, %v8365
  %v8395 = vpack.c.b16 %v8368, %v8367
  %v8396 = vpack.c.b16 %v8370, %v8369
  %v8397 = vpack.c.b16 %v8372, %v8371
  %v8398 = vpack.c.b16 %v8373, %v8373
  %8424 = vst [vmem:[%s5] sm:$0xff] %v8374
  %8425 = vst [vmem:[%s5 + $0x8] sm:$0xff] %v8375
  %8426 = vst [vmem:[%s5 + $0x10] sm:$0xff] %v8376
  %8427 = vst [vmem:[%s5 + $0x18] sm:$0xff] %v8377
  %8428 = vst [vmem:[%s5 + $0x20] sm:$0xff] %v8378
  %8429 = vst [vmem:[%s5 + $0x28] sm:$0xff] %v8379
  %8430 = vst [vmem:[%s5 + $0x30] sm:$0xff] %v8380
  %8431 = vst [vmem:[%s5 + $0x38] sm:$0xff] %v8381
  %8432 = vst [vmem:[%s5 + $0x40] sm:$0xff] %v8382
  %8433 = vst [vmem:[%s5 + $0x48] sm:$0xff] %v8383
  %8434 = vst [vmem:[%s5 + $0x50] sm:$0xff] %v8384
  %8435 = vst [vmem:[%s5 + $0x58] sm:$0xff] %v8385
  %8436 = vst [vmem:[%s5 + $0x60] sm:$0xff] %v8386
  %8437 = vst [vmem:[%s5 + $0x68] sm:$0xff] %v8387
  %8438 = vst [vmem:[%s5 + $0x70] sm:$0xff] %v8388
  %8439 = vst [vmem:[%s5 + $0x78] sm:$0xff] %v8389
  %8440 = vst [vmem:[%s5 + $0x80] sm:$0xff] %v8390
  %8441 = vst [vmem:[%s5 + $0x88] sm:$0xff] %v8391
  %8442 = vst [vmem:[%s5 + $0x90] sm:$0xff] %v8392
  %8443 = vst [vmem:[%s5 + $0x98] sm:$0xff] %v8393
  %8444 = vst [vmem:[%s5 + $0xa0] sm:$0xff] %v8394
  %8445 = vst [vmem:[%s5 + $0xa8] sm:$0xff] %v8395
  %8446 = vst [vmem:[%s5 + $0xb0] sm:$0xff] %v8396
  %8447 = vst [vmem:[%s5 + $0xb8] sm:$0xff] %v8397
  %8448 = vst [vmem:[%s5 + $0xc0] sm:$0xf] %v8398
  // Predicated region
  $region22: #{image_ae_forward.7} parent=0 // pred_check
    _
  $region23: #{image_ae_forward.7} parent=0 // pred_check_branch
    %8450 = sbr.rel (0) target = $region25
  $region24: #{image_ae_forward.7} parent=0 // pred_region
    _
  $region25: #{image_ae_forward.7} parent=0 // pred_fallthru
    _
  // Predicated region
  $region26: #{image_ae_forward.7} parent=0 // pred_check
    _
  $region27: #{image_ae_forward.7} parent=0 // pred_check_branch
    %8452 = sbr.rel (0) target = $region29
  $region28: #{image_ae_forward.7} parent=0 // pred_region
    _
  $region29: #{image_ae_forward.7} parent=0 // pred_fallthru
    _

// kernel: image_ae_forward.9
$region0: #{image_ae_forward.9}
  #allocation0 [shape = 'u32[]', space=smem, size = 0x4, offset = 0x4, fixed_abs, tag = 'smem constant byte address 0x4 - core index']
  #allocation1 [shape = 'u32[144,128]{1,0:T(1,128)}', space=vmem, size = 0x12000, scoped, tag = 'internal scratch']
  %s0 = inlined_call_operand.vmem [shape: bf16[512,128], index: 0, kind: input, shape index: {}]
  %s1 = inlined_call_operand.vmem [shape: bf16[128,128], index: 1, kind: input, shape index: {}]
  %s2 = inlined_call_operand.vmem [shape: bf16[1,128], index: 2, kind: input, shape index: {}]
  %s3 = inlined_call_operand.vmem [shape: bf16[512,128], index: 3, kind: output, shape index: {}]
  %s4 = sld [smem:[#allocation0]]
  $region45: #{image_ae_forward.9} parent=0
    _
  %s6 = ssub.s32 1, %s4
  %s7 = scalar_select 0, %s6, %s4
  loop: start=0, step=1, limit=4
  $region2: #{image_ae_forward.9} parent=0 // loop_pre_header
    _
  $region3: #{image_ae_forward.9} parent=0 // loop_header
    %s9 = sphi 0, %s13
    %p10 = scmp.ge.s32.totalorder %s9, 4
    %s19 = sphi 0, %s21
    %s22 = sphi 0, %s19
    %s23 = sphi 0, %s22
    %s39 = sphi 0, %s23
    %s43 = sphi 0, %s43
    %s45 = sphi 0, %s43
    %s46 = sphi 0, %s45
    %s60 = sphi 0, %s46
    %s64 = sphi 0, %s64
    %s66 = sphi 0, %s64
    %s67 = sphi 0, %s66
    %s81 = sphi 0, %s67
    %s87 = sphi 0, %s89
    %s90 = sphi 0, %s87
    %s91 = sphi 0, %s90
    %s107 = sphi 0, %s91
  $region4: #{image_ae_forward.9} parent=0 // loop_header_branch
    %12 = sbr.rel (%p10) target = $region8
  $region5: #{image_ae_forward.9} parent=0 // loop_body
    %s14 = ssub.s32 %s9, 1
    %s15 = ssub.s32 %s9, 2
    %s16 = sadd.s32 %s9, 1
    %s17 = ssub.s32 %s9, %s16
    %p18 = scmp.eq.s32.totalorder %s17, 0
    %s20 = sadd.s32 %s19, 1
    %s21 = scalar_select %p18, %s19, %s20
    %p24 = pneg %p18
    %p25 = scmp.eq.s32.totalorder %s9, 1
    %p26 = por %p24, %p25
    %p27 = scmp.ne.s32.totalorder %s19, %s22
    %p28 = scmp.eq.s32.totalorder %s9, 0
    %p29 = por %p27, %p28
    %p30 = scmp.ne.s32.totalorder %s19, %s22
    %p31 = scmp.eq.s32.totalorder %s14, 1
    %p32 = por %p30, %p31
    %p33 = scmp.ne.s32.totalorder %s22, %s23
    %p34 = scmp.eq.s32.totalorder %s14, 0
    %p35 = por %p33, %p34
    %p36 = scmp.ne.s32.totalorder %s22, %s23
    %p37 = scmp.eq.s32.totalorder %s15, 1
    %p38 = por %p36, %p37
    %p40 = scmp.ne.s32.totalorder %s23, %s39
    %p41 = scmp.eq.s32.totalorder %s15, 0
    %p42 = por %p40, %p41
    %s44 = sadd.s32 %s43, 1
    %p47 = scmp.eq.s32.totalorder %s9, 1
    %p48 = scmp.ne.s32.totalorder %s43, %s45
    %p49 = scmp.eq.s32.totalorder %s9, 0
    %p50 = por %p48, %p49
    %p51 = scmp.ne.s32.totalorder %s43, %s45
    %p52 = scmp.eq.s32.totalorder %s14, 1
    %p53 = por %p51, %p52
    %p54 = scmp.ne.s32.totalorder %s45, %s46
    %p55 = scmp.eq.s32.totalorder %s14, 0
    %p56 = por %p54, %p55
    %p57 = scmp.ne.s32.totalorder %s45, %s46
    %p58 = scmp.eq.s32.totalorder %s15, 1
    %p59 = por %p57, %p58
    %p61 = scmp.ne.s32.totalorder %s46, %s60
    %p62 = scmp.eq.s32.totalorder %s15, 0
    %p63 = por %p61, %p62
    %s65 = sadd.s32 %s64, 1
    %p68 = scmp.eq.s32.totalorder %s9, 1
    %p69 = scmp.ne.s32.totalorder %s64, %s66
    %p70 = scmp.eq.s32.totalorder %s9, 0
    %p71 = por %p69, %p70
    %p72 = scmp.ne.s32.totalorder %s64, %s66
    %p73 = scmp.eq.s32.totalorder %s14, 1
    %p74 = por %p72, %p73
    %p75 = scmp.ne.s32.totalorder %s66, %s67
    %p76 = scmp.eq.s32.totalorder %s14, 0
    %p77 = por %p75, %p76
    %p78 = scmp.ne.s32.totalorder %s66, %s67
    %p79 = scmp.eq.s32.totalorder %s15, 1
    %p80 = por %p78, %p79
    %p82 = scmp.ne.s32.totalorder %s67, %s81
    %p83 = scmp.eq.s32.totalorder %s15, 0
    %p84 = por %p82, %p83
    %s85 = ssub.s32 %s9, %s16
    %p86 = scmp.eq.s32.totalorder %s85, 0
    %s88 = sadd.s32 %s87, 1
    %s89 = scalar_select %p86, %s87, %s88
    %p92 = pneg %p86
    %p93 = scmp.eq.s32.totalorder %s9, 1
    %p94 = por %p92, %p93
    %p95 = scmp.ne.s32.totalorder %s87, %s90
    %p96 = scmp.eq.s32.totalorder %s9, 0
    %p97 = por %p95, %p96
    %p98 = scmp.ne.s32.totalorder %s87, %s90
    %p99 = scmp.eq.s32.totalorder %s14, 1
    %p100 = por %p98, %p99
    %p101 = scmp.ne.s32.totalorder %s90, %s91
    %p102 = scmp.eq.s32.totalorder %s14, 0
    %p103 = por %p101, %p102
    %p104 = scmp.ne.s32.totalorder %s90, %s91
    %p105 = scmp.eq.s32.totalorder %s15, 1
    %p106 = por %p104, %p105
    %p108 = scmp.ne.s32.totalorder %s91, %s107
    %p109 = scmp.eq.s32.totalorder %s15, 0
    %p110 = por %p108, %p109
    %p111 = scmp.le.s32.totalorder 1, %s9
    %p112 = scmp.lt.s32.totalorder %s9, 3
    %p113 = pnand %p111, %p112
    %p114 = pneg %p113
    // Predicated region
    $region9: #{image_ae_forward.9} parent=5 // pred_check
      _
    $region10: #{image_ae_forward.9} parent=5 // pred_check_branch
      %116 = sbr.rel (%p113) target = $region12
    $region11: #{image_ae_forward.9} parent=5 // pred_region
      %s117 = ssub.s32 %s9, 1
      // Predicated region
      $region13: #{image_ae_forward.9} parent=11 // pred_check
        %p118 = pneg %p56
      $region14: #{image_ae_forward.9} parent=11 // pred_check_branch
        %120 = sbr.rel (%p118) target = $region16
      $region15: #{image_ae_forward.9} parent=11 // pred_region
        _
      $region16: #{image_ae_forward.9} parent=11 // pred_fallthru
        _
      // Predicated region
      $region17: #{image_ae_forward.9} parent=11 // pred_check
        %p121 = pneg %p77
      $region18: #{image_ae_forward.9} parent=11 // pred_check_branch
        %123 = sbr.rel (%p121) target = $region20
      $region19: #{image_ae_forward.9} parent=11 // pred_region
        _
      $region20: #{image_ae_forward.9} parent=11 // pred_fallthru
        _
    $region12: #{image_ae_forward.9} parent=5 // pred_fallthru
      _
    %p124 = scmp.lt.s32.totalorder %s9, 2
    // Predicated region
    $region21: #{image_ae_forward.9} parent=5 // pred_check
      %p125 = pneg %p124
    $region22: #{image_ae_forward.9} parent=5 // pred_check_branch
      %127 = sbr.rel (%p125) target = $region24
    $region23: #{image_ae_forward.9} parent=5 // pred_region
      // Predicated region
      $region25: #{image_ae_forward.9} parent=23 // pred_check
        %p128 = pneg %p29
      $region26: #{image_ae_forward.9} parent=23 // pred_check_branch
        %130 = sbr.rel (%p128) target = $region28
      $region27: #{image_ae_forward.9} parent=23 // pred_region
        %s131 = smul.u32 32, %s9
        %p132 = scmp.lt.s32.totalorder %s131, 63
        %s133 = scalar_select %p132, %s131, 63
        %s134 = smul.addr %s133, 4
        %s135 = scalar_lea.vmem %s0, %s134
        %s136 = smul.u32 32, %s9
      $region28: #{image_ae_forward.9} parent=23 // pred_fallthru
        _
    $region24: #{image_ae_forward.9} parent=5 // pred_fallthru
      _
    %p137 = scmp.le.s32.totalorder 1, %s9
    %p138 = scmp.lt.s32.totalorder %s9, 3
    %p139 = pnand %p137, %p138
    %p140 = pneg %p139
    // Predicated region
    $region29: #{image_ae_forward.9} parent=5 // pred_check
      _
    $region30: #{image_ae_forward.9} parent=5 // pred_check_branch
      %142 = sbr.rel (%p139) target = $region32
    $region31: #{image_ae_forward.9} parent=5 // pred_region
      %s143 = ssub.s32 %s9, 1
      %s144 = smul.u32 32, %s14
      %p145 = scmp.lt.s32.totalorder %s144, 63
      %s146 = scalar_select %p145, %s144, 63
      %s147 = smul.addr %s146, 4
      %s148 = scalar_lea.vmem %s0, %s147
      %p149 = pneg %p35
      %p150 = pneg %p32
      %p151 = pneg %p56
      %p152 = pneg %p53
      %p153 = pneg %p77
      %p154 = pneg %p74
      %p155 = pneg %p103
      %p156 = pneg %p100
      %s157 = smul.u32 32, %s14
      %p158 = scmp.lt.s32.totalorder %s157, 63
      %s159 = scalar_select %p158, %s157, 63
      %s160 = smul.addr %s159, 4
      %s161 = scalar_lea.vmem %s3, %s160
      %s162 = smul.u32 32, %s14
      %p163 = scmp.lt.s32.totalorder %s162, 63
      %s164 = scalar_select %p163, %s162, 63
      %s165 = smul.addr %s164, 4
      %s166 = scalar_lea.vmem %s0, %s165
      %s167 = smul.u32 32, %s14
      %s168 = smul.u32 32, %s14
      %p169 = scmp.lt.s32.totalorder %s168, 63
      %s170 = scalar_select %p169, %s168, 63
      %s171 = smul.addr %s170, 4
      %s172 = scalar_lea.vmem %s3, %s171
      %s173 = smul.u32 32, %s14
      %v175 = vld [vmem:[%s166] sm:$0xf]
      %v176 = vld [vmem:[%s166 + $0x4] sm:$0xf]
      %v177 = vld [vmem:[%s166 + $0x8] sm:$0xf]
      %v178 = vld [vmem:[%s166 + $0xc] sm:$0xf]
      %v179 = vld [vmem:[%s166 + $0x10] sm:$0xf]
      %v180 = vld [vmem:[%s166 + $0x14] sm:$0xf]
      %v181 = vld [vmem:[%s166 + $0x18] sm:$0xf]
      %v182 = vld [vmem:[%s166 + $0x1c] sm:$0xf]
      %v183 = vld [vmem:[%s166 + $0x20] sm:$0xf]
      %v184 = vld [vmem:[%s166 + $0x24] sm:$0xf]
      %v185 = vld [vmem:[%s166 + $0x28] sm:$0xf]
      %v186 = vld [vmem:[%s166 + $0x2c] sm:$0xf]
      %v187 = vld [vmem:[%s166 + $0x30] sm:$0xf]
      %v188 = vld [vmem:[%s166 + $0x34] sm:$0xf]
      %v189 = vld [vmem:[%s166 + $0x38] sm:$0xf]
      %v190 = vld [vmem:[%s166 + $0x3c] sm:$0xf]
      %v191 = vld [vmem:[%s166 + $0x40] sm:$0xf]
      %v192 = vld [vmem:[%s166 + $0x44] sm:$0xf]
      %v193 = vld [vmem:[%s166 + $0x48] sm:$0xf]
      %v194 = vld [vmem:[%s166 + $0x4c] sm:$0xf]
      %v195 = vld [vmem:[%s166 + $0x50] sm:$0xf]
      %v196 = vld [vmem:[%s166 + $0x54] sm:$0xf]
      %v197 = vld [vmem:[%s166 + $0x58] sm:$0xf]
      %v198 = vld [vmem:[%s166 + $0x5c] sm:$0xf]
      %v199 = vld [vmem:[%s166 + $0x60] sm:$0xf]
      %v200 = vld [vmem:[%s166 + $0x64] sm:$0xf]
      %v201 = vld [vmem:[%s166 + $0x68] sm:$0xf]
      %v202 = vld [vmem:[%s166 + $0x6c] sm:$0xf]
      %v203 = vld [vmem:[%s166 + $0x70] sm:$0xf]
      %v204 = vld [vmem:[%s166 + $0x74] sm:$0xf]
      %v205 = vld [vmem:[%s166 + $0x78] sm:$0xf]
      %v206 = vld [vmem:[%s166 + $0x7c] sm:$0xf]
      %v207 = vld [vmem:[%s1] sm:$0xf]
      %v208 = vld [vmem:[%s1 + $0x4] sm:$0xf]
      %v209 = vld [vmem:[%s1 + $0x8] sm:$0xf]
      %v210 = vld [vmem:[%s1 + $0xc] sm:$0xf]
      %v211 = vld [vmem:[%s1 + $0x10] sm:$0xf]
      %v212 = vld [vmem:[%s1 + $0x14] sm:$0xf]
      %v213 = vld [vmem:[%s1 + $0x18] sm:$0xf]
      %v214 = vld [vmem:[%s1 + $0x1c] sm:$0xf]
      %v215 = vld [vmem:[%s1 + $0x20] sm:$0xf]
      %v216 = vld [vmem:[%s1 + $0x24] sm:$0xf]
      %v217 = vld [vmem:[%s1 + $0x28] sm:$0xf]
      %v218 = vld [vmem:[%s1 + $0x2c] sm:$0xf]
      %v219 = vld [vmem:[%s1 + $0x30] sm:$0xf]
      %v220 = vld [vmem:[%s1 + $0x34] sm:$0xf]
      %v221 = vld [vmem:[%s1 + $0x38] sm:$0xf]
      %v222 = vld [vmem:[%s1 + $0x3c] sm:$0xf]
      %v223 = vld [vmem:[%s2] sm:$0x1]
      %v224 = vunpack.c.l.bf16 %v223
      %v225 = vlaneseq
      %v226 = vshrl.u32 %v225, 7
      %v227 = vsub.s32 0, %v226
      %v228 = vrot.slane %v224, %v227
      %v261 = vunpack.c.l.b16 %v175
      %v262 = vunpack.c.l.b16 %v176
      %v263 = vunpack.c.l.b16 %v177
      %v264 = vunpack.c.l.b16 %v178
      %v265 = vunpack.c.l.b16 %v179
      %v266 = vunpack.c.l.b16 %v180
      %v267 = vunpack.c.l.b16 %v181
      %v268 = vunpack.c.l.b16 %v182
      %v269 = vunpack.c.l.b16 %v183
      %v270 = vunpack.c.l.b16 %v184
      %v271 = vunpack.c.l.b16 %v185
      %v272 = vunpack.c.l.b16 %v186
      %v273 = vunpack.c.l.b16 %v187
      %v274 = vunpack.c.l.b16 %v188
      %v275 = vunpack.c.l.b16 %v189
      %v276 = vunpack.c.l.b16 %v190
      %v277 = vunpack.c.l.b16 %v191
      %v278 = vunpack.c.l.b16 %v192
      %v279 = vunpack.c.l.b16 %v193
      %v280 = vunpack.c.l.b16 %v194
      %v281 = vunpack.c.l.b16 %v195
      %v282 = vunpack.c.l.b16 %v196
      %v283 = vunpack.c.l.b16 %v197
      %v284 = vunpack.c.l.b16 %v198
      %v285 = vunpack.c.l.b16 %v199
      %v286 = vunpack.c.l.b16 %v200
      %v287 = vunpack.c.l.b16 %v201
      %v288 = vunpack.c.l.b16 %v202
      %v289 = vunpack.c.l.b16 %v203
      %v290 = vunpack.c.l.b16 %v204
      %v291 = vunpack.c.l.b16 %v205
      %v292 = vunpack.c.l.b16 %v206
      %v293 = vpack.c.b16 %v262, %v261
      %v294 = vpack.c.b16 %v264, %v263
      %v295 = vpack.c.b16 %v266, %v265
      %v296 = vpack.c.b16 %v268, %v267
      %v297 = vpack.c.b16 %v270, %v269
      %v298 = vpack.c.b16 %v272, %v271
      %v299 = vpack.c.b16 %v274, %v273
      %v300 = vpack.c.b16 %v276, %v275
      %v301 = vpack.c.b16 %v278, %v277
      %v302 = vpack.c.b16 %v280, %v279
      %v303 = vpack.c.b16 %v282, %v281
      %v304 = vpack.c.b16 %v284, %v283
      %v305 = vpack.c.b16 %v286, %v285
      %v306 = vpack.c.b16 %v288, %v287
      %v307 = vpack.c.b16 %v290, %v289
      %v308 = vpack.c.b16 %v292, %v291
      %v341 = vunpack.c.l.b16 %v207
      %v342 = vunpack.c.l.b16 %v208
      %v343 = vunpack.c.l.b16 %v209
      %v344 = vunpack.c.l.b16 %v210
      %v345 = vunpack.c.l.b16 %v211
      %v346 = vunpack.c.l.b16 %v212
      %v347 = vunpack.c.l.b16 %v213
      %v348 = vunpack.c.l.b16 %v214
      %v349 = vunpack.c.l.b16 %v215
      %v350 = vunpack.c.l.b16 %v216
      %v351 = vunpack.c.l.b16 %v217
      %v352 = vunpack.c.l.b16 %v218
      %v353 = vunpack.c.l.b16 %v219
      %v354 = vunpack.c.l.b16 %v220
      %v355 = vunpack.c.l.b16 %v221
      %v356 = vunpack.c.l.b16 %v222
      %v357 = vpack.c.b16 %v342, %v341
      %v358 = vpack.c.b16 %v344, %v343
      %v359 = vpack.c.b16 %v346, %v345
      %v360 = vpack.c.b16 %v348, %v347
      %v361 = vpack.c.b16 %v350, %v349
      %v362 = vpack.c.b16 %v352, %v351
      %v363 = vpack.c.b16 %v354, %v353
      %v364 = vpack.c.b16 %v356, %v355
      %373 = vmatprep.subr.bf16.mxu0 0
      %374 = vmatpush1.bf16.msra.mxu0 %v357
      %375 = vmatprep.subr.bf16.mxu0 0
      %376 = vmatpush1.bf16.msra.mxu0 %v358
      %377 = vmatprep.subr.bf16.mxu0 0
      %378 = vmatpush1.bf16.msra.mxu0 %v359
      %379 = vmatprep.subr.bf16.mxu0 0
      %380 = vmatpush1.bf16.msra.mxu0 %v360
      %381 = vmatprep.subr.bf16.mxu0 0
      %382 = vmatpush1.bf16.msra.mxu0 %v361
      %383 = vmatprep.subr.bf16.mxu0 0
      %384 = vmatpush1.bf16.msra.mxu0 %v362
      %385 = vmatprep.subr.bf16.mxu0 0
      %386 = vmatpush1.bf16.msra.mxu0 %v363
      %387 = vmatprep.subr.bf16.mxu0 0
      %388 = vmatpush1.bf16.msra.mxu0 %v364
      %389 = vmatprep.subr.bf16.mxu0 0
      %390 = vmatpush1.bf16.msra.mxu0 0
      %391 = vmatprep.subr.bf16.mxu0 0
      %392 = vmatpush1.bf16.msra.mxu0 0
      %393 = vmatprep.subr.bf16.mxu0 0
      %394 = vmatpush1.bf16.msra.mxu0 0
      %395 = vmatprep.subr.bf16.mxu0 0
      %396 = vmatpush1.bf16.msra.mxu0 0
      %397 = vmatprep.subr.bf16.mxu0 0
      %398 = vmatpush1.bf16.msra.mxu0 0
      %399 = vmatprep.subr.bf16.mxu0 0
      %400 = vmatpush1.bf16.msra.mxu0 0
      %401 = vmatprep.subr.bf16.mxu0 0
      %402 = vmatpush1.bf16.msra.mxu0 0
      %403 = vmatprep.subr.bf16.mxu0 0
      %404 = vmatpush1.bf16.msra.mxu0 0
      %405 = vmatprep.mubr.bf16.mxu0 0
      %406 = vmatmul.mubr.bf16.gmra.mrb[0].mxu0 %v293
      %v407 = vpop.f32.mrb[0].mxu0
      %v408 = vadd.f32 %v228, %v407
      %v409 = vpop.f32.mrb[0].mxu0
      %v410 = vpop.f32.mrb[0].mxu0
      %v411 = vadd.f32 %v228, %v410
      %v412 = vpop.f32.mrb[0].mxu0
      %413 = vmatprep.mubr.bf16.mxu0 0
      %414 = vmatmul.mubr.bf16.gmra.mrb[0].mxu0 %v294
      %v415 = vpop.f32.mrb[0].mxu0
      %v416 = vadd.f32 %v228, %v415
      %v417 = vpop.f32.mrb[0].mxu0
      %v418 = vpop.f32.mrb[0].mxu0
      %v419 = vadd.f32 %v228, %v418
      %v420 = vpop.f32.mrb[0].mxu0
      %421 = vmatprep.mubr.bf16.mxu0 0
      %422 = vmatmul.mubr.bf16.gmra.mrb[0].mxu0 %v295
      %v423 = vpop.f32.mrb[0].mxu0
      %v424 = vadd.f32 %v228, %v423
      %v425 = vpop.f32.mrb[0].mxu0
      %v426 = vpop.f32.mrb[0].mxu0
      %v427 = vadd.f32 %v228, %v426
      %v428 = vpop.f32.mrb[0].mxu0
      %429 = vmatprep.mubr.bf16.mxu0 0
      %430 = vmatmul.mubr.bf16.gmra.mrb[0].mxu0 %v296
      %v431 = vpop.f32.mrb[0].mxu0
      %v432 = vadd.f32 %v228, %v431
      %v433 = vpop.f32.mrb[0].mxu0
      %v434 = vpop.f32.mrb[0].mxu0
      %v435 = vadd.f32 %v228, %v434
      %v436 = vpop.f32.mrb[0].mxu0
      %437 = vmatprep.mubr.bf16.mxu0 0
      %438 = vmatmul.mubr.bf16.gmra.mrb[0].mxu0 %v297
      %v439 = vpop.f32.mrb[0].mxu0
      %v440 = vadd.f32 %v228, %v439
      %v441 = vpop.f32.mrb[0].mxu0
      %v442 = vpop.f32.mrb[0].mxu0
      %v443 = vadd.f32 %v228, %v442
      %v444 = vpop.f32.mrb[0].mxu0
      %445 = vmatprep.mubr.bf16.mxu0 0
      %446 = vmatmul.mubr.bf16.gmra.mrb[0].mxu0 %v298
      %v447 = vpop.f32.mrb[0].mxu0
      %v448 = vadd.f32 %v228, %v447
      %v449 = vpop.f32.mrb[0].mxu0
      %v450 = vpop.f32.mrb[0].mxu0
      %v451 = vadd.f32 %v228, %v450
      %v452 = vpop.f32.mrb[0].mxu0
      %453 = vmatprep.mubr.bf16.mxu0 0
      %454 = vmatmul.mubr.bf16.gmra.mrb[0].mxu0 %v299
      %v455 = vpop.f32.mrb[0].mxu0
      %v456 = vadd.f32 %v228, %v455
      %v457 = vpop.f32.mrb[0].mxu0
      %v458 = vpop.f32.mrb[0].mxu0
      %v459 = vadd.f32 %v228, %v458
      %v460 = vpop.f32.mrb[0].mxu0
      %461 = vmatprep.mubr.bf16.mxu0 0
      %462 = vmatmul.mubr.bf16.gmra.mrb[0].mxu0 %v300
      %v463 = vpop.f32.mrb[0].mxu0
      %v464 = vadd.f32 %v228, %v463
      %v465 = vpop.f32.mrb[0].mxu0
      %v466 = vpop.f32.mrb[0].mxu0
      %v467 = vadd.f32 %v228, %v466
      %v468 = vpop.f32.mrb[0].mxu0
      %469 = vmatprep.mubr.bf16.mxu0 0
      %470 = vmatmul.mubr.bf16.gmra.mrb[0].mxu0 %v301
      %v471 = vpop.f32.mrb[0].mxu0
      %v472 = vadd.f32 %v228, %v471
      %v473 = vpop.f32.mrb[0].mxu0
      %v474 = vpop.f32.mrb[0].mxu0
      %v475 = vadd.f32 %v228, %v474
      %v476 = vpop.f32.mrb[0].mxu0
      %477 = vmatprep.mubr.bf16.mxu0 0
      %478 = vmatmul.mubr.bf16.gmra.mrb[0].mxu0 %v302
      %v479 = vpop.f32.mrb[0].mxu0
      %v480 = vadd.f32 %v228, %v479
      %v481 = vpop.f32.mrb[0].mxu0
      %v482 = vpop.f32.mrb[0].mxu0
      %v483 = vadd.f32 %v228, %v482
      %v484 = vpop.f32.mrb[0].mxu0
      %485 = vmatprep.mubr.bf16.mxu0 0
      %486 = vmatmul.mubr.bf16.gmra.mrb[0].mxu0 %v303
      %v487 = vpop.f32.mrb[0].mxu0
      %v488 = vadd.f32 %v228, %v487
      %v489 = vpop.f32.mrb[0].mxu0
      %v490 = vpop.f32.mrb[0].mxu0
      %v491 = vadd.f32 %v228, %v490
      %v492 = vpop.f32.mrb[0].mxu0
      %493 = vmatprep.mubr.bf16.mxu0 0
      %494 = vmatmul.mubr.bf16.gmra.mrb[0].mxu0 %v304
      %v495 = vpop.f32.mrb[0].mxu0
      %v496 = vadd.f32 %v228, %v495
      %v497 = vpop.f32.mrb[0].mxu0
      %v498 = vpop.f32.mrb[0].mxu0
      %v499 = vadd.f32 %v228, %v498
      %v500 = vpop.f32.mrb[0].mxu0
      %501 = vmatprep.mubr.bf16.mxu0 0
      %502 = vmatmul.mubr.bf16.gmra.mrb[0].mxu0 %v305
      %v503 = vpop.f32.mrb[0].mxu0
      %v504 = vadd.f32 %v228, %v503
      %v505 = vpop.f32.mrb[0].mxu0
      %v506 = vpop.f32.mrb[0].mxu0
      %v507 = vadd.f32 %v228, %v506
      %v508 = vpop.f32.mrb[0].mxu0
      %509 = vmatprep.mubr.bf16.mxu0 0
      %510 = vmatmul.mubr.bf16.gmra.mrb[0].mxu0 %v306
      %v511 = vpop.f32.mrb[0].mxu0
      %v512 = vadd.f32 %v228, %v511
      %v513 = vpop.f32.mrb[0].mxu0
      %v514 = vpop.f32.mrb[0].mxu0
      %v515 = vadd.f32 %v228, %v514
      %v516 = vpop.f32.mrb[0].mxu0
      %517 = vmatprep.mubr.bf16.mxu0 0
      %518 = vmatmul.mubr.bf16.gmra.mrb[0].mxu0 %v307
      %v519 = vpop.f32.mrb[0].mxu0
      %v520 = vadd.f32 %v228, %v519
      %v521 = vpop.f32.mrb[0].mxu0
      %v522 = vpop.f32.mrb[0].mxu0
      %v523 = vadd.f32 %v228, %v522
      %v524 = vpop.f32.mrb[0].mxu0
      %525 = vmatprep.mubr.bf16.mxu0 0
      %526 = vmatmul.mubr.bf16.gmra.mrb[0].mxu0 %v308
      %v527 = vpop.f32.mrb[0].mxu0
      %v528 = vadd.f32 %v228, %v527
      %v529 = vpop.f32.mrb[0].mxu0
      %v530 = vpop.f32.mrb[0].mxu0
      %v531 = vadd.f32 %v228, %v530
      %v532 = vpop.f32.mrb[0].mxu0
      %533 = vdwg.mxu0
      %vm534 = vcmp.ge.f32.partialorder %v408, 0.0
      %vm535 = vcmp.ge.f32.partialorder %v411, 0.0
      %vm536 = vcmp.ge.f32.partialorder %v416, 0.0
      %vm537 = vcmp.ge.f32.partialorder %v419, 0.0
      %vm538 = vcmp.ge.f32.partialorder %v424, 0.0
      %vm539 = vcmp.ge.f32.partialorder %v427, 0.0
      %vm540 = vcmp.ge.f32.partialorder %v432, 0.0
      %vm541 = vcmp.ge.f32.partialorder %v435, 0.0
      %vm542 = vcmp.ge.f32.partialorder %v440, 0.0
      %vm543 = vcmp.ge.f32.partialorder %v443, 0.0
      %vm544 = vcmp.ge.f32.partialorder %v448, 0.0
      %vm545 = vcmp.ge.f32.partialorder %v451, 0.0
      %vm546 = vcmp.ge.f32.partialorder %v456, 0.0
      %vm547 = vcmp.ge.f32.partialorder %v459, 0.0
      %vm548 = vcmp.ge.f32.partialorder %v464, 0.0
      %vm549 = vcmp.ge.f32.partialorder %v467, 0.0
      %vm550 = vcmp.ge.f32.partialorder %v472, 0.0
      %vm551 = vcmp.ge.f32.partialorder %v475, 0.0
      %vm552 = vcmp.ge.f32.partialorder %v480, 0.0
      %vm553 = vcmp.ge.f32.partialorder %v483, 0.0
      %vm554 = vcmp.ge.f32.partialorder %v488, 0.0
      %vm555 = vcmp.ge.f32.partialorder %v491, 0.0
      %vm556 = vcmp.ge.f32.partialorder %v496, 0.0
      %vm557 = vcmp.ge.f32.partialorder %v499, 0.0
      %vm558 = vcmp.ge.f32.partialorder %v504, 0.0
      %vm559 = vcmp.ge.f32.partialorder %v507, 0.0
      %vm560 = vcmp.ge.f32.partialorder %v512, 0.0
      %vm561 = vcmp.ge.f32.partialorder %v515, 0.0
      %vm562 = vcmp.ge.f32.partialorder %v520, 0.0
      %vm563 = vcmp.ge.f32.partialorder %v523, 0.0
      %vm564 = vcmp.ge.f32.partialorder %v528, 0.0
      %vm565 = vcmp.ge.f32.partialorder %v531, 0.0
      %v566 = vsub.f32 0.0, %v408
      %v567 = vsub.f32 0.0, %v411
      %v568 = vsub.f32 0.0, %v416
      %v569 = vsub.f32 0.0, %v419
      %v570 = vsub.f32 0.0, %v424
      %v571 = vsub.f32 0.0, %v427
      %v572 = vsub.f32 0.0, %v432
      %v573 = vsub.f32 0.0, %v435
      %v574 = vsub.f32 0.0, %v440
      %v575 = vsub.f32 0.0, %v443
      %v576 = vsub.f32 0.0, %v448
      %v577 = vsub.f32 0.0, %v451
      %v578 = vsub.f32 0.0, %v456
      %v579 = vsub.f32 0.0, %v459
      %v580 = vsub.f32 0.0, %v464
      %v581 = vsub.f32 0.0, %v467
      %v582 = vsub.f32 0.0, %v472
      %v583 = vsub.f32 0.0, %v475
      %v584 = vsub.f32 0.0, %v480
      %v585 = vsub.f32 0.0, %v483
      %v586 = vsub.f32 0.0, %v488
      %v587 = vsub.f32 0.0, %v491
      %v588 = vsub.f32 0.0, %v496
      %v589 = vsub.f32 0.0, %v499
      %v590 = vsub.f32 0.0, %v504
      %v591 = vsub.f32 0.0, %v507
      %v592 = vsub.f32 0.0, %v512
      %v593 = vsub.f32 0.0, %v515
      %v594 = vsub.f32 0.0, %v520
      %v595 = vsub.f32 0.0, %v523
      %v596 = vsub.f32 0.0, %v528
      %v597 = vsub.f32 0.0, %v531
      %v598 = vsel %vm534, %v566, %v408
      %v599 = vsel %vm535, %v567, %v411
      %v600 = vsel %vm536, %v568, %v416
      %v601 = vsel %vm537, %v569, %v419
      %v602 = vsel %vm538, %v570, %v424
      %v603 = vsel %vm539, %v571, %v427
      %v604 = vsel %vm540, %v572, %v432
      %v605 = vsel %vm541, %v573, %v435
      %v606 = vsel %vm542, %v574, %v440
      %v607 = vsel %vm543, %v575, %v443
      %v608 = vsel %vm544, %v576, %v448
      %v609 = vsel %vm545, %v577, %v451
      %v610 = vsel %vm546, %v578, %v456
      %v611 = vsel %vm547, %v579, %v459
      %v612 = vsel %vm548, %v580, %v464
      %v613 = vsel %vm549, %v581, %v467
      %v614 = vsel %vm550, %v582, %v472
      %v615 = vsel %vm551, %v583, %v475
      %v616 = vsel %vm552, %v584, %v480
      %v617 = vsel %vm553, %v585, %v483
      %v618 = vsel %vm554, %v586, %v488
      %v619 = vsel %vm555, %v587, %v491
      %v620 = vsel %vm556, %v588, %v496
      %v621 = vsel %vm557, %v589, %v499
      %v622 = vsel %vm558, %v590, %v504
      %v623 = vsel %vm559, %v591, %v507
      %v624 = vsel %vm560, %v592, %v512
      %v625 = vsel %vm561, %v593, %v515
      %v626 = vsel %vm562, %v594, %v520
      %v627 = vsel %vm563, %v595, %v523
      %v628 = vsel %vm564, %v596, %v528
      %v629 = vsel %vm565, %v597, %v531
      %v630 = vmul.f32 %v598, 1.442695
      %v631 = vpow.pop %v630
      %v632 = vmul.f32 %v599, 1.442695
      %v633 = vpow.pop %v632
      %v634 = vmul.f32 %v600, 1.442695
      %v635 = vpow.pop %v634
      %v636 = vmul.f32 %v601, 1.442695
      %v637 = vpow.pop %v636
      %v638 = vmul.f32 %v602, 1.442695
      %v639 = vpow.pop %v638
      %v640 = vmul.f32 %v603, 1.442695
      %v641 = vpow.pop %v640
      %v642 = vmul.f32 %v604, 1.442695
      %v643 = vpow.pop %v642
      %v644 = vmul.f32 %v605, 1.442695
      %v645 = vpow.pop %v644
      %v646 = vmul.f32 %v606, 1.442695
      %v647 = vpow.pop %v646
      %v648 = vmul.f32 %v607, 1.442695
      %v649 = vpow.pop %v648
      %v650 = vmul.f32 %v608, 1.442695
      %v651 = vpow.pop %v650
      %v652 = vmul.f32 %v609, 1.442695
      %v653 = vpow.pop %v652
      %v654 = vmul.f32 %v610, 1.442695
      %v655 = vpow.pop %v654
      %v656 = vmul.f32 %v611, 1.442695
      %v657 = vpow.pop %v656
      %v658 = vmul.f32 %v612, 1.442695
      %v659 = vpow.pop %v658
      %v660 = vmul.f32 %v613, 1.442695
      %v661 = vpow.pop %v660
      %v662 = vmul.f32 %v614, 1.442695
      %v663 = vpow.pop %v662
      %v664 = vmul.f32 %v615, 1.442695
      %v665 = vpow.pop %v664
      %v666 = vmul.f32 %v616, 1.442695
      %v667 = vpow.pop %v666
      %v668 = vmul.f32 %v617, 1.442695
      %v669 = vpow.pop %v668
      %v670 = vmul.f32 %v618, 1.442695
      %v671 = vpow.pop %v670
      %v672 = vmul.f32 %v619, 1.442695
      %v673 = vpow.pop %v672
      %v674 = vmul.f32 %v620, 1.442695
      %v675 = vpow.pop %v674
      %v676 = vmul.f32 %v621, 1.442695
      %v677 = vpow.pop %v676
      %v678 = vmul.f32 %v622, 1.442695
      %v679 = vpow.pop %v678
      %v680 = vmul.f32 %v623, 1.442695
      %v681 = vpow.pop %v680
      %v682 = vmul.f32 %v624, 1.442695
      %v683 = vpow.pop %v682
      %v684 = vmul.f32 %v625, 1.442695
      %v685 = vpow.pop %v684
      %v686 = vmul.f32 %v626, 1.442695
      %v687 = vpow.pop %v686
      %v688 = vmul.f32 %v627, 1.442695
      %v689 = vpow.pop %v688
      %v690 = vmul.f32 %v628, 1.442695
      %v691 = vpow.pop %v690
      %v692 = vmul.f32 %v629, 1.442695
      %v693 = vpow.pop %v692
      %v694 = vsel %vm534, 1.0, %v631
      %v695 = vsel %vm535, 1.0, %v633
      %v696 = vsel %vm536, 1.0, %v635
      %v697 = vsel %vm537, 1.0, %v637
      %v698 = vsel %vm538, 1.0, %v639
      %v699 = vsel %vm539, 1.0, %v641
      %v700 = vsel %vm540, 1.0, %v643
      %v701 = vsel %vm541, 1.0, %v645
      %v702 = vsel %vm542, 1.0, %v647
      %v703 = vsel %vm543, 1.0, %v649
      %v704 = vsel %vm544, 1.0, %v651
      %v705 = vsel %vm545, 1.0, %v653
      %v706 = vsel %vm546, 1.0, %v655
      %v707 = vsel %vm547, 1.0, %v657
      %v708 = vsel %vm548, 1.0, %v659
      %v709 = vsel %vm549, 1.0, %v661
      %v710 = vsel %vm550, 1.0, %v663
      %v711 = vsel %vm551, 1.0, %v665
      %v712 = vsel %vm552, 1.0, %v667
      %v713 = vsel %vm553, 1.0, %v669
      %v714 = vsel %vm554, 1.0, %v671
      %v715 = vsel %vm555, 1.0, %v673
      %v716 = vsel %vm556, 1.0, %v675
      %v717 = vsel %vm557, 1.0, %v677
      %v718 = vsel %vm558, 1.0, %v679
      %v719 = vsel %vm559, 1.0, %v681
      %v720 = vsel %vm560, 1.0, %v683
      %v721 = vsel %vm561, 1.0, %v685
      %v722 = vsel %vm562, 1.0, %v687
      %v723 = vsel %vm563, 1.0, %v689
      %v724 = vsel %vm564, 1.0, %v691
      %v725 = vsel %vm565, 1.0, %v693
      %v726 = vadd.f32 %v631, 1.0
      %v727 = vadd.f32 %v633, 1.0
      %v728 = vadd.f32 %v635, 1.0
      %v729 = vadd.f32 %v637, 1.0
      %v730 = vadd.f32 %v639, 1.0
      %v731 = vadd.f32 %v641, 1.0
      %v732 = vadd.f32 %v643, 1.0
      %v733 = vadd.f32 %v645, 1.0
      %v734 = vadd.f32 %v647, 1.0
      %v735 = vadd.f32 %v649, 1.0
      %v736 = vadd.f32 %v651, 1.0
      %v737 = vadd.f32 %v653, 1.0
      %v738 = vadd.f32 %v655, 1.0
      %v739 = vadd.f32 %v657, 1.0
      %v740 = vadd.f32 %v659, 1.0
      %v741 = vadd.f32 %v661, 1.0
      %v742 = vadd.f32 %v663, 1.0
      %v743 = vadd.f32 %v665, 1.0
      %v744 = vadd.f32 %v667, 1.0
      %v745 = vadd.f32 %v669, 1.0
      %v746 = vadd.f32 %v671, 1.0
      %v747 = vadd.f32 %v673, 1.0
      %v748 = vadd.f32 %v675, 1.0
      %v749 = vadd.f32 %v677, 1.0
      %v750 = vadd.f32 %v679, 1.0
      %v751 = vadd.f32 %v681, 1.0
      %v752 = vadd.f32 %v683, 1.0
      %v753 = vadd.f32 %v685, 1.0
      %v754 = vadd.f32 %v687, 1.0
      %v755 = vadd.f32 %v689, 1.0
      %v756 = vadd.f32 %v691, 1.0
      %v757 = vadd.f32 %v693, 1.0
      %v758 = vrcp.pop %v726
      %v759 = vrcp.pop %v727
      %v760 = vrcp.pop %v728
      %v761 = vrcp.pop %v729
      %v762 = vrcp.pop %v730
      %v763 = vrcp.pop %v731
      %v764 = vrcp.pop %v732
      %v765 = vrcp.pop %v733
      %v766 = vrcp.pop %v734
      %v767 = vrcp.pop %v735
      %v768 = vrcp.pop %v736
      %v769 = vrcp.pop %v737
      %v770 = vrcp.pop %v738
      %v771 = vrcp.pop %v739
      %v772 = vrcp.pop %v740
      %v773 = vrcp.pop %v741
      %v774 = vrcp.pop %v742
      %v775 = vrcp.pop %v743
      %v776 = vrcp.pop %v744
      %v777 = vrcp.pop %v745
      %v778 = vrcp.pop %v746
      %v779 = vrcp.pop %v747
      %v780 = vrcp.pop %v748
      %v781 = vrcp.pop %v749
      %v782 = vrcp.pop %v750
      %v783 = vrcp.pop %v751
      %v784 = vrcp.pop %v752
      %v785 = vrcp.pop %v753
      %v786 = vrcp.pop %v754
      %v787 = vrcp.pop %v755
      %v788 = vrcp.pop %v756
      %v789 = vrcp.pop %v757
      %v790 = vmul.f32 %v694, %v758
      %v791 = vmul.f32 %v695, %v759
      %v792 = vmul.f32 %v696, %v760
      %v793 = vmul.f32 %v697, %v761
      %v794 = vmul.f32 %v698, %v762
      %v795 = vmul.f32 %v699, %v763
      %v796 = vmul.f32 %v700, %v764
      %v797 = vmul.f32 %v701, %v765
      %v798 = vmul.f32 %v702, %v766
      %v799 = vmul.f32 %v703, %v767
      %v800 = vmul.f32 %v704, %v768
      %v801 = vmul.f32 %v705, %v769
      %v802 = vmul.f32 %v706, %v770
      %v803 = vmul.f32 %v707, %v771
      %v804 = vmul.f32 %v708, %v772
      %v805 = vmul.f32 %v709, %v773
      %v806 = vmul.f32 %v710, %v774
      %v807 = vmul.f32 %v711, %v775
      %v808 = vmul.f32 %v712, %v776
      %v809 = vmul.f32 %v713, %v777
      %v810 = vmul.f32 %v714, %v778
      %v811 = vmul.f32 %v715, %v779
      %v812 = vmul.f32 %v716, %v780
      %v813 = vmul.f32 %v717, %v781
      %v814 = vmul.f32 %v718, %v782
      %v815 = vmul.f32 %v719, %v783
      %v816 = vmul.f32 %v720, %v784
      %v817 = vmul.f32 %v721, %v785
      %v818 = vmul.f32 %v722, %v786
      %v819 = vmul.f32 %v723, %v787
      %v820 = vmul.f32 %v724, %v788
      %v821 = vmul.f32 %v725, %v789
      %v822 = vmax.f32 %v790, 0.0
      %v823 = vmax.f32 %v791, 0.0
      %v824 = vmax.f32 %v792, 0.0
      %v825 = vmax.f32 %v793, 0.0
      %v826 = vmax.f32 %v794, 0.0
      %v827 = vmax.f32 %v795, 0.0
      %v828 = vmax.f32 %v796, 0.0
      %v829 = vmax.f32 %v797, 0.0
      %v830 = vmax.f32 %v798, 0.0
      %v831 = vmax.f32 %v799, 0.0
      %v832 = vmax.f32 %v800, 0.0
      %v833 = vmax.f32 %v801, 0.0
      %v834 = vmax.f32 %v802, 0.0
      %v835 = vmax.f32 %v803, 0.0
      %v836 = vmax.f32 %v804, 0.0
      %v837 = vmax.f32 %v805, 0.0
      %v838 = vmax.f32 %v806, 0.0
      %v839 = vmax.f32 %v807, 0.0
      %v840 = vmax.f32 %v808, 0.0
      %v841 = vmax.f32 %v809, 0.0
      %v842 = vmax.f32 %v810, 0.0
      %v843 = vmax.f32 %v811, 0.0
      %v844 = vmax.f32 %v812, 0.0
      %v845 = vmax.f32 %v813, 0.0
      %v846 = vmax.f32 %v814, 0.0
      %v847 = vmax.f32 %v815, 0.0
      %v848 = vmax.f32 %v816, 0.0
      %v849 = vmax.f32 %v817, 0.0
      %v850 = vmax.f32 %v818, 0.0
      %v851 = vmax.f32 %v819, 0.0
      %v852 = vmax.f32 %v820, 0.0
      %v853 = vmax.f32 %v821, 0.0
      %v854 = vmin.f32 %v822, 1.0
      %v855 = vmin.f32 %v823, 1.0
      %v856 = vmin.f32 %v824, 1.0
      %v857 = vmin.f32 %v825, 1.0
      %v858 = vmin.f32 %v826, 1.0
      %v859 = vmin.f32 %v827, 1.0
      %v860 = vmin.f32 %v828, 1.0
      %v861 = vmin.f32 %v829, 1.0
      %v862 = vmin.f32 %v830, 1.0
      %v863 = vmin.f32 %v831, 1.0
      %v864 = vmin.f32 %v832, 1.0
      %v865 = vmin.f32 %v833, 1.0
      %v866 = vmin.f32 %v834, 1.0
      %v867 = vmin.f32 %v835, 1.0
      %v868 = vmin.f32 %v836, 1.0
      %v869 = vmin.f32 %v837, 1.0
      %v870 = vmin.f32 %v838, 1.0
      %v871 = vmin.f32 %v839, 1.0
      %v872 = vmin.f32 %v840, 1.0
      %v873 = vmin.f32 %v841, 1.0
      %v874 = vmin.f32 %v842, 1.0
      %v875 = vmin.f32 %v843, 1.0
      %v876 = vmin.f32 %v844, 1.0
      %v877 = vmin.f32 %v845, 1.0
      %v878 = vmin.f32 %v846, 1.0
      %v879 = vmin.f32 %v847, 1.0
      %v880 = vmin.f32 %v848, 1.0
      %v881 = vmin.f32 %v849, 1.0
      %v882 = vmin.f32 %v850, 1.0
      %v883 = vmin.f32 %v851, 1.0
      %v884 = vmin.f32 %v852, 1.0
      %v885 = vmin.f32 %v853, 1.0
      %v886 = vpack.c.bf16 %v855, %v854
      %v887 = vpack.c.bf16 %v857, %v856
      %v888 = vpack.c.bf16 %v859, %v858
      %v889 = vpack.c.bf16 %v861, %v860
      %v890 = vpack.c.bf16 %v863, %v862
      %v891 = vpack.c.bf16 %v865, %v864
      %v892 = vpack.c.bf16 %v867, %v866
      %v893 = vpack.c.bf16 %v869, %v868
      %v894 = vpack.c.bf16 %v871, %v870
      %v895 = vpack.c.bf16 %v873, %v872
      %v896 = vpack.c.bf16 %v875, %v874
      %v897 = vpack.c.bf16 %v877, %v876
      %v898 = vpack.c.bf16 %v879, %v878
      %v899 = vpack.c.bf16 %v881, %v880
      %v900 = vpack.c.bf16 %v883, %v882
      %v901 = vpack.c.bf16 %v885, %v884
      %v918 = vunpack.c.l.b16 %v886
      %v919 = vunpack.c.h.b16 %v886
      %v920 = vunpack.c.l.b16 %v887
      %v921 = vunpack.c.h.b16 %v887
      %v922 = vunpack.c.l.b16 %v888
      %v923 = vunpack.c.h.b16 %v888
      %v924 = vunpack.c.l.b16 %v889
      %v925 = vunpack.c.h.b16 %v889
      %v926 = vunpack.c.l.b16 %v890
      %v927 = vunpack.c.h.b16 %v890
      %v928 = vunpack.c.l.b16 %v891
      %v929 = vunpack.c.h.b16 %v891
      %v930 = vunpack.c.l.b16 %v892
      %v931 = vunpack.c.h.b16 %v892
      %v932 = vunpack.c.l.b16 %v893
      %v933 = vunpack.c.h.b16 %v893
      %v934 = vunpack.c.l.b16 %v894
      %v935 = vunpack.c.h.b16 %v894
      %v936 = vunpack.c.l.b16 %v895
      %v937 = vunpack.c.h.b16 %v895
      %v938 = vunpack.c.l.b16 %v896
      %v939 = vunpack.c.h.b16 %v896
      %v940 = vunpack.c.l.b16 %v897
      %v941 = vunpack.c.h.b16 %v897
      %v942 = vunpack.c.l.b16 %v898
      %v943 = vunpack.c.h.b16 %v898
      %v944 = vunpack.c.l.b16 %v899
      %v945 = vunpack.c.h.b16 %v899
      %v946 = vunpack.c.l.b16 %v900
      %v947 = vunpack.c.h.b16 %v900
      %v948 = vunpack.c.l.b16 %v901
      %v949 = vunpack.c.h.b16 %v901
      %v950 = vpack.c.b16 %v918, %v918
      %v951 = vpack.c.b16 %v919, %v919
      %v952 = vpack.c.b16 %v920, %v920
      %v953 = vpack.c.b16 %v921, %v921
      %v954 = vpack.c.b16 %v922, %v922
      %v955 = vpack.c.b16 %v923, %v923
      %v956 = vpack.c.b16 %v924, %v924
      %v957 = vpack.c.b16 %v925, %v925
      %v958 = vpack.c.b16 %v926, %v926
      %v959 = vpack.c.b16 %v927, %v927
      %v960 = vpack.c.b16 %v928, %v928
      %v961 = vpack.c.b16 %v929, %v929
      %v962 = vpack.c.b16 %v930, %v930
      %v963 = vpack.c.b16 %v931, %v931
      %v964 = vpack.c.b16 %v932, %v932
      %v965 = vpack.c.b16 %v933, %v933
      %v966 = vpack.c.b16 %v934, %v934
      %v967 = vpack.c.b16 %v935, %v935
      %v968 = vpack.c.b16 %v936, %v936
      %v969 = vpack.c.b16 %v937, %v937
      %v970 = vpack.c.b16 %v938, %v938
      %v971 = vpack.c.b16 %v939, %v939
      %v972 = vpack.c.b16 %v940, %v940
      %v973 = vpack.c.b16 %v941, %v941
      %v974 = vpack.c.b16 %v942, %v942
      %v975 = vpack.c.b16 %v943, %v943
      %v976 = vpack.c.b16 %v944, %v944
      %v977 = vpack.c.b16 %v945, %v945
      %v978 = vpack.c.b16 %v946, %v946
      %v979 = vpack.c.b16 %v947, %v947
      %v980 = vpack.c.b16 %v948, %v948
      %v981 = vpack.c.b16 %v949, %v949
      %1014 = vst [vmem:[%s172] sm:$0xf] %v950
      %1015 = vst [vmem:[%s172 + $0x4] sm:$0xf] %v951
      %1016 = vst [vmem:[%s172 + $0x8] sm:$0xf] %v952
      %1017 = vst [vmem:[%s172 + $0xc] sm:$0xf] %v953
      %1018 = vst [vmem:[%s172 + $0x10] sm:$0xf] %v954
      %1019 = vst [vmem:[%s172 + $0x14] sm:$0xf] %v955
      %1020 = vst [vmem:[%s172 + $0x18] sm:$0xf] %v956
      %1021 = vst [vmem:[%s172 + $0x1c] sm:$0xf] %v957
      %1022 = vst [vmem:[%s172 + $0x20] sm:$0xf] %v958
      %1023 = vst [vmem:[%s172 + $0x24] sm:$0xf] %v959
      %1024 = vst [vmem:[%s172 + $0x28] sm:$0xf] %v960
      %1025 = vst [vmem:[%s172 + $0x2c] sm:$0xf] %v961
      %1026 = vst [vmem:[%s172 + $0x30] sm:$0xf] %v962
      %1027 = vst [vmem:[%s172 + $0x34] sm:$0xf] %v963
      %1028 = vst [vmem:[%s172 + $0x38] sm:$0xf] %v964
      %1029 = vst [vmem:[%s172 + $0x3c] sm:$0xf] %v965
      %1030 = vst [vmem:[%s172 + $0x40] sm:$0xf] %v966
      %1031 = vst [vmem:[%s172 + $0x44] sm:$0xf] %v967
      %1032 = vst [vmem:[%s172 + $0x48] sm:$0xf] %v968
      %1033 = vst [vmem:[%s172 + $0x4c] sm:$0xf] %v969
      %1034 = vst [vmem:[%s172 + $0x50] sm:$0xf] %v970
      %1035 = vst [vmem:[%s172 + $0x54] sm:$0xf] %v971
      %1036 = vst [vmem:[%s172 + $0x58] sm:$0xf] %v972
      %1037 = vst [vmem:[%s172 + $0x5c] sm:$0xf] %v973
      %1038 = vst [vmem:[%s172 + $0x60] sm:$0xf] %v974
      %1039 = vst [vmem:[%s172 + $0x64] sm:$0xf] %v975
      %1040 = vst [vmem:[%s172 + $0x68] sm:$0xf] %v976
      %1041 = vst [vmem:[%s172 + $0x6c] sm:$0xf] %v977
      %1042 = vst [vmem:[%s172 + $0x70] sm:$0xf] %v978
      %1043 = vst [vmem:[%s172 + $0x74] sm:$0xf] %v979
      %1044 = vst [vmem:[%s172 + $0x78] sm:$0xf] %v980
      %1045 = vst [vmem:[%s172 + $0x7c] sm:$0xf] %v981
      %s1046 = smul.u32 32, %s14
      %p1047 = scmp.lt.s32.totalorder %s1046, 63
      %s1048 = scalar_select %p1047, %s1046, 63
      %s1049 = smul.addr %s1048, 4
      %s1050 = scalar_lea.vmem %s3, %s1049
      // Predicated region
      $region33: #{image_ae_forward.9} parent=31 // pred_check
        %p1051 = pneg %p100
      $region34: #{image_ae_forward.9} parent=31 // pred_check_branch
        %1053 = sbr.rel (%p1051) target = $region36
      $region35: #{image_ae_forward.9} parent=31 // pred_region
        %s1054 = smul.u32 32, %s14
      $region36: #{image_ae_forward.9} parent=31 // pred_fallthru
        _
    $region32: #{image_ae_forward.9} parent=5 // pred_fallthru
      _
    %p1055 = scmp.le.s32.totalorder 2, %s9
    // Predicated region
    $region37: #{image_ae_forward.9} parent=5 // pred_check
      %p1056 = pneg %p1055
    $region38: #{image_ae_forward.9} parent=5 // pred_check_branch
      %1058 = sbr.rel (%p1056) target = $region40
    $region39: #{image_ae_forward.9} parent=5 // pred_region
      %s1059 = ssub.s32 %s9, 2
      // Predicated region
      $region41: #{image_ae_forward.9} parent=39 // pred_check
        %p1060 = pneg %p106
      $region42: #{image_ae_forward.9} parent=39 // pred_check_branch
        %1062 = sbr.rel (%p1060) target = $region44
      $region43: #{image_ae_forward.9} parent=39 // pred_region
        %s1063 = smul.u32 32, %s15
        %p1064 = scmp.lt.s32.totalorder %s1063, 63
        %s1065 = scalar_select %p1064, %s1063, 63
        %s1066 = smul.addr %s1065, 4
        %s1067 = scalar_lea.vmem %s3, %s1066
      $region44: #{image_ae_forward.9} parent=39 // pred_fallthru
        _
    $region40: #{image_ae_forward.9} parent=5 // pred_fallthru
      _
  $region6: #{image_ae_forward.9} parent=0 // loop_footer
    %s13 = sadd.s32 1, %s9
  $region7: #{image_ae_forward.9} parent=0 // loop_footer_branch
    %8 = sbr.rel target = $region3
  $region8: #{image_ae_forward.9} parent=0 // loop_exit
    _

</llo_original>
